<compile_context>
chip_gen: v5e
topology: v5e:2x2
jax: 0.10.0
libtpu: 0.0.40
codegen_flags: <defaults>
</compile_context>

<pallas_src>
import functools

import jax
import jax.numpy as jnp
import numpy as np
from jax.experimental import pallas as pl
from jax.experimental.pallas import tpu as pltpu

BN_EPS = 1e-5
CPAD = 128  # lane-dense channel / feature padding

# (cout, cin, k, stride, pad, relu_after_bn) -- mirrors the nn.Sequential.
LAYER_CFG = [
    (16, 1, 5, 2, 1, True),
    (32, 16, 5, 2, 1, True),
    (64, 32, 3, 2, 1, True),
    (10, 64, 3, 3, 0, False),
]


# ---------------------------------------------------------------------------
# Fused Pallas kernel
# ---------------------------------------------------------------------------
def _bn_act(y, gamma, beta, relu):
    # BatchNorm2d in training mode: per-channel stats over rows = (N, Ho, Wo).
    # Padded channels have y == 0, gamma == beta == 0 -> output stays 0, no NaN.
    mu = jnp.mean(y, axis=0, keepdims=True)
    var = jnp.mean((y - mu) * (y - mu), axis=0, keepdims=True)
    out = gamma * (y - mu) * jax.lax.rsqrt(var + BN_EPS) + beta
    if relu:
        out = jnp.maximum(out, 0.0)
    return out


def fused_cnn_kernel(layer_cfg, *refs):
    """layer_cfg: static tuple of (num_taps, relu_after_bn) per layer.

    refs layout:
      patches1 (M1, 128), w1 (128, 128), gamma1 (1, 128), beta1 (1, 128),
      then for each later layer:
        gather (taps, M_out, M_in), tap_w (taps, 128, 128), gamma, beta,
      finally the output ref (M_last, 128).
    """
    o_ref = refs[-1]
    p1_ref, w1_ref, g1_ref, b1_ref = refs[:4]

    # ---- Layer 1: im2col GEMM (patches built host-side, K zero-padded). ----
    y = jnp.dot(p1_ref[...], w1_ref[...], preferred_element_type=jnp.float32)
    act = _bn_act(y, g1_ref[...], b1_ref[...], relu=layer_cfg[0][1])

    # ---- Layers 2..: in-kernel im2col via per-tap 0/1 gather matmuls. ------
    idx = 4
    for taps, relu in layer_cfg[1:]:
        gm_ref, wt_ref, g_ref, b_ref = refs[idx:idx + 4]
        idx += 4
        m_out = gm_ref.shape[1]
        y = jnp.zeros((m_out, CPAD), jnp.float32)
        for t in range(taps):            # statically unrolled (<= 25 taps)
            x_tap = jnp.dot(gm_ref[t], act, preferred_element_type=jnp.float32)
            y = y + jnp.dot(x_tap, wt_ref[t], preferred_element_type=jnp.float32)
        act = _bn_act(y, g_ref[...], b_ref[...], relu=relu)

    o_ref[...] = act


# ---------------------------------------------------------------------------
# Host-side prep (static, depends only on params + shapes)
# ---------------------------------------------------------------------------
def _conv_out(size, k, s, p):
    return (size + 2 * p - k) // s + 1


def im2col(x, kh, kw, stride, pad):
    # x: NCHW. Rows ordered (N, Ho, Wo); features ordered (Cin, kh, kw) to
    # match PyTorch's OIHW weight flattening.
    N, C, H, W = x.shape
    xp = jnp.pad(x, ((0, 0), (0, 0), (pad, pad), (pad, pad)))
    Ho = _conv_out(H, kh, stride, pad)
    Wo = _conv_out(W, kw, stride, pad)
    cols = []
    for i in range(kh):
        for j in range(kw):
            cols.append(xp[:, :, i:i + stride * Ho:stride, j:j + stride * Wo:stride])
    patches = jnp.stack(cols, axis=0).reshape(kh, kw, N, C, Ho, Wo)
    patches = patches.transpose(2, 4, 5, 3, 0, 1).reshape(N * Ho * Wo, C * kh * kw)
    return patches, Ho, Wo


def _gather_matrices(n, hi, wi, ho, wo, k, stride, pad):
    """G[t, r_out, r_in] = 1 iff output row r_out's tap t reads input row r_in
    (rows ordered (N, H, W)); padding taps leave the row all-zero."""
    g = np.zeros((k * k, n * ho * wo, n * hi * wi), np.float32)
    for i in range(k):
        for j in range(k):
            t = i * k + j
            for b in range(n):
                for oh in range(ho):
                    ih = oh * stride - pad + i
                    if ih < 0 or ih >= hi:
                        continue
                    for ow in range(wo):
                        iw = ow * stride - pad + j
                        if iw < 0 or iw >= wi:
                            continue
                        g[t, (b * ho + oh) * wo + ow, (b * hi + ih) * wi + iw] = 1.0
    return g


def _pad_vec(v, c):
    out = np.zeros((1, CPAD), np.float32)
    out[0, :c] = np.asarray(v, np.float32)
    return jnp.asarray(out)


def prepare_model(params, batch, height, width):
    """Precompute padded weights, BN params and gather matrices (all static)."""
    hs, ws = [height], [width]
    for (w, _, _, _, stride, pad, _) in params:
        k = w.shape[2]
        hs.append(_conv_out(hs[-1], k, stride, pad))
        ws.append(_conv_out(ws[-1], k, stride, pad))

    # Layer 1: dense (K, Cout) weight, both dims zero-padded to 128.
    w1, _, g1, bt1, s1, p1, _ = params[0]
    cout1, cin1, k1, _ = w1.shape
    w1mat = np.zeros((CPAD, CPAD), np.float32)
    w1mat[:cin1 * k1 * k1, :cout1] = np.asarray(w1, np.float32).reshape(cout1, -1).T
    args = [jnp.asarray(w1mat), _pad_vec(g1, cout1), _pad_vec(bt1, cout1)]

    # Layers 2..: gather matrices + per-tap (Cin, Cout) weights padded to 128x128.
    for li in range(1, len(params)):
        w, _, g, bt, stride, pad, _ = params[li]
        cout, cin, k, _ = w.shape
        gmat = _gather_matrices(batch, hs[li], ws[li], hs[li + 1], ws[li + 1],
                                k, stride, pad)
        wtap = np.zeros((k * k, CPAD, CPAD), np.float32)
        wnp = np.asarray(w, np.float32)
        for i in range(k):
            for j in range(k):
                wtap[i * k + j, :cin, :cout] = wnp[:, :, i, j].T
        args += [jnp.asarray(gmat), jnp.asarray(wtap),
                 _pad_vec(g, cout), _pad_vec(bt, cout)]

    meta = dict(
        layer_cfg=tuple((w.shape[2] * w.shape[2], relu)
                        for (w, _, _, _, _, _, relu) in params),
        k1=k1, s1=s1, p1=p1,
        batch=batch, h_out=hs[-1], w_out=ws[-1],
        cout_last=params[-1][0].shape[0],
    )
    return dict(args=tuple(args), meta=meta)


# ---------------------------------------------------------------------------
# Forward pass
# ---------------------------------------------------------------------------
def cnn_forward_pallas(x, prepared):
    meta = prepared['meta']
    patches, _, _ = im2col(x, meta['k1'], meta['k1'], meta['s1'], meta['p1'])
    kfeat = patches.shape[1]
    patches = jnp.pad(patches, ((0, 0), (0, CPAD - kfeat)))  # lane-dense K

    n, ho, wo, cout = meta['batch'], meta['h_out'], meta['w_out'], meta['cout_last']
    m_out = n * ho * wo
    out = pl.pallas_call(
        functools.partial(fused_cnn_kernel, meta['layer_cfg']),
        out_shape=jax.ShapeDtypeStruct((m_out, CPAD), jnp.float32),
        in_specs=[pl.BlockSpec(memory_space=pltpu.MemorySpace.VMEM)]
                 * (1 + len(prepared['args'])),
        out_specs=pl.BlockSpec(memory_space=pltpu.MemorySpace.VMEM),
        compiler_params=pltpu.CompilerParams(vmem_limit_bytes=32 * 1024 * 1024),
    )(patches, *prepared['args'])

    # Rows are (N, Ho, Wo); emulate nn.Flatten() on NCHW (here Ho=Wo=1 -> (N, 10)).
    out = out[:, :cout].reshape(n, ho, wo, cout).transpose(0, 3, 1, 2)
    return out.reshape(n, -1)


# ---------------------------------------------------------------------------
# Parameters + pure-JAX reference (with bias, for the cancellation check)
# ---------------------------------------------------------------------------
def init_params(key):
    params = []
    for (cout, cin, k, stride, pad, relu) in LAYER_CFG:
        key, kw_key, kb_key = jax.random.split(key, 3)
        w = 0.1 * jax.random.normal(kw_key, (cout, cin, k, k), jnp.float32)
        b = 0.05 * jax.random.normal(kb_key, (cout,), jnp.float32)
        gamma = jnp.ones((cout,), jnp.float32)
        beta = jnp.zeros((cout,), jnp.float32)
        params.append((w, b, gamma, beta, stride, pad, relu))
    return params


def cnn_forward_ref(x, params):
    h = x
    for (w, b, gamma, beta, stride, pad, relu) in params:
        h = jax.lax.conv_general_dilated(
            h, w, (stride, stride), [(pad, pad), (pad, pad)],
            dimension_numbers=('NCHW', 'OIHW', 'NCHW'))
        h = h + b[None, :, None, None]
        mu = h.mean(axis=(0, 2, 3), keepdims=True)
        var = ((h - mu) ** 2).mean(axis=(0, 2, 3), keepdims=True)
        h = gamma[None, :, None, None] * (h - mu) * jax.lax.rsqrt(var + BN_EPS) \
            + beta[None, :, None, None]
        if relu:
            h = jnp.maximum(h, 0.0)
    return h.reshape(h.shape[0], -1)


if __name__ == "__main__":
    key = jax.random.PRNGKey(0)
    key, xkey = jax.random.split(key)
    # MNIST-like input implied by the final 3x3/stride-3 conv: (N, 1, 28, 28)
    x = jax.random.normal(xkey, (2, 1, 28, 28), jnp.float32)

    params = init_params(key)
    prepared = prepare_model(params, batch=x.shape[0],
                             height=x.shape[2], width=x.shape[3])
    forward = jax.jit(functools.partial(cnn_forward_pallas, prepared=prepared))

    out = jax.block_until_ready(forward(x))
    ref = jax.block_until_ready(cnn_forward_ref(x, params))

    assert out.shape == (2, 10), out.shape
    assert jnp.allclose(out, ref, rtol=1e-3, atol=1e-3), \
        f"max diff {jnp.max(jnp.abs(out - ref))}"

    print("KERNEL_OK")
</pallas_src>

<mosaic_0001>
module attributes {stable_mosaic.version = 11 : i64} {
  func.func @fused_cnn_kernel(%arg0: memref<338x128xf32, #tpu.memory_space<vmem>>, %arg1: memref<128x128xf32, #tpu.memory_space<vmem>>, %arg2: memref<1x128xf32, #tpu.memory_space<vmem>>, %arg3: memref<1x128xf32, #tpu.memory_space<vmem>>, %arg4: memref<25x72x338xf32, #tpu.memory_space<vmem>>, %arg5: memref<25x128x128xf32, #tpu.memory_space<vmem>>, %arg6: memref<1x128xf32, #tpu.memory_space<vmem>>, %arg7: memref<1x128xf32, #tpu.memory_space<vmem>>, %arg8: memref<9x18x72xf32, #tpu.memory_space<vmem>>, %arg9: memref<9x128x128xf32, #tpu.memory_space<vmem>>, %arg10: memref<1x128xf32, #tpu.memory_space<vmem>>, %arg11: memref<1x128xf32, #tpu.memory_space<vmem>>, %arg12: memref<9x2x18xf32, #tpu.memory_space<vmem>>, %arg13: memref<9x128x128xf32, #tpu.memory_space<vmem>>, %arg14: memref<1x128xf32, #tpu.memory_space<vmem>>, %arg15: memref<1x128xf32, #tpu.memory_space<vmem>>, %arg16: memref<2x128xf32, #tpu.memory_space<vmem>>) attributes {dimension_semantics = [], scalar_prefetch = 0 : i64, scratch_operands = 0 : i64, tpu.core_type = #tpu.core_type<tc>} {
    %c0 = arith.constant 0 : index
    %c0_0 = arith.constant 0 : index
    %0 = vector.load %arg0[%c0, %c0_0] : memref<338x128xf32, #tpu.memory_space<vmem>>, vector<338x128xf32>
    %c0_1 = arith.constant 0 : index
    %c0_2 = arith.constant 0 : index
    %1 = vector.load %arg1[%c0_1, %c0_2] : memref<128x128xf32, #tpu.memory_space<vmem>>, vector<128x128xf32>
    %cst = arith.constant dense<0.000000e+00> : vector<338x128xf32>
    %2 = tpu.matmul %0, %1, %cst {dimension_numbers = #tpu.dot_dimension_numbers<[1], [0], [0], [1], [0, 0, 1, 1], [], []>} : vector<338x128xf32>, vector<128x128xf32>, vector<338x128xf32> -> vector<338x128xf32>
    %c0_3 = arith.constant 0 : index
    %c0_4 = arith.constant 0 : index
    %3 = vector.load %arg2[%c0_3, %c0_4] : memref<1x128xf32, #tpu.memory_space<vmem>>, vector<1x128xf32>
    %c0_5 = arith.constant 0 : index
    %c0_6 = arith.constant 0 : index
    %4 = vector.load %arg3[%c0_5, %c0_6] : memref<1x128xf32, #tpu.memory_space<vmem>>, vector<1x128xf32>
    %cst_7 = arith.constant dense<0.000000e+00> : vector<128xf32>
    %5 = vector.multi_reduction <add>, %2, %cst_7 [0] : vector<338x128xf32> to vector<128xf32>
    %6 = vector.shape_cast %5 : vector<128xf32> to vector<1x128xf32>
    %cst_8 = arith.constant 3.380000e+02 : f32
    %7 = vector.broadcast %cst_8 : f32 to vector<1x128xf32>
    %8 = arith.divf %6, %7 : vector<1x128xf32>
    %9 = vector.broadcast %8 : vector<1x128xf32> to vector<338x128xf32>
    %10 = arith.subf %2, %9 : vector<338x128xf32>
    %11 = vector.broadcast %8 : vector<1x128xf32> to vector<338x128xf32>
    %12 = arith.subf %2, %11 : vector<338x128xf32>
    %13 = arith.mulf %10, %12 : vector<338x128xf32>
    %cst_9 = arith.constant dense<0.000000e+00> : vector<128xf32>
    %14 = vector.multi_reduction <add>, %13, %cst_9 [0] : vector<338x128xf32> to vector<128xf32>
    %15 = vector.shape_cast %14 : vector<128xf32> to vector<1x128xf32>
    %cst_10 = arith.constant 3.380000e+02 : f32
    %16 = vector.broadcast %cst_10 : f32 to vector<1x128xf32>
    %17 = arith.divf %15, %16 : vector<1x128xf32>
    %18 = vector.broadcast %8 : vector<1x128xf32> to vector<338x128xf32>
    %19 = arith.subf %2, %18 : vector<338x128xf32>
    %20 = vector.broadcast %3 : vector<1x128xf32> to vector<338x128xf32>
    %21 = arith.mulf %20, %19 : vector<338x128xf32>
    %cst_11 = arith.constant 9.99999974E-6 : f32
    %22 = vector.broadcast %cst_11 : f32 to vector<1x128xf32>
    %23 = arith.addf %17, %22 : vector<1x128xf32>
    %24 = math.rsqrt %23 : vector<1x128xf32>
    %25 = vector.broadcast %24 : vector<1x128xf32> to vector<338x128xf32>
    %26 = arith.mulf %21, %25 : vector<338x128xf32>
    %27 = vector.broadcast %4 : vector<1x128xf32> to vector<338x128xf32>
    %28 = arith.addf %26, %27 : vector<338x128xf32>
    %cst_12 = arith.constant 0.000000e+00 : f32
    %29 = vector.broadcast %cst_12 : f32 to vector<338x128xf32>
    %30 = arith.maximumf %28, %29 : vector<338x128xf32>
    %cst_13 = arith.constant 0.000000e+00 : f32
    %31 = vector.broadcast %cst_13 : f32 to vector<72x128xf32>
    %c0_14 = arith.constant 0 : index
    %c0_15 = arith.constant 0 : index
    %c0_16 = arith.constant 0 : index
    %32 = vector.load %arg4[%c0_14, %c0_15, %c0_16] : memref<25x72x338xf32, #tpu.memory_space<vmem>>, vector<1x72x338xf32>
    %33 = vector.shape_cast %32 : vector<1x72x338xf32> to vector<72x338xf32>
    %cst_17 = arith.constant dense<0.000000e+00> : vector<72x128xf32>
    %34 = tpu.matmul %33, %30, %cst_17 {dimension_numbers = #tpu.dot_dimension_numbers<[1], [0], [0], [1], [0, 0, 1, 1], [], []>} : vector<72x338xf32>, vector<338x128xf32>, vector<72x128xf32> -> vector<72x128xf32>
    %c0_18 = arith.constant 0 : index
    %c0_19 = arith.constant 0 : index
    %c0_20 = arith.constant 0 : index
    %35 = vector.load %arg5[%c0_18, %c0_19, %c0_20] : memref<25x128x128xf32, #tpu.memory_space<vmem>>, vector<1x128x128xf32>
    %36 = vector.shape_cast %35 : vector<1x128x128xf32> to vector<128x128xf32>
    %cst_21 = arith.constant dense<0.000000e+00> : vector<72x128xf32>
    %37 = tpu.matmul %34, %36, %cst_21 {dimension_numbers = #tpu.dot_dimension_numbers<[1], [0], [0], [1], [0, 0, 1, 1], [], []>} : vector<72x128xf32>, vector<128x128xf32>, vector<72x128xf32> -> vector<72x128xf32>
    %38 = arith.addf %31, %37 : vector<72x128xf32>
    %c1 = arith.constant 1 : index
    %c0_22 = arith.constant 0 : index
    %c0_23 = arith.constant 0 : index
    %39 = vector.load %arg4[%c1, %c0_22, %c0_23] : memref<25x72x338xf32, #tpu.memory_space<vmem>>, vector<1x72x338xf32>
    %40 = vector.shape_cast %39 : vector<1x72x338xf32> to vector<72x338xf32>
    %cst_24 = arith.constant dense<0.000000e+00> : vector<72x128xf32>
    %41 = tpu.matmul %40, %30, %cst_24 {dimension_numbers = #tpu.dot_dimension_numbers<[1], [0], [0], [1], [0, 0, 1, 1], [], []>} : vector<72x338xf32>, vector<338x128xf32>, vector<72x128xf32> -> vector<72x128xf32>
    %c1_25 = arith.constant 1 : index
    %c0_26 = arith.constant 0 : index
    %c0_27 = arith.constant 0 : index
    %42 = vector.load %arg5[%c1_25, %c0_26, %c0_27] : memref<25x128x128xf32, #tpu.memory_space<vmem>>, vector<1x128x128xf32>
    %43 = vector.shape_cast %42 : vector<1x128x128xf32> to vector<128x128xf32>
    %cst_28 = arith.constant dense<0.000000e+00> : vector<72x128xf32>
    %44 = tpu.matmul %41, %43, %cst_28 {dimension_numbers = #tpu.dot_dimension_numbers<[1], [0], [0], [1], [0, 0, 1, 1], [], []>} : vector<72x128xf32>, vector<128x128xf32>, vector<72x128xf32> -> vector<72x128xf32>
    %45 = arith.addf %38, %44 : vector<72x128xf32>
    %c2 = arith.constant 2 : index
    %c0_29 = arith.constant 0 : index
    %c0_30 = arith.constant 0 : index
    %46 = vector.load %arg4[%c2, %c0_29, %c0_30] : memref<25x72x338xf32, #tpu.memory_space<vmem>>, vector<1x72x338xf32>
    %47 = vector.shape_cast %46 : vector<1x72x338xf32> to vector<72x338xf32>
    %cst_31 = arith.constant dense<0.000000e+00> : vector<72x128xf32>
    %48 = tpu.matmul %47, %30, %cst_31 {dimension_numbers = #tpu.dot_dimension_numbers<[1], [0], [0], [1], [0, 0, 1, 1], [], []>} : vector<72x338xf32>, vector<338x128xf32>, vector<72x128xf32> -> vector<72x128xf32>
    %c2_32 = arith.constant 2 : index
    %c0_33 = arith.constant 0 : index
    %c0_34 = arith.constant 0 : index
    %49 = vector.load %arg5[%c2_32, %c0_33, %c0_34] : memref<25x128x128xf32, #tpu.memory_space<vmem>>, vector<1x128x128xf32>
    %50 = vector.shape_cast %49 : vector<1x128x128xf32> to vector<128x128xf32>
    %cst_35 = arith.constant dense<0.000000e+00> : vector<72x128xf32>
    %51 = tpu.matmul %48, %50, %cst_35 {dimension_numbers = #tpu.dot_dimension_numbers<[1], [0], [0], [1], [0, 0, 1, 1], [], []>} : vector<72x128xf32>, vector<128x128xf32>, vector<72x128xf32> -> vector<72x128xf32>
    %52 = arith.addf %45, %51 : vector<72x128xf32>
    %c3 = arith.constant 3 : index
    %c0_36 = arith.constant 0 : index
    %c0_37 = arith.constant 0 : index
    %53 = vector.load %arg4[%c3, %c0_36, %c0_37] : memref<25x72x338xf32, #tpu.memory_space<vmem>>, vector<1x72x338xf32>
    %54 = vector.shape_cast %53 : vector<1x72x338xf32> to vector<72x338xf32>
    %cst_38 = arith.constant dense<0.000000e+00> : vector<72x128xf32>
    %55 = tpu.matmul %54, %30, %cst_38 {dimension_numbers = #tpu.dot_dimension_numbers<[1], [0], [0], [1], [0, 0, 1, 1], [], []>} : vector<72x338xf32>, vector<338x128xf32>, vector<72x128xf32> -> vector<72x128xf32>
    %c3_39 = arith.constant 3 : index
    %c0_40 = arith.constant 0 : index
    %c0_41 = arith.constant 0 : index
    %56 = vector.load %arg5[%c3_39, %c0_40, %c0_41] : memref<25x128x128xf32, #tpu.memory_space<vmem>>, vector<1x128x128xf32>
    %57 = vector.shape_cast %56 : vector<1x128x128xf32> to vector<128x128xf32>
    %cst_42 = arith.constant dense<0.000000e+00> : vector<72x128xf32>
    %58 = tpu.matmul %55, %57, %cst_42 {dimension_numbers = #tpu.dot_dimension_numbers<[1], [0], [0], [1], [0, 0, 1, 1], [], []>} : vector<72x128xf32>, vector<128x128xf32>, vector<72x128xf32> -> vector<72x128xf32>
    %59 = arith.addf %52, %58 : vector<72x128xf32>
    %c4 = arith.constant 4 : index
    %c0_43 = arith.constant 0 : index
    %c0_44 = arith.constant 0 : index
    %60 = vector.load %arg4[%c4, %c0_43, %c0_44] : memref<25x72x338xf32, #tpu.memory_space<vmem>>, vector<1x72x338xf32>
    %61 = vector.shape_cast %60 : vector<1x72x338xf32> to vector<72x338xf32>
    %cst_45 = arith.constant dense<0.000000e+00> : vector<72x128xf32>
    %62 = tpu.matmul %61, %30, %cst_45 {dimension_numbers = #tpu.dot_dimension_numbers<[1], [0], [0], [1], [0, 0, 1, 1], [], []>} : vector<72x338xf32>, vector<338x128xf32>, vector<72x128xf32> -> vector<72x128xf32>
    %c4_46 = arith.constant 4 : index
    %c0_47 = arith.constant 0 : index
    %c0_48 = arith.constant 0 : index
    %63 = vector.load %arg5[%c4_46, %c0_47, %c0_48] : memref<25x128x128xf32, #tpu.memory_space<vmem>>, vector<1x128x128xf32>
    %64 = vector.shape_cast %63 : vector<1x128x128xf32> to vector<128x128xf32>
    %cst_49 = arith.constant dense<0.000000e+00> : vector<72x128xf32>
    %65 = tpu.matmul %62, %64, %cst_49 {dimension_numbers = #tpu.dot_dimension_numbers<[1], [0], [0], [1], [0, 0, 1, 1], [], []>} : vector<72x128xf32>, vector<128x128xf32>, vector<72x128xf32> -> vector<72x128xf32>
    %66 = arith.addf %59, %65 : vector<72x128xf32>
    %c5 = arith.constant 5 : index
    %c0_50 = arith.constant 0 : index
    %c0_51 = arith.constant 0 : index
    %67 = vector.load %arg4[%c5, %c0_50, %c0_51] : memref<25x72x338xf32, #tpu.memory_space<vmem>>, vector<1x72x338xf32>
    %68 = vector.shape_cast %67 : vector<1x72x338xf32> to vector<72x338xf32>
    %cst_52 = arith.constant dense<0.000000e+00> : vector<72x128xf32>
    %69 = tpu.matmul %68, %30, %cst_52 {dimension_numbers = #tpu.dot_dimension_numbers<[1], [0], [0], [1], [0, 0, 1, 1], [], []>} : vector<72x338xf32>, vector<338x128xf32>, vector<72x128xf32> -> vector<72x128xf32>
    %c5_53 = arith.constant 5 : index
    %c0_54 = arith.constant 0 : index
    %c0_55 = arith.constant 0 : index
    %70 = vector.load %arg5[%c5_53, %c0_54, %c0_55] : memref<25x128x128xf32, #tpu.memory_space<vmem>>, vector<1x128x128xf32>
    %71 = vector.shape_cast %70 : vector<1x128x128xf32> to vector<128x128xf32>
    %cst_56 = arith.constant dense<0.000000e+00> : vector<72x128xf32>
    %72 = tpu.matmul %69, %71, %cst_56 {dimension_numbers = #tpu.dot_dimension_numbers<[1], [0], [0], [1], [0, 0, 1, 1], [], []>} : vector<72x128xf32>, vector<128x128xf32>, vector<72x128xf32> -> vector<72x128xf32>
    %73 = arith.addf %66, %72 : vector<72x128xf32>
    %c6 = arith.constant 6 : index
    %c0_57 = arith.constant 0 : index
    %c0_58 = arith.constant 0 : index
    %74 = vector.load %arg4[%c6, %c0_57, %c0_58] : memref<25x72x338xf32, #tpu.memory_space<vmem>>, vector<1x72x338xf32>
    %75 = vector.shape_cast %74 : vector<1x72x338xf32> to vector<72x338xf32>
    %cst_59 = arith.constant dense<0.000000e+00> : vector<72x128xf32>
    %76 = tpu.matmul %75, %30, %cst_59 {dimension_numbers = #tpu.dot_dimension_numbers<[1], [0], [0], [1], [0, 0, 1, 1], [], []>} : vector<72x338xf32>, vector<338x128xf32>, vector<72x128xf32> -> vector<72x128xf32>
    %c6_60 = arith.constant 6 : index
    %c0_61 = arith.constant 0 : index
    %c0_62 = arith.constant 0 : index
    %77 = vector.load %arg5[%c6_60, %c0_61, %c0_62] : memref<25x128x128xf32, #tpu.memory_space<vmem>>, vector<1x128x128xf32>
    %78 = vector.shape_cast %77 : vector<1x128x128xf32> to vector<128x128xf32>
    %cst_63 = arith.constant dense<0.000000e+00> : vector<72x128xf32>
    %79 = tpu.matmul %76, %78, %cst_63 {dimension_numbers = #tpu.dot_dimension_numbers<[1], [0], [0], [1], [0, 0, 1, 1], [], []>} : vector<72x128xf32>, vector<128x128xf32>, vector<72x128xf32> -> vector<72x128xf32>
    %80 = arith.addf %73, %79 : vector<72x128xf32>
    %c7 = arith.constant 7 : index
    %c0_64 = arith.constant 0 : index
    %c0_65 = arith.constant 0 : index
    %81 = vector.load %arg4[%c7, %c0_64, %c0_65] : memref<25x72x338xf32, #tpu.memory_space<vmem>>, vector<1x72x338xf32>
    %82 = vector.shape_cast %81 : vector<1x72x338xf32> to vector<72x338xf32>
    %cst_66 = arith.constant dense<0.000000e+00> : vector<72x128xf32>
    %83 = tpu.matmul %82, %30, %cst_66 {dimension_numbers = #tpu.dot_dimension_numbers<[1], [0], [0], [1], [0, 0, 1, 1], [], []>} : vector<72x338xf32>, vector<338x128xf32>, vector<72x128xf32> -> vector<72x128xf32>
    %c7_67 = arith.constant 7 : index
    %c0_68 = arith.constant 0 : index
    %c0_69 = arith.constant 0 : index
    %84 = vector.load %arg5[%c7_67, %c0_68, %c0_69] : memref<25x128x128xf32, #tpu.memory_space<vmem>>, vector<1x128x128xf32>
    %85 = vector.shape_cast %84 : vector<1x128x128xf32> to vector<128x128xf32>
    %cst_70 = arith.constant dense<0.000000e+00> : vector<72x128xf32>
    %86 = tpu.matmul %83, %85, %cst_70 {dimension_numbers = #tpu.dot_dimension_numbers<[1], [0], [0], [1], [0, 0, 1, 1], [], []>} : vector<72x128xf32>, vector<128x128xf32>, vector<72x128xf32> -> vector<72x128xf32>
    %87 = arith.addf %80, %86 : vector<72x128xf32>
    %c8 = arith.constant 8 : index
    %c0_71 = arith.constant 0 : index
    %c0_72 = arith.constant 0 : index
    %88 = vector.load %arg4[%c8, %c0_71, %c0_72] : memref<25x72x338xf32, #tpu.memory_space<vmem>>, vector<1x72x338xf32>
    %89 = vector.shape_cast %88 : vector<1x72x338xf32> to vector<72x338xf32>
    %cst_73 = arith.constant dense<0.000000e+00> : vector<72x128xf32>
    %90 = tpu.matmul %89, %30, %cst_73 {dimension_numbers = #tpu.dot_dimension_numbers<[1], [0], [0], [1], [0, 0, 1, 1], [], []>} : vector<72x338xf32>, vector<338x128xf32>, vector<72x128xf32> -> vector<72x128xf32>
    %c8_74 = arith.constant 8 : index
    %c0_75 = arith.constant 0 : index
    %c0_76 = arith.constant 0 : index
    %91 = vector.load %arg5[%c8_74, %c0_75, %c0_76] : memref<25x128x128xf32, #tpu.memory_space<vmem>>, vector<1x128x128xf32>
    %92 = vector.shape_cast %91 : vector<1x128x128xf32> to vector<128x128xf32>
    %cst_77 = arith.constant dense<0.000000e+00> : vector<72x128xf32>
    %93 = tpu.matmul %90, %92, %cst_77 {dimension_numbers = #tpu.dot_dimension_numbers<[1], [0], [0], [1], [0, 0, 1, 1], [], []>} : vector<72x128xf32>, vector<128x128xf32>, vector<72x128xf32> -> vector<72x128xf32>
    %94 = arith.addf %87, %93 : vector<72x128xf32>
    %c9 = arith.constant 9 : index
    %c0_78 = arith.constant 0 : index
    %c0_79 = arith.constant 0 : index
    %95 = vector.load %arg4[%c9, %c0_78, %c0_79] : memref<25x72x338xf32, #tpu.memory_space<vmem>>, vector<1x72x338xf32>
    %96 = vector.shape_cast %95 : vector<1x72x338xf32> to vector<72x338xf32>
    %cst_80 = arith.constant dense<0.000000e+00> : vector<72x128xf32>
    %97 = tpu.matmul %96, %30, %cst_80 {dimension_numbers = #tpu.dot_dimension_numbers<[1], [0], [0], [1], [0, 0, 1, 1], [], []>} : vector<72x338xf32>, vector<338x128xf32>, vector<72x128xf32> -> vector<72x128xf32>
    %c9_81 = arith.constant 9 : index
    %c0_82 = arith.constant 0 : index
    %c0_83 = arith.constant 0 : index
    %98 = vector.load %arg5[%c9_81, %c0_82, %c0_83] : memref<25x128x128xf32, #tpu.memory_space<vmem>>, vector<1x128x128xf32>
    %99 = vector.shape_cast %98 : vector<1x128x128xf32> to vector<128x128xf32>
    %cst_84 = arith.constant dense<0.000000e+00> : vector<72x128xf32>
    %100 = tpu.matmul %97, %99, %cst_84 {dimension_numbers = #tpu.dot_dimension_numbers<[1], [0], [0], [1], [0, 0, 1, 1], [], []>} : vector<72x128xf32>, vector<128x128xf32>, vector<72x128xf32> -> vector<72x128xf32>
    %101 = arith.addf %94, %100 : vector<72x128xf32>
    %c10 = arith.constant 10 : index
    %c0_85 = arith.constant 0 : index
    %c0_86 = arith.constant 0 : index
    %102 = vector.load %arg4[%c10, %c0_85, %c0_86] : memref<25x72x338xf32, #tpu.memory_space<vmem>>, vector<1x72x338xf32>
    %103 = vector.shape_cast %102 : vector<1x72x338xf32> to vector<72x338xf32>
    %cst_87 = arith.constant dense<0.000000e+00> : vector<72x128xf32>
    %104 = tpu.matmul %103, %30, %cst_87 {dimension_numbers = #tpu.dot_dimension_numbers<[1], [0], [0], [1], [0, 0, 1, 1], [], []>} : vector<72x338xf32>, vector<338x128xf32>, vector<72x128xf32> -> vector<72x128xf32>
    %c10_88 = arith.constant 10 : index
    %c0_89 = arith.constant 0 : index
    %c0_90 = arith.constant 0 : index
    %105 = vector.load %arg5[%c10_88, %c0_89, %c0_90] : memref<25x128x128xf32, #tpu.memory_space<vmem>>, vector<1x128x128xf32>
    %106 = vector.shape_cast %105 : vector<1x128x128xf32> to vector<128x128xf32>
    %cst_91 = arith.constant dense<0.000000e+00> : vector<72x128xf32>
    %107 = tpu.matmul %104, %106, %cst_91 {dimension_numbers = #tpu.dot_dimension_numbers<[1], [0], [0], [1], [0, 0, 1, 1], [], []>} : vector<72x128xf32>, vector<128x128xf32>, vector<72x128xf32> -> vector<72x128xf32>
    %108 = arith.addf %101, %107 : vector<72x128xf32>
    %c11 = arith.constant 11 : index
    %c0_92 = arith.constant 0 : index
    %c0_93 = arith.constant 0 : index
    %109 = vector.load %arg4[%c11, %c0_92, %c0_93] : memref<25x72x338xf32, #tpu.memory_space<vmem>>, vector<1x72x338xf32>
    %110 = vector.shape_cast %109 : vector<1x72x338xf32> to vector<72x338xf32>
    %cst_94 = arith.constant dense<0.000000e+00> : vector<72x128xf32>
    %111 = tpu.matmul %110, %30, %cst_94 {dimension_numbers = #tpu.dot_dimension_numbers<[1], [0], [0], [1], [0, 0, 1, 1], [], []>} : vector<72x338xf32>, vector<338x128xf32>, vector<72x128xf32> -> vector<72x128xf32>
    %c11_95 = arith.constant 11 : index
    %c0_96 = arith.constant 0 : index
    %c0_97 = arith.constant 0 : index
    %112 = vector.load %arg5[%c11_95, %c0_96, %c0_97] : memref<25x128x128xf32, #tpu.memory_space<vmem>>, vector<1x128x128xf32>
    %113 = vector.shape_cast %112 : vector<1x128x128xf32> to vector<128x128xf32>
    %cst_98 = arith.constant dense<0.000000e+00> : vector<72x128xf32>
    %114 = tpu.matmul %111, %113, %cst_98 {dimension_numbers = #tpu.dot_dimension_numbers<[1], [0], [0], [1], [0, 0, 1, 1], [], []>} : vector<72x128xf32>, vector<128x128xf32>, vector<72x128xf32> -> vector<72x128xf32>
    %115 = arith.addf %108, %114 : vector<72x128xf32>
    %c12 = arith.constant 12 : index
    %c0_99 = arith.constant 0 : index
    %c0_100 = arith.constant 0 : index
    %116 = vector.load %arg4[%c12, %c0_99, %c0_100] : memref<25x72x338xf32, #tpu.memory_space<vmem>>, vector<1x72x338xf32>
    %117 = vector.shape_cast %116 : vector<1x72x338xf32> to vector<72x338xf32>
    %cst_101 = arith.constant dense<0.000000e+00> : vector<72x128xf32>
    %118 = tpu.matmul %117, %30, %cst_101 {dimension_numbers = #tpu.dot_dimension_numbers<[1], [0], [0], [1], [0, 0, 1, 1], [], []>} : vector<72x338xf32>, vector<338x128xf32>, vector<72x128xf32> -> vector<72x128xf32>
    %c12_102 = arith.constant 12 : index
    %c0_103 = arith.constant 0 : index
    %c0_104 = arith.constant 0 : index
    %119 = vector.load %arg5[%c12_102, %c0_103, %c0_104] : memref<25x128x128xf32, #tpu.memory_space<vmem>>, vector<1x128x128xf32>
    %120 = vector.shape_cast %119 : vector<1x128x128xf32> to vector<128x128xf32>
    %cst_105 = arith.constant dense<0.000000e+00> : vector<72x128xf32>
    %121 = tpu.matmul %118, %120, %cst_105 {dimension_numbers = #tpu.dot_dimension_numbers<[1], [0], [0], [1], [0, 0, 1, 1], [], []>} : vector<72x128xf32>, vector<128x128xf32>, vector<72x128xf32> -> vector<72x128xf32>
    %122 = arith.addf %115, %121 : vector<72x128xf32>
    %c13 = arith.constant 13 : index
    %c0_106 = arith.constant 0 : index
    %c0_107 = arith.constant 0 : index
    %123 = vector.load %arg4[%c13, %c0_106, %c0_107] : memref<25x72x338xf32, #tpu.memory_space<vmem>>, vector<1x72x338xf32>
    %124 = vector.shape_cast %123 : vector<1x72x338xf32> to vector<72x338xf32>
    %cst_108 = arith.constant dense<0.000000e+00> : vector<72x128xf32>
    %125 = tpu.matmul %124, %30, %cst_108 {dimension_numbers = #tpu.dot_dimension_numbers<[1], [0], [0], [1], [0, 0, 1, 1], [], []>} : vector<72x338xf32>, vector<338x128xf32>, vector<72x128xf32> -> vector<72x128xf32>
    %c13_109 = arith.constant 13 : index
    %c0_110 = arith.constant 0 : index
    %c0_111 = arith.constant 0 : index
    %126 = vector.load %arg5[%c13_109, %c0_110, %c0_111] : memref<25x128x128xf32, #tpu.memory_space<vmem>>, vector<1x128x128xf32>
    %127 = vector.shape_cast %126 : vector<1x128x128xf32> to vector<128x128xf32>
    %cst_112 = arith.constant dense<0.000000e+00> : vector<72x128xf32>
    %128 = tpu.matmul %125, %127, %cst_112 {dimension_numbers = #tpu.dot_dimension_numbers<[1], [0], [0], [1], [0, 0, 1, 1], [], []>} : vector<72x128xf32>, vector<128x128xf32>, vector<72x128xf32> -> vector<72x128xf32>
    %129 = arith.addf %122, %128 : vector<72x128xf32>
    %c14 = arith.constant 14 : index
    %c0_113 = arith.constant 0 : index
    %c0_114 = arith.constant 0 : index
    %130 = vector.load %arg4[%c14, %c0_113, %c0_114] : memref<25x72x338xf32, #tpu.memory_space<vmem>>, vector<1x72x338xf32>
    %131 = vector.shape_cast %130 : vector<1x72x338xf32> to vector<72x338xf32>
    %cst_115 = arith.constant dense<0.000000e+00> : vector<72x128xf32>
    %132 = tpu.matmul %131, %30, %cst_115 {dimension_numbers = #tpu.dot_dimension_numbers<[1], [0], [0], [1], [0, 0, 1, 1], [], []>} : vector<72x338xf32>, vector<338x128xf32>, vector<72x128xf32> -> vector<72x128xf32>
    %c14_116 = arith.constant 14 : index
    %c0_117 = arith.constant 0 : index
    %c0_118 = arith.constant 0 : index
    %133 = vector.load %arg5[%c14_116, %c0_117, %c0_118] : memref<25x128x128xf32, #tpu.memory_space<vmem>>, vector<1x128x128xf32>
    %134 = vector.shape_cast %133 : vector<1x128x128xf32> to vector<128x128xf32>
    %cst_119 = arith.constant dense<0.000000e+00> : vector<72x128xf32>
    %135 = tpu.matmul %132, %134, %cst_119 {dimension_numbers = #tpu.dot_dimension_numbers<[1], [0], [0], [1], [0, 0, 1, 1], [], []>} : vector<72x128xf32>, vector<128x128xf32>, vector<72x128xf32> -> vector<72x128xf32>
    %136 = arith.addf %129, %135 : vector<72x128xf32>
    %c15 = arith.constant 15 : index
    %c0_120 = arith.constant 0 : index
    %c0_121 = arith.constant 0 : index
    %137 = vector.load %arg4[%c15, %c0_120, %c0_121] : memref<25x72x338xf32, #tpu.memory_space<vmem>>, vector<1x72x338xf32>
    %138 = vector.shape_cast %137 : vector<1x72x338xf32> to vector<72x338xf32>
    %cst_122 = arith.constant dense<0.000000e+00> : vector<72x128xf32>
    %139 = tpu.matmul %138, %30, %cst_122 {dimension_numbers = #tpu.dot_dimension_numbers<[1], [0], [0], [1], [0, 0, 1, 1], [], []>} : vector<72x338xf32>, vector<338x128xf32>, vector<72x128xf32> -> vector<72x128xf32>
    %c15_123 = arith.constant 15 : index
    %c0_124 = arith.constant 0 : index
    %c0_125 = arith.constant 0 : index
    %140 = vector.load %arg5[%c15_123, %c0_124, %c0_125] : memref<25x128x128xf32, #tpu.memory_space<vmem>>, vector<1x128x128xf32>
    %141 = vector.shape_cast %140 : vector<1x128x128xf32> to vector<128x128xf32>
    %cst_126 = arith.constant dense<0.000000e+00> : vector<72x128xf32>
    %142 = tpu.matmul %139, %141, %cst_126 {dimension_numbers = #tpu.dot_dimension_numbers<[1], [0], [0], [1], [0, 0, 1, 1], [], []>} : vector<72x128xf32>, vector<128x128xf32>, vector<72x128xf32> -> vector<72x128xf32>
    %143 = arith.addf %136, %142 : vector<72x128xf32>
    %c16 = arith.constant 16 : index
    %c0_127 = arith.constant 0 : index
    %c0_128 = arith.constant 0 : index
    %144 = vector.load %arg4[%c16, %c0_127, %c0_128] : memref<25x72x338xf32, #tpu.memory_space<vmem>>, vector<1x72x338xf32>
    %145 = vector.shape_cast %144 : vector<1x72x338xf32> to vector<72x338xf32>
    %cst_129 = arith.constant dense<0.000000e+00> : vector<72x128xf32>
    %146 = tpu.matmul %145, %30, %cst_129 {dimension_numbers = #tpu.dot_dimension_numbers<[1], [0], [0], [1], [0, 0, 1, 1], [], []>} : vector<72x338xf32>, vector<338x128xf32>, vector<72x128xf32> -> vector<72x128xf32>
    %c16_130 = arith.constant 16 : index
    %c0_131 = arith.constant 0 : index
    %c0_132 = arith.constant 0 : index
    %147 = vector.load %arg5[%c16_130, %c0_131, %c0_132] : memref<25x128x128xf32, #tpu.memory_space<vmem>>, vector<1x128x128xf32>
    %148 = vector.shape_cast %147 : vector<1x128x128xf32> to vector<128x128xf32>
    %cst_133 = arith.constant dense<0.000000e+00> : vector<72x128xf32>
    %149 = tpu.matmul %146, %148, %cst_133 {dimension_numbers = #tpu.dot_dimension_numbers<[1], [0], [0], [1], [0, 0, 1, 1], [], []>} : vector<72x128xf32>, vector<128x128xf32>, vector<72x128xf32> -> vector<72x128xf32>
    %150 = arith.addf %143, %149 : vector<72x128xf32>
    %c17 = arith.constant 17 : index
    %c0_134 = arith.constant 0 : index
    %c0_135 = arith.constant 0 : index
    %151 = vector.load %arg4[%c17, %c0_134, %c0_135] : memref<25x72x338xf32, #tpu.memory_space<vmem>>, vector<1x72x338xf32>
    %152 = vector.shape_cast %151 : vector<1x72x338xf32> to vector<72x338xf32>
    %cst_136 = arith.constant dense<0.000000e+00> : vector<72x128xf32>
    %153 = tpu.matmul %152, %30, %cst_136 {dimension_numbers = #tpu.dot_dimension_numbers<[1], [0], [0], [1], [0, 0, 1, 1], [], []>} : vector<72x338xf32>, vector<338x128xf32>, vector<72x128xf32> -> vector<72x128xf32>
    %c17_137 = arith.constant 17 : index
    %c0_138 = arith.constant 0 : index
    %c0_139 = arith.constant 0 : index
    %154 = vector.load %arg5[%c17_137, %c0_138, %c0_139] : memref<25x128x128xf32, #tpu.memory_space<vmem>>, vector<1x128x128xf32>
    %155 = vector.shape_cast %154 : vector<1x128x128xf32> to vector<128x128xf32>
    %cst_140 = arith.constant dense<0.000000e+00> : vector<72x128xf32>
    %156 = tpu.matmul %153, %155, %cst_140 {dimension_numbers = #tpu.dot_dimension_numbers<[1], [0], [0], [1], [0, 0, 1, 1], [], []>} : vector<72x128xf32>, vector<128x128xf32>, vector<72x128xf32> -> vector<72x128xf32>
    %157 = arith.addf %150, %156 : vector<72x128xf32>
    %c18 = arith.constant 18 : index
    %c0_141 = arith.constant 0 : index
    %c0_142 = arith.constant 0 : index
    %158 = vector.load %arg4[%c18, %c0_141, %c0_142] : memref<25x72x338xf32, #tpu.memory_space<vmem>>, vector<1x72x338xf32>
    %159 = vector.shape_cast %158 : vector<1x72x338xf32> to vector<72x338xf32>
    %cst_143 = arith.constant dense<0.000000e+00> : vector<72x128xf32>
    %160 = tpu.matmul %159, %30, %cst_143 {dimension_numbers = #tpu.dot_dimension_numbers<[1], [0], [0], [1], [0, 0, 1, 1], [], []>} : vector<72x338xf32>, vector<338x128xf32>, vector<72x128xf32> -> vector<72x128xf32>
    %c18_144 = arith.constant 18 : index
    %c0_145 = arith.constant 0 : index
    %c0_146 = arith.constant 0 : index
    %161 = vector.load %arg5[%c18_144, %c0_145, %c0_146] : memref<25x128x128xf32, #tpu.memory_space<vmem>>, vector<1x128x128xf32>
    %162 = vector.shape_cast %161 : vector<1x128x128xf32> to vector<128x128xf32>
    %cst_147 = arith.constant dense<0.000000e+00> : vector<72x128xf32>
    %163 = tpu.matmul %160, %162, %cst_147 {dimension_numbers = #tpu.dot_dimension_numbers<[1], [0], [0], [1], [0, 0, 1, 1], [], []>} : vector<72x128xf32>, vector<128x128xf32>, vector<72x128xf32> -> vector<72x128xf32>
    %164 = arith.addf %157, %163 : vector<72x128xf32>
    %c19 = arith.constant 19 : index
    %c0_148 = arith.constant 0 : index
    %c0_149 = arith.constant 0 : index
    %165 = vector.load %arg4[%c19, %c0_148, %c0_149] : memref<25x72x338xf32, #tpu.memory_space<vmem>>, vector<1x72x338xf32>
    %166 = vector.shape_cast %165 : vector<1x72x338xf32> to vector<72x338xf32>
    %cst_150 = arith.constant dense<0.000000e+00> : vector<72x128xf32>
    %167 = tpu.matmul %166, %30, %cst_150 {dimension_numbers = #tpu.dot_dimension_numbers<[1], [0], [0], [1], [0, 0, 1, 1], [], []>} : vector<72x338xf32>, vector<338x128xf32>, vector<72x128xf32> -> vector<72x128xf32>
    %c19_151 = arith.constant 19 : index
    %c0_152 = arith.constant 0 : index
    %c0_153 = arith.constant 0 : index
    %168 = vector.load %arg5[%c19_151, %c0_152, %c0_153] : memref<25x128x128xf32, #tpu.memory_space<vmem>>, vector<1x128x128xf32>
    %169 = vector.shape_cast %168 : vector<1x128x128xf32> to vector<128x128xf32>
    %cst_154 = arith.constant dense<0.000000e+00> : vector<72x128xf32>
    %170 = tpu.matmul %167, %169, %cst_154 {dimension_numbers = #tpu.dot_dimension_numbers<[1], [0], [0], [1], [0, 0, 1, 1], [], []>} : vector<72x128xf32>, vector<128x128xf32>, vector<72x128xf32> -> vector<72x128xf32>
    %171 = arith.addf %164, %170 : vector<72x128xf32>
    %c20 = arith.constant 20 : index
    %c0_155 = arith.constant 0 : index
    %c0_156 = arith.constant 0 : index
    %172 = vector.load %arg4[%c20, %c0_155, %c0_156] : memref<25x72x338xf32, #tpu.memory_space<vmem>>, vector<1x72x338xf32>
    %173 = vector.shape_cast %172 : vector<1x72x338xf32> to vector<72x338xf32>
    %cst_157 = arith.constant dense<0.000000e+00> : vector<72x128xf32>
    %174 = tpu.matmul %173, %30, %cst_157 {dimension_numbers = #tpu.dot_dimension_numbers<[1], [0], [0], [1], [0, 0, 1, 1], [], []>} : vector<72x338xf32>, vector<338x128xf32>, vector<72x128xf32> -> vector<72x128xf32>
    %c20_158 = arith.constant 20 : index
    %c0_159 = arith.constant 0 : index
    %c0_160 = arith.constant 0 : index
    %175 = vector.load %arg5[%c20_158, %c0_159, %c0_160] : memref<25x128x128xf32, #tpu.memory_space<vmem>>, vector<1x128x128xf32>
    %176 = vector.shape_cast %175 : vector<1x128x128xf32> to vector<128x128xf32>
    %cst_161 = arith.constant dense<0.000000e+00> : vector<72x128xf32>
    %177 = tpu.matmul %174, %176, %cst_161 {dimension_numbers = #tpu.dot_dimension_numbers<[1], [0], [0], [1], [0, 0, 1, 1], [], []>} : vector<72x128xf32>, vector<128x128xf32>, vector<72x128xf32> -> vector<72x128xf32>
    %178 = arith.addf %171, %177 : vector<72x128xf32>
    %c21 = arith.constant 21 : index
    %c0_162 = arith.constant 0 : index
    %c0_163 = arith.constant 0 : index
    %179 = vector.load %arg4[%c21, %c0_162, %c0_163] : memref<25x72x338xf32, #tpu.memory_space<vmem>>, vector<1x72x338xf32>
    %180 = vector.shape_cast %179 : vector<1x72x338xf32> to vector<72x338xf32>
    %cst_164 = arith.constant dense<0.000000e+00> : vector<72x128xf32>
    %181 = tpu.matmul %180, %30, %cst_164 {dimension_numbers = #tpu.dot_dimension_numbers<[1], [0], [0], [1], [0, 0, 1, 1], [], []>} : vector<72x338xf32>, vector<338x128xf32>, vector<72x128xf32> -> vector<72x128xf32>
    %c21_165 = arith.constant 21 : index
    %c0_166 = arith.constant 0 : index
    %c0_167 = arith.constant 0 : index
    %182 = vector.load %arg5[%c21_165, %c0_166, %c0_167] : memref<25x128x128xf32, #tpu.memory_space<vmem>>, vector<1x128x128xf32>
    %183 = vector.shape_cast %182 : vector<1x128x128xf32> to vector<128x128xf32>
    %cst_168 = arith.constant dense<0.000000e+00> : vector<72x128xf32>
    %184 = tpu.matmul %181, %183, %cst_168 {dimension_numbers = #tpu.dot_dimension_numbers<[1], [0], [0], [1], [0, 0, 1, 1], [], []>} : vector<72x128xf32>, vector<128x128xf32>, vector<72x128xf32> -> vector<72x128xf32>
    %185 = arith.addf %178, %184 : vector<72x128xf32>
    %c22 = arith.constant 22 : index
    %c0_169 = arith.constant 0 : index
    %c0_170 = arith.constant 0 : index
    %186 = vector.load %arg4[%c22, %c0_169, %c0_170] : memref<25x72x338xf32, #tpu.memory_space<vmem>>, vector<1x72x338xf32>
    %187 = vector.shape_cast %186 : vector<1x72x338xf32> to vector<72x338xf32>
    %cst_171 = arith.constant dense<0.000000e+00> : vector<72x128xf32>
    %188 = tpu.matmul %187, %30, %cst_171 {dimension_numbers = #tpu.dot_dimension_numbers<[1], [0], [0], [1], [0, 0, 1, 1], [], []>} : vector<72x338xf32>, vector<338x128xf32>, vector<72x128xf32> -> vector<72x128xf32>
    %c22_172 = arith.constant 22 : index
    %c0_173 = arith.constant 0 : index
    %c0_174 = arith.constant 0 : index
    %189 = vector.load %arg5[%c22_172, %c0_173, %c0_174] : memref<25x128x128xf32, #tpu.memory_space<vmem>>, vector<1x128x128xf32>
    %190 = vector.shape_cast %189 : vector<1x128x128xf32> to vector<128x128xf32>
    %cst_175 = arith.constant dense<0.000000e+00> : vector<72x128xf32>
    %191 = tpu.matmul %188, %190, %cst_175 {dimension_numbers = #tpu.dot_dimension_numbers<[1], [0], [0], [1], [0, 0, 1, 1], [], []>} : vector<72x128xf32>, vector<128x128xf32>, vector<72x128xf32> -> vector<72x128xf32>
    %192 = arith.addf %185, %191 : vector<72x128xf32>
    %c23 = arith.constant 23 : index
    %c0_176 = arith.constant 0 : index
    %c0_177 = arith.constant 0 : index
    %193 = vector.load %arg4[%c23, %c0_176, %c0_177] : memref<25x72x338xf32, #tpu.memory_space<vmem>>, vector<1x72x338xf32>
    %194 = vector.shape_cast %193 : vector<1x72x338xf32> to vector<72x338xf32>
    %cst_178 = arith.constant dense<0.000000e+00> : vector<72x128xf32>
    %195 = tpu.matmul %194, %30, %cst_178 {dimension_numbers = #tpu.dot_dimension_numbers<[1], [0], [0], [1], [0, 0, 1, 1], [], []>} : vector<72x338xf32>, vector<338x128xf32>, vector<72x128xf32> -> vector<72x128xf32>
    %c23_179 = arith.constant 23 : index
    %c0_180 = arith.constant 0 : index
    %c0_181 = arith.constant 0 : index
    %196 = vector.load %arg5[%c23_179, %c0_180, %c0_181] : memref<25x128x128xf32, #tpu.memory_space<vmem>>, vector<1x128x128xf32>
    %197 = vector.shape_cast %196 : vector<1x128x128xf32> to vector<128x128xf32>
    %cst_182 = arith.constant dense<0.000000e+00> : vector<72x128xf32>
    %198 = tpu.matmul %195, %197, %cst_182 {dimension_numbers = #tpu.dot_dimension_numbers<[1], [0], [0], [1], [0, 0, 1, 1], [], []>} : vector<72x128xf32>, vector<128x128xf32>, vector<72x128xf32> -> vector<72x128xf32>
    %199 = arith.addf %192, %198 : vector<72x128xf32>
    %c24 = arith.constant 24 : index
    %c0_183 = arith.constant 0 : index
    %c0_184 = arith.constant 0 : index
    %200 = vector.load %arg4[%c24, %c0_183, %c0_184] : memref<25x72x338xf32, #tpu.memory_space<vmem>>, vector<1x72x338xf32>
    %201 = vector.shape_cast %200 : vector<1x72x338xf32> to vector<72x338xf32>
    %cst_185 = arith.constant dense<0.000000e+00> : vector<72x128xf32>
    %202 = tpu.matmul %201, %30, %cst_185 {dimension_numbers = #tpu.dot_dimension_numbers<[1], [0], [0], [1], [0, 0, 1, 1], [], []>} : vector<72x338xf32>, vector<338x128xf32>, vector<72x128xf32> -> vector<72x128xf32>
    %c24_186 = arith.constant 24 : index
    %c0_187 = arith.constant 0 : index
    %c0_188 = arith.constant 0 : index
    %203 = vector.load %arg5[%c24_186, %c0_187, %c0_188] : memref<25x128x128xf32, #tpu.memory_space<vmem>>, vector<1x128x128xf32>
    %204 = vector.shape_cast %203 : vector<1x128x128xf32> to vector<128x128xf32>
    %cst_189 = arith.constant dense<0.000000e+00> : vector<72x128xf32>
    %205 = tpu.matmul %202, %204, %cst_189 {dimension_numbers = #tpu.dot_dimension_numbers<[1], [0], [0], [1], [0, 0, 1, 1], [], []>} : vector<72x128xf32>, vector<128x128xf32>, vector<72x128xf32> -> vector<72x128xf32>
    %206 = arith.addf %199, %205 : vector<72x128xf32>
    %c0_190 = arith.constant 0 : index
    %c0_191 = arith.constant 0 : index
    %207 = vector.load %arg6[%c0_190, %c0_191] : memref<1x128xf32, #tpu.memory_space<vmem>>, vector<1x128xf32>
    %c0_192 = arith.constant 0 : index
    %c0_193 = arith.constant 0 : index
    %208 = vector.load %arg7[%c0_192, %c0_193] : memref<1x128xf32, #tpu.memory_space<vmem>>, vector<1x128xf32>
    %cst_194 = arith.constant dense<0.000000e+00> : vector<128xf32>
    %209 = vector.multi_reduction <add>, %206, %cst_194 [0] : vector<72x128xf32> to vector<128xf32>
    %210 = vector.shape_cast %209 : vector<128xf32> to vector<1x128xf32>
    %cst_195 = arith.constant 7.200000e+01 : f32
    %211 = vector.broadcast %cst_195 : f32 to vector<1x128xf32>
    %212 = arith.divf %210, %211 : vector<1x128xf32>
    %213 = vector.broadcast %212 : vector<1x128xf32> to vector<72x128xf32>
    %214 = arith.subf %206, %213 : vector<72x128xf32>
    %215 = vector.broadcast %212 : vector<1x128xf32> to vector<72x128xf32>
    %216 = arith.subf %206, %215 : vector<72x128xf32>
    %217 = arith.mulf %214, %216 : vector<72x128xf32>
    %cst_196 = arith.constant dense<0.000000e+00> : vector<128xf32>
    %218 = vector.multi_reduction <add>, %217, %cst_196 [0] : vector<72x128xf32> to vector<128xf32>
    %219 = vector.shape_cast %218 : vector<128xf32> to vector<1x128xf32>
    %cst_197 = arith.constant 7.200000e+01 : f32
    %220 = vector.broadcast %cst_197 : f32 to vector<1x128xf32>
    %221 = arith.divf %219, %220 : vector<1x128xf32>
    %222 = vector.broadcast %212 : vector<1x128xf32> to vector<72x128xf32>
    %223 = arith.subf %206, %222 : vector<72x128xf32>
    %224 = vector.broadcast %207 : vector<1x128xf32> to vector<72x128xf32>
    %225 = arith.mulf %224, %223 : vector<72x128xf32>
    %cst_198 = arith.constant 9.99999974E-6 : f32
    %226 = vector.broadcast %cst_198 : f32 to vector<1x128xf32>
    %227 = arith.addf %221, %226 : vector<1x128xf32>
    %228 = math.rsqrt %227 : vector<1x128xf32>
    %229 = vector.broadcast %228 : vector<1x128xf32> to vector<72x128xf32>
    %230 = arith.mulf %225, %229 : vector<72x128xf32>
    %231 = vector.broadcast %208 : vector<1x128xf32> to vector<72x128xf32>
    %232 = arith.addf %230, %231 : vector<72x128xf32>
    %cst_199 = arith.constant 0.000000e+00 : f32
    %233 = vector.broadcast %cst_199 : f32 to vector<72x128xf32>
    %234 = arith.maximumf %232, %233 : vector<72x128xf32>
    %cst_200 = arith.constant 0.000000e+00 : f32
    %235 = vector.broadcast %cst_200 : f32 to vector<18x128xf32>
    %c0_201 = arith.constant 0 : index
    %c0_202 = arith.constant 0 : index
    %c0_203 = arith.constant 0 : index
    %236 = vector.load %arg8[%c0_201, %c0_202, %c0_203] : memref<9x18x72xf32, #tpu.memory_space<vmem>>, vector<1x18x72xf32>
    %237 = vector.shape_cast %236 : vector<1x18x72xf32> to vector<18x72xf32>
    %cst_204 = arith.constant dense<0.000000e+00> : vector<18x128xf32>
    %238 = tpu.matmul %237, %234, %cst_204 {dimension_numbers = #tpu.dot_dimension_numbers<[1], [0], [0], [1], [0, 0, 1, 1], [], []>} : vector<18x72xf32>, vector<72x128xf32>, vector<18x128xf32> -> vector<18x128xf32>
    %c0_205 = arith.constant 0 : index
    %c0_206 = arith.constant 0 : index
    %c0_207 = arith.constant 0 : index
    %239 = vector.load %arg9[%c0_205, %c0_206, %c0_207] : memref<9x128x128xf32, #tpu.memory_space<vmem>>, vector<1x128x128xf32>
    %240 = vector.shape_cast %239 : vector<1x128x128xf32> to vector<128x128xf32>
    %cst_208 = arith.constant dense<0.000000e+00> : vector<18x128xf32>
    %241 = tpu.matmul %238, %240, %cst_208 {dimension_numbers = #tpu.dot_dimension_numbers<[1], [0], [0], [1], [0, 0, 1, 1], [], []>} : vector<18x128xf32>, vector<128x128xf32>, vector<18x128xf32> -> vector<18x128xf32>
    %242 = arith.addf %235, %241 : vector<18x128xf32>
    %c1_209 = arith.constant 1 : index
    %c0_210 = arith.constant 0 : index
    %c0_211 = arith.constant 0 : index
    %243 = vector.load %arg8[%c1_209, %c0_210, %c0_211] : memref<9x18x72xf32, #tpu.memory_space<vmem>>, vector<1x18x72xf32>
    %244 = vector.shape_cast %243 : vector<1x18x72xf32> to vector<18x72xf32>
    %cst_212 = arith.constant dense<0.000000e+00> : vector<18x128xf32>
    %245 = tpu.matmul %244, %234, %cst_212 {dimension_numbers = #tpu.dot_dimension_numbers<[1], [0], [0], [1], [0, 0, 1, 1], [], []>} : vector<18x72xf32>, vector<72x128xf32>, vector<18x128xf32> -> vector<18x128xf32>
    %c1_213 = arith.constant 1 : index
    %c0_214 = arith.constant 0 : index
    %c0_215 = arith.constant 0 : index
    %246 = vector.load %arg9[%c1_213, %c0_214, %c0_215] : memref<9x128x128xf32, #tpu.memory_space<vmem>>, vector<1x128x128xf32>
    %247 = vector.shape_cast %246 : vector<1x128x128xf32> to vector<128x128xf32>
    %cst_216 = arith.constant dense<0.000000e+00> : vector<18x128xf32>
    %248 = tpu.matmul %245, %247, %cst_216 {dimension_numbers = #tpu.dot_dimension_numbers<[1], [0], [0], [1], [0, 0, 1, 1], [], []>} : vector<18x128xf32>, vector<128x128xf32>, vector<18x128xf32> -> vector<18x128xf32>
    %249 = arith.addf %242, %248 : vector<18x128xf32>
    %c2_217 = arith.constant 2 : index
    %c0_218 = arith.constant 0 : index
    %c0_219 = arith.constant 0 : index
    %250 = vector.load %arg8[%c2_217, %c0_218, %c0_219] : memref<9x18x72xf32, #tpu.memory_space<vmem>>, vector<1x18x72xf32>
    %251 = vector.shape_cast %250 : vector<1x18x72xf32> to vector<18x72xf32>
    %cst_220 = arith.constant dense<0.000000e+00> : vector<18x128xf32>
    %252 = tpu.matmul %251, %234, %cst_220 {dimension_numbers = #tpu.dot_dimension_numbers<[1], [0], [0], [1], [0, 0, 1, 1], [], []>} : vector<18x72xf32>, vector<72x128xf32>, vector<18x128xf32> -> vector<18x128xf32>
    %c2_221 = arith.constant 2 : index
    %c0_222 = arith.constant 0 : index
    %c0_223 = arith.constant 0 : index
    %253 = vector.load %arg9[%c2_221, %c0_222, %c0_223] : memref<9x128x128xf32, #tpu.memory_space<vmem>>, vector<1x128x128xf32>
    %254 = vector.shape_cast %253 : vector<1x128x128xf32> to vector<128x128xf32>
    %cst_224 = arith.constant dense<0.000000e+00> : vector<18x128xf32>
    %255 = tpu.matmul %252, %254, %cst_224 {dimension_numbers = #tpu.dot_dimension_numbers<[1], [0], [0], [1], [0, 0, 1, 1], [], []>} : vector<18x128xf32>, vector<128x128xf32>, vector<18x128xf32> -> vector<18x128xf32>
    %256 = arith.addf %249, %255 : vector<18x128xf32>
    %c3_225 = arith.constant 3 : index
    %c0_226 = arith.constant 0 : index
    %c0_227 = arith.constant 0 : index
    %257 = vector.load %arg8[%c3_225, %c0_226, %c0_227] : memref<9x18x72xf32, #tpu.memory_space<vmem>>, vector<1x18x72xf32>
    %258 = vector.shape_cast %257 : vector<1x18x72xf32> to vector<18x72xf32>
    %cst_228 = arith.constant dense<0.000000e+00> : vector<18x128xf32>
    %259 = tpu.matmul %258, %234, %cst_228 {dimension_numbers = #tpu.dot_dimension_numbers<[1], [0], [0], [1], [0, 0, 1, 1], [], []>} : vector<18x72xf32>, vector<72x128xf32>, vector<18x128xf32> -> vector<18x128xf32>
    %c3_229 = arith.constant 3 : index
    %c0_230 = arith.constant 0 : index
    %c0_231 = arith.constant 0 : index
    %260 = vector.load %arg9[%c3_229, %c0_230, %c0_231] : memref<9x128x128xf32, #tpu.memory_space<vmem>>, vector<1x128x128xf32>
    %261 = vector.shape_cast %260 : vector<1x128x128xf32> to vector<128x128xf32>
    %cst_232 = arith.constant dense<0.000000e+00> : vector<18x128xf32>
    %262 = tpu.matmul %259, %261, %cst_232 {dimension_numbers = #tpu.dot_dimension_numbers<[1], [0], [0], [1], [0, 0, 1, 1], [], []>} : vector<18x128xf32>, vector<128x128xf32>, vector<18x128xf32> -> vector<18x128xf32>
    %263 = arith.addf %256, %262 : vector<18x128xf32>
    %c4_233 = arith.constant 4 : index
    %c0_234 = arith.constant 0 : index
    %c0_235 = arith.constant 0 : index
    %264 = vector.load %arg8[%c4_233, %c0_234, %c0_235] : memref<9x18x72xf32, #tpu.memory_space<vmem>>, vector<1x18x72xf32>
    %265 = vector.shape_cast %264 : vector<1x18x72xf32> to vector<18x72xf32>
    %cst_236 = arith.constant dense<0.000000e+00> : vector<18x128xf32>
    %266 = tpu.matmul %265, %234, %cst_236 {dimension_numbers = #tpu.dot_dimension_numbers<[1], [0], [0], [1], [0, 0, 1, 1], [], []>} : vector<18x72xf32>, vector<72x128xf32>, vector<18x128xf32> -> vector<18x128xf32>
    %c4_237 = arith.constant 4 : index
    %c0_238 = arith.constant 0 : index
    %c0_239 = arith.constant 0 : index
    %267 = vector.load %arg9[%c4_237, %c0_238, %c0_239] : memref<9x128x128xf32, #tpu.memory_space<vmem>>, vector<1x128x128xf32>
    %268 = vector.shape_cast %267 : vector<1x128x128xf32> to vector<128x128xf32>
    %cst_240 = arith.constant dense<0.000000e+00> : vector<18x128xf32>
    %269 = tpu.matmul %266, %268, %cst_240 {dimension_numbers = #tpu.dot_dimension_numbers<[1], [0], [0], [1], [0, 0, 1, 1], [], []>} : vector<18x128xf32>, vector<128x128xf32>, vector<18x128xf32> -> vector<18x128xf32>
    %270 = arith.addf %263, %269 : vector<18x128xf32>
    %c5_241 = arith.constant 5 : index
    %c0_242 = arith.constant 0 : index
    %c0_243 = arith.constant 0 : index
    %271 = vector.load %arg8[%c5_241, %c0_242, %c0_243] : memref<9x18x72xf32, #tpu.memory_space<vmem>>, vector<1x18x72xf32>
    %272 = vector.shape_cast %271 : vector<1x18x72xf32> to vector<18x72xf32>
    %cst_244 = arith.constant dense<0.000000e+00> : vector<18x128xf32>
    %273 = tpu.matmul %272, %234, %cst_244 {dimension_numbers = #tpu.dot_dimension_numbers<[1], [0], [0], [1], [0, 0, 1, 1], [], []>} : vector<18x72xf32>, vector<72x128xf32>, vector<18x128xf32> -> vector<18x128xf32>
    %c5_245 = arith.constant 5 : index
    %c0_246 = arith.constant 0 : index
    %c0_247 = arith.constant 0 : index
    %274 = vector.load %arg9[%c5_245, %c0_246, %c0_247] : memref<9x128x128xf32, #tpu.memory_space<vmem>>, vector<1x128x128xf32>
    %275 = vector.shape_cast %274 : vector<1x128x128xf32> to vector<128x128xf32>
    %cst_248 = arith.constant dense<0.000000e+00> : vector<18x128xf32>
    %276 = tpu.matmul %273, %275, %cst_248 {dimension_numbers = #tpu.dot_dimension_numbers<[1], [0], [0], [1], [0, 0, 1, 1], [], []>} : vector<18x128xf32>, vector<128x128xf32>, vector<18x128xf32> -> vector<18x128xf32>
    %277 = arith.addf %270, %276 : vector<18x128xf32>
    %c6_249 = arith.constant 6 : index
    %c0_250 = arith.constant 0 : index
    %c0_251 = arith.constant 0 : index
    %278 = vector.load %arg8[%c6_249, %c0_250, %c0_251] : memref<9x18x72xf32, #tpu.memory_space<vmem>>, vector<1x18x72xf32>
    %279 = vector.shape_cast %278 : vector<1x18x72xf32> to vector<18x72xf32>
    %cst_252 = arith.constant dense<0.000000e+00> : vector<18x128xf32>
    %280 = tpu.matmul %279, %234, %cst_252 {dimension_numbers = #tpu.dot_dimension_numbers<[1], [0], [0], [1], [0, 0, 1, 1], [], []>} : vector<18x72xf32>, vector<72x128xf32>, vector<18x128xf32> -> vector<18x128xf32>
    %c6_253 = arith.constant 6 : index
    %c0_254 = arith.constant 0 : index
    %c0_255 = arith.constant 0 : index
    %281 = vector.load %arg9[%c6_253, %c0_254, %c0_255] : memref<9x128x128xf32, #tpu.memory_space<vmem>>, vector<1x128x128xf32>
    %282 = vector.shape_cast %281 : vector<1x128x128xf32> to vector<128x128xf32>
    %cst_256 = arith.constant dense<0.000000e+00> : vector<18x128xf32>
    %283 = tpu.matmul %280, %282, %cst_256 {dimension_numbers = #tpu.dot_dimension_numbers<[1], [0], [0], [1], [0, 0, 1, 1], [], []>} : vector<18x128xf32>, vector<128x128xf32>, vector<18x128xf32> -> vector<18x128xf32>
    %284 = arith.addf %277, %283 : vector<18x128xf32>
    %c7_257 = arith.constant 7 : index
    %c0_258 = arith.constant 0 : index
    %c0_259 = arith.constant 0 : index
    %285 = vector.load %arg8[%c7_257, %c0_258, %c0_259] : memref<9x18x72xf32, #tpu.memory_space<vmem>>, vector<1x18x72xf32>
    %286 = vector.shape_cast %285 : vector<1x18x72xf32> to vector<18x72xf32>
    %cst_260 = arith.constant dense<0.000000e+00> : vector<18x128xf32>
    %287 = tpu.matmul %286, %234, %cst_260 {dimension_numbers = #tpu.dot_dimension_numbers<[1], [0], [0], [1], [0, 0, 1, 1], [], []>} : vector<18x72xf32>, vector<72x128xf32>, vector<18x128xf32> -> vector<18x128xf32>
    %c7_261 = arith.constant 7 : index
    %c0_262 = arith.constant 0 : index
    %c0_263 = arith.constant 0 : index
    %288 = vector.load %arg9[%c7_261, %c0_262, %c0_263] : memref<9x128x128xf32, #tpu.memory_space<vmem>>, vector<1x128x128xf32>
    %289 = vector.shape_cast %288 : vector<1x128x128xf32> to vector<128x128xf32>
    %cst_264 = arith.constant dense<0.000000e+00> : vector<18x128xf32>
    %290 = tpu.matmul %287, %289, %cst_264 {dimension_numbers = #tpu.dot_dimension_numbers<[1], [0], [0], [1], [0, 0, 1, 1], [], []>} : vector<18x128xf32>, vector<128x128xf32>, vector<18x128xf32> -> vector<18x128xf32>
    %291 = arith.addf %284, %290 : vector<18x128xf32>
    %c8_265 = arith.constant 8 : index
    %c0_266 = arith.constant 0 : index
    %c0_267 = arith.constant 0 : index
    %292 = vector.load %arg8[%c8_265, %c0_266, %c0_267] : memref<9x18x72xf32, #tpu.memory_space<vmem>>, vector<1x18x72xf32>
    %293 = vector.shape_cast %292 : vector<1x18x72xf32> to vector<18x72xf32>
    %cst_268 = arith.constant dense<0.000000e+00> : vector<18x128xf32>
    %294 = tpu.matmul %293, %234, %cst_268 {dimension_numbers = #tpu.dot_dimension_numbers<[1], [0], [0], [1], [0, 0, 1, 1], [], []>} : vector<18x72xf32>, vector<72x128xf32>, vector<18x128xf32> -> vector<18x128xf32>
    %c8_269 = arith.constant 8 : index
    %c0_270 = arith.constant 0 : index
    %c0_271 = arith.constant 0 : index
    %295 = vector.load %arg9[%c8_269, %c0_270, %c0_271] : memref<9x128x128xf32, #tpu.memory_space<vmem>>, vector<1x128x128xf32>
    %296 = vector.shape_cast %295 : vector<1x128x128xf32> to vector<128x128xf32>
    %cst_272 = arith.constant dense<0.000000e+00> : vector<18x128xf32>
    %297 = tpu.matmul %294, %296, %cst_272 {dimension_numbers = #tpu.dot_dimension_numbers<[1], [0], [0], [1], [0, 0, 1, 1], [], []>} : vector<18x128xf32>, vector<128x128xf32>, vector<18x128xf32> -> vector<18x128xf32>
    %298 = arith.addf %291, %297 : vector<18x128xf32>
    %c0_273 = arith.constant 0 : index
    %c0_274 = arith.constant 0 : index
    %299 = vector.load %arg10[%c0_273, %c0_274] : memref<1x128xf32, #tpu.memory_space<vmem>>, vector<1x128xf32>
    %c0_275 = arith.constant 0 : index
    %c0_276 = arith.constant 0 : index
    %300 = vector.load %arg11[%c0_275, %c0_276] : memref<1x128xf32, #tpu.memory_space<vmem>>, vector<1x128xf32>
    %cst_277 = arith.constant dense<0.000000e+00> : vector<128xf32>
    %301 = vector.multi_reduction <add>, %298, %cst_277 [0] : vector<18x128xf32> to vector<128xf32>
    %302 = vector.shape_cast %301 : vector<128xf32> to vector<1x128xf32>
    %cst_278 = arith.constant 1.800000e+01 : f32
    %303 = vector.broadcast %cst_278 : f32 to vector<1x128xf32>
    %304 = arith.divf %302, %303 : vector<1x128xf32>
    %305 = vector.broadcast %304 : vector<1x128xf32> to vector<18x128xf32>
    %306 = arith.subf %298, %305 : vector<18x128xf32>
    %307 = vector.broadcast %304 : vector<1x128xf32> to vector<18x128xf32>
    %308 = arith.subf %298, %307 : vector<18x128xf32>
    %309 = arith.mulf %306, %308 : vector<18x128xf32>
    %cst_279 = arith.constant dense<0.000000e+00> : vector<128xf32>
    %310 = vector.multi_reduction <add>, %309, %cst_279 [0] : vector<18x128xf32> to vector<128xf32>
    %311 = vector.shape_cast %310 : vector<128xf32> to vector<1x128xf32>
    %cst_280 = arith.constant 1.800000e+01 : f32
    %312 = vector.broadcast %cst_280 : f32 to vector<1x128xf32>
    %313 = arith.divf %311, %312 : vector<1x128xf32>
    %314 = vector.broadcast %304 : vector<1x128xf32> to vector<18x128xf32>
    %315 = arith.subf %298, %314 : vector<18x128xf32>
    %316 = vector.broadcast %299 : vector<1x128xf32> to vector<18x128xf32>
    %317 = arith.mulf %316, %315 : vector<18x128xf32>
    %cst_281 = arith.constant 9.99999974E-6 : f32
    %318 = vector.broadcast %cst_281 : f32 to vector<1x128xf32>
    %319 = arith.addf %313, %318 : vector<1x128xf32>
    %320 = math.rsqrt %319 : vector<1x128xf32>
    %321 = vector.broadcast %320 : vector<1x128xf32> to vector<18x128xf32>
    %322 = arith.mulf %317, %321 : vector<18x128xf32>
    %323 = vector.broadcast %300 : vector<1x128xf32> to vector<18x128xf32>
    %324 = arith.addf %322, %323 : vector<18x128xf32>
    %cst_282 = arith.constant 0.000000e+00 : f32
    %325 = vector.broadcast %cst_282 : f32 to vector<18x128xf32>
    %326 = arith.maximumf %324, %325 : vector<18x128xf32>
    %cst_283 = arith.constant 0.000000e+00 : f32
    %327 = vector.broadcast %cst_283 : f32 to vector<2x128xf32>
    %c0_284 = arith.constant 0 : index
    %c0_285 = arith.constant 0 : index
    %c0_286 = arith.constant 0 : index
    %328 = vector.load %arg12[%c0_284, %c0_285, %c0_286] : memref<9x2x18xf32, #tpu.memory_space<vmem>>, vector<1x2x18xf32>
    %329 = vector.shape_cast %328 : vector<1x2x18xf32> to vector<2x18xf32>
    %cst_287 = arith.constant dense<0.000000e+00> : vector<2x128xf32>
    %330 = tpu.matmul %329, %326, %cst_287 {dimension_numbers = #tpu.dot_dimension_numbers<[1], [0], [0], [1], [0, 0, 1, 1], [], []>} : vector<2x18xf32>, vector<18x128xf32>, vector<2x128xf32> -> vector<2x128xf32>
    %c0_288 = arith.constant 0 : index
    %c0_289 = arith.constant 0 : index
    %c0_290 = arith.constant 0 : index
    %331 = vector.load %arg13[%c0_288, %c0_289, %c0_290] : memref<9x128x128xf32, #tpu.memory_space<vmem>>, vector<1x128x128xf32>
    %332 = vector.shape_cast %331 : vector<1x128x128xf32> to vector<128x128xf32>
    %cst_291 = arith.constant dense<0.000000e+00> : vector<2x128xf32>
    %333 = tpu.matmul %330, %332, %cst_291 {dimension_numbers = #tpu.dot_dimension_numbers<[1], [0], [0], [1], [0, 0, 1, 1], [], []>} : vector<2x128xf32>, vector<128x128xf32>, vector<2x128xf32> -> vector<2x128xf32>
    %334 = arith.addf %327, %333 : vector<2x128xf32>
    %c1_292 = arith.constant 1 : index
    %c0_293 = arith.constant 0 : index
    %c0_294 = arith.constant 0 : index
    %335 = vector.load %arg12[%c1_292, %c0_293, %c0_294] : memref<9x2x18xf32, #tpu.memory_space<vmem>>, vector<1x2x18xf32>
    %336 = vector.shape_cast %335 : vector<1x2x18xf32> to vector<2x18xf32>
    %cst_295 = arith.constant dense<0.000000e+00> : vector<2x128xf32>
    %337 = tpu.matmul %336, %326, %cst_295 {dimension_numbers = #tpu.dot_dimension_numbers<[1], [0], [0], [1], [0, 0, 1, 1], [], []>} : vector<2x18xf32>, vector<18x128xf32>, vector<2x128xf32> -> vector<2x128xf32>
    %c1_296 = arith.constant 1 : index
    %c0_297 = arith.constant 0 : index
    %c0_298 = arith.constant 0 : index
    %338 = vector.load %arg13[%c1_296, %c0_297, %c0_298] : memref<9x128x128xf32, #tpu.memory_space<vmem>>, vector<1x128x128xf32>
    %339 = vector.shape_cast %338 : vector<1x128x128xf32> to vector<128x128xf32>
    %cst_299 = arith.constant dense<0.000000e+00> : vector<2x128xf32>
    %340 = tpu.matmul %337, %339, %cst_299 {dimension_numbers = #tpu.dot_dimension_numbers<[1], [0], [0], [1], [0, 0, 1, 1], [], []>} : vector<2x128xf32>, vector<128x128xf32>, vector<2x128xf32> -> vector<2x128xf32>
    %341 = arith.addf %334, %340 : vector<2x128xf32>
    %c2_300 = arith.constant 2 : index
    %c0_301 = arith.constant 0 : index
    %c0_302 = arith.constant 0 : index
    %342 = vector.load %arg12[%c2_300, %c0_301, %c0_302] : memref<9x2x18xf32, #tpu.memory_space<vmem>>, vector<1x2x18xf32>
    %343 = vector.shape_cast %342 : vector<1x2x18xf32> to vector<2x18xf32>
    %cst_303 = arith.constant dense<0.000000e+00> : vector<2x128xf32>
    %344 = tpu.matmul %343, %326, %cst_303 {dimension_numbers = #tpu.dot_dimension_numbers<[1], [0], [0], [1], [0, 0, 1, 1], [], []>} : vector<2x18xf32>, vector<18x128xf32>, vector<2x128xf32> -> vector<2x128xf32>
    %c2_304 = arith.constant 2 : index
    %c0_305 = arith.constant 0 : index
    %c0_306 = arith.constant 0 : index
    %345 = vector.load %arg13[%c2_304, %c0_305, %c0_306] : memref<9x128x128xf32, #tpu.memory_space<vmem>>, vector<1x128x128xf32>
    %346 = vector.shape_cast %345 : vector<1x128x128xf32> to vector<128x128xf32>
    %cst_307 = arith.constant dense<0.000000e+00> : vector<2x128xf32>
    %347 = tpu.matmul %344, %346, %cst_307 {dimension_numbers = #tpu.dot_dimension_numbers<[1], [0], [0], [1], [0, 0, 1, 1], [], []>} : vector<2x128xf32>, vector<128x128xf32>, vector<2x128xf32> -> vector<2x128xf32>
    %348 = arith.addf %341, %347 : vector<2x128xf32>
    %c3_308 = arith.constant 3 : index
    %c0_309 = arith.constant 0 : index
    %c0_310 = arith.constant 0 : index
    %349 = vector.load %arg12[%c3_308, %c0_309, %c0_310] : memref<9x2x18xf32, #tpu.memory_space<vmem>>, vector<1x2x18xf32>
    %350 = vector.shape_cast %349 : vector<1x2x18xf32> to vector<2x18xf32>
    %cst_311 = arith.constant dense<0.000000e+00> : vector<2x128xf32>
    %351 = tpu.matmul %350, %326, %cst_311 {dimension_numbers = #tpu.dot_dimension_numbers<[1], [0], [0], [1], [0, 0, 1, 1], [], []>} : vector<2x18xf32>, vector<18x128xf32>, vector<2x128xf32> -> vector<2x128xf32>
    %c3_312 = arith.constant 3 : index
    %c0_313 = arith.constant 0 : index
    %c0_314 = arith.constant 0 : index
    %352 = vector.load %arg13[%c3_312, %c0_313, %c0_314] : memref<9x128x128xf32, #tpu.memory_space<vmem>>, vector<1x128x128xf32>
    %353 = vector.shape_cast %352 : vector<1x128x128xf32> to vector<128x128xf32>
    %cst_315 = arith.constant dense<0.000000e+00> : vector<2x128xf32>
    %354 = tpu.matmul %351, %353, %cst_315 {dimension_numbers = #tpu.dot_dimension_numbers<[1], [0], [0], [1], [0, 0, 1, 1], [], []>} : vector<2x128xf32>, vector<128x128xf32>, vector<2x128xf32> -> vector<2x128xf32>
    %355 = arith.addf %348, %354 : vector<2x128xf32>
    %c4_316 = arith.constant 4 : index
    %c0_317 = arith.constant 0 : index
    %c0_318 = arith.constant 0 : index
    %356 = vector.load %arg12[%c4_316, %c0_317, %c0_318] : memref<9x2x18xf32, #tpu.memory_space<vmem>>, vector<1x2x18xf32>
    %357 = vector.shape_cast %356 : vector<1x2x18xf32> to vector<2x18xf32>
    %cst_319 = arith.constant dense<0.000000e+00> : vector<2x128xf32>
    %358 = tpu.matmul %357, %326, %cst_319 {dimension_numbers = #tpu.dot_dimension_numbers<[1], [0], [0], [1], [0, 0, 1, 1], [], []>} : vector<2x18xf32>, vector<18x128xf32>, vector<2x128xf32> -> vector<2x128xf32>
    %c4_320 = arith.constant 4 : index
    %c0_321 = arith.constant 0 : index
    %c0_322 = arith.constant 0 : index
    %359 = vector.load %arg13[%c4_320, %c0_321, %c0_322] : memref<9x128x128xf32, #tpu.memory_space<vmem>>, vector<1x128x128xf32>
    %360 = vector.shape_cast %359 : vector<1x128x128xf32> to vector<128x128xf32>
    %cst_323 = arith.constant dense<0.000000e+00> : vector<2x128xf32>
    %361 = tpu.matmul %358, %360, %cst_323 {dimension_numbers = #tpu.dot_dimension_numbers<[1], [0], [0], [1], [0, 0, 1, 1], [], []>} : vector<2x128xf32>, vector<128x128xf32>, vector<2x128xf32> -> vector<2x128xf32>
    %362 = arith.addf %355, %361 : vector<2x128xf32>
    %c5_324 = arith.constant 5 : index
    %c0_325 = arith.constant 0 : index
    %c0_326 = arith.constant 0 : index
    %363 = vector.load %arg12[%c5_324, %c0_325, %c0_326] : memref<9x2x18xf32, #tpu.memory_space<vmem>>, vector<1x2x18xf32>
    %364 = vector.shape_cast %363 : vector<1x2x18xf32> to vector<2x18xf32>
    %cst_327 = arith.constant dense<0.000000e+00> : vector<2x128xf32>
    %365 = tpu.matmul %364, %326, %cst_327 {dimension_numbers = #tpu.dot_dimension_numbers<[1], [0], [0], [1], [0, 0, 1, 1], [], []>} : vector<2x18xf32>, vector<18x128xf32>, vector<2x128xf32> -> vector<2x128xf32>
    %c5_328 = arith.constant 5 : index
    %c0_329 = arith.constant 0 : index
    %c0_330 = arith.constant 0 : index
    %366 = vector.load %arg13[%c5_328, %c0_329, %c0_330] : memref<9x128x128xf32, #tpu.memory_space<vmem>>, vector<1x128x128xf32>
    %367 = vector.shape_cast %366 : vector<1x128x128xf32> to vector<128x128xf32>
    %cst_331 = arith.constant dense<0.000000e+00> : vector<2x128xf32>
    %368 = tpu.matmul %365, %367, %cst_331 {dimension_numbers = #tpu.dot_dimension_numbers<[1], [0], [0], [1], [0, 0, 1, 1], [], []>} : vector<2x128xf32>, vector<128x128xf32>, vector<2x128xf32> -> vector<2x128xf32>
    %369 = arith.addf %362, %368 : vector<2x128xf32>
    %c6_332 = arith.constant 6 : index
    %c0_333 = arith.constant 0 : index
    %c0_334 = arith.constant 0 : index
    %370 = vector.load %arg12[%c6_332, %c0_333, %c0_334] : memref<9x2x18xf32, #tpu.memory_space<vmem>>, vector<1x2x18xf32>
    %371 = vector.shape_cast %370 : vector<1x2x18xf32> to vector<2x18xf32>
    %cst_335 = arith.constant dense<0.000000e+00> : vector<2x128xf32>
    %372 = tpu.matmul %371, %326, %cst_335 {dimension_numbers = #tpu.dot_dimension_numbers<[1], [0], [0], [1], [0, 0, 1, 1], [], []>} : vector<2x18xf32>, vector<18x128xf32>, vector<2x128xf32> -> vector<2x128xf32>
    %c6_336 = arith.constant 6 : index
    %c0_337 = arith.constant 0 : index
    %c0_338 = arith.constant 0 : index
    %373 = vector.load %arg13[%c6_336, %c0_337, %c0_338] : memref<9x128x128xf32, #tpu.memory_space<vmem>>, vector<1x128x128xf32>
    %374 = vector.shape_cast %373 : vector<1x128x128xf32> to vector<128x128xf32>
    %cst_339 = arith.constant dense<0.000000e+00> : vector<2x128xf32>
    %375 = tpu.matmul %372, %374, %cst_339 {dimension_numbers = #tpu.dot_dimension_numbers<[1], [0], [0], [1], [0, 0, 1, 1], [], []>} : vector<2x128xf32>, vector<128x128xf32>, vector<2x128xf32> -> vector<2x128xf32>
    %376 = arith.addf %369, %375 : vector<2x128xf32>
    %c7_340 = arith.constant 7 : index
    %c0_341 = arith.constant 0 : index
    %c0_342 = arith.constant 0 : index
    %377 = vector.load %arg12[%c7_340, %c0_341, %c0_342] : memref<9x2x18xf32, #tpu.memory_space<vmem>>, vector<1x2x18xf32>
    %378 = vector.shape_cast %377 : vector<1x2x18xf32> to vector<2x18xf32>
    %cst_343 = arith.constant dense<0.000000e+00> : vector<2x128xf32>
    %379 = tpu.matmul %378, %326, %cst_343 {dimension_numbers = #tpu.dot_dimension_numbers<[1], [0], [0], [1], [0, 0, 1, 1], [], []>} : vector<2x18xf32>, vector<18x128xf32>, vector<2x128xf32> -> vector<2x128xf32>
    %c7_344 = arith.constant 7 : index
    %c0_345 = arith.constant 0 : index
    %c0_346 = arith.constant 0 : index
    %380 = vector.load %arg13[%c7_344, %c0_345, %c0_346] : memref<9x128x128xf32, #tpu.memory_space<vmem>>, vector<1x128x128xf32>
    %381 = vector.shape_cast %380 : vector<1x128x128xf32> to vector<128x128xf32>
    %cst_347 = arith.constant dense<0.000000e+00> : vector<2x128xf32>
    %382 = tpu.matmul %379, %381, %cst_347 {dimension_numbers = #tpu.dot_dimension_numbers<[1], [0], [0], [1], [0, 0, 1, 1], [], []>} : vector<2x128xf32>, vector<128x128xf32>, vector<2x128xf32> -> vector<2x128xf32>
    %383 = arith.addf %376, %382 : vector<2x128xf32>
    %c8_348 = arith.constant 8 : index
    %c0_349 = arith.constant 0 : index
    %c0_350 = arith.constant 0 : index
    %384 = vector.load %arg12[%c8_348, %c0_349, %c0_350] : memref<9x2x18xf32, #tpu.memory_space<vmem>>, vector<1x2x18xf32>
    %385 = vector.shape_cast %384 : vector<1x2x18xf32> to vector<2x18xf32>
    %cst_351 = arith.constant dense<0.000000e+00> : vector<2x128xf32>
    %386 = tpu.matmul %385, %326, %cst_351 {dimension_numbers = #tpu.dot_dimension_numbers<[1], [0], [0], [1], [0, 0, 1, 1], [], []>} : vector<2x18xf32>, vector<18x128xf32>, vector<2x128xf32> -> vector<2x128xf32>
    %c8_352 = arith.constant 8 : index
    %c0_353 = arith.constant 0 : index
    %c0_354 = arith.constant 0 : index
    %387 = vector.load %arg13[%c8_352, %c0_353, %c0_354] : memref<9x128x128xf32, #tpu.memory_space<vmem>>, vector<1x128x128xf32>
    %388 = vector.shape_cast %387 : vector<1x128x128xf32> to vector<128x128xf32>
    %cst_355 = arith.constant dense<0.000000e+00> : vector<2x128xf32>
    %389 = tpu.matmul %386, %388, %cst_355 {dimension_numbers = #tpu.dot_dimension_numbers<[1], [0], [0], [1], [0, 0, 1, 1], [], []>} : vector<2x128xf32>, vector<128x128xf32>, vector<2x128xf32> -> vector<2x128xf32>
    %390 = arith.addf %383, %389 : vector<2x128xf32>
    %c0_356 = arith.constant 0 : index
    %c0_357 = arith.constant 0 : index
    %391 = vector.load %arg14[%c0_356, %c0_357] : memref<1x128xf32, #tpu.memory_space<vmem>>, vector<1x128xf32>
    %c0_358 = arith.constant 0 : index
    %c0_359 = arith.constant 0 : index
    %392 = vector.load %arg15[%c0_358, %c0_359] : memref<1x128xf32, #tpu.memory_space<vmem>>, vector<1x128xf32>
    %cst_360 = arith.constant dense<0.000000e+00> : vector<128xf32>
    %393 = vector.multi_reduction <add>, %390, %cst_360 [0] : vector<2x128xf32> to vector<128xf32>
    %394 = vector.shape_cast %393 : vector<128xf32> to vector<1x128xf32>
    %cst_361 = arith.constant 2.000000e+00 : f32
    %395 = vector.broadcast %cst_361 : f32 to vector<1x128xf32>
    %396 = arith.divf %394, %395 : vector<1x128xf32>
    %397 = vector.broadcast %396 : vector<1x128xf32> to vector<2x128xf32>
    %398 = arith.subf %390, %397 : vector<2x128xf32>
    %399 = vector.broadcast %396 : vector<1x128xf32> to vector<2x128xf32>
    %400 = arith.subf %390, %399 : vector<2x128xf32>
    %401 = arith.mulf %398, %400 : vector<2x128xf32>
    %cst_362 = arith.constant dense<0.000000e+00> : vector<128xf32>
    %402 = vector.multi_reduction <add>, %401, %cst_362 [0] : vector<2x128xf32> to vector<128xf32>
    %403 = vector.shape_cast %402 : vector<128xf32> to vector<1x128xf32>
    %cst_363 = arith.constant 2.000000e+00 : f32
    %404 = vector.broadcast %cst_363 : f32 to vector<1x128xf32>
    %405 = arith.divf %403, %404 : vector<1x128xf32>
    %406 = vector.broadcast %396 : vector<1x128xf32> to vector<2x128xf32>
    %407 = arith.subf %390, %406 : vector<2x128xf32>
    %408 = vector.broadcast %391 : vector<1x128xf32> to vector<2x128xf32>
    %409 = arith.mulf %408, %407 : vector<2x128xf32>
    %cst_364 = arith.constant 9.99999974E-6 : f32
    %410 = vector.broadcast %cst_364 : f32 to vector<1x128xf32>
    %411 = arith.addf %405, %410 : vector<1x128xf32>
    %412 = math.rsqrt %411 : vector<1x128xf32>
    %413 = vector.broadcast %412 : vector<1x128xf32> to vector<2x128xf32>
    %414 = arith.mulf %409, %413 : vector<2x128xf32>
    %415 = vector.broadcast %392 : vector<1x128xf32> to vector<2x128xf32>
    %416 = arith.addf %414, %415 : vector<2x128xf32>
    %c0_365 = arith.constant 0 : index
    %c0_366 = arith.constant 0 : index
    %417 = vector.load %arg16[%c0_365, %c0_366] : memref<2x128xf32, #tpu.memory_space<vmem>>, vector<2x128xf32>
    tpu.vector_store %arg16[%c0_365, %c0_366], %416 {strides = array<i32>} : memref<2x128xf32, #tpu.memory_space<vmem>>, vector<2x128xf32>,
    return
  }
}

</mosaic_0001>

<llo_original>
// kernel: cnn_forward_pallas.1
$region0: #{cnn_forward_pallas.1}
  #allocation0 [shape = 'u32[]', space=smem, size = 0x4, offset = 0x4, fixed_abs, tag = 'smem constant byte address 0x4 - core index']
  #allocation1 [shape = 'u32[72,128]{1,0:T(1,128)}', space=vmem, size = 0x9000, scoped, tag = 'internal scratch']
  %s0 = inlined_call_operand.vmem [shape: f32[338,128], index: 0, kind: input, shape index: {}]
  %s1 = inlined_call_operand.vmem [shape: f32[128,128], index: 1, kind: input, shape index: {}]
  %s2 = inlined_call_operand.vmem [shape: f32[1,128], index: 2, kind: input, shape index: {}]
  %s3 = inlined_call_operand.vmem [shape: f32[1,128], index: 3, kind: input, shape index: {}, may-alias: {3,7,11,15}]
  %s4 = inlined_call_operand.vmem [shape: f32[25,72,338], index: 4, kind: input, shape index: {}]
  %s5 = inlined_call_operand.hbm [shape: f32[25,128,128], index: 5, kind: input, shape index: {}]
  %s6 = inlined_call_operand.vmem [shape: f32[1,128], index: 6, kind: input, shape index: {}]
  %s7 = inlined_call_operand.vmem [shape: f32[1,128], index: 7, kind: input, shape index: {}, may-alias: {3,7,11,15}]
  %s8 = inlined_call_operand.vmem [shape: f32[9,18,72], index: 8, kind: input, shape index: {}]
  %s9 = inlined_call_operand.hbm [shape: f32[9,128,128], index: 9, kind: input, shape index: {}]
  %s10 = inlined_call_operand.vmem [shape: f32[1,128], index: 10, kind: input, shape index: {}]
  %s11 = inlined_call_operand.vmem [shape: f32[1,128], index: 11, kind: input, shape index: {}, may-alias: {3,7,11,15}]
  %s12 = inlined_call_operand.vmem [shape: f32[9,2,18], index: 12, kind: input, shape index: {}]
  %s13 = inlined_call_operand.hbm [shape: f32[9,128,128], index: 13, kind: input, shape index: {}]
  %s14 = inlined_call_operand.vmem [shape: f32[1,128], index: 14, kind: input, shape index: {}]
  %s15 = inlined_call_operand.vmem [shape: f32[1,128], index: 15, kind: input, shape index: {}, may-alias: {3,7,11,15}]
  %s16 = inlined_call_operand.hbm [shape: f32[2,128], index: 16, kind: output, shape index: {}]
  %s17 = sld [smem:[#allocation0]]
  $region86: #{cnn_forward_pallas.1} parent=0
    _
  %s19 = ssub.s32 1, %s17
  %s20 = scalar_select 0, %s19, %s17
  $region1: #{cnn_forward_pallas.1} parent=0
    #allocation2 [shape = 'u8[1638400]{0}', space=vmem, size = 0x190000, scoped, tag = 'input window, operand 5, single buffered']
    #allocation3 [shape = 's32[1]{0}', space=sflag, size = 0x4, scoped, tag = 'scoped memory for cnn_forward_pallas.1']
    #allocation4 [shape = 's32[1]{0}', space=sflag, size = 0x4, scoped, tag = 'scoped memory for cnn_forward_pallas.1']
    #allocation5 [shape = 'u8[589824]{0}', space=vmem, size = 0x90000, scoped, tag = 'input window, operand 9, single buffered']
    #allocation6 [shape = 's32[1]{0}', space=sflag, size = 0x4, scoped, tag = 'scoped memory for cnn_forward_pallas.1']
    #allocation7 [shape = 'u8[589824]{0}', space=vmem, size = 0x90000, scoped, tag = 'input window, operand 13, single buffered']
    #allocation8 [shape = 'u8[1024]{0}', space=vmem, size = 0x400, scoped, tag = 'output window, operand 0, single buffered']
    %21 = vsyncpa [#allocation3], 0
    %22 = vsyncpa [#allocation6], 0
    %23 = vsyncpa [#allocation4], 0
    // Predicated region
    $region2: #{cnn_forward_pallas.1} parent=1 // pred_check
      _
    $region3: #{cnn_forward_pallas.1} parent=1 // pred_check_branch
      %25 = sbr.rel (0) target = $region5
    $region4: #{cnn_forward_pallas.1} parent=1 // pred_region
      _
    $region5: #{cnn_forward_pallas.1} parent=1 // pred_fallthru
      _
    // Predicated region
    $region6: #{cnn_forward_pallas.1} parent=1 // pred_check
      _
    $region7: #{cnn_forward_pallas.1} parent=1 // pred_check_branch
      %27 = sbr.rel (0) target = $region9
    $region8: #{cnn_forward_pallas.1} parent=1 // pred_region
      _
    $region9: #{cnn_forward_pallas.1} parent=1 // pred_fallthru
      _
    // Predicated region
    $region10: #{cnn_forward_pallas.1} parent=1 // pred_check
      _
    $region11: #{cnn_forward_pallas.1} parent=1 // pred_check_branch
      %29 = sbr.rel (0) target = $region13
    $region12: #{cnn_forward_pallas.1} parent=1 // pred_region
      _
    $region13: #{cnn_forward_pallas.1} parent=1 // pred_fallthru
      _
    // Predicated region
    $region14: #{cnn_forward_pallas.1} parent=1 // pred_check
      _
    $region15: #{cnn_forward_pallas.1} parent=1 // pred_check_branch
      %31 = sbr.rel (0) target = $region17
    $region16: #{cnn_forward_pallas.1} parent=1 // pred_region
      _
    $region17: #{cnn_forward_pallas.1} parent=1 // pred_fallthru
      _
    // Predicated region
    $region18: #{cnn_forward_pallas.1} parent=1 // pred_check
      _
    $region19: #{cnn_forward_pallas.1} parent=1 // pred_check_branch
      %33 = sbr.rel (0) target = $region21
    $region20: #{cnn_forward_pallas.1} parent=1 // pred_region
      _
    $region21: #{cnn_forward_pallas.1} parent=1 // pred_fallthru
      _
    // Predicated region
    $region22: #{cnn_forward_pallas.1} parent=1 // pred_check
      _
    $region23: #{cnn_forward_pallas.1} parent=1 // pred_check_branch
      %35 = sbr.rel (0) target = $region25
    $region24: #{cnn_forward_pallas.1} parent=1 // pred_region
      %37 = vsyncadd [#allocation3], 0
      %s38 = sshll.u32 %s5, 4
      %s39 = int_to_ptr.hbm [resolvable:$true] %s38
      %s40 = sshll.u32 [#allocation2], 4
      %s41 = int_to_ptr.vmem [resolvable:$true] %s40
      %46 = dma.hbm_to_vmem [thread:$0]  %s39, 51200, %s41, [#allocation3], 128, 128, 8
    $region25: #{cnn_forward_pallas.1} parent=1 // pred_fallthru
      _
    // Predicated region
    $region26: #{cnn_forward_pallas.1} parent=1 // pred_check
      _
    $region27: #{cnn_forward_pallas.1} parent=1 // pred_check_branch
      %48 = sbr.rel (0) target = $region29
    $region28: #{cnn_forward_pallas.1} parent=1 // pred_region
      _
    $region29: #{cnn_forward_pallas.1} parent=1 // pred_fallthru
      _
    // Predicated region
    $region30: #{cnn_forward_pallas.1} parent=1 // pred_check
      _
    $region31: #{cnn_forward_pallas.1} parent=1 // pred_check_branch
      %50 = sbr.rel (0) target = $region33
    $region32: #{cnn_forward_pallas.1} parent=1 // pred_region
      _
    $region33: #{cnn_forward_pallas.1} parent=1 // pred_fallthru
      _
    // Predicated region
    $region34: #{cnn_forward_pallas.1} parent=1 // pred_check
      _
    $region35: #{cnn_forward_pallas.1} parent=1 // pred_check_branch
      %52 = sbr.rel (0) target = $region37
    $region36: #{cnn_forward_pallas.1} parent=1 // pred_region
      _
    $region37: #{cnn_forward_pallas.1} parent=1 // pred_fallthru
      _
    // Predicated region
    $region38: #{cnn_forward_pallas.1} parent=1 // pred_check
      _
    $region39: #{cnn_forward_pallas.1} parent=1 // pred_check_branch
      %54 = sbr.rel (0) target = $region41
    $region40: #{cnn_forward_pallas.1} parent=1 // pred_region
      %56 = vsyncadd [#allocation6], 0
      %s57 = sshll.u32 %s9, 4
      %s58 = int_to_ptr.hbm [resolvable:$true] %s57
      %s59 = sshll.u32 [#allocation5], 4
      %s60 = int_to_ptr.vmem [resolvable:$true] %s59
      %65 = dma.hbm_to_vmem [thread:$0]  %s58, 18432, %s60, [#allocation6], 128, 128, 8
    $region41: #{cnn_forward_pallas.1} parent=1 // pred_fallthru
      _
    // Predicated region
    $region42: #{cnn_forward_pallas.1} parent=1 // pred_check
      _
    $region43: #{cnn_forward_pallas.1} parent=1 // pred_check_branch
      %67 = sbr.rel (0) target = $region45
    $region44: #{cnn_forward_pallas.1} parent=1 // pred_region
      _
    $region45: #{cnn_forward_pallas.1} parent=1 // pred_fallthru
      _
    // Predicated region
    $region46: #{cnn_forward_pallas.1} parent=1 // pred_check
      _
    $region47: #{cnn_forward_pallas.1} parent=1 // pred_check_branch
      %69 = sbr.rel (0) target = $region49
    $region48: #{cnn_forward_pallas.1} parent=1 // pred_region
      _
    $region49: #{cnn_forward_pallas.1} parent=1 // pred_fallthru
      _
    // Predicated region
    $region50: #{cnn_forward_pallas.1} parent=1 // pred_check
      _
    $region51: #{cnn_forward_pallas.1} parent=1 // pred_check_branch
      %71 = sbr.rel (0) target = $region53
    $region52: #{cnn_forward_pallas.1} parent=1 // pred_region
      _
    $region53: #{cnn_forward_pallas.1} parent=1 // pred_fallthru
      _
    // Predicated region
    $region54: #{cnn_forward_pallas.1} parent=1 // pred_check
      _
    $region55: #{cnn_forward_pallas.1} parent=1 // pred_check_branch
      %73 = sbr.rel (0) target = $region57
    $region56: #{cnn_forward_pallas.1} parent=1 // pred_region
      %75 = vsyncadd [#allocation6], 0
      %s76 = sshll.u32 %s13, 4
      %s77 = int_to_ptr.hbm [resolvable:$true] %s76
      %s78 = sshll.u32 [#allocation7], 4
      %s79 = int_to_ptr.vmem [resolvable:$true] %s78
      %84 = dma.hbm_to_vmem [thread:$0]  %s77, 18432, %s79, [#allocation6], 128, 128, 8
    $region57: #{cnn_forward_pallas.1} parent=1 // pred_fallthru
      _
    // Predicated region
    $region58: #{cnn_forward_pallas.1} parent=1 // pred_check
      _
    $region59: #{cnn_forward_pallas.1} parent=1 // pred_check_branch
      %86 = sbr.rel (0) target = $region61
    $region60: #{cnn_forward_pallas.1} parent=1 // pred_region
      _
    $region61: #{cnn_forward_pallas.1} parent=1 // pred_fallthru
      _
    // Predicated region
    $region62: #{cnn_forward_pallas.1} parent=1 // pred_check
      _
    $region63: #{cnn_forward_pallas.1} parent=1 // pred_check_branch
      %88 = sbr.rel (0) target = $region65
    $region64: #{cnn_forward_pallas.1} parent=1 // pred_region
      _
    $region65: #{cnn_forward_pallas.1} parent=1 // pred_fallthru
      _
    // Predicated region
    $region66: #{cnn_forward_pallas.1} parent=1 // pred_check
      _
    $region67: #{cnn_forward_pallas.1} parent=1 // pred_check_branch
      %90 = sbr.rel (0) target = $region69
    $region68: #{cnn_forward_pallas.1} parent=1 // pred_region
      %92 = dma.done [#allocation3], 51200
    $region69: #{cnn_forward_pallas.1} parent=1 // pred_fallthru
      _
    // Predicated region
    $region70: #{cnn_forward_pallas.1} parent=1 // pred_check
      _
    $region71: #{cnn_forward_pallas.1} parent=1 // pred_check_branch
      %94 = sbr.rel (0) target = $region73
    $region72: #{cnn_forward_pallas.1} parent=1 // pred_region
      %96 = dma.done [#allocation6], 18432
    $region73: #{cnn_forward_pallas.1} parent=1 // pred_fallthru
      _
    // Predicated region
    $region74: #{cnn_forward_pallas.1} parent=1 // pred_check
      _
    $region75: #{cnn_forward_pallas.1} parent=1 // pred_check_branch
      %98 = sbr.rel (0) target = $region77
    $region76: #{cnn_forward_pallas.1} parent=1 // pred_region
      %100 = dma.done [#allocation6], 18432
    $region77: #{cnn_forward_pallas.1} parent=1 // pred_fallthru
      _
    %v101 = vld [vmem:[%s0] sm:$0xff]
    %v102 = vld [vmem:[%s0 + $0x8] sm:$0xff]
    %v103 = vld [vmem:[%s0 + $0x10] sm:$0xff]
    %v104 = vld [vmem:[%s0 + $0x18] sm:$0xff]
    %v105 = vld [vmem:[%s0 + $0x20] sm:$0xff]
    %v106 = vld [vmem:[%s0 + $0x28] sm:$0xff]
    %v107 = vld [vmem:[%s0 + $0x30] sm:$0xff]
    %v108 = vld [vmem:[%s0 + $0x38] sm:$0xff]
    %v109 = vld [vmem:[%s0 + $0x40] sm:$0xff]
    %v110 = vld [vmem:[%s0 + $0x48] sm:$0xff]
    %v111 = vld [vmem:[%s0 + $0x50] sm:$0xff]
    %v112 = vld [vmem:[%s0 + $0x58] sm:$0xff]
    %v113 = vld [vmem:[%s0 + $0x60] sm:$0xff]
    %v114 = vld [vmem:[%s0 + $0x68] sm:$0xff]
    %v115 = vld [vmem:[%s0 + $0x70] sm:$0xff]
    %v116 = vld [vmem:[%s0 + $0x78] sm:$0xff]
    %v117 = vld [vmem:[%s0 + $0x80] sm:$0xff]
    %v118 = vld [vmem:[%s0 + $0x88] sm:$0xff]
    %v119 = vld [vmem:[%s0 + $0x90] sm:$0xff]
    %v120 = vld [vmem:[%s0 + $0x98] sm:$0xff]
    %v121 = vld [vmem:[%s0 + $0xa0] sm:$0xff]
    %v122 = vld [vmem:[%s0 + $0xa8] sm:$0xff]
    %v123 = vld [vmem:[%s0 + $0xb0] sm:$0xff]
    %v124 = vld [vmem:[%s0 + $0xb8] sm:$0xff]
    %v125 = vld [vmem:[%s0 + $0xc0] sm:$0xff]
    %v126 = vld [vmem:[%s0 + $0xc8] sm:$0xff]
    %v127 = vld [vmem:[%s0 + $0xd0] sm:$0xff]
    %v128 = vld [vmem:[%s0 + $0xd8] sm:$0xff]
    %v129 = vld [vmem:[%s0 + $0xe0] sm:$0xff]
    %v130 = vld [vmem:[%s0 + $0xe8] sm:$0xff]
    %v131 = vld [vmem:[%s0 + $0xf0] sm:$0xff]
    %v132 = vld [vmem:[%s0 + $0xf8] sm:$0xff]
    %v133 = vld [vmem:[%s0 + $0x100] sm:$0xff]
    %v134 = vld [vmem:[%s0 + $0x108] sm:$0xff]
    %v135 = vld [vmem:[%s0 + $0x110] sm:$0xff]
    %v136 = vld [vmem:[%s0 + $0x118] sm:$0xff]
    %v137 = vld [vmem:[%s0 + $0x120] sm:$0xff]
    %v138 = vld [vmem:[%s0 + $0x128] sm:$0xff]
    %v139 = vld [vmem:[%s0 + $0x130] sm:$0xff]
    %v140 = vld [vmem:[%s0 + $0x138] sm:$0xff]
    %v141 = vld [vmem:[%s0 + $0x140] sm:$0xff]
    %v142 = vld [vmem:[%s0 + $0x148] sm:$0xff]
    %v143 = vld [vmem:[%s0 + $0x150] sm:$0x3]
    %v144 = vld [vmem:[%s1] sm:$0xff]
    %v145 = vld [vmem:[%s1 + $0x8] sm:$0xff]
    %v146 = vld [vmem:[%s1 + $0x10] sm:$0xff]
    %v147 = vld [vmem:[%s1 + $0x18] sm:$0xff]
    %v148 = vld [vmem:[%s1 + $0x20] sm:$0xff]
    %v149 = vld [vmem:[%s1 + $0x28] sm:$0xff]
    %v150 = vld [vmem:[%s1 + $0x30] sm:$0xff]
    %v151 = vld [vmem:[%s1 + $0x38] sm:$0xff]
    %v152 = vld [vmem:[%s1 + $0x40] sm:$0xff]
    %v153 = vld [vmem:[%s1 + $0x48] sm:$0xff]
    %v154 = vld [vmem:[%s1 + $0x50] sm:$0xff]
    %v155 = vld [vmem:[%s1 + $0x58] sm:$0xff]
    %v156 = vld [vmem:[%s1 + $0x60] sm:$0xff]
    %v157 = vld [vmem:[%s1 + $0x68] sm:$0xff]
    %v158 = vld [vmem:[%s1 + $0x70] sm:$0xff]
    %v159 = vld [vmem:[%s1 + $0x78] sm:$0xff]
    %160 = vmatpush.msra.mxu0 %v159
    %161 = vmatpush.msra.mxu0 %v158
    %162 = vmatpush.msra.mxu0 %v157
    %163 = vmatpush.msra.mxu0 %v156
    %164 = vmatpush.msra.mxu0 %v155
    %165 = vmatpush.msra.mxu0 %v154
    %166 = vmatpush.msra.mxu0 %v153
    %167 = vmatpush.msra.mxu0 %v152
    %168 = vmatpush.msra.mxu0 %v151
    %169 = vmatpush.msra.mxu0 %v150
    %170 = vmatpush.msra.mxu0 %v149
    %171 = vmatpush.msra.mxu0 %v148
    %172 = vmatpush.msra.mxu0 %v147
    %173 = vmatpush.msra.mxu0 %v146
    %174 = vmatpush.msra.mxu0 %v145
    %175 = vmatpush.msra.mxu0 %v144
    %176 = vmatmul.f32.gmra.mxu0 %v101
    %v177 = vpop.f32.mrf.mxu0
    %v178 = vadd.f32 0.0, %v177
    %179 = vmatmul.f32.gmra.mxu0 %v102
    %v180 = vpop.f32.mrf.mxu0
    %v181 = vadd.f32 0.0, %v180
    %182 = vmatmul.f32.gmra.mxu0 %v103
    %v183 = vpop.f32.mrf.mxu0
    %v184 = vadd.f32 0.0, %v183
    %185 = vmatmul.f32.gmra.mxu0 %v104
    %v186 = vpop.f32.mrf.mxu0
    %v187 = vadd.f32 0.0, %v186
    %188 = vmatmul.f32.gmra.mxu0 %v105
    %v189 = vpop.f32.mrf.mxu0
    %v190 = vadd.f32 0.0, %v189
    %191 = vmatmul.f32.gmra.mxu0 %v106
    %v192 = vpop.f32.mrf.mxu0
    %v193 = vadd.f32 0.0, %v192
    %194 = vmatmul.f32.gmra.mxu0 %v107
    %v195 = vpop.f32.mrf.mxu0
    %v196 = vadd.f32 0.0, %v195
    %197 = vmatmul.f32.gmra.mxu0 %v108
    %v198 = vpop.f32.mrf.mxu0
    %v199 = vadd.f32 0.0, %v198
    %200 = vmatmul.f32.gmra.mxu0 %v109
    %v201 = vpop.f32.mrf.mxu0
    %v202 = vadd.f32 0.0, %v201
    %203 = vmatmul.f32.gmra.mxu0 %v110
    %v204 = vpop.f32.mrf.mxu0
    %v205 = vadd.f32 0.0, %v204
    %206 = vmatmul.f32.gmra.mxu0 %v111
    %v207 = vpop.f32.mrf.mxu0
    %v208 = vadd.f32 0.0, %v207
    %209 = vmatmul.f32.gmra.mxu0 %v112
    %v210 = vpop.f32.mrf.mxu0
    %v211 = vadd.f32 0.0, %v210
    %212 = vmatmul.f32.gmra.mxu0 %v113
    %v213 = vpop.f32.mrf.mxu0
    %v214 = vadd.f32 0.0, %v213
    %215 = vmatmul.f32.gmra.mxu0 %v114
    %v216 = vpop.f32.mrf.mxu0
    %v217 = vadd.f32 0.0, %v216
    %218 = vmatmul.f32.gmra.mxu0 %v115
    %v219 = vpop.f32.mrf.mxu0
    %v220 = vadd.f32 0.0, %v219
    %221 = vmatmul.f32.gmra.mxu0 %v116
    %v222 = vpop.f32.mrf.mxu0
    %v223 = vadd.f32 0.0, %v222
    %224 = vmatmul.f32.gmra.mxu0 %v117
    %v225 = vpop.f32.mrf.mxu0
    %v226 = vadd.f32 0.0, %v225
    %227 = vmatmul.f32.gmra.mxu0 %v118
    %v228 = vpop.f32.mrf.mxu0
    %v229 = vadd.f32 0.0, %v228
    %230 = vmatmul.f32.gmra.mxu0 %v119
    %v231 = vpop.f32.mrf.mxu0
    %v232 = vadd.f32 0.0, %v231
    %233 = vmatmul.f32.gmra.mxu0 %v120
    %v234 = vpop.f32.mrf.mxu0
    %v235 = vadd.f32 0.0, %v234
    %236 = vmatmul.f32.gmra.mxu0 %v121
    %v237 = vpop.f32.mrf.mxu0
    %v238 = vadd.f32 0.0, %v237
    %239 = vmatmul.f32.gmra.mxu0 %v122
    %v240 = vpop.f32.mrf.mxu0
    %v241 = vadd.f32 0.0, %v240
    %242 = vmatmul.f32.gmra.mxu0 %v123
    %v243 = vpop.f32.mrf.mxu0
    %v244 = vadd.f32 0.0, %v243
    %245 = vmatmul.f32.gmra.mxu0 %v124
    %v246 = vpop.f32.mrf.mxu0
    %v247 = vadd.f32 0.0, %v246
    %248 = vmatmul.f32.gmra.mxu0 %v125
    %v249 = vpop.f32.mrf.mxu0
    %v250 = vadd.f32 0.0, %v249
    %251 = vmatmul.f32.gmra.mxu0 %v126
    %v252 = vpop.f32.mrf.mxu0
    %v253 = vadd.f32 0.0, %v252
    %254 = vmatmul.f32.gmra.mxu0 %v127
    %v255 = vpop.f32.mrf.mxu0
    %v256 = vadd.f32 0.0, %v255
    %257 = vmatmul.f32.gmra.mxu0 %v128
    %v258 = vpop.f32.mrf.mxu0
    %v259 = vadd.f32 0.0, %v258
    %260 = vmatmul.f32.gmra.mxu0 %v129
    %v261 = vpop.f32.mrf.mxu0
    %v262 = vadd.f32 0.0, %v261
    %263 = vmatmul.f32.gmra.mxu0 %v130
    %v264 = vpop.f32.mrf.mxu0
    %v265 = vadd.f32 0.0, %v264
    %266 = vmatmul.f32.gmra.mxu0 %v131
    %v267 = vpop.f32.mrf.mxu0
    %v268 = vadd.f32 0.0, %v267
    %269 = vmatmul.f32.gmra.mxu0 %v132
    %v270 = vpop.f32.mrf.mxu0
    %v271 = vadd.f32 0.0, %v270
    %272 = vmatmul.f32.gmra.mxu0 %v133
    %v273 = vpop.f32.mrf.mxu0
    %v274 = vadd.f32 0.0, %v273
    %275 = vmatmul.f32.gmra.mxu0 %v134
    %v276 = vpop.f32.mrf.mxu0
    %v277 = vadd.f32 0.0, %v276
    %278 = vmatmul.f32.gmra.mxu0 %v135
    %v279 = vpop.f32.mrf.mxu0
    %v280 = vadd.f32 0.0, %v279
    %281 = vmatmul.f32.gmra.mxu0 %v136
    %v282 = vpop.f32.mrf.mxu0
    %v283 = vadd.f32 0.0, %v282
    %284 = vmatmul.f32.gmra.mxu0 %v137
    %v285 = vpop.f32.mrf.mxu0
    %v286 = vadd.f32 0.0, %v285
    %287 = vmatmul.f32.gmra.mxu0 %v138
    %v288 = vpop.f32.mrf.mxu0
    %v289 = vadd.f32 0.0, %v288
    %290 = vmatmul.f32.gmra.mxu0 %v139
    %v291 = vpop.f32.mrf.mxu0
    %v292 = vadd.f32 0.0, %v291
    %293 = vmatmul.f32.gmra.mxu0 %v140
    %v294 = vpop.f32.mrf.mxu0
    %v295 = vadd.f32 0.0, %v294
    %296 = vmatmul.f32.gmra.mxu0 %v141
    %v297 = vpop.f32.mrf.mxu0
    %v298 = vadd.f32 0.0, %v297
    %299 = vmatmul.f32.gmra.mxu0 %v142
    %v300 = vpop.f32.mrf.mxu0
    %v301 = vadd.f32 0.0, %v300
    %302 = vmatmul.f32.gmra.mxu0 %v143
    %v303 = vpop.f32.mrf.mxu0
    %v304 = vadd.f32 0.0, %v303
    %305 = vdwg.mxu0
    %v306 = vld [vmem:[%s2] sm:$0x1]
    %v307 = vld [vmem:[%s3] sm:$0x1]
    %v308 = vadd.f32 %v178, %v181
    %v309 = vadd.f32 %v308, %v184
    %v310 = vadd.f32 %v309, %v187
    %v311 = vadd.f32 %v310, %v190
    %v312 = vadd.f32 %v311, %v193
    %v313 = vadd.f32 %v312, %v196
    %v314 = vadd.f32 %v313, %v199
    %v315 = vadd.f32 %v314, %v202
    %v316 = vadd.f32 %v315, %v205
    %v317 = vadd.f32 %v316, %v208
    %v318 = vadd.f32 %v317, %v211
    %v319 = vadd.f32 %v318, %v214
    %v320 = vadd.f32 %v319, %v217
    %v321 = vadd.f32 %v320, %v220
    %v322 = vadd.f32 %v321, %v223
    %v323 = vadd.f32 %v322, %v226
    %v324 = vadd.f32 %v323, %v229
    %v325 = vadd.f32 %v324, %v232
    %v326 = vadd.f32 %v325, %v235
    %v327 = vadd.f32 %v326, %v238
    %v328 = vadd.f32 %v327, %v241
    %v329 = vadd.f32 %v328, %v244
    %v330 = vadd.f32 %v329, %v247
    %v331 = vadd.f32 %v330, %v250
    %v332 = vadd.f32 %v331, %v253
    %v333 = vadd.f32 %v332, %v256
    %v334 = vadd.f32 %v333, %v259
    %v335 = vadd.f32 %v334, %v262
    %v336 = vadd.f32 %v335, %v265
    %v337 = vadd.f32 %v336, %v268
    %v338 = vadd.f32 %v337, %v271
    %v339 = vadd.f32 %v338, %v274
    %v340 = vadd.f32 %v339, %v277
    %v341 = vadd.f32 %v340, %v280
    %v342 = vadd.f32 %v341, %v283
    %v343 = vadd.f32 %v342, %v286
    %v344 = vadd.f32 %v343, %v289
    %v345 = vadd.f32 %v344, %v292
    %v346 = vadd.f32 %v345, %v295
    %v347 = vadd.f32 %v346, %v298
    %v348 = vadd.f32 %v347, %v301
    %vm349 = vcmask 1041408
    %v350 = vsel %vm349, %v304, 0.0
    %v351 = vadd.f32 %v348, %v350
    %v352 = vrot.slane %v351, 4
    %v353 = vadd.f32 %v351, %v352
    %v354 = vrot.slane %v353, 2
    %v355 = vadd.f32 %v353, %v354
    %v356 = vrot.slane %v355, 1
    %v357 = vadd.f32 %v355, %v356
    %v358 = vrcp.pop 338.0
    %v359 = vmul.f32 338.0, %v358
    %v360 = vsub.f32 1.0, %v359
    %v361 = vmul.f32 %v358, %v360
    %v362 = vadd.f32 %v358, %v361
    %vm363 = vweird.f32 %v358
    %v364 = vsel %vm363, %v358, %v362
    %v365 = vmul.f32 %v357, %v364
    %v366 = vsub.f32 %v178, %v365
    %v367 = vsub.f32 %v181, %v365
    %v368 = vsub.f32 %v184, %v365
    %v369 = vsub.f32 %v187, %v365
    %v370 = vsub.f32 %v190, %v365
    %v371 = vsub.f32 %v193, %v365
    %v372 = vsub.f32 %v196, %v365
    %v373 = vsub.f32 %v199, %v365
    %v374 = vsub.f32 %v202, %v365
    %v375 = vsub.f32 %v205, %v365
    %v376 = vsub.f32 %v208, %v365
    %v377 = vsub.f32 %v211, %v365
    %v378 = vsub.f32 %v214, %v365
    %v379 = vsub.f32 %v217, %v365
    %v380 = vsub.f32 %v220, %v365
    %v381 = vsub.f32 %v223, %v365
    %v382 = vsub.f32 %v226, %v365
    %v383 = vsub.f32 %v229, %v365
    %v384 = vsub.f32 %v232, %v365
    %v385 = vsub.f32 %v235, %v365
    %v386 = vsub.f32 %v238, %v365
    %v387 = vsub.f32 %v241, %v365
    %v388 = vsub.f32 %v244, %v365
    %v389 = vsub.f32 %v247, %v365
    %v390 = vsub.f32 %v250, %v365
    %v391 = vsub.f32 %v253, %v365
    %v392 = vsub.f32 %v256, %v365
    %v393 = vsub.f32 %v259, %v365
    %v394 = vsub.f32 %v262, %v365
    %v395 = vsub.f32 %v265, %v365
    %v396 = vsub.f32 %v268, %v365
    %v397 = vsub.f32 %v271, %v365
    %v398 = vsub.f32 %v274, %v365
    %v399 = vsub.f32 %v277, %v365
    %v400 = vsub.f32 %v280, %v365
    %v401 = vsub.f32 %v283, %v365
    %v402 = vsub.f32 %v286, %v365
    %v403 = vsub.f32 %v289, %v365
    %v404 = vsub.f32 %v292, %v365
    %v405 = vsub.f32 %v295, %v365
    %v406 = vsub.f32 %v298, %v365
    %v407 = vsub.f32 %v301, %v365
    %v408 = vsub.f32 %v304, %v365
    %v409 = vmul.f32 %v366, %v366
    %v410 = vmul.f32 %v367, %v367
    %v411 = vmul.f32 %v368, %v368
    %v412 = vmul.f32 %v369, %v369
    %v413 = vmul.f32 %v370, %v370
    %v414 = vmul.f32 %v371, %v371
    %v415 = vmul.f32 %v372, %v372
    %v416 = vmul.f32 %v373, %v373
    %v417 = vmul.f32 %v374, %v374
    %v418 = vmul.f32 %v375, %v375
    %v419 = vmul.f32 %v376, %v376
    %v420 = vmul.f32 %v377, %v377
    %v421 = vmul.f32 %v378, %v378
    %v422 = vmul.f32 %v379, %v379
    %v423 = vmul.f32 %v380, %v380
    %v424 = vmul.f32 %v381, %v381
    %v425 = vmul.f32 %v382, %v382
    %v426 = vmul.f32 %v383, %v383
    %v427 = vmul.f32 %v384, %v384
    %v428 = vmul.f32 %v385, %v385
    %v429 = vmul.f32 %v386, %v386
    %v430 = vmul.f32 %v387, %v387
    %v431 = vmul.f32 %v388, %v388
    %v432 = vmul.f32 %v389, %v389
    %v433 = vmul.f32 %v390, %v390
    %v434 = vmul.f32 %v391, %v391
    %v435 = vmul.f32 %v392, %v392
    %v436 = vmul.f32 %v393, %v393
    %v437 = vmul.f32 %v394, %v394
    %v438 = vmul.f32 %v395, %v395
    %v439 = vmul.f32 %v396, %v396
    %v440 = vmul.f32 %v397, %v397
    %v441 = vmul.f32 %v398, %v398
    %v442 = vmul.f32 %v399, %v399
    %v443 = vmul.f32 %v400, %v400
    %v444 = vmul.f32 %v401, %v401
    %v445 = vmul.f32 %v402, %v402
    %v446 = vmul.f32 %v403, %v403
    %v447 = vmul.f32 %v404, %v404
    %v448 = vmul.f32 %v405, %v405
    %v449 = vmul.f32 %v406, %v406
    %v450 = vmul.f32 %v407, %v407
    %v451 = vmul.f32 %v408, %v408
    %v452 = vadd.f32 %v409, %v410
    %v453 = vadd.f32 %v452, %v411
    %v454 = vadd.f32 %v453, %v412
    %v455 = vadd.f32 %v454, %v413
    %v456 = vadd.f32 %v455, %v414
    %v457 = vadd.f32 %v456, %v415
    %v458 = vadd.f32 %v457, %v416
    %v459 = vadd.f32 %v458, %v417
    %v460 = vadd.f32 %v459, %v418
    %v461 = vadd.f32 %v460, %v419
    %v462 = vadd.f32 %v461, %v420
    %v463 = vadd.f32 %v462, %v421
    %v464 = vadd.f32 %v463, %v422
    %v465 = vadd.f32 %v464, %v423
    %v466 = vadd.f32 %v465, %v424
    %v467 = vadd.f32 %v466, %v425
    %v468 = vadd.f32 %v467, %v426
    %v469 = vadd.f32 %v468, %v427
    %v470 = vadd.f32 %v469, %v428
    %v471 = vadd.f32 %v470, %v429
    %v472 = vadd.f32 %v471, %v430
    %v473 = vadd.f32 %v472, %v431
    %v474 = vadd.f32 %v473, %v432
    %v475 = vadd.f32 %v474, %v433
    %v476 = vadd.f32 %v475, %v434
    %v477 = vadd.f32 %v476, %v435
    %v478 = vadd.f32 %v477, %v436
    %v479 = vadd.f32 %v478, %v437
    %v480 = vadd.f32 %v479, %v438
    %v481 = vadd.f32 %v480, %v439
    %v482 = vadd.f32 %v481, %v440
    %v483 = vadd.f32 %v482, %v441
    %v484 = vadd.f32 %v483, %v442
    %v485 = vadd.f32 %v484, %v443
    %v486 = vadd.f32 %v485, %v444
    %v487 = vadd.f32 %v486, %v445
    %v488 = vadd.f32 %v487, %v446
    %v489 = vadd.f32 %v488, %v447
    %v490 = vadd.f32 %v489, %v448
    %v491 = vadd.f32 %v490, %v449
    %v492 = vadd.f32 %v491, %v450
    %v493 = vsel %vm349, %v451, 0.0
    %v494 = vadd.f32 %v492, %v493
    %v495 = vrot.slane %v494, 4
    %v496 = vadd.f32 %v494, %v495
    %v497 = vrot.slane %v496, 2
    %v498 = vadd.f32 %v496, %v497
    %v499 = vrot.slane %v498, 1
    %v500 = vadd.f32 %v498, %v499
    %v501 = vmul.f32 %v500, %v364
    %v503 = vperm.slane %v306, 0
    %v505 = vmul.f32 %v503, %v366
    %v506 = vmul.f32 %v503, %v367
    %v507 = vmul.f32 %v503, %v368
    %v508 = vmul.f32 %v503, %v369
    %v509 = vmul.f32 %v503, %v370
    %v510 = vmul.f32 %v503, %v371
    %v511 = vmul.f32 %v503, %v372
    %v512 = vmul.f32 %v503, %v373
    %v513 = vmul.f32 %v503, %v374
    %v514 = vmul.f32 %v503, %v375
    %v515 = vmul.f32 %v503, %v376
    %v516 = vmul.f32 %v503, %v377
    %v517 = vmul.f32 %v503, %v378
    %v518 = vmul.f32 %v503, %v379
    %v519 = vmul.f32 %v503, %v380
    %v520 = vmul.f32 %v503, %v381
    %v521 = vmul.f32 %v503, %v382
    %v522 = vmul.f32 %v503, %v383
    %v523 = vmul.f32 %v503, %v384
    %v524 = vmul.f32 %v503, %v385
    %v525 = vmul.f32 %v503, %v386
    %v526 = vmul.f32 %v503, %v387
    %v527 = vmul.f32 %v503, %v388
    %v528 = vmul.f32 %v503, %v389
    %v529 = vmul.f32 %v503, %v390
    %v530 = vmul.f32 %v503, %v391
    %v531 = vmul.f32 %v503, %v392
    %v532 = vmul.f32 %v503, %v393
    %v533 = vmul.f32 %v503, %v394
    %v534 = vmul.f32 %v503, %v395
    %v535 = vmul.f32 %v503, %v396
    %v536 = vmul.f32 %v503, %v397
    %v537 = vmul.f32 %v503, %v398
    %v538 = vmul.f32 %v503, %v399
    %v539 = vmul.f32 %v503, %v400
    %v540 = vmul.f32 %v503, %v401
    %v541 = vmul.f32 %v503, %v402
    %v542 = vmul.f32 %v503, %v403
    %v543 = vmul.f32 %v503, %v404
    %v544 = vmul.f32 %v503, %v405
    %v545 = vmul.f32 %v503, %v406
    %v546 = vmul.f32 %v503, %v407
    %v547 = vmul.f32 %v503, %v408
    %v548 = vadd.f32 %v501, 1e-05
    %v549 = vrsqrt.pop %v548
    %v550 = vmul.f32 %v549, %v548
    %v551 = vmul.f32 %v550, %v549
    %v552 = vmul.f32 0.5, %v551
    %v553 = vsub.f32 1.5, %v552
    %v554 = vmul.f32 %v549, %v553
    %vm555 = vweird.f32 %v548
    %vm556 = vweird.f32 %v549
    %vm557 = vmor %vm555, %vm556
    %v558 = vsel %vm557, %v549, %v554
    %v559 = vmul.f32 %v505, %v558
    %v560 = vmul.f32 %v506, %v558
    %v561 = vmul.f32 %v507, %v558
    %v562 = vmul.f32 %v508, %v558
    %v563 = vmul.f32 %v509, %v558
    %v564 = vmul.f32 %v510, %v558
    %v565 = vmul.f32 %v511, %v558
    %v566 = vmul.f32 %v512, %v558
    %v567 = vmul.f32 %v513, %v558
    %v568 = vmul.f32 %v514, %v558
    %v569 = vmul.f32 %v515, %v558
    %v570 = vmul.f32 %v516, %v558
    %v571 = vmul.f32 %v517, %v558
    %v572 = vmul.f32 %v518, %v558
    %v573 = vmul.f32 %v519, %v558
    %v574 = vmul.f32 %v520, %v558
    %v575 = vmul.f32 %v521, %v558
    %v576 = vmul.f32 %v522, %v558
    %v577 = vmul.f32 %v523, %v558
    %v578 = vmul.f32 %v524, %v558
    %v579 = vmul.f32 %v525, %v558
    %v580 = vmul.f32 %v526, %v558
    %v581 = vmul.f32 %v527, %v558
    %v582 = vmul.f32 %v528, %v558
    %v583 = vmul.f32 %v529, %v558
    %v584 = vmul.f32 %v530, %v558
    %v585 = vmul.f32 %v531, %v558
    %v586 = vmul.f32 %v532, %v558
    %v587 = vmul.f32 %v533, %v558
    %v588 = vmul.f32 %v534, %v558
    %v589 = vmul.f32 %v535, %v558
    %v590 = vmul.f32 %v536, %v558
    %v591 = vmul.f32 %v537, %v558
    %v592 = vmul.f32 %v538, %v558
    %v593 = vmul.f32 %v539, %v558
    %v594 = vmul.f32 %v540, %v558
    %v595 = vmul.f32 %v541, %v558
    %v596 = vmul.f32 %v542, %v558
    %v597 = vmul.f32 %v543, %v558
    %v598 = vmul.f32 %v544, %v558
    %v599 = vmul.f32 %v545, %v558
    %v600 = vmul.f32 %v546, %v558
    %v601 = vmul.f32 %v547, %v558
    %v603 = vperm.slane %v307, 0
    %v605 = vadd.f32 %v559, %v603
    %v606 = vadd.f32 %v560, %v603
    %v607 = vadd.f32 %v561, %v603
    %v608 = vadd.f32 %v562, %v603
    %v609 = vadd.f32 %v563, %v603
    %v610 = vadd.f32 %v564, %v603
    %v611 = vadd.f32 %v565, %v603
    %v612 = vadd.f32 %v566, %v603
    %v613 = vadd.f32 %v567, %v603
    %v614 = vadd.f32 %v568, %v603
    %v615 = vadd.f32 %v569, %v603
    %v616 = vadd.f32 %v570, %v603
    %v617 = vadd.f32 %v571, %v603
    %v618 = vadd.f32 %v572, %v603
    %v619 = vadd.f32 %v573, %v603
    %v620 = vadd.f32 %v574, %v603
    %v621 = vadd.f32 %v575, %v603
    %v622 = vadd.f32 %v576, %v603
    %v623 = vadd.f32 %v577, %v603
    %v624 = vadd.f32 %v578, %v603
    %v625 = vadd.f32 %v579, %v603
    %v626 = vadd.f32 %v580, %v603
    %v627 = vadd.f32 %v581, %v603
    %v628 = vadd.f32 %v582, %v603
    %v629 = vadd.f32 %v583, %v603
    %v630 = vadd.f32 %v584, %v603
    %v631 = vadd.f32 %v585, %v603
    %v632 = vadd.f32 %v586, %v603
    %v633 = vadd.f32 %v587, %v603
    %v634 = vadd.f32 %v588, %v603
    %v635 = vadd.f32 %v589, %v603
    %v636 = vadd.f32 %v590, %v603
    %v637 = vadd.f32 %v591, %v603
    %v638 = vadd.f32 %v592, %v603
    %v639 = vadd.f32 %v593, %v603
    %v640 = vadd.f32 %v594, %v603
    %v641 = vadd.f32 %v595, %v603
    %v642 = vadd.f32 %v596, %v603
    %v643 = vadd.f32 %v597, %v603
    %v644 = vadd.f32 %v598, %v603
    %v645 = vadd.f32 %v599, %v603
    %v646 = vadd.f32 %v600, %v603
    %v647 = vadd.f32 %v601, %v603
    %v648 = vmax.f32 %v605, 0.0
    %v649 = vmax.f32 %v606, 0.0
    %v650 = vmax.f32 %v607, 0.0
    %v651 = vmax.f32 %v608, 0.0
    %v652 = vmax.f32 %v609, 0.0
    %v653 = vmax.f32 %v610, 0.0
    %v654 = vmax.f32 %v611, 0.0
    %v655 = vmax.f32 %v612, 0.0
    %v656 = vmax.f32 %v613, 0.0
    %v657 = vmax.f32 %v614, 0.0
    %v658 = vmax.f32 %v615, 0.0
    %v659 = vmax.f32 %v616, 0.0
    %v660 = vmax.f32 %v617, 0.0
    %v661 = vmax.f32 %v618, 0.0
    %v662 = vmax.f32 %v619, 0.0
    %v663 = vmax.f32 %v620, 0.0
    %v664 = vmax.f32 %v621, 0.0
    %v665 = vmax.f32 %v622, 0.0
    %v666 = vmax.f32 %v623, 0.0
    %v667 = vmax.f32 %v624, 0.0
    %v668 = vmax.f32 %v625, 0.0
    %v669 = vmax.f32 %v626, 0.0
    %v670 = vmax.f32 %v627, 0.0
    %v671 = vmax.f32 %v628, 0.0
    %v672 = vmax.f32 %v629, 0.0
    %v673 = vmax.f32 %v630, 0.0
    %v674 = vmax.f32 %v631, 0.0
    %v675 = vmax.f32 %v632, 0.0
    %v676 = vmax.f32 %v633, 0.0
    %v677 = vmax.f32 %v634, 0.0
    %v678 = vmax.f32 %v635, 0.0
    %v679 = vmax.f32 %v636, 0.0
    %v680 = vmax.f32 %v637, 0.0
    %v681 = vmax.f32 %v638, 0.0
    %v682 = vmax.f32 %v639, 0.0
    %v683 = vmax.f32 %v640, 0.0
    %v684 = vmax.f32 %v641, 0.0
    %v685 = vmax.f32 %v642, 0.0
    %v686 = vmax.f32 %v643, 0.0
    %v687 = vmax.f32 %v644, 0.0
    %v688 = vmax.f32 %v645, 0.0
    %v689 = vmax.f32 %v646, 0.0
    %v690 = vmax.f32 %v647, 0.0
    %v691 = vld [vmem:[%s4] sm:$0xff]
    %v692 = vld [vmem:[%s4 + $0x8] sm:$0xff]
    %v693 = vld [vmem:[%s4 + $0x10] sm:$0xff]
    %v694 = vld [vmem:[%s4 + $0x18] sm:$0xff]
    %v695 = vld [vmem:[%s4 + $0x20] sm:$0xff]
    %v696 = vld [vmem:[%s4 + $0x28] sm:$0xff]
    %v697 = vld [vmem:[%s4 + $0x30] sm:$0xff]
    %v698 = vld [vmem:[%s4 + $0x38] sm:$0xff]
    %v699 = vld [vmem:[%s4 + $0x40] sm:$0xff]
    %v700 = vld [vmem:[%s4 + $0x48] sm:$0xff]
    %v701 = vld [vmem:[%s4 + $0x50] sm:$0xff]
    %v702 = vld [vmem:[%s4 + $0x58] sm:$0xff]
    %v703 = vld [vmem:[%s4 + $0x60] sm:$0xff]
    %v704 = vld [vmem:[%s4 + $0x68] sm:$0xff]
    %v705 = vld [vmem:[%s4 + $0x70] sm:$0xff]
    %v706 = vld [vmem:[%s4 + $0x78] sm:$0xff]
    %v707 = vld [vmem:[%s4 + $0x80] sm:$0xff]
    %v708 = vld [vmem:[%s4 + $0x88] sm:$0xff]
    %v709 = vld [vmem:[%s4 + $0x90] sm:$0xff]
    %v710 = vld [vmem:[%s4 + $0x98] sm:$0xff]
    %v711 = vld [vmem:[%s4 + $0xa0] sm:$0xff]
    %v712 = vld [vmem:[%s4 + $0xa8] sm:$0xff]
    %v713 = vld [vmem:[%s4 + $0xb0] sm:$0xff]
    %v714 = vld [vmem:[%s4 + $0xb8] sm:$0xff]
    %v715 = vld [vmem:[%s4 + $0xc0] sm:$0xff]
    %v716 = vld [vmem:[%s4 + $0xc8] sm:$0xff]
    %v717 = vld [vmem:[%s4 + $0xd0] sm:$0xff]
    %vm718 = vcmask 670720
    %v720 = vsel %vm718, %v693, 0
    %v723 = vsel %vm718, %v696, 0
    %v726 = vsel %vm718, %v699, 0
    %v729 = vsel %vm718, %v702, 0
    %v732 = vsel %vm718, %v705, 0
    %v735 = vsel %vm718, %v708, 0
    %v738 = vsel %vm718, %v711, 0
    %v741 = vsel %vm718, %v714, 0
    %v744 = vsel %vm718, %v717, 0
    %v747 = vsel %vm349, %v690, 0
    %749 = vmatpush.msra.mxu0 %v663
    %750 = vmatpush.msra.mxu0 %v662
    %751 = vmatpush.msra.mxu0 %v661
    %752 = vmatpush.msra.mxu0 %v660
    %753 = vmatpush.msra.mxu0 %v659
    %754 = vmatpush.msra.mxu0 %v658
    %755 = vmatpush.msra.mxu0 %v657
    %756 = vmatpush.msra.mxu0 %v656
    %757 = vmatpush.msra.mxu0 %v655
    %758 = vmatpush.msra.mxu0 %v654
    %759 = vmatpush.msra.mxu0 %v653
    %760 = vmatpush.msra.mxu0 %v652
    %761 = vmatpush.msra.mxu0 %v651
    %762 = vmatpush.msra.mxu0 %v650
    %763 = vmatpush.msra.mxu0 %v649
    %764 = vmatpush.msra.mxu0 %v648
    %765 = vmatmul.f32.gmra.mxu0 %v691
    %v766 = vpop.f32.mrf.mxu0
    %v767 = vadd.f32 0.0, %v766
    %768 = vmatmul.f32.gmra.mxu0 %v694
    %v769 = vpop.f32.mrf.mxu0
    %v770 = vadd.f32 0.0, %v769
    %771 = vmatmul.f32.gmra.mxu0 %v697
    %v772 = vpop.f32.mrf.mxu0
    %v773 = vadd.f32 0.0, %v772
    %774 = vmatmul.f32.gmra.mxu0 %v700
    %v775 = vpop.f32.mrf.mxu0
    %v776 = vadd.f32 0.0, %v775
    %777 = vmatmul.f32.gmra.mxu0 %v703
    %v778 = vpop.f32.mrf.mxu0
    %v779 = vadd.f32 0.0, %v778
    %780 = vmatmul.f32.gmra.mxu0 %v706
    %v781 = vpop.f32.mrf.mxu0
    %v782 = vadd.f32 0.0, %v781
    %783 = vmatmul.f32.gmra.mxu0 %v709
    %v784 = vpop.f32.mrf.mxu0
    %v785 = vadd.f32 0.0, %v784
    %786 = vmatmul.f32.gmra.mxu0 %v712
    %v787 = vpop.f32.mrf.mxu0
    %v788 = vadd.f32 0.0, %v787
    %789 = vmatmul.f32.gmra.mxu0 %v715
    %v790 = vpop.f32.mrf.mxu0
    %v791 = vadd.f32 0.0, %v790
    %792 = vdwg.mxu0
    %793 = vmatpush.msra.mxu0 %v679
    %794 = vmatpush.msra.mxu0 %v678
    %795 = vmatpush.msra.mxu0 %v677
    %796 = vmatpush.msra.mxu0 %v676
    %797 = vmatpush.msra.mxu0 %v675
    %798 = vmatpush.msra.mxu0 %v674
    %799 = vmatpush.msra.mxu0 %v673
    %800 = vmatpush.msra.mxu0 %v672
    %801 = vmatpush.msra.mxu0 %v671
    %802 = vmatpush.msra.mxu0 %v670
    %803 = vmatpush.msra.mxu0 %v669
    %804 = vmatpush.msra.mxu0 %v668
    %805 = vmatpush.msra.mxu0 %v667
    %806 = vmatpush.msra.mxu0 %v666
    %807 = vmatpush.msra.mxu0 %v665
    %808 = vmatpush.msra.mxu0 %v664
    %809 = vmatmul.f32.gmra.mxu0 %v692
    %v810 = vpop.f32.mrf.mxu0
    %v811 = vadd.f32 %v767, %v810
    %812 = vmatmul.f32.gmra.mxu0 %v695
    %v813 = vpop.f32.mrf.mxu0
    %v814 = vadd.f32 %v770, %v813
    %815 = vmatmul.f32.gmra.mxu0 %v698
    %v816 = vpop.f32.mrf.mxu0
    %v817 = vadd.f32 %v773, %v816
    %818 = vmatmul.f32.gmra.mxu0 %v701
    %v819 = vpop.f32.mrf.mxu0
    %v820 = vadd.f32 %v776, %v819
    %821 = vmatmul.f32.gmra.mxu0 %v704
    %v822 = vpop.f32.mrf.mxu0
    %v823 = vadd.f32 %v779, %v822
    %824 = vmatmul.f32.gmra.mxu0 %v707
    %v825 = vpop.f32.mrf.mxu0
    %v826 = vadd.f32 %v782, %v825
    %827 = vmatmul.f32.gmra.mxu0 %v710
    %v828 = vpop.f32.mrf.mxu0
    %v829 = vadd.f32 %v785, %v828
    %830 = vmatmul.f32.gmra.mxu0 %v713
    %v831 = vpop.f32.mrf.mxu0
    %v832 = vadd.f32 %v788, %v831
    %833 = vmatmul.f32.gmra.mxu0 %v716
    %v834 = vpop.f32.mrf.mxu0
    %v835 = vadd.f32 %v791, %v834
    %836 = vdwg.mxu0
    %837 = vmatpush.msra.mxu0 0.0
    %838 = vmatpush.msra.mxu0 0.0
    %839 = vmatpush.msra.mxu0 0.0
    %840 = vmatpush.msra.mxu0 0.0
    %841 = vmatpush.msra.mxu0 0.0
    %842 = vmatpush.msra.mxu0 %v747
    %843 = vmatpush.msra.mxu0 %v689
    %844 = vmatpush.msra.mxu0 %v688
    %845 = vmatpush.msra.mxu0 %v687
    %846 = vmatpush.msra.mxu0 %v686
    %847 = vmatpush.msra.mxu0 %v685
    %848 = vmatpush.msra.mxu0 %v684
    %849 = vmatpush.msra.mxu0 %v683
    %850 = vmatpush.msra.mxu0 %v682
    %851 = vmatpush.msra.mxu0 %v681
    %852 = vmatpush.msra.mxu0 %v680
    %853 = vmatmul.f32.gmra.mxu0 %v720
    %v854 = vpop.f32.mrf.mxu0
    %v855 = vadd.f32 %v811, %v854
    %856 = vmatmul.f32.gmra.mxu0 %v723
    %v857 = vpop.f32.mrf.mxu0
    %v858 = vadd.f32 %v814, %v857
    %859 = vmatmul.f32.gmra.mxu0 %v726
    %v860 = vpop.f32.mrf.mxu0
    %v861 = vadd.f32 %v817, %v860
    %862 = vmatmul.f32.gmra.mxu0 %v729
    %v863 = vpop.f32.mrf.mxu0
    %v864 = vadd.f32 %v820, %v863
    %865 = vmatmul.f32.gmra.mxu0 %v732
    %v866 = vpop.f32.mrf.mxu0
    %v867 = vadd.f32 %v823, %v866
    %868 = vmatmul.f32.gmra.mxu0 %v735
    %v869 = vpop.f32.mrf.mxu0
    %v870 = vadd.f32 %v826, %v869
    %871 = vmatmul.f32.gmra.mxu0 %v738
    %v872 = vpop.f32.mrf.mxu0
    %v873 = vadd.f32 %v829, %v872
    %874 = vmatmul.f32.gmra.mxu0 %v741
    %v875 = vpop.f32.mrf.mxu0
    %v876 = vadd.f32 %v832, %v875
    %877 = vmatmul.f32.gmra.mxu0 %v744
    %v878 = vpop.f32.mrf.mxu0
    %v879 = vadd.f32 %v835, %v878
    %880 = vdwg.mxu0
    %v881 = vld [vmem:[#allocation2] sm:$0xff]
    %v882 = vld [vmem:[#allocation2 + $0x8] sm:$0xff]
    %v883 = vld [vmem:[#allocation2 + $0x10] sm:$0xff]
    %v884 = vld [vmem:[#allocation2 + $0x18] sm:$0xff]
    %v885 = vld [vmem:[#allocation2 + $0x20] sm:$0xff]
    %v886 = vld [vmem:[#allocation2 + $0x28] sm:$0xff]
    %v887 = vld [vmem:[#allocation2 + $0x30] sm:$0xff]
    %v888 = vld [vmem:[#allocation2 + $0x38] sm:$0xff]
    %v889 = vld [vmem:[#allocation2 + $0x40] sm:$0xff]
    %v890 = vld [vmem:[#allocation2 + $0x48] sm:$0xff]
    %v891 = vld [vmem:[#allocation2 + $0x50] sm:$0xff]
    %v892 = vld [vmem:[#allocation2 + $0x58] sm:$0xff]
    %v893 = vld [vmem:[#allocation2 + $0x60] sm:$0xff]
    %v894 = vld [vmem:[#allocation2 + $0x68] sm:$0xff]
    %v895 = vld [vmem:[#allocation2 + $0x70] sm:$0xff]
    %v896 = vld [vmem:[#allocation2 + $0x78] sm:$0xff]
    %s897 = scalar_lea.vmem %s4, 216
    %v898 = vld [vmem:[%s897] sm:$0xff]
    %v899 = vld [vmem:[%s897 + $0x8] sm:$0xff]
    %v900 = vld [vmem:[%s897 + $0x10] sm:$0xff]
    %v901 = vld [vmem:[%s897 + $0x18] sm:$0xff]
    %v902 = vld [vmem:[%s897 + $0x20] sm:$0xff]
    %v903 = vld [vmem:[%s897 + $0x28] sm:$0xff]
    %v904 = vld [vmem:[%s897 + $0x30] sm:$0xff]
    %v905 = vld [vmem:[%s897 + $0x38] sm:$0xff]
    %v906 = vld [vmem:[%s897 + $0x40] sm:$0xff]
    %v907 = vld [vmem:[%s897 + $0x48] sm:$0xff]
    %v908 = vld [vmem:[%s897 + $0x50] sm:$0xff]
    %v909 = vld [vmem:[%s897 + $0x58] sm:$0xff]
    %v910 = vld [vmem:[%s897 + $0x60] sm:$0xff]
    %v911 = vld [vmem:[%s897 + $0x68] sm:$0xff]
    %v912 = vld [vmem:[%s897 + $0x70] sm:$0xff]
    %v913 = vld [vmem:[%s897 + $0x78] sm:$0xff]
    %v914 = vld [vmem:[%s897 + $0x80] sm:$0xff]
    %v915 = vld [vmem:[%s897 + $0x88] sm:$0xff]
    %v916 = vld [vmem:[%s897 + $0x90] sm:$0xff]
    %v917 = vld [vmem:[%s897 + $0x98] sm:$0xff]
    %v918 = vld [vmem:[%s897 + $0xa0] sm:$0xff]
    %v919 = vld [vmem:[%s897 + $0xa8] sm:$0xff]
    %v920 = vld [vmem:[%s897 + $0xb0] sm:$0xff]
    %v921 = vld [vmem:[%s897 + $0xb8] sm:$0xff]
    %v922 = vld [vmem:[%s897 + $0xc0] sm:$0xff]
    %v923 = vld [vmem:[%s897 + $0xc8] sm:$0xff]
    %v924 = vld [vmem:[%s897 + $0xd0] sm:$0xff]
    %v926 = vsel %vm718, %v900, 0
    %v929 = vsel %vm718, %v903, 0
    %v932 = vsel %vm718, %v906, 0
    %v935 = vsel %vm718, %v909, 0
    %v938 = vsel %vm718, %v912, 0
    %v941 = vsel %vm718, %v915, 0
    %v944 = vsel %vm718, %v918, 0
    %v947 = vsel %vm718, %v921, 0
    %v950 = vsel %vm718, %v924, 0
    %952 = vmatpush.msra.mxu0 %v663
    %953 = vmatpush.msra.mxu0 %v662
    %954 = vmatpush.msra.mxu0 %v661
    %955 = vmatpush.msra.mxu0 %v660
    %956 = vmatpush.msra.mxu0 %v659
    %957 = vmatpush.msra.mxu0 %v658
    %958 = vmatpush.msra.mxu0 %v657
    %959 = vmatpush.msra.mxu0 %v656
    %960 = vmatpush.msra.mxu0 %v655
    %961 = vmatpush.msra.mxu0 %v654
    %962 = vmatpush.msra.mxu0 %v653
    %963 = vmatpush.msra.mxu0 %v652
    %964 = vmatpush.msra.mxu0 %v651
    %965 = vmatpush.msra.mxu0 %v650
    %966 = vmatpush.msra.mxu0 %v649
    %967 = vmatpush.msra.mxu0 %v648
    %968 = vmatmul.f32.gmra.mxu0 %v898
    %v969 = vpop.f32.mrf.mxu0
    %v970 = vadd.f32 0.0, %v969
    %971 = vmatmul.f32.gmra.mxu0 %v901
    %v972 = vpop.f32.mrf.mxu0
    %v973 = vadd.f32 0.0, %v972
    %974 = vmatmul.f32.gmra.mxu0 %v904
    %v975 = vpop.f32.mrf.mxu0
    %v976 = vadd.f32 0.0, %v975
    %977 = vmatmul.f32.gmra.mxu0 %v907
    %v978 = vpop.f32.mrf.mxu0
    %v979 = vadd.f32 0.0, %v978
    %980 = vmatmul.f32.gmra.mxu0 %v910
    %v981 = vpop.f32.mrf.mxu0
    %v982 = vadd.f32 0.0, %v981
    %983 = vmatmul.f32.gmra.mxu0 %v913
    %v984 = vpop.f32.mrf.mxu0
    %v985 = vadd.f32 0.0, %v984
    %986 = vmatmul.f32.gmra.mxu0 %v916
    %v987 = vpop.f32.mrf.mxu0
    %v988 = vadd.f32 0.0, %v987
    %989 = vmatmul.f32.gmra.mxu0 %v919
    %v990 = vpop.f32.mrf.mxu0
    %v991 = vadd.f32 0.0, %v990
    %992 = vmatmul.f32.gmra.mxu0 %v922
    %v993 = vpop.f32.mrf.mxu0
    %v994 = vadd.f32 0.0, %v993
    %995 = vdwg.mxu0
    %996 = vmatpush.msra.mxu0 %v679
    %997 = vmatpush.msra.mxu0 %v678
    %998 = vmatpush.msra.mxu0 %v677
    %999 = vmatpush.msra.mxu0 %v676
    %1000 = vmatpush.msra.mxu0 %v675
    %1001 = vmatpush.msra.mxu0 %v674
    %1002 = vmatpush.msra.mxu0 %v673
    %1003 = vmatpush.msra.mxu0 %v672
    %1004 = vmatpush.msra.mxu0 %v671
    %1005 = vmatpush.msra.mxu0 %v670
    %1006 = vmatpush.msra.mxu0 %v669
    %1007 = vmatpush.msra.mxu0 %v668
    %1008 = vmatpush.msra.mxu0 %v667
    %1009 = vmatpush.msra.mxu0 %v666
    %1010 = vmatpush.msra.mxu0 %v665
    %1011 = vmatpush.msra.mxu0 %v664
    %1012 = vmatmul.f32.gmra.mxu0 %v899
    %v1013 = vpop.f32.mrf.mxu0
    %v1014 = vadd.f32 %v970, %v1013
    %1015 = vmatmul.f32.gmra.mxu0 %v902
    %v1016 = vpop.f32.mrf.mxu0
    %v1017 = vadd.f32 %v973, %v1016
    %1018 = vmatmul.f32.gmra.mxu0 %v905
    %v1019 = vpop.f32.mrf.mxu0
    %v1020 = vadd.f32 %v976, %v1019
    %1021 = vmatmul.f32.gmra.mxu0 %v908
    %v1022 = vpop.f32.mrf.mxu0
    %v1023 = vadd.f32 %v979, %v1022
    %1024 = vmatmul.f32.gmra.mxu0 %v911
    %v1025 = vpop.f32.mrf.mxu0
    %v1026 = vadd.f32 %v982, %v1025
    %1027 = vmatmul.f32.gmra.mxu0 %v914
    %v1028 = vpop.f32.mrf.mxu0
    %v1029 = vadd.f32 %v985, %v1028
    %1030 = vmatmul.f32.gmra.mxu0 %v917
    %v1031 = vpop.f32.mrf.mxu0
    %v1032 = vadd.f32 %v988, %v1031
    %1033 = vmatmul.f32.gmra.mxu0 %v920
    %v1034 = vpop.f32.mrf.mxu0
    %v1035 = vadd.f32 %v991, %v1034
    %1036 = vmatmul.f32.gmra.mxu0 %v923
    %v1037 = vpop.f32.mrf.mxu0
    %v1038 = vadd.f32 %v994, %v1037
    %1039 = vdwg.mxu0
    %1040 = vmatpush.msra.mxu0 0.0
    %1041 = vmatpush.msra.mxu0 0.0
    %1042 = vmatpush.msra.mxu0 0.0
    %1043 = vmatpush.msra.mxu0 0.0
    %1044 = vmatpush.msra.mxu0 0.0
    %1045 = vmatpush.msra.mxu0 %v747
    %1046 = vmatpush.msra.mxu0 %v689
    %1047 = vmatpush.msra.mxu0 %v688
    %1048 = vmatpush.msra.mxu0 %v687
    %1049 = vmatpush.msra.mxu0 %v686
    %1050 = vmatpush.msra.mxu0 %v685
    %1051 = vmatpush.msra.mxu0 %v684
    %1052 = vmatpush.msra.mxu0 %v683
    %1053 = vmatpush.msra.mxu0 %v682
    %1054 = vmatpush.msra.mxu0 %v681
    %1055 = vmatpush.msra.mxu0 %v680
    %1056 = vmatmul.f32.gmra.mxu0 %v926
    %v1057 = vpop.f32.mrf.mxu0
    %v1058 = vadd.f32 %v1014, %v1057
    %1059 = vmatmul.f32.gmra.mxu0 %v929
    %v1060 = vpop.f32.mrf.mxu0
    %v1061 = vadd.f32 %v1017, %v1060
    %1062 = vmatmul.f32.gmra.mxu0 %v932
    %v1063 = vpop.f32.mrf.mxu0
    %v1064 = vadd.f32 %v1020, %v1063
    %1065 = vmatmul.f32.gmra.mxu0 %v935
    %v1066 = vpop.f32.mrf.mxu0
    %v1067 = vadd.f32 %v1023, %v1066
    %1068 = vmatmul.f32.gmra.mxu0 %v938
    %v1069 = vpop.f32.mrf.mxu0
    %v1070 = vadd.f32 %v1026, %v1069
    %1071 = vmatmul.f32.gmra.mxu0 %v941
    %v1072 = vpop.f32.mrf.mxu0
    %v1073 = vadd.f32 %v1029, %v1072
    %1074 = vmatmul.f32.gmra.mxu0 %v944
    %v1075 = vpop.f32.mrf.mxu0
    %v1076 = vadd.f32 %v1032, %v1075
    %1077 = vmatmul.f32.gmra.mxu0 %v947
    %v1078 = vpop.f32.mrf.mxu0
    %v1079 = vadd.f32 %v1035, %v1078
    %1080 = vmatmul.f32.gmra.mxu0 %v950
    %v1081 = vpop.f32.mrf.mxu0
    %v1082 = vadd.f32 %v1038, %v1081
    %1083 = vdwg.mxu0
    %s1084 = scalar_lea.vmem [#allocation2], 128
    %v1085 = vld [vmem:[%s1084] sm:$0xff]
    %v1086 = vld [vmem:[%s1084 + $0x8] sm:$0xff]
    %v1087 = vld [vmem:[%s1084 + $0x10] sm:$0xff]
    %v1088 = vld [vmem:[%s1084 + $0x18] sm:$0xff]
    %v1089 = vld [vmem:[%s1084 + $0x20] sm:$0xff]
    %v1090 = vld [vmem:[%s1084 + $0x28] sm:$0xff]
    %v1091 = vld [vmem:[%s1084 + $0x30] sm:$0xff]
    %v1092 = vld [vmem:[%s1084 + $0x38] sm:$0xff]
    %v1093 = vld [vmem:[%s1084 + $0x40] sm:$0xff]
    %v1094 = vld [vmem:[%s1084 + $0x48] sm:$0xff]
    %v1095 = vld [vmem:[%s1084 + $0x50] sm:$0xff]
    %v1096 = vld [vmem:[%s1084 + $0x58] sm:$0xff]
    %v1097 = vld [vmem:[%s1084 + $0x60] sm:$0xff]
    %v1098 = vld [vmem:[%s1084 + $0x68] sm:$0xff]
    %v1099 = vld [vmem:[%s1084 + $0x70] sm:$0xff]
    %v1100 = vld [vmem:[%s1084 + $0x78] sm:$0xff]
    %1101 = vmatpush.msra.mxu0 %v1100
    %1102 = vmatpush.msra.mxu0 %v1099
    %1103 = vmatpush.msra.mxu0 %v1098
    %1104 = vmatpush.msra.mxu0 %v1097
    %1105 = vmatpush.msra.mxu0 %v1096
    %1106 = vmatpush.msra.mxu0 %v1095
    %1107 = vmatpush.msra.mxu0 %v1094
    %1108 = vmatpush.msra.mxu0 %v1093
    %1109 = vmatpush.msra.mxu0 %v1092
    %1110 = vmatpush.msra.mxu0 %v1091
    %1111 = vmatpush.msra.mxu0 %v1090
    %1112 = vmatpush.msra.mxu0 %v1089
    %1113 = vmatpush.msra.mxu0 %v1088
    %1114 = vmatpush.msra.mxu0 %v1087
    %1115 = vmatpush.msra.mxu0 %v1086
    %1116 = vmatpush.msra.mxu0 %v1085
    %1117 = vmatmul.f32.gmra.mxu0 %v1058
    %v1118 = vpop.f32.mrf.mxu0
    %v1119 = vadd.f32 0.0, %v1118
    %1120 = vmatmul.f32.gmra.mxu0 %v1061
    %v1121 = vpop.f32.mrf.mxu0
    %v1122 = vadd.f32 0.0, %v1121
    %1123 = vmatmul.f32.gmra.mxu0 %v1064
    %v1124 = vpop.f32.mrf.mxu0
    %v1125 = vadd.f32 0.0, %v1124
    %1126 = vmatmul.f32.gmra.mxu0 %v1067
    %v1127 = vpop.f32.mrf.mxu0
    %v1128 = vadd.f32 0.0, %v1127
    %1129 = vmatmul.f32.gmra.mxu0 %v1070
    %v1130 = vpop.f32.mrf.mxu0
    %v1131 = vadd.f32 0.0, %v1130
    %1132 = vmatmul.f32.gmra.mxu0 %v1073
    %v1133 = vpop.f32.mrf.mxu0
    %v1134 = vadd.f32 0.0, %v1133
    %1135 = vmatmul.f32.gmra.mxu0 %v1076
    %v1136 = vpop.f32.mrf.mxu0
    %v1137 = vadd.f32 0.0, %v1136
    %1138 = vmatmul.f32.gmra.mxu0 %v1079
    %v1139 = vpop.f32.mrf.mxu0
    %v1140 = vadd.f32 0.0, %v1139
    %1141 = vmatmul.f32.gmra.mxu0 %v1082
    %v1142 = vpop.f32.mrf.mxu0
    %v1143 = vadd.f32 0.0, %v1142
    %1144 = vdwg.mxu0
    %1145 = vmatpush.msra.mxu0 %v896
    %1146 = vmatpush.msra.mxu0 %v895
    %1147 = vmatpush.msra.mxu0 %v894
    %1148 = vmatpush.msra.mxu0 %v893
    %1149 = vmatpush.msra.mxu0 %v892
    %1150 = vmatpush.msra.mxu0 %v891
    %1151 = vmatpush.msra.mxu0 %v890
    %1152 = vmatpush.msra.mxu0 %v889
    %1153 = vmatpush.msra.mxu0 %v888
    %1154 = vmatpush.msra.mxu0 %v887
    %1155 = vmatpush.msra.mxu0 %v886
    %1156 = vmatpush.msra.mxu0 %v885
    %1157 = vmatpush.msra.mxu0 %v884
    %1158 = vmatpush.msra.mxu0 %v883
    %1159 = vmatpush.msra.mxu0 %v882
    %1160 = vmatpush.msra.mxu0 %v881
    %1161 = vmatmul.f32.gmra.mxu0 %v855
    %v1162 = vpop.f32.mrf.mxu0
    %v1163 = vadd.f32 %v1119, %v1162
    %1164 = vmatmul.f32.gmra.mxu0 %v858
    %v1165 = vpop.f32.mrf.mxu0
    %v1166 = vadd.f32 %v1122, %v1165
    %1167 = vmatmul.f32.gmra.mxu0 %v861
    %v1168 = vpop.f32.mrf.mxu0
    %v1169 = vadd.f32 %v1125, %v1168
    %1170 = vmatmul.f32.gmra.mxu0 %v864
    %v1171 = vpop.f32.mrf.mxu0
    %v1172 = vadd.f32 %v1128, %v1171
    %1173 = vmatmul.f32.gmra.mxu0 %v867
    %v1174 = vpop.f32.mrf.mxu0
    %v1175 = vadd.f32 %v1131, %v1174
    %1176 = vmatmul.f32.gmra.mxu0 %v870
    %v1177 = vpop.f32.mrf.mxu0
    %v1178 = vadd.f32 %v1134, %v1177
    %1179 = vmatmul.f32.gmra.mxu0 %v873
    %v1180 = vpop.f32.mrf.mxu0
    %v1181 = vadd.f32 %v1137, %v1180
    %1182 = vmatmul.f32.gmra.mxu0 %v876
    %v1183 = vpop.f32.mrf.mxu0
    %v1184 = vadd.f32 %v1140, %v1183
    %1185 = vmatmul.f32.gmra.mxu0 %v879
    %v1186 = vpop.f32.mrf.mxu0
    %v1187 = vadd.f32 %v1143, %v1186
    %1188 = vdwg.mxu0
    %s1189 = scalar_lea.vmem %s4, 432
    %v1190 = vld [vmem:[%s1189] sm:$0xff]
    %v1191 = vld [vmem:[%s1189 + $0x8] sm:$0xff]
    %v1192 = vld [vmem:[%s1189 + $0x10] sm:$0xff]
    %v1193 = vld [vmem:[%s1189 + $0x18] sm:$0xff]
    %v1194 = vld [vmem:[%s1189 + $0x20] sm:$0xff]
    %v1195 = vld [vmem:[%s1189 + $0x28] sm:$0xff]
    %v1196 = vld [vmem:[%s1189 + $0x30] sm:$0xff]
    %v1197 = vld [vmem:[%s1189 + $0x38] sm:$0xff]
    %v1198 = vld [vmem:[%s1189 + $0x40] sm:$0xff]
    %v1199 = vld [vmem:[%s1189 + $0x48] sm:$0xff]
    %v1200 = vld [vmem:[%s1189 + $0x50] sm:$0xff]
    %v1201 = vld [vmem:[%s1189 + $0x58] sm:$0xff]
    %v1202 = vld [vmem:[%s1189 + $0x60] sm:$0xff]
    %v1203 = vld [vmem:[%s1189 + $0x68] sm:$0xff]
    %v1204 = vld [vmem:[%s1189 + $0x70] sm:$0xff]
    %v1205 = vld [vmem:[%s1189 + $0x78] sm:$0xff]
    %v1206 = vld [vmem:[%s1189 + $0x80] sm:$0xff]
    %v1207 = vld [vmem:[%s1189 + $0x88] sm:$0xff]
    %v1208 = vld [vmem:[%s1189 + $0x90] sm:$0xff]
    %v1209 = vld [vmem:[%s1189 + $0x98] sm:$0xff]
    %v1210 = vld [vmem:[%s1189 + $0xa0] sm:$0xff]
    %v1211 = vld [vmem:[%s1189 + $0xa8] sm:$0xff]
    %v1212 = vld [vmem:[%s1189 + $0xb0] sm:$0xff]
    %v1213 = vld [vmem:[%s1189 + $0xb8] sm:$0xff]
    %v1214 = vld [vmem:[%s1189 + $0xc0] sm:$0xff]
    %v1215 = vld [vmem:[%s1189 + $0xc8] sm:$0xff]
    %v1216 = vld [vmem:[%s1189 + $0xd0] sm:$0xff]
    %v1218 = vsel %vm718, %v1192, 0
    %v1221 = vsel %vm718, %v1195, 0
    %v1224 = vsel %vm718, %v1198, 0
    %v1227 = vsel %vm718, %v1201, 0
    %v1230 = vsel %vm718, %v1204, 0
    %v1233 = vsel %vm718, %v1207, 0
    %v1236 = vsel %vm718, %v1210, 0
    %v1239 = vsel %vm718, %v1213, 0
    %v1242 = vsel %vm718, %v1216, 0
    %1244 = vmatpush.msra.mxu0 %v663
    %1245 = vmatpush.msra.mxu0 %v662
    %1246 = vmatpush.msra.mxu0 %v661
    %1247 = vmatpush.msra.mxu0 %v660
    %1248 = vmatpush.msra.mxu0 %v659
    %1249 = vmatpush.msra.mxu0 %v658
    %1250 = vmatpush.msra.mxu0 %v657
    %1251 = vmatpush.msra.mxu0 %v656
    %1252 = vmatpush.msra.mxu0 %v655
    %1253 = vmatpush.msra.mxu0 %v654
    %1254 = vmatpush.msra.mxu0 %v653
    %1255 = vmatpush.msra.mxu0 %v652
    %1256 = vmatpush.msra.mxu0 %v651
    %1257 = vmatpush.msra.mxu0 %v650
    %1258 = vmatpush.msra.mxu0 %v649
    %1259 = vmatpush.msra.mxu0 %v648
    %1260 = vmatmul.f32.gmra.mxu0 %v1190
    %v1261 = vpop.f32.mrf.mxu0
    %v1262 = vadd.f32 0.0, %v1261
    %1263 = vmatmul.f32.gmra.mxu0 %v1193
    %v1264 = vpop.f32.mrf.mxu0
    %v1265 = vadd.f32 0.0, %v1264
    %1266 = vmatmul.f32.gmra.mxu0 %v1196
    %v1267 = vpop.f32.mrf.mxu0
    %v1268 = vadd.f32 0.0, %v1267
    %1269 = vmatmul.f32.gmra.mxu0 %v1199
    %v1270 = vpop.f32.mrf.mxu0
    %v1271 = vadd.f32 0.0, %v1270
    %1272 = vmatmul.f32.gmra.mxu0 %v1202
    %v1273 = vpop.f32.mrf.mxu0
    %v1274 = vadd.f32 0.0, %v1273
    %1275 = vmatmul.f32.gmra.mxu0 %v1205
    %v1276 = vpop.f32.mrf.mxu0
    %v1277 = vadd.f32 0.0, %v1276
    %1278 = vmatmul.f32.gmra.mxu0 %v1208
    %v1279 = vpop.f32.mrf.mxu0
    %v1280 = vadd.f32 0.0, %v1279
    %1281 = vmatmul.f32.gmra.mxu0 %v1211
    %v1282 = vpop.f32.mrf.mxu0
    %v1283 = vadd.f32 0.0, %v1282
    %1284 = vmatmul.f32.gmra.mxu0 %v1214
    %v1285 = vpop.f32.mrf.mxu0
    %v1286 = vadd.f32 0.0, %v1285
    %1287 = vdwg.mxu0
    %1288 = vmatpush.msra.mxu0 %v679
    %1289 = vmatpush.msra.mxu0 %v678
    %1290 = vmatpush.msra.mxu0 %v677
    %1291 = vmatpush.msra.mxu0 %v676
    %1292 = vmatpush.msra.mxu0 %v675
    %1293 = vmatpush.msra.mxu0 %v674
    %1294 = vmatpush.msra.mxu0 %v673
    %1295 = vmatpush.msra.mxu0 %v672
    %1296 = vmatpush.msra.mxu0 %v671
    %1297 = vmatpush.msra.mxu0 %v670
    %1298 = vmatpush.msra.mxu0 %v669
    %1299 = vmatpush.msra.mxu0 %v668
    %1300 = vmatpush.msra.mxu0 %v667
    %1301 = vmatpush.msra.mxu0 %v666
    %1302 = vmatpush.msra.mxu0 %v665
    %1303 = vmatpush.msra.mxu0 %v664
    %1304 = vmatmul.f32.gmra.mxu0 %v1191
    %v1305 = vpop.f32.mrf.mxu0
    %v1306 = vadd.f32 %v1262, %v1305
    %1307 = vmatmul.f32.gmra.mxu0 %v1194
    %v1308 = vpop.f32.mrf.mxu0
    %v1309 = vadd.f32 %v1265, %v1308
    %1310 = vmatmul.f32.gmra.mxu0 %v1197
    %v1311 = vpop.f32.mrf.mxu0
    %v1312 = vadd.f32 %v1268, %v1311
    %1313 = vmatmul.f32.gmra.mxu0 %v1200
    %v1314 = vpop.f32.mrf.mxu0
    %v1315 = vadd.f32 %v1271, %v1314
    %1316 = vmatmul.f32.gmra.mxu0 %v1203
    %v1317 = vpop.f32.mrf.mxu0
    %v1318 = vadd.f32 %v1274, %v1317
    %1319 = vmatmul.f32.gmra.mxu0 %v1206
    %v1320 = vpop.f32.mrf.mxu0
    %v1321 = vadd.f32 %v1277, %v1320
    %1322 = vmatmul.f32.gmra.mxu0 %v1209
    %v1323 = vpop.f32.mrf.mxu0
    %v1324 = vadd.f32 %v1280, %v1323
    %1325 = vmatmul.f32.gmra.mxu0 %v1212
    %v1326 = vpop.f32.mrf.mxu0
    %v1327 = vadd.f32 %v1283, %v1326
    %1328 = vmatmul.f32.gmra.mxu0 %v1215
    %v1329 = vpop.f32.mrf.mxu0
    %v1330 = vadd.f32 %v1286, %v1329
    %1331 = vdwg.mxu0
    %1332 = vmatpush.msra.mxu0 0.0
    %1333 = vmatpush.msra.mxu0 0.0
    %1334 = vmatpush.msra.mxu0 0.0
    %1335 = vmatpush.msra.mxu0 0.0
    %1336 = vmatpush.msra.mxu0 0.0
    %1337 = vmatpush.msra.mxu0 %v747
    %1338 = vmatpush.msra.mxu0 %v689
    %1339 = vmatpush.msra.mxu0 %v688
    %1340 = vmatpush.msra.mxu0 %v687
    %1341 = vmatpush.msra.mxu0 %v686
    %1342 = vmatpush.msra.mxu0 %v685
    %1343 = vmatpush.msra.mxu0 %v684
    %1344 = vmatpush.msra.mxu0 %v683
    %1345 = vmatpush.msra.mxu0 %v682
    %1346 = vmatpush.msra.mxu0 %v681
    %1347 = vmatpush.msra.mxu0 %v680
    %1348 = vmatmul.f32.gmra.mxu0 %v1218
    %v1349 = vpop.f32.mrf.mxu0
    %v1350 = vadd.f32 %v1306, %v1349
    %1351 = vmatmul.f32.gmra.mxu0 %v1221
    %v1352 = vpop.f32.mrf.mxu0
    %v1353 = vadd.f32 %v1309, %v1352
    %1354 = vmatmul.f32.gmra.mxu0 %v1224
    %v1355 = vpop.f32.mrf.mxu0
    %v1356 = vadd.f32 %v1312, %v1355
    %1357 = vmatmul.f32.gmra.mxu0 %v1227
    %v1358 = vpop.f32.mrf.mxu0
    %v1359 = vadd.f32 %v1315, %v1358
    %1360 = vmatmul.f32.gmra.mxu0 %v1230
    %v1361 = vpop.f32.mrf.mxu0
    %v1362 = vadd.f32 %v1318, %v1361
    %1363 = vmatmul.f32.gmra.mxu0 %v1233
    %v1364 = vpop.f32.mrf.mxu0
    %v1365 = vadd.f32 %v1321, %v1364
    %1366 = vmatmul.f32.gmra.mxu0 %v1236
    %v1367 = vpop.f32.mrf.mxu0
    %v1368 = vadd.f32 %v1324, %v1367
    %1369 = vmatmul.f32.gmra.mxu0 %v1239
    %v1370 = vpop.f32.mrf.mxu0
    %v1371 = vadd.f32 %v1327, %v1370
    %1372 = vmatmul.f32.gmra.mxu0 %v1242
    %v1373 = vpop.f32.mrf.mxu0
    %v1374 = vadd.f32 %v1330, %v1373
    %1375 = vdwg.mxu0
    %s1376 = scalar_lea.vmem [#allocation2], 256
    %v1377 = vld [vmem:[%s1376] sm:$0xff]
    %v1378 = vld [vmem:[%s1376 + $0x8] sm:$0xff]
    %v1379 = vld [vmem:[%s1376 + $0x10] sm:$0xff]
    %v1380 = vld [vmem:[%s1376 + $0x18] sm:$0xff]
    %v1381 = vld [vmem:[%s1376 + $0x20] sm:$0xff]
    %v1382 = vld [vmem:[%s1376 + $0x28] sm:$0xff]
    %v1383 = vld [vmem:[%s1376 + $0x30] sm:$0xff]
    %v1384 = vld [vmem:[%s1376 + $0x38] sm:$0xff]
    %v1385 = vld [vmem:[%s1376 + $0x40] sm:$0xff]
    %v1386 = vld [vmem:[%s1376 + $0x48] sm:$0xff]
    %v1387 = vld [vmem:[%s1376 + $0x50] sm:$0xff]
    %v1388 = vld [vmem:[%s1376 + $0x58] sm:$0xff]
    %v1389 = vld [vmem:[%s1376 + $0x60] sm:$0xff]
    %v1390 = vld [vmem:[%s1376 + $0x68] sm:$0xff]
    %v1391 = vld [vmem:[%s1376 + $0x70] sm:$0xff]
    %v1392 = vld [vmem:[%s1376 + $0x78] sm:$0xff]
    %1393 = vmatpush.msra.mxu0 %v1392
    %1394 = vmatpush.msra.mxu0 %v1391
    %1395 = vmatpush.msra.mxu0 %v1390
    %1396 = vmatpush.msra.mxu0 %v1389
    %1397 = vmatpush.msra.mxu0 %v1388
    %1398 = vmatpush.msra.mxu0 %v1387
    %1399 = vmatpush.msra.mxu0 %v1386
    %1400 = vmatpush.msra.mxu0 %v1385
    %1401 = vmatpush.msra.mxu0 %v1384
    %1402 = vmatpush.msra.mxu0 %v1383
    %1403 = vmatpush.msra.mxu0 %v1382
    %1404 = vmatpush.msra.mxu0 %v1381
    %1405 = vmatpush.msra.mxu0 %v1380
    %1406 = vmatpush.msra.mxu0 %v1379
    %1407 = vmatpush.msra.mxu0 %v1378
    %1408 = vmatpush.msra.mxu0 %v1377
    %1409 = vmatmul.f32.gmra.mxu0 %v1350
    %v1410 = vpop.f32.mrf.mxu0
    %v1411 = vadd.f32 0.0, %v1410
    %1412 = vmatmul.f32.gmra.mxu0 %v1353
    %v1413 = vpop.f32.mrf.mxu0
    %v1414 = vadd.f32 0.0, %v1413
    %1415 = vmatmul.f32.gmra.mxu0 %v1356
    %v1416 = vpop.f32.mrf.mxu0
    %v1417 = vadd.f32 0.0, %v1416
    %1418 = vmatmul.f32.gmra.mxu0 %v1359
    %v1419 = vpop.f32.mrf.mxu0
    %v1420 = vadd.f32 0.0, %v1419
    %1421 = vmatmul.f32.gmra.mxu0 %v1362
    %v1422 = vpop.f32.mrf.mxu0
    %v1423 = vadd.f32 0.0, %v1422
    %1424 = vmatmul.f32.gmra.mxu0 %v1365
    %v1425 = vpop.f32.mrf.mxu0
    %v1426 = vadd.f32 0.0, %v1425
    %1427 = vmatmul.f32.gmra.mxu0 %v1368
    %v1428 = vpop.f32.mrf.mxu0
    %v1429 = vadd.f32 0.0, %v1428
    %1430 = vmatmul.f32.gmra.mxu0 %v1371
    %v1431 = vpop.f32.mrf.mxu0
    %v1432 = vadd.f32 0.0, %v1431
    %1433 = vmatmul.f32.gmra.mxu0 %v1374
    %v1434 = vpop.f32.mrf.mxu0
    %v1435 = vadd.f32 0.0, %v1434
    %1436 = vdwg.mxu0
    %v1437 = vadd.f32 %v1163, %v1411
    %v1438 = vadd.f32 %v1166, %v1414
    %v1439 = vadd.f32 %v1169, %v1417
    %v1440 = vadd.f32 %v1172, %v1420
    %v1441 = vadd.f32 %v1175, %v1423
    %v1442 = vadd.f32 %v1178, %v1426
    %v1443 = vadd.f32 %v1181, %v1429
    %v1444 = vadd.f32 %v1184, %v1432
    %v1445 = vadd.f32 %v1187, %v1435
    %s1446 = scalar_lea.vmem %s4, 648
    %v1447 = vld [vmem:[%s1446] sm:$0xff]
    %v1448 = vld [vmem:[%s1446 + $0x8] sm:$0xff]
    %v1449 = vld [vmem:[%s1446 + $0x10] sm:$0xff]
    %v1450 = vld [vmem:[%s1446 + $0x18] sm:$0xff]
    %v1451 = vld [vmem:[%s1446 + $0x20] sm:$0xff]
    %v1452 = vld [vmem:[%s1446 + $0x28] sm:$0xff]
    %v1453 = vld [vmem:[%s1446 + $0x30] sm:$0xff]
    %v1454 = vld [vmem:[%s1446 + $0x38] sm:$0xff]
    %v1455 = vld [vmem:[%s1446 + $0x40] sm:$0xff]
    %v1456 = vld [vmem:[%s1446 + $0x48] sm:$0xff]
    %v1457 = vld [vmem:[%s1446 + $0x50] sm:$0xff]
    %v1458 = vld [vmem:[%s1446 + $0x58] sm:$0xff]
    %v1459 = vld [vmem:[%s1446 + $0x60] sm:$0xff]
    %v1460 = vld [vmem:[%s1446 + $0x68] sm:$0xff]
    %v1461 = vld [vmem:[%s1446 + $0x70] sm:$0xff]
    %v1462 = vld [vmem:[%s1446 + $0x78] sm:$0xff]
    %v1463 = vld [vmem:[%s1446 + $0x80] sm:$0xff]
    %v1464 = vld [vmem:[%s1446 + $0x88] sm:$0xff]
    %v1465 = vld [vmem:[%s1446 + $0x90] sm:$0xff]
    %v1466 = vld [vmem:[%s1446 + $0x98] sm:$0xff]
    %v1467 = vld [vmem:[%s1446 + $0xa0] sm:$0xff]
    %v1468 = vld [vmem:[%s1446 + $0xa8] sm:$0xff]
    %v1469 = vld [vmem:[%s1446 + $0xb0] sm:$0xff]
    %v1470 = vld [vmem:[%s1446 + $0xb8] sm:$0xff]
    %v1471 = vld [vmem:[%s1446 + $0xc0] sm:$0xff]
    %v1472 = vld [vmem:[%s1446 + $0xc8] sm:$0xff]
    %v1473 = vld [vmem:[%s1446 + $0xd0] sm:$0xff]
    %v1475 = vsel %vm718, %v1449, 0
    %v1478 = vsel %vm718, %v1452, 0
    %v1481 = vsel %vm718, %v1455, 0
    %v1484 = vsel %vm718, %v1458, 0
    %v1487 = vsel %vm718, %v1461, 0
    %v1490 = vsel %vm718, %v1464, 0
    %v1493 = vsel %vm718, %v1467, 0
    %v1496 = vsel %vm718, %v1470, 0
    %v1499 = vsel %vm718, %v1473, 0
    %1501 = vmatpush.msra.mxu0 %v663
    %1502 = vmatpush.msra.mxu0 %v662
    %1503 = vmatpush.msra.mxu0 %v661
    %1504 = vmatpush.msra.mxu0 %v660
    %1505 = vmatpush.msra.mxu0 %v659
    %1506 = vmatpush.msra.mxu0 %v658
    %1507 = vmatpush.msra.mxu0 %v657
    %1508 = vmatpush.msra.mxu0 %v656
    %1509 = vmatpush.msra.mxu0 %v655
    %1510 = vmatpush.msra.mxu0 %v654
    %1511 = vmatpush.msra.mxu0 %v653
    %1512 = vmatpush.msra.mxu0 %v652
    %1513 = vmatpush.msra.mxu0 %v651
    %1514 = vmatpush.msra.mxu0 %v650
    %1515 = vmatpush.msra.mxu0 %v649
    %1516 = vmatpush.msra.mxu0 %v648
    %1517 = vmatmul.f32.gmra.mxu0 %v1447
    %v1518 = vpop.f32.mrf.mxu0
    %v1519 = vadd.f32 0.0, %v1518
    %1520 = vmatmul.f32.gmra.mxu0 %v1450
    %v1521 = vpop.f32.mrf.mxu0
    %v1522 = vadd.f32 0.0, %v1521
    %1523 = vmatmul.f32.gmra.mxu0 %v1453
    %v1524 = vpop.f32.mrf.mxu0
    %v1525 = vadd.f32 0.0, %v1524
    %1526 = vmatmul.f32.gmra.mxu0 %v1456
    %v1527 = vpop.f32.mrf.mxu0
    %v1528 = vadd.f32 0.0, %v1527
    %1529 = vmatmul.f32.gmra.mxu0 %v1459
    %v1530 = vpop.f32.mrf.mxu0
    %v1531 = vadd.f32 0.0, %v1530
    %1532 = vmatmul.f32.gmra.mxu0 %v1462
    %v1533 = vpop.f32.mrf.mxu0
    %v1534 = vadd.f32 0.0, %v1533
    %1535 = vmatmul.f32.gmra.mxu0 %v1465
    %v1536 = vpop.f32.mrf.mxu0
    %v1537 = vadd.f32 0.0, %v1536
    %1538 = vmatmul.f32.gmra.mxu0 %v1468
    %v1539 = vpop.f32.mrf.mxu0
    %v1540 = vadd.f32 0.0, %v1539
    %1541 = vmatmul.f32.gmra.mxu0 %v1471
    %v1542 = vpop.f32.mrf.mxu0
    %v1543 = vadd.f32 0.0, %v1542
    %1544 = vdwg.mxu0
    %1545 = vmatpush.msra.mxu0 %v679
    %1546 = vmatpush.msra.mxu0 %v678
    %1547 = vmatpush.msra.mxu0 %v677
    %1548 = vmatpush.msra.mxu0 %v676
    %1549 = vmatpush.msra.mxu0 %v675
    %1550 = vmatpush.msra.mxu0 %v674
    %1551 = vmatpush.msra.mxu0 %v673
    %1552 = vmatpush.msra.mxu0 %v672
    %1553 = vmatpush.msra.mxu0 %v671
    %1554 = vmatpush.msra.mxu0 %v670
    %1555 = vmatpush.msra.mxu0 %v669
    %1556 = vmatpush.msra.mxu0 %v668
    %1557 = vmatpush.msra.mxu0 %v667
    %1558 = vmatpush.msra.mxu0 %v666
    %1559 = vmatpush.msra.mxu0 %v665
    %1560 = vmatpush.msra.mxu0 %v664
    %1561 = vmatmul.f32.gmra.mxu0 %v1448
    %v1562 = vpop.f32.mrf.mxu0
    %v1563 = vadd.f32 %v1519, %v1562
    %1564 = vmatmul.f32.gmra.mxu0 %v1451
    %v1565 = vpop.f32.mrf.mxu0
    %v1566 = vadd.f32 %v1522, %v1565
    %1567 = vmatmul.f32.gmra.mxu0 %v1454
    %v1568 = vpop.f32.mrf.mxu0
    %v1569 = vadd.f32 %v1525, %v1568
    %1570 = vmatmul.f32.gmra.mxu0 %v1457
    %v1571 = vpop.f32.mrf.mxu0
    %v1572 = vadd.f32 %v1528, %v1571
    %1573 = vmatmul.f32.gmra.mxu0 %v1460
    %v1574 = vpop.f32.mrf.mxu0
    %v1575 = vadd.f32 %v1531, %v1574
    %1576 = vmatmul.f32.gmra.mxu0 %v1463
    %v1577 = vpop.f32.mrf.mxu0
    %v1578 = vadd.f32 %v1534, %v1577
    %1579 = vmatmul.f32.gmra.mxu0 %v1466
    %v1580 = vpop.f32.mrf.mxu0
    %v1581 = vadd.f32 %v1537, %v1580
    %1582 = vmatmul.f32.gmra.mxu0 %v1469
    %v1583 = vpop.f32.mrf.mxu0
    %v1584 = vadd.f32 %v1540, %v1583
    %1585 = vmatmul.f32.gmra.mxu0 %v1472
    %v1586 = vpop.f32.mrf.mxu0
    %v1587 = vadd.f32 %v1543, %v1586
    %1588 = vdwg.mxu0
    %1589 = vmatpush.msra.mxu0 0.0
    %1590 = vmatpush.msra.mxu0 0.0
    %1591 = vmatpush.msra.mxu0 0.0
    %1592 = vmatpush.msra.mxu0 0.0
    %1593 = vmatpush.msra.mxu0 0.0
    %1594 = vmatpush.msra.mxu0 %v747
    %1595 = vmatpush.msra.mxu0 %v689
    %1596 = vmatpush.msra.mxu0 %v688
    %1597 = vmatpush.msra.mxu0 %v687
    %1598 = vmatpush.msra.mxu0 %v686
    %1599 = vmatpush.msra.mxu0 %v685
    %1600 = vmatpush.msra.mxu0 %v684
    %1601 = vmatpush.msra.mxu0 %v683
    %1602 = vmatpush.msra.mxu0 %v682
    %1603 = vmatpush.msra.mxu0 %v681
    %1604 = vmatpush.msra.mxu0 %v680
    %1605 = vmatmul.f32.gmra.mxu0 %v1475
    %v1606 = vpop.f32.mrf.mxu0
    %v1607 = vadd.f32 %v1563, %v1606
    %1608 = vmatmul.f32.gmra.mxu0 %v1478
    %v1609 = vpop.f32.mrf.mxu0
    %v1610 = vadd.f32 %v1566, %v1609
    %1611 = vmatmul.f32.gmra.mxu0 %v1481
    %v1612 = vpop.f32.mrf.mxu0
    %v1613 = vadd.f32 %v1569, %v1612
    %1614 = vmatmul.f32.gmra.mxu0 %v1484
    %v1615 = vpop.f32.mrf.mxu0
    %v1616 = vadd.f32 %v1572, %v1615
    %1617 = vmatmul.f32.gmra.mxu0 %v1487
    %v1618 = vpop.f32.mrf.mxu0
    %v1619 = vadd.f32 %v1575, %v1618
    %1620 = vmatmul.f32.gmra.mxu0 %v1490
    %v1621 = vpop.f32.mrf.mxu0
    %v1622 = vadd.f32 %v1578, %v1621
    %1623 = vmatmul.f32.gmra.mxu0 %v1493
    %v1624 = vpop.f32.mrf.mxu0
    %v1625 = vadd.f32 %v1581, %v1624
    %1626 = vmatmul.f32.gmra.mxu0 %v1496
    %v1627 = vpop.f32.mrf.mxu0
    %v1628 = vadd.f32 %v1584, %v1627
    %1629 = vmatmul.f32.gmra.mxu0 %v1499
    %v1630 = vpop.f32.mrf.mxu0
    %v1631 = vadd.f32 %v1587, %v1630
    %1632 = vdwg.mxu0
    %s1633 = scalar_lea.vmem [#allocation2], 384
    %v1634 = vld [vmem:[%s1633] sm:$0xff]
    %v1635 = vld [vmem:[%s1633 + $0x8] sm:$0xff]
    %v1636 = vld [vmem:[%s1633 + $0x10] sm:$0xff]
    %v1637 = vld [vmem:[%s1633 + $0x18] sm:$0xff]
    %v1638 = vld [vmem:[%s1633 + $0x20] sm:$0xff]
    %v1639 = vld [vmem:[%s1633 + $0x28] sm:$0xff]
    %v1640 = vld [vmem:[%s1633 + $0x30] sm:$0xff]
    %v1641 = vld [vmem:[%s1633 + $0x38] sm:$0xff]
    %v1642 = vld [vmem:[%s1633 + $0x40] sm:$0xff]
    %v1643 = vld [vmem:[%s1633 + $0x48] sm:$0xff]
    %v1644 = vld [vmem:[%s1633 + $0x50] sm:$0xff]
    %v1645 = vld [vmem:[%s1633 + $0x58] sm:$0xff]
    %v1646 = vld [vmem:[%s1633 + $0x60] sm:$0xff]
    %v1647 = vld [vmem:[%s1633 + $0x68] sm:$0xff]
    %v1648 = vld [vmem:[%s1633 + $0x70] sm:$0xff]
    %v1649 = vld [vmem:[%s1633 + $0x78] sm:$0xff]
    %1650 = vmatpush.msra.mxu0 %v1649
    %1651 = vmatpush.msra.mxu0 %v1648
    %1652 = vmatpush.msra.mxu0 %v1647
    %1653 = vmatpush.msra.mxu0 %v1646
    %1654 = vmatpush.msra.mxu0 %v1645
    %1655 = vmatpush.msra.mxu0 %v1644
    %1656 = vmatpush.msra.mxu0 %v1643
    %1657 = vmatpush.msra.mxu0 %v1642
    %1658 = vmatpush.msra.mxu0 %v1641
    %1659 = vmatpush.msra.mxu0 %v1640
    %1660 = vmatpush.msra.mxu0 %v1639
    %1661 = vmatpush.msra.mxu0 %v1638
    %1662 = vmatpush.msra.mxu0 %v1637
    %1663 = vmatpush.msra.mxu0 %v1636
    %1664 = vmatpush.msra.mxu0 %v1635
    %1665 = vmatpush.msra.mxu0 %v1634
    %1666 = vmatmul.f32.gmra.mxu0 %v1607
    %v1667 = vpop.f32.mrf.mxu0
    %v1668 = vadd.f32 0.0, %v1667
    %1669 = vmatmul.f32.gmra.mxu0 %v1610
    %v1670 = vpop.f32.mrf.mxu0
    %v1671 = vadd.f32 0.0, %v1670
    %1672 = vmatmul.f32.gmra.mxu0 %v1613
    %v1673 = vpop.f32.mrf.mxu0
    %v1674 = vadd.f32 0.0, %v1673
    %1675 = vmatmul.f32.gmra.mxu0 %v1616
    %v1676 = vpop.f32.mrf.mxu0
    %v1677 = vadd.f32 0.0, %v1676
    %1678 = vmatmul.f32.gmra.mxu0 %v1619
    %v1679 = vpop.f32.mrf.mxu0
    %v1680 = vadd.f32 0.0, %v1679
    %1681 = vmatmul.f32.gmra.mxu0 %v1622
    %v1682 = vpop.f32.mrf.mxu0
    %v1683 = vadd.f32 0.0, %v1682
    %1684 = vmatmul.f32.gmra.mxu0 %v1625
    %v1685 = vpop.f32.mrf.mxu0
    %v1686 = vadd.f32 0.0, %v1685
    %1687 = vmatmul.f32.gmra.mxu0 %v1628
    %v1688 = vpop.f32.mrf.mxu0
    %v1689 = vadd.f32 0.0, %v1688
    %1690 = vmatmul.f32.gmra.mxu0 %v1631
    %v1691 = vpop.f32.mrf.mxu0
    %v1692 = vadd.f32 0.0, %v1691
    %1693 = vdwg.mxu0
    %v1694 = vadd.f32 %v1437, %v1668
    %v1695 = vadd.f32 %v1438, %v1671
    %v1696 = vadd.f32 %v1439, %v1674
    %v1697 = vadd.f32 %v1440, %v1677
    %v1698 = vadd.f32 %v1441, %v1680
    %v1699 = vadd.f32 %v1442, %v1683
    %v1700 = vadd.f32 %v1443, %v1686
    %v1701 = vadd.f32 %v1444, %v1689
    %v1702 = vadd.f32 %v1445, %v1692
    %s1703 = scalar_lea.vmem %s4, 864
    %v1704 = vld [vmem:[%s1703] sm:$0xff]
    %v1705 = vld [vmem:[%s1703 + $0x8] sm:$0xff]
    %v1706 = vld [vmem:[%s1703 + $0x10] sm:$0xff]
    %v1707 = vld [vmem:[%s1703 + $0x18] sm:$0xff]
    %v1708 = vld [vmem:[%s1703 + $0x20] sm:$0xff]
    %v1709 = vld [vmem:[%s1703 + $0x28] sm:$0xff]
    %v1710 = vld [vmem:[%s1703 + $0x30] sm:$0xff]
    %v1711 = vld [vmem:[%s1703 + $0x38] sm:$0xff]
    %v1712 = vld [vmem:[%s1703 + $0x40] sm:$0xff]
    %v1713 = vld [vmem:[%s1703 + $0x48] sm:$0xff]
    %v1714 = vld [vmem:[%s1703 + $0x50] sm:$0xff]
    %v1715 = vld [vmem:[%s1703 + $0x58] sm:$0xff]
    %v1716 = vld [vmem:[%s1703 + $0x60] sm:$0xff]
    %v1717 = vld [vmem:[%s1703 + $0x68] sm:$0xff]
    %v1718 = vld [vmem:[%s1703 + $0x70] sm:$0xff]
    %v1719 = vld [vmem:[%s1703 + $0x78] sm:$0xff]
    %v1720 = vld [vmem:[%s1703 + $0x80] sm:$0xff]
    %v1721 = vld [vmem:[%s1703 + $0x88] sm:$0xff]
    %v1722 = vld [vmem:[%s1703 + $0x90] sm:$0xff]
    %v1723 = vld [vmem:[%s1703 + $0x98] sm:$0xff]
    %v1724 = vld [vmem:[%s1703 + $0xa0] sm:$0xff]
    %v1725 = vld [vmem:[%s1703 + $0xa8] sm:$0xff]
    %v1726 = vld [vmem:[%s1703 + $0xb0] sm:$0xff]
    %v1727 = vld [vmem:[%s1703 + $0xb8] sm:$0xff]
    %v1728 = vld [vmem:[%s1703 + $0xc0] sm:$0xff]
    %v1729 = vld [vmem:[%s1703 + $0xc8] sm:$0xff]
    %v1730 = vld [vmem:[%s1703 + $0xd0] sm:$0xff]
    %v1732 = vsel %vm718, %v1706, 0
    %v1735 = vsel %vm718, %v1709, 0
    %v1738 = vsel %vm718, %v1712, 0
    %v1741 = vsel %vm718, %v1715, 0
    %v1744 = vsel %vm718, %v1718, 0
    %v1747 = vsel %vm718, %v1721, 0
    %v1750 = vsel %vm718, %v1724, 0
    %v1753 = vsel %vm718, %v1727, 0
    %v1756 = vsel %vm718, %v1730, 0
    %1758 = vmatpush.msra.mxu0 %v663
    %1759 = vmatpush.msra.mxu0 %v662
    %1760 = vmatpush.msra.mxu0 %v661
    %1761 = vmatpush.msra.mxu0 %v660
    %1762 = vmatpush.msra.mxu0 %v659
    %1763 = vmatpush.msra.mxu0 %v658
    %1764 = vmatpush.msra.mxu0 %v657
    %1765 = vmatpush.msra.mxu0 %v656
    %1766 = vmatpush.msra.mxu0 %v655
    %1767 = vmatpush.msra.mxu0 %v654
    %1768 = vmatpush.msra.mxu0 %v653
    %1769 = vmatpush.msra.mxu0 %v652
    %1770 = vmatpush.msra.mxu0 %v651
    %1771 = vmatpush.msra.mxu0 %v650
    %1772 = vmatpush.msra.mxu0 %v649
    %1773 = vmatpush.msra.mxu0 %v648
    %1774 = vmatmul.f32.gmra.mxu0 %v1704
    %v1775 = vpop.f32.mrf.mxu0
    %v1776 = vadd.f32 0.0, %v1775
    %1777 = vmatmul.f32.gmra.mxu0 %v1707
    %v1778 = vpop.f32.mrf.mxu0
    %v1779 = vadd.f32 0.0, %v1778
    %1780 = vmatmul.f32.gmra.mxu0 %v1710
    %v1781 = vpop.f32.mrf.mxu0
    %v1782 = vadd.f32 0.0, %v1781
    %1783 = vmatmul.f32.gmra.mxu0 %v1713
    %v1784 = vpop.f32.mrf.mxu0
    %v1785 = vadd.f32 0.0, %v1784
    %1786 = vmatmul.f32.gmra.mxu0 %v1716
    %v1787 = vpop.f32.mrf.mxu0
    %v1788 = vadd.f32 0.0, %v1787
    %1789 = vmatmul.f32.gmra.mxu0 %v1719
    %v1790 = vpop.f32.mrf.mxu0
    %v1791 = vadd.f32 0.0, %v1790
    %1792 = vmatmul.f32.gmra.mxu0 %v1722
    %v1793 = vpop.f32.mrf.mxu0
    %v1794 = vadd.f32 0.0, %v1793
    %1795 = vmatmul.f32.gmra.mxu0 %v1725
    %v1796 = vpop.f32.mrf.mxu0
    %v1797 = vadd.f32 0.0, %v1796
    %1798 = vmatmul.f32.gmra.mxu0 %v1728
    %v1799 = vpop.f32.mrf.mxu0
    %v1800 = vadd.f32 0.0, %v1799
    %1801 = vdwg.mxu0
    %1802 = vmatpush.msra.mxu0 %v679
    %1803 = vmatpush.msra.mxu0 %v678
    %1804 = vmatpush.msra.mxu0 %v677
    %1805 = vmatpush.msra.mxu0 %v676
    %1806 = vmatpush.msra.mxu0 %v675
    %1807 = vmatpush.msra.mxu0 %v674
    %1808 = vmatpush.msra.mxu0 %v673
    %1809 = vmatpush.msra.mxu0 %v672
    %1810 = vmatpush.msra.mxu0 %v671
    %1811 = vmatpush.msra.mxu0 %v670
    %1812 = vmatpush.msra.mxu0 %v669
    %1813 = vmatpush.msra.mxu0 %v668
    %1814 = vmatpush.msra.mxu0 %v667
    %1815 = vmatpush.msra.mxu0 %v666
    %1816 = vmatpush.msra.mxu0 %v665
    %1817 = vmatpush.msra.mxu0 %v664
    %1818 = vmatmul.f32.gmra.mxu0 %v1705
    %v1819 = vpop.f32.mrf.mxu0
    %v1820 = vadd.f32 %v1776, %v1819
    %1821 = vmatmul.f32.gmra.mxu0 %v1708
    %v1822 = vpop.f32.mrf.mxu0
    %v1823 = vadd.f32 %v1779, %v1822
    %1824 = vmatmul.f32.gmra.mxu0 %v1711
    %v1825 = vpop.f32.mrf.mxu0
    %v1826 = vadd.f32 %v1782, %v1825
    %1827 = vmatmul.f32.gmra.mxu0 %v1714
    %v1828 = vpop.f32.mrf.mxu0
    %v1829 = vadd.f32 %v1785, %v1828
    %1830 = vmatmul.f32.gmra.mxu0 %v1717
    %v1831 = vpop.f32.mrf.mxu0
    %v1832 = vadd.f32 %v1788, %v1831
    %1833 = vmatmul.f32.gmra.mxu0 %v1720
    %v1834 = vpop.f32.mrf.mxu0
    %v1835 = vadd.f32 %v1791, %v1834
    %1836 = vmatmul.f32.gmra.mxu0 %v1723
    %v1837 = vpop.f32.mrf.mxu0
    %v1838 = vadd.f32 %v1794, %v1837
    %1839 = vmatmul.f32.gmra.mxu0 %v1726
    %v1840 = vpop.f32.mrf.mxu0
    %v1841 = vadd.f32 %v1797, %v1840
    %1842 = vmatmul.f32.gmra.mxu0 %v1729
    %v1843 = vpop.f32.mrf.mxu0
    %v1844 = vadd.f32 %v1800, %v1843
    %1845 = vdwg.mxu0
    %1846 = vmatpush.msra.mxu0 0.0
    %1847 = vmatpush.msra.mxu0 0.0
    %1848 = vmatpush.msra.mxu0 0.0
    %1849 = vmatpush.msra.mxu0 0.0
    %1850 = vmatpush.msra.mxu0 0.0
    %1851 = vmatpush.msra.mxu0 %v747
    %1852 = vmatpush.msra.mxu0 %v689
    %1853 = vmatpush.msra.mxu0 %v688
    %1854 = vmatpush.msra.mxu0 %v687
    %1855 = vmatpush.msra.mxu0 %v686
    %1856 = vmatpush.msra.mxu0 %v685
    %1857 = vmatpush.msra.mxu0 %v684
    %1858 = vmatpush.msra.mxu0 %v683
    %1859 = vmatpush.msra.mxu0 %v682
    %1860 = vmatpush.msra.mxu0 %v681
    %1861 = vmatpush.msra.mxu0 %v680
    %1862 = vmatmul.f32.gmra.mxu0 %v1732
    %v1863 = vpop.f32.mrf.mxu0
    %v1864 = vadd.f32 %v1820, %v1863
    %1865 = vmatmul.f32.gmra.mxu0 %v1735
    %v1866 = vpop.f32.mrf.mxu0
    %v1867 = vadd.f32 %v1823, %v1866
    %1868 = vmatmul.f32.gmra.mxu0 %v1738
    %v1869 = vpop.f32.mrf.mxu0
    %v1870 = vadd.f32 %v1826, %v1869
    %1871 = vmatmul.f32.gmra.mxu0 %v1741
    %v1872 = vpop.f32.mrf.mxu0
    %v1873 = vadd.f32 %v1829, %v1872
    %1874 = vmatmul.f32.gmra.mxu0 %v1744
    %v1875 = vpop.f32.mrf.mxu0
    %v1876 = vadd.f32 %v1832, %v1875
    %1877 = vmatmul.f32.gmra.mxu0 %v1747
    %v1878 = vpop.f32.mrf.mxu0
    %v1879 = vadd.f32 %v1835, %v1878
    %1880 = vmatmul.f32.gmra.mxu0 %v1750
    %v1881 = vpop.f32.mrf.mxu0
    %v1882 = vadd.f32 %v1838, %v1881
    %1883 = vmatmul.f32.gmra.mxu0 %v1753
    %v1884 = vpop.f32.mrf.mxu0
    %v1885 = vadd.f32 %v1841, %v1884
    %1886 = vmatmul.f32.gmra.mxu0 %v1756
    %v1887 = vpop.f32.mrf.mxu0
    %v1888 = vadd.f32 %v1844, %v1887
    %1889 = vdwg.mxu0
    %s1890 = scalar_lea.vmem [#allocation2], 512
    %v1891 = vld [vmem:[%s1890] sm:$0xff]
    %v1892 = vld [vmem:[%s1890 + $0x8] sm:$0xff]
    %v1893 = vld [vmem:[%s1890 + $0x10] sm:$0xff]
    %v1894 = vld [vmem:[%s1890 + $0x18] sm:$0xff]
    %v1895 = vld [vmem:[%s1890 + $0x20] sm:$0xff]
    %v1896 = vld [vmem:[%s1890 + $0x28] sm:$0xff]
    %v1897 = vld [vmem:[%s1890 + $0x30] sm:$0xff]
    %v1898 = vld [vmem:[%s1890 + $0x38] sm:$0xff]
    %v1899 = vld [vmem:[%s1890 + $0x40] sm:$0xff]
    %v1900 = vld [vmem:[%s1890 + $0x48] sm:$0xff]
    %v1901 = vld [vmem:[%s1890 + $0x50] sm:$0xff]
    %v1902 = vld [vmem:[%s1890 + $0x58] sm:$0xff]
    %v1903 = vld [vmem:[%s1890 + $0x60] sm:$0xff]
    %v1904 = vld [vmem:[%s1890 + $0x68] sm:$0xff]
    %v1905 = vld [vmem:[%s1890 + $0x70] sm:$0xff]
    %v1906 = vld [vmem:[%s1890 + $0x78] sm:$0xff]
    %1907 = vmatpush.msra.mxu0 %v1906
    %1908 = vmatpush.msra.mxu0 %v1905
    %1909 = vmatpush.msra.mxu0 %v1904
    %1910 = vmatpush.msra.mxu0 %v1903
    %1911 = vmatpush.msra.mxu0 %v1902
    %1912 = vmatpush.msra.mxu0 %v1901
    %1913 = vmatpush.msra.mxu0 %v1900
    %1914 = vmatpush.msra.mxu0 %v1899
    %1915 = vmatpush.msra.mxu0 %v1898
    %1916 = vmatpush.msra.mxu0 %v1897
    %1917 = vmatpush.msra.mxu0 %v1896
    %1918 = vmatpush.msra.mxu0 %v1895
    %1919 = vmatpush.msra.mxu0 %v1894
    %1920 = vmatpush.msra.mxu0 %v1893
    %1921 = vmatpush.msra.mxu0 %v1892
    %1922 = vmatpush.msra.mxu0 %v1891
    %1923 = vmatmul.f32.gmra.mxu0 %v1864
    %v1924 = vpop.f32.mrf.mxu0
    %v1925 = vadd.f32 0.0, %v1924
    %1926 = vmatmul.f32.gmra.mxu0 %v1867
    %v1927 = vpop.f32.mrf.mxu0
    %v1928 = vadd.f32 0.0, %v1927
    %1929 = vmatmul.f32.gmra.mxu0 %v1870
    %v1930 = vpop.f32.mrf.mxu0
    %v1931 = vadd.f32 0.0, %v1930
    %1932 = vmatmul.f32.gmra.mxu0 %v1873
    %v1933 = vpop.f32.mrf.mxu0
    %v1934 = vadd.f32 0.0, %v1933
    %1935 = vmatmul.f32.gmra.mxu0 %v1876
    %v1936 = vpop.f32.mrf.mxu0
    %v1937 = vadd.f32 0.0, %v1936
    %1938 = vmatmul.f32.gmra.mxu0 %v1879
    %v1939 = vpop.f32.mrf.mxu0
    %v1940 = vadd.f32 0.0, %v1939
    %1941 = vmatmul.f32.gmra.mxu0 %v1882
    %v1942 = vpop.f32.mrf.mxu0
    %v1943 = vadd.f32 0.0, %v1942
    %1944 = vmatmul.f32.gmra.mxu0 %v1885
    %v1945 = vpop.f32.mrf.mxu0
    %v1946 = vadd.f32 0.0, %v1945
    %1947 = vmatmul.f32.gmra.mxu0 %v1888
    %v1948 = vpop.f32.mrf.mxu0
    %v1949 = vadd.f32 0.0, %v1948
    %1950 = vdwg.mxu0
    %v1951 = vadd.f32 %v1694, %v1925
    %v1952 = vadd.f32 %v1695, %v1928
    %v1953 = vadd.f32 %v1696, %v1931
    %v1954 = vadd.f32 %v1697, %v1934
    %v1955 = vadd.f32 %v1698, %v1937
    %v1956 = vadd.f32 %v1699, %v1940
    %v1957 = vadd.f32 %v1700, %v1943
    %v1958 = vadd.f32 %v1701, %v1946
    %v1959 = vadd.f32 %v1702, %v1949
    %s1960 = scalar_lea.vmem %s4, 1080
    %v1961 = vld [vmem:[%s1960] sm:$0xff]
    %v1962 = vld [vmem:[%s1960 + $0x8] sm:$0xff]
    %v1963 = vld [vmem:[%s1960 + $0x10] sm:$0xff]
    %v1964 = vld [vmem:[%s1960 + $0x18] sm:$0xff]
    %v1965 = vld [vmem:[%s1960 + $0x20] sm:$0xff]
    %v1966 = vld [vmem:[%s1960 + $0x28] sm:$0xff]
    %v1967 = vld [vmem:[%s1960 + $0x30] sm:$0xff]
    %v1968 = vld [vmem:[%s1960 + $0x38] sm:$0xff]
    %v1969 = vld [vmem:[%s1960 + $0x40] sm:$0xff]
    %v1970 = vld [vmem:[%s1960 + $0x48] sm:$0xff]
    %v1971 = vld [vmem:[%s1960 + $0x50] sm:$0xff]
    %v1972 = vld [vmem:[%s1960 + $0x58] sm:$0xff]
    %v1973 = vld [vmem:[%s1960 + $0x60] sm:$0xff]
    %v1974 = vld [vmem:[%s1960 + $0x68] sm:$0xff]
    %v1975 = vld [vmem:[%s1960 + $0x70] sm:$0xff]
    %v1976 = vld [vmem:[%s1960 + $0x78] sm:$0xff]
    %v1977 = vld [vmem:[%s1960 + $0x80] sm:$0xff]
    %v1978 = vld [vmem:[%s1960 + $0x88] sm:$0xff]
    %v1979 = vld [vmem:[%s1960 + $0x90] sm:$0xff]
    %v1980 = vld [vmem:[%s1960 + $0x98] sm:$0xff]
    %v1981 = vld [vmem:[%s1960 + $0xa0] sm:$0xff]
    %v1982 = vld [vmem:[%s1960 + $0xa8] sm:$0xff]
    %v1983 = vld [vmem:[%s1960 + $0xb0] sm:$0xff]
    %v1984 = vld [vmem:[%s1960 + $0xb8] sm:$0xff]
    %v1985 = vld [vmem:[%s1960 + $0xc0] sm:$0xff]
    %v1986 = vld [vmem:[%s1960 + $0xc8] sm:$0xff]
    %v1987 = vld [vmem:[%s1960 + $0xd0] sm:$0xff]
    %v1989 = vsel %vm718, %v1963, 0
    %v1992 = vsel %vm718, %v1966, 0
    %v1995 = vsel %vm718, %v1969, 0
    %v1998 = vsel %vm718, %v1972, 0
    %v2001 = vsel %vm718, %v1975, 0
    %v2004 = vsel %vm718, %v1978, 0
    %v2007 = vsel %vm718, %v1981, 0
    %v2010 = vsel %vm718, %v1984, 0
    %v2013 = vsel %vm718, %v1987, 0
    %2015 = vmatpush.msra.mxu0 %v663
    %2016 = vmatpush.msra.mxu0 %v662
    %2017 = vmatpush.msra.mxu0 %v661
    %2018 = vmatpush.msra.mxu0 %v660
    %2019 = vmatpush.msra.mxu0 %v659
    %2020 = vmatpush.msra.mxu0 %v658
    %2021 = vmatpush.msra.mxu0 %v657
    %2022 = vmatpush.msra.mxu0 %v656
    %2023 = vmatpush.msra.mxu0 %v655
    %2024 = vmatpush.msra.mxu0 %v654
    %2025 = vmatpush.msra.mxu0 %v653
    %2026 = vmatpush.msra.mxu0 %v652
    %2027 = vmatpush.msra.mxu0 %v651
    %2028 = vmatpush.msra.mxu0 %v650
    %2029 = vmatpush.msra.mxu0 %v649
    %2030 = vmatpush.msra.mxu0 %v648
    %2031 = vmatmul.f32.gmra.mxu0 %v1961
    %v2032 = vpop.f32.mrf.mxu0
    %v2033 = vadd.f32 0.0, %v2032
    %2034 = vmatmul.f32.gmra.mxu0 %v1964
    %v2035 = vpop.f32.mrf.mxu0
    %v2036 = vadd.f32 0.0, %v2035
    %2037 = vmatmul.f32.gmra.mxu0 %v1967
    %v2038 = vpop.f32.mrf.mxu0
    %v2039 = vadd.f32 0.0, %v2038
    %2040 = vmatmul.f32.gmra.mxu0 %v1970
    %v2041 = vpop.f32.mrf.mxu0
    %v2042 = vadd.f32 0.0, %v2041
    %2043 = vmatmul.f32.gmra.mxu0 %v1973
    %v2044 = vpop.f32.mrf.mxu0
    %v2045 = vadd.f32 0.0, %v2044
    %2046 = vmatmul.f32.gmra.mxu0 %v1976
    %v2047 = vpop.f32.mrf.mxu0
    %v2048 = vadd.f32 0.0, %v2047
    %2049 = vmatmul.f32.gmra.mxu0 %v1979
    %v2050 = vpop.f32.mrf.mxu0
    %v2051 = vadd.f32 0.0, %v2050
    %2052 = vmatmul.f32.gmra.mxu0 %v1982
    %v2053 = vpop.f32.mrf.mxu0
    %v2054 = vadd.f32 0.0, %v2053
    %2055 = vmatmul.f32.gmra.mxu0 %v1985
    %v2056 = vpop.f32.mrf.mxu0
    %v2057 = vadd.f32 0.0, %v2056
    %2058 = vdwg.mxu0
    %2059 = vmatpush.msra.mxu0 %v679
    %2060 = vmatpush.msra.mxu0 %v678
    %2061 = vmatpush.msra.mxu0 %v677
    %2062 = vmatpush.msra.mxu0 %v676
    %2063 = vmatpush.msra.mxu0 %v675
    %2064 = vmatpush.msra.mxu0 %v674
    %2065 = vmatpush.msra.mxu0 %v673
    %2066 = vmatpush.msra.mxu0 %v672
    %2067 = vmatpush.msra.mxu0 %v671
    %2068 = vmatpush.msra.mxu0 %v670
    %2069 = vmatpush.msra.mxu0 %v669
    %2070 = vmatpush.msra.mxu0 %v668
    %2071 = vmatpush.msra.mxu0 %v667
    %2072 = vmatpush.msra.mxu0 %v666
    %2073 = vmatpush.msra.mxu0 %v665
    %2074 = vmatpush.msra.mxu0 %v664
    %2075 = vmatmul.f32.gmra.mxu0 %v1962
    %v2076 = vpop.f32.mrf.mxu0
    %v2077 = vadd.f32 %v2033, %v2076
    %2078 = vmatmul.f32.gmra.mxu0 %v1965
    %v2079 = vpop.f32.mrf.mxu0
    %v2080 = vadd.f32 %v2036, %v2079
    %2081 = vmatmul.f32.gmra.mxu0 %v1968
    %v2082 = vpop.f32.mrf.mxu0
    %v2083 = vadd.f32 %v2039, %v2082
    %2084 = vmatmul.f32.gmra.mxu0 %v1971
    %v2085 = vpop.f32.mrf.mxu0
    %v2086 = vadd.f32 %v2042, %v2085
    %2087 = vmatmul.f32.gmra.mxu0 %v1974
    %v2088 = vpop.f32.mrf.mxu0
    %v2089 = vadd.f32 %v2045, %v2088
    %2090 = vmatmul.f32.gmra.mxu0 %v1977
    %v2091 = vpop.f32.mrf.mxu0
    %v2092 = vadd.f32 %v2048, %v2091
    %2093 = vmatmul.f32.gmra.mxu0 %v1980
    %v2094 = vpop.f32.mrf.mxu0
    %v2095 = vadd.f32 %v2051, %v2094
    %2096 = vmatmul.f32.gmra.mxu0 %v1983
    %v2097 = vpop.f32.mrf.mxu0
    %v2098 = vadd.f32 %v2054, %v2097
    %2099 = vmatmul.f32.gmra.mxu0 %v1986
    %v2100 = vpop.f32.mrf.mxu0
    %v2101 = vadd.f32 %v2057, %v2100
    %2102 = vdwg.mxu0
    %2103 = vmatpush.msra.mxu0 0.0
    %2104 = vmatpush.msra.mxu0 0.0
    %2105 = vmatpush.msra.mxu0 0.0
    %2106 = vmatpush.msra.mxu0 0.0
    %2107 = vmatpush.msra.mxu0 0.0
    %2108 = vmatpush.msra.mxu0 %v747
    %2109 = vmatpush.msra.mxu0 %v689
    %2110 = vmatpush.msra.mxu0 %v688
    %2111 = vmatpush.msra.mxu0 %v687
    %2112 = vmatpush.msra.mxu0 %v686
    %2113 = vmatpush.msra.mxu0 %v685
    %2114 = vmatpush.msra.mxu0 %v684
    %2115 = vmatpush.msra.mxu0 %v683
    %2116 = vmatpush.msra.mxu0 %v682
    %2117 = vmatpush.msra.mxu0 %v681
    %2118 = vmatpush.msra.mxu0 %v680
    %2119 = vmatmul.f32.gmra.mxu0 %v1989
    %v2120 = vpop.f32.mrf.mxu0
    %v2121 = vadd.f32 %v2077, %v2120
    %2122 = vmatmul.f32.gmra.mxu0 %v1992
    %v2123 = vpop.f32.mrf.mxu0
    %v2124 = vadd.f32 %v2080, %v2123
    %2125 = vmatmul.f32.gmra.mxu0 %v1995
    %v2126 = vpop.f32.mrf.mxu0
    %v2127 = vadd.f32 %v2083, %v2126
    %2128 = vmatmul.f32.gmra.mxu0 %v1998
    %v2129 = vpop.f32.mrf.mxu0
    %v2130 = vadd.f32 %v2086, %v2129
    %2131 = vmatmul.f32.gmra.mxu0 %v2001
    %v2132 = vpop.f32.mrf.mxu0
    %v2133 = vadd.f32 %v2089, %v2132
    %2134 = vmatmul.f32.gmra.mxu0 %v2004
    %v2135 = vpop.f32.mrf.mxu0
    %v2136 = vadd.f32 %v2092, %v2135
    %2137 = vmatmul.f32.gmra.mxu0 %v2007
    %v2138 = vpop.f32.mrf.mxu0
    %v2139 = vadd.f32 %v2095, %v2138
    %2140 = vmatmul.f32.gmra.mxu0 %v2010
    %v2141 = vpop.f32.mrf.mxu0
    %v2142 = vadd.f32 %v2098, %v2141
    %2143 = vmatmul.f32.gmra.mxu0 %v2013
    %v2144 = vpop.f32.mrf.mxu0
    %v2145 = vadd.f32 %v2101, %v2144
    %2146 = vdwg.mxu0
    %s2147 = scalar_lea.vmem [#allocation2], 640
    %v2148 = vld [vmem:[%s2147] sm:$0xff]
    %v2149 = vld [vmem:[%s2147 + $0x8] sm:$0xff]
    %v2150 = vld [vmem:[%s2147 + $0x10] sm:$0xff]
    %v2151 = vld [vmem:[%s2147 + $0x18] sm:$0xff]
    %v2152 = vld [vmem:[%s2147 + $0x20] sm:$0xff]
    %v2153 = vld [vmem:[%s2147 + $0x28] sm:$0xff]
    %v2154 = vld [vmem:[%s2147 + $0x30] sm:$0xff]
    %v2155 = vld [vmem:[%s2147 + $0x38] sm:$0xff]
    %v2156 = vld [vmem:[%s2147 + $0x40] sm:$0xff]
    %v2157 = vld [vmem:[%s2147 + $0x48] sm:$0xff]
    %v2158 = vld [vmem:[%s2147 + $0x50] sm:$0xff]
    %v2159 = vld [vmem:[%s2147 + $0x58] sm:$0xff]
    %v2160 = vld [vmem:[%s2147 + $0x60] sm:$0xff]
    %v2161 = vld [vmem:[%s2147 + $0x68] sm:$0xff]
    %v2162 = vld [vmem:[%s2147 + $0x70] sm:$0xff]
    %v2163 = vld [vmem:[%s2147 + $0x78] sm:$0xff]
    %2164 = vmatpush.msra.mxu0 %v2163
    %2165 = vmatpush.msra.mxu0 %v2162
    %2166 = vmatpush.msra.mxu0 %v2161
    %2167 = vmatpush.msra.mxu0 %v2160
    %2168 = vmatpush.msra.mxu0 %v2159
    %2169 = vmatpush.msra.mxu0 %v2158
    %2170 = vmatpush.msra.mxu0 %v2157
    %2171 = vmatpush.msra.mxu0 %v2156
    %2172 = vmatpush.msra.mxu0 %v2155
    %2173 = vmatpush.msra.mxu0 %v2154
    %2174 = vmatpush.msra.mxu0 %v2153
    %2175 = vmatpush.msra.mxu0 %v2152
    %2176 = vmatpush.msra.mxu0 %v2151
    %2177 = vmatpush.msra.mxu0 %v2150
    %2178 = vmatpush.msra.mxu0 %v2149
    %2179 = vmatpush.msra.mxu0 %v2148
    %2180 = vmatmul.f32.gmra.mxu0 %v2121
    %v2181 = vpop.f32.mrf.mxu0
    %v2182 = vadd.f32 0.0, %v2181
    %2183 = vmatmul.f32.gmra.mxu0 %v2124
    %v2184 = vpop.f32.mrf.mxu0
    %v2185 = vadd.f32 0.0, %v2184
    %2186 = vmatmul.f32.gmra.mxu0 %v2127
    %v2187 = vpop.f32.mrf.mxu0
    %v2188 = vadd.f32 0.0, %v2187
    %2189 = vmatmul.f32.gmra.mxu0 %v2130
    %v2190 = vpop.f32.mrf.mxu0
    %v2191 = vadd.f32 0.0, %v2190
    %2192 = vmatmul.f32.gmra.mxu0 %v2133
    %v2193 = vpop.f32.mrf.mxu0
    %v2194 = vadd.f32 0.0, %v2193
    %2195 = vmatmul.f32.gmra.mxu0 %v2136
    %v2196 = vpop.f32.mrf.mxu0
    %v2197 = vadd.f32 0.0, %v2196
    %2198 = vmatmul.f32.gmra.mxu0 %v2139
    %v2199 = vpop.f32.mrf.mxu0
    %v2200 = vadd.f32 0.0, %v2199
    %2201 = vmatmul.f32.gmra.mxu0 %v2142
    %v2202 = vpop.f32.mrf.mxu0
    %v2203 = vadd.f32 0.0, %v2202
    %2204 = vmatmul.f32.gmra.mxu0 %v2145
    %v2205 = vpop.f32.mrf.mxu0
    %v2206 = vadd.f32 0.0, %v2205
    %2207 = vdwg.mxu0
    %v2208 = vadd.f32 %v1951, %v2182
    %v2209 = vadd.f32 %v1952, %v2185
    %v2210 = vadd.f32 %v1953, %v2188
    %v2211 = vadd.f32 %v1954, %v2191
    %v2212 = vadd.f32 %v1955, %v2194
    %v2213 = vadd.f32 %v1956, %v2197
    %v2214 = vadd.f32 %v1957, %v2200
    %v2215 = vadd.f32 %v1958, %v2203
    %v2216 = vadd.f32 %v1959, %v2206
    %s2217 = scalar_lea.vmem %s4, 1296
    %v2218 = vld [vmem:[%s2217] sm:$0xff]
    %v2219 = vld [vmem:[%s2217 + $0x8] sm:$0xff]
    %v2220 = vld [vmem:[%s2217 + $0x10] sm:$0xff]
    %v2221 = vld [vmem:[%s2217 + $0x18] sm:$0xff]
    %v2222 = vld [vmem:[%s2217 + $0x20] sm:$0xff]
    %v2223 = vld [vmem:[%s2217 + $0x28] sm:$0xff]
    %v2224 = vld [vmem:[%s2217 + $0x30] sm:$0xff]
    %v2225 = vld [vmem:[%s2217 + $0x38] sm:$0xff]
    %v2226 = vld [vmem:[%s2217 + $0x40] sm:$0xff]
    %v2227 = vld [vmem:[%s2217 + $0x48] sm:$0xff]
    %v2228 = vld [vmem:[%s2217 + $0x50] sm:$0xff]
    %v2229 = vld [vmem:[%s2217 + $0x58] sm:$0xff]
    %v2230 = vld [vmem:[%s2217 + $0x60] sm:$0xff]
    %v2231 = vld [vmem:[%s2217 + $0x68] sm:$0xff]
    %v2232 = vld [vmem:[%s2217 + $0x70] sm:$0xff]
    %v2233 = vld [vmem:[%s2217 + $0x78] sm:$0xff]
    %v2234 = vld [vmem:[%s2217 + $0x80] sm:$0xff]
    %v2235 = vld [vmem:[%s2217 + $0x88] sm:$0xff]
    %v2236 = vld [vmem:[%s2217 + $0x90] sm:$0xff]
    %v2237 = vld [vmem:[%s2217 + $0x98] sm:$0xff]
    %v2238 = vld [vmem:[%s2217 + $0xa0] sm:$0xff]
    %v2239 = vld [vmem:[%s2217 + $0xa8] sm:$0xff]
    %v2240 = vld [vmem:[%s2217 + $0xb0] sm:$0xff]
    %v2241 = vld [vmem:[%s2217 + $0xb8] sm:$0xff]
    %v2242 = vld [vmem:[%s2217 + $0xc0] sm:$0xff]
    %v2243 = vld [vmem:[%s2217 + $0xc8] sm:$0xff]
    %v2244 = vld [vmem:[%s2217 + $0xd0] sm:$0xff]
    %v2246 = vsel %vm718, %v2220, 0
    %v2249 = vsel %vm718, %v2223, 0
    %v2252 = vsel %vm718, %v2226, 0
    %v2255 = vsel %vm718, %v2229, 0
    %v2258 = vsel %vm718, %v2232, 0
    %v2261 = vsel %vm718, %v2235, 0
    %v2264 = vsel %vm718, %v2238, 0
    %v2267 = vsel %vm718, %v2241, 0
    %v2270 = vsel %vm718, %v2244, 0
    %2272 = vmatpush.msra.mxu0 %v663
    %2273 = vmatpush.msra.mxu0 %v662
    %2274 = vmatpush.msra.mxu0 %v661
    %2275 = vmatpush.msra.mxu0 %v660
    %2276 = vmatpush.msra.mxu0 %v659
    %2277 = vmatpush.msra.mxu0 %v658
    %2278 = vmatpush.msra.mxu0 %v657
    %2279 = vmatpush.msra.mxu0 %v656
    %2280 = vmatpush.msra.mxu0 %v655
    %2281 = vmatpush.msra.mxu0 %v654
    %2282 = vmatpush.msra.mxu0 %v653
    %2283 = vmatpush.msra.mxu0 %v652
    %2284 = vmatpush.msra.mxu0 %v651
    %2285 = vmatpush.msra.mxu0 %v650
    %2286 = vmatpush.msra.mxu0 %v649
    %2287 = vmatpush.msra.mxu0 %v648
    %2288 = vmatmul.f32.gmra.mxu0 %v2218
    %v2289 = vpop.f32.mrf.mxu0
    %v2290 = vadd.f32 0.0, %v2289
    %2291 = vmatmul.f32.gmra.mxu0 %v2221
    %v2292 = vpop.f32.mrf.mxu0
    %v2293 = vadd.f32 0.0, %v2292
    %2294 = vmatmul.f32.gmra.mxu0 %v2224
    %v2295 = vpop.f32.mrf.mxu0
    %v2296 = vadd.f32 0.0, %v2295
    %2297 = vmatmul.f32.gmra.mxu0 %v2227
    %v2298 = vpop.f32.mrf.mxu0
    %v2299 = vadd.f32 0.0, %v2298
    %2300 = vmatmul.f32.gmra.mxu0 %v2230
    %v2301 = vpop.f32.mrf.mxu0
    %v2302 = vadd.f32 0.0, %v2301
    %2303 = vmatmul.f32.gmra.mxu0 %v2233
    %v2304 = vpop.f32.mrf.mxu0
    %v2305 = vadd.f32 0.0, %v2304
    %2306 = vmatmul.f32.gmra.mxu0 %v2236
    %v2307 = vpop.f32.mrf.mxu0
    %v2308 = vadd.f32 0.0, %v2307
    %2309 = vmatmul.f32.gmra.mxu0 %v2239
    %v2310 = vpop.f32.mrf.mxu0
    %v2311 = vadd.f32 0.0, %v2310
    %2312 = vmatmul.f32.gmra.mxu0 %v2242
    %v2313 = vpop.f32.mrf.mxu0
    %v2314 = vadd.f32 0.0, %v2313
    %2315 = vdwg.mxu0
    %2316 = vmatpush.msra.mxu0 %v679
    %2317 = vmatpush.msra.mxu0 %v678
    %2318 = vmatpush.msra.mxu0 %v677
    %2319 = vmatpush.msra.mxu0 %v676
    %2320 = vmatpush.msra.mxu0 %v675
    %2321 = vmatpush.msra.mxu0 %v674
    %2322 = vmatpush.msra.mxu0 %v673
    %2323 = vmatpush.msra.mxu0 %v672
    %2324 = vmatpush.msra.mxu0 %v671
    %2325 = vmatpush.msra.mxu0 %v670
    %2326 = vmatpush.msra.mxu0 %v669
    %2327 = vmatpush.msra.mxu0 %v668
    %2328 = vmatpush.msra.mxu0 %v667
    %2329 = vmatpush.msra.mxu0 %v666
    %2330 = vmatpush.msra.mxu0 %v665
    %2331 = vmatpush.msra.mxu0 %v664
    %2332 = vmatmul.f32.gmra.mxu0 %v2219
    %v2333 = vpop.f32.mrf.mxu0
    %v2334 = vadd.f32 %v2290, %v2333
    %2335 = vmatmul.f32.gmra.mxu0 %v2222
    %v2336 = vpop.f32.mrf.mxu0
    %v2337 = vadd.f32 %v2293, %v2336
    %2338 = vmatmul.f32.gmra.mxu0 %v2225
    %v2339 = vpop.f32.mrf.mxu0
    %v2340 = vadd.f32 %v2296, %v2339
    %2341 = vmatmul.f32.gmra.mxu0 %v2228
    %v2342 = vpop.f32.mrf.mxu0
    %v2343 = vadd.f32 %v2299, %v2342
    %2344 = vmatmul.f32.gmra.mxu0 %v2231
    %v2345 = vpop.f32.mrf.mxu0
    %v2346 = vadd.f32 %v2302, %v2345
    %2347 = vmatmul.f32.gmra.mxu0 %v2234
    %v2348 = vpop.f32.mrf.mxu0
    %v2349 = vadd.f32 %v2305, %v2348
    %2350 = vmatmul.f32.gmra.mxu0 %v2237
    %v2351 = vpop.f32.mrf.mxu0
    %v2352 = vadd.f32 %v2308, %v2351
    %2353 = vmatmul.f32.gmra.mxu0 %v2240
    %v2354 = vpop.f32.mrf.mxu0
    %v2355 = vadd.f32 %v2311, %v2354
    %2356 = vmatmul.f32.gmra.mxu0 %v2243
    %v2357 = vpop.f32.mrf.mxu0
    %v2358 = vadd.f32 %v2314, %v2357
    %2359 = vdwg.mxu0
    %2360 = vmatpush.msra.mxu0 0.0
    %2361 = vmatpush.msra.mxu0 0.0
    %2362 = vmatpush.msra.mxu0 0.0
    %2363 = vmatpush.msra.mxu0 0.0
    %2364 = vmatpush.msra.mxu0 0.0
    %2365 = vmatpush.msra.mxu0 %v747
    %2366 = vmatpush.msra.mxu0 %v689
    %2367 = vmatpush.msra.mxu0 %v688
    %2368 = vmatpush.msra.mxu0 %v687
    %2369 = vmatpush.msra.mxu0 %v686
    %2370 = vmatpush.msra.mxu0 %v685
    %2371 = vmatpush.msra.mxu0 %v684
    %2372 = vmatpush.msra.mxu0 %v683
    %2373 = vmatpush.msra.mxu0 %v682
    %2374 = vmatpush.msra.mxu0 %v681
    %2375 = vmatpush.msra.mxu0 %v680
    %2376 = vmatmul.f32.gmra.mxu0 %v2246
    %v2377 = vpop.f32.mrf.mxu0
    %v2378 = vadd.f32 %v2334, %v2377
    %2379 = vmatmul.f32.gmra.mxu0 %v2249
    %v2380 = vpop.f32.mrf.mxu0
    %v2381 = vadd.f32 %v2337, %v2380
    %2382 = vmatmul.f32.gmra.mxu0 %v2252
    %v2383 = vpop.f32.mrf.mxu0
    %v2384 = vadd.f32 %v2340, %v2383
    %2385 = vmatmul.f32.gmra.mxu0 %v2255
    %v2386 = vpop.f32.mrf.mxu0
    %v2387 = vadd.f32 %v2343, %v2386
    %2388 = vmatmul.f32.gmra.mxu0 %v2258
    %v2389 = vpop.f32.mrf.mxu0
    %v2390 = vadd.f32 %v2346, %v2389
    %2391 = vmatmul.f32.gmra.mxu0 %v2261
    %v2392 = vpop.f32.mrf.mxu0
    %v2393 = vadd.f32 %v2349, %v2392
    %2394 = vmatmul.f32.gmra.mxu0 %v2264
    %v2395 = vpop.f32.mrf.mxu0
    %v2396 = vadd.f32 %v2352, %v2395
    %2397 = vmatmul.f32.gmra.mxu0 %v2267
    %v2398 = vpop.f32.mrf.mxu0
    %v2399 = vadd.f32 %v2355, %v2398
    %2400 = vmatmul.f32.gmra.mxu0 %v2270
    %v2401 = vpop.f32.mrf.mxu0
    %v2402 = vadd.f32 %v2358, %v2401
    %2403 = vdwg.mxu0
    %s2404 = scalar_lea.vmem [#allocation2], 768
    %v2405 = vld [vmem:[%s2404] sm:$0xff]
    %v2406 = vld [vmem:[%s2404 + $0x8] sm:$0xff]
    %v2407 = vld [vmem:[%s2404 + $0x10] sm:$0xff]
    %v2408 = vld [vmem:[%s2404 + $0x18] sm:$0xff]
    %v2409 = vld [vmem:[%s2404 + $0x20] sm:$0xff]
    %v2410 = vld [vmem:[%s2404 + $0x28] sm:$0xff]
    %v2411 = vld [vmem:[%s2404 + $0x30] sm:$0xff]
    %v2412 = vld [vmem:[%s2404 + $0x38] sm:$0xff]
    %v2413 = vld [vmem:[%s2404 + $0x40] sm:$0xff]
    %v2414 = vld [vmem:[%s2404 + $0x48] sm:$0xff]
    %v2415 = vld [vmem:[%s2404 + $0x50] sm:$0xff]
    %v2416 = vld [vmem:[%s2404 + $0x58] sm:$0xff]
    %v2417 = vld [vmem:[%s2404 + $0x60] sm:$0xff]
    %v2418 = vld [vmem:[%s2404 + $0x68] sm:$0xff]
    %v2419 = vld [vmem:[%s2404 + $0x70] sm:$0xff]
    %v2420 = vld [vmem:[%s2404 + $0x78] sm:$0xff]
    %2421 = vmatpush.msra.mxu0 %v2420
    %2422 = vmatpush.msra.mxu0 %v2419
    %2423 = vmatpush.msra.mxu0 %v2418
    %2424 = vmatpush.msra.mxu0 %v2417
    %2425 = vmatpush.msra.mxu0 %v2416
    %2426 = vmatpush.msra.mxu0 %v2415
    %2427 = vmatpush.msra.mxu0 %v2414
    %2428 = vmatpush.msra.mxu0 %v2413
    %2429 = vmatpush.msra.mxu0 %v2412
    %2430 = vmatpush.msra.mxu0 %v2411
    %2431 = vmatpush.msra.mxu0 %v2410
    %2432 = vmatpush.msra.mxu0 %v2409
    %2433 = vmatpush.msra.mxu0 %v2408
    %2434 = vmatpush.msra.mxu0 %v2407
    %2435 = vmatpush.msra.mxu0 %v2406
    %2436 = vmatpush.msra.mxu0 %v2405
    %2437 = vmatmul.f32.gmra.mxu0 %v2378
    %v2438 = vpop.f32.mrf.mxu0
    %v2439 = vadd.f32 0.0, %v2438
    %2440 = vmatmul.f32.gmra.mxu0 %v2381
    %v2441 = vpop.f32.mrf.mxu0
    %v2442 = vadd.f32 0.0, %v2441
    %2443 = vmatmul.f32.gmra.mxu0 %v2384
    %v2444 = vpop.f32.mrf.mxu0
    %v2445 = vadd.f32 0.0, %v2444
    %2446 = vmatmul.f32.gmra.mxu0 %v2387
    %v2447 = vpop.f32.mrf.mxu0
    %v2448 = vadd.f32 0.0, %v2447
    %2449 = vmatmul.f32.gmra.mxu0 %v2390
    %v2450 = vpop.f32.mrf.mxu0
    %v2451 = vadd.f32 0.0, %v2450
    %2452 = vmatmul.f32.gmra.mxu0 %v2393
    %v2453 = vpop.f32.mrf.mxu0
    %v2454 = vadd.f32 0.0, %v2453
    %2455 = vmatmul.f32.gmra.mxu0 %v2396
    %v2456 = vpop.f32.mrf.mxu0
    %v2457 = vadd.f32 0.0, %v2456
    %2458 = vmatmul.f32.gmra.mxu0 %v2399
    %v2459 = vpop.f32.mrf.mxu0
    %v2460 = vadd.f32 0.0, %v2459
    %2461 = vmatmul.f32.gmra.mxu0 %v2402
    %v2462 = vpop.f32.mrf.mxu0
    %v2463 = vadd.f32 0.0, %v2462
    %2464 = vdwg.mxu0
    %v2465 = vadd.f32 %v2208, %v2439
    %v2466 = vadd.f32 %v2209, %v2442
    %v2467 = vadd.f32 %v2210, %v2445
    %v2468 = vadd.f32 %v2211, %v2448
    %v2469 = vadd.f32 %v2212, %v2451
    %v2470 = vadd.f32 %v2213, %v2454
    %v2471 = vadd.f32 %v2214, %v2457
    %v2472 = vadd.f32 %v2215, %v2460
    %v2473 = vadd.f32 %v2216, %v2463
    %s2474 = scalar_lea.vmem %s4, 1512
    %v2475 = vld [vmem:[%s2474] sm:$0xff]
    %v2476 = vld [vmem:[%s2474 + $0x8] sm:$0xff]
    %v2477 = vld [vmem:[%s2474 + $0x10] sm:$0xff]
    %v2478 = vld [vmem:[%s2474 + $0x18] sm:$0xff]
    %v2479 = vld [vmem:[%s2474 + $0x20] sm:$0xff]
    %v2480 = vld [vmem:[%s2474 + $0x28] sm:$0xff]
    %v2481 = vld [vmem:[%s2474 + $0x30] sm:$0xff]
    %v2482 = vld [vmem:[%s2474 + $0x38] sm:$0xff]
    %v2483 = vld [vmem:[%s2474 + $0x40] sm:$0xff]
    %v2484 = vld [vmem:[%s2474 + $0x48] sm:$0xff]
    %v2485 = vld [vmem:[%s2474 + $0x50] sm:$0xff]
    %v2486 = vld [vmem:[%s2474 + $0x58] sm:$0xff]
    %v2487 = vld [vmem:[%s2474 + $0x60] sm:$0xff]
    %v2488 = vld [vmem:[%s2474 + $0x68] sm:$0xff]
    %v2489 = vld [vmem:[%s2474 + $0x70] sm:$0xff]
    %v2490 = vld [vmem:[%s2474 + $0x78] sm:$0xff]
    %v2491 = vld [vmem:[%s2474 + $0x80] sm:$0xff]
    %v2492 = vld [vmem:[%s2474 + $0x88] sm:$0xff]
    %v2493 = vld [vmem:[%s2474 + $0x90] sm:$0xff]
    %v2494 = vld [vmem:[%s2474 + $0x98] sm:$0xff]
    %v2495 = vld [vmem:[%s2474 + $0xa0] sm:$0xff]
    %v2496 = vld [vmem:[%s2474 + $0xa8] sm:$0xff]
    %v2497 = vld [vmem:[%s2474 + $0xb0] sm:$0xff]
    %v2498 = vld [vmem:[%s2474 + $0xb8] sm:$0xff]
    %v2499 = vld [vmem:[%s2474 + $0xc0] sm:$0xff]
    %v2500 = vld [vmem:[%s2474 + $0xc8] sm:$0xff]
    %v2501 = vld [vmem:[%s2474 + $0xd0] sm:$0xff]
    %v2503 = vsel %vm718, %v2477, 0
    %v2506 = vsel %vm718, %v2480, 0
    %v2509 = vsel %vm718, %v2483, 0
    %v2512 = vsel %vm718, %v2486, 0
    %v2515 = vsel %vm718, %v2489, 0
    %v2518 = vsel %vm718, %v2492, 0
    %v2521 = vsel %vm718, %v2495, 0
    %v2524 = vsel %vm718, %v2498, 0
    %v2527 = vsel %vm718, %v2501, 0
    %2529 = vmatpush.msra.mxu0 %v663
    %2530 = vmatpush.msra.mxu0 %v662
    %2531 = vmatpush.msra.mxu0 %v661
    %2532 = vmatpush.msra.mxu0 %v660
    %2533 = vmatpush.msra.mxu0 %v659
    %2534 = vmatpush.msra.mxu0 %v658
    %2535 = vmatpush.msra.mxu0 %v657
    %2536 = vmatpush.msra.mxu0 %v656
    %2537 = vmatpush.msra.mxu0 %v655
    %2538 = vmatpush.msra.mxu0 %v654
    %2539 = vmatpush.msra.mxu0 %v653
    %2540 = vmatpush.msra.mxu0 %v652
    %2541 = vmatpush.msra.mxu0 %v651
    %2542 = vmatpush.msra.mxu0 %v650
    %2543 = vmatpush.msra.mxu0 %v649
    %2544 = vmatpush.msra.mxu0 %v648
    %2545 = vmatmul.f32.gmra.mxu0 %v2475
    %v2546 = vpop.f32.mrf.mxu0
    %v2547 = vadd.f32 0.0, %v2546
    %2548 = vmatmul.f32.gmra.mxu0 %v2478
    %v2549 = vpop.f32.mrf.mxu0
    %v2550 = vadd.f32 0.0, %v2549
    %2551 = vmatmul.f32.gmra.mxu0 %v2481
    %v2552 = vpop.f32.mrf.mxu0
    %v2553 = vadd.f32 0.0, %v2552
    %2554 = vmatmul.f32.gmra.mxu0 %v2484
    %v2555 = vpop.f32.mrf.mxu0
    %v2556 = vadd.f32 0.0, %v2555
    %2557 = vmatmul.f32.gmra.mxu0 %v2487
    %v2558 = vpop.f32.mrf.mxu0
    %v2559 = vadd.f32 0.0, %v2558
    %2560 = vmatmul.f32.gmra.mxu0 %v2490
    %v2561 = vpop.f32.mrf.mxu0
    %v2562 = vadd.f32 0.0, %v2561
    %2563 = vmatmul.f32.gmra.mxu0 %v2493
    %v2564 = vpop.f32.mrf.mxu0
    %v2565 = vadd.f32 0.0, %v2564
    %2566 = vmatmul.f32.gmra.mxu0 %v2496
    %v2567 = vpop.f32.mrf.mxu0
    %v2568 = vadd.f32 0.0, %v2567
    %2569 = vmatmul.f32.gmra.mxu0 %v2499
    %v2570 = vpop.f32.mrf.mxu0
    %v2571 = vadd.f32 0.0, %v2570
    %2572 = vdwg.mxu0
    %2573 = vmatpush.msra.mxu0 %v679
    %2574 = vmatpush.msra.mxu0 %v678
    %2575 = vmatpush.msra.mxu0 %v677
    %2576 = vmatpush.msra.mxu0 %v676
    %2577 = vmatpush.msra.mxu0 %v675
    %2578 = vmatpush.msra.mxu0 %v674
    %2579 = vmatpush.msra.mxu0 %v673
    %2580 = vmatpush.msra.mxu0 %v672
    %2581 = vmatpush.msra.mxu0 %v671
    %2582 = vmatpush.msra.mxu0 %v670
    %2583 = vmatpush.msra.mxu0 %v669
    %2584 = vmatpush.msra.mxu0 %v668
    %2585 = vmatpush.msra.mxu0 %v667
    %2586 = vmatpush.msra.mxu0 %v666
    %2587 = vmatpush.msra.mxu0 %v665
    %2588 = vmatpush.msra.mxu0 %v664
    %2589 = vmatmul.f32.gmra.mxu0 %v2476
    %v2590 = vpop.f32.mrf.mxu0
    %v2591 = vadd.f32 %v2547, %v2590
    %2592 = vmatmul.f32.gmra.mxu0 %v2479
    %v2593 = vpop.f32.mrf.mxu0
    %v2594 = vadd.f32 %v2550, %v2593
    %2595 = vmatmul.f32.gmra.mxu0 %v2482
    %v2596 = vpop.f32.mrf.mxu0
    %v2597 = vadd.f32 %v2553, %v2596
    %2598 = vmatmul.f32.gmra.mxu0 %v2485
    %v2599 = vpop.f32.mrf.mxu0
    %v2600 = vadd.f32 %v2556, %v2599
    %2601 = vmatmul.f32.gmra.mxu0 %v2488
    %v2602 = vpop.f32.mrf.mxu0
    %v2603 = vadd.f32 %v2559, %v2602
    %2604 = vmatmul.f32.gmra.mxu0 %v2491
    %v2605 = vpop.f32.mrf.mxu0
    %v2606 = vadd.f32 %v2562, %v2605
    %2607 = vmatmul.f32.gmra.mxu0 %v2494
    %v2608 = vpop.f32.mrf.mxu0
    %v2609 = vadd.f32 %v2565, %v2608
    %2610 = vmatmul.f32.gmra.mxu0 %v2497
    %v2611 = vpop.f32.mrf.mxu0
    %v2612 = vadd.f32 %v2568, %v2611
    %2613 = vmatmul.f32.gmra.mxu0 %v2500
    %v2614 = vpop.f32.mrf.mxu0
    %v2615 = vadd.f32 %v2571, %v2614
    %2616 = vdwg.mxu0
    %2617 = vmatpush.msra.mxu0 0.0
    %2618 = vmatpush.msra.mxu0 0.0
    %2619 = vmatpush.msra.mxu0 0.0
    %2620 = vmatpush.msra.mxu0 0.0
    %2621 = vmatpush.msra.mxu0 0.0
    %2622 = vmatpush.msra.mxu0 %v747
    %2623 = vmatpush.msra.mxu0 %v689
    %2624 = vmatpush.msra.mxu0 %v688
    %2625 = vmatpush.msra.mxu0 %v687
    %2626 = vmatpush.msra.mxu0 %v686
    %2627 = vmatpush.msra.mxu0 %v685
    %2628 = vmatpush.msra.mxu0 %v684
    %2629 = vmatpush.msra.mxu0 %v683
    %2630 = vmatpush.msra.mxu0 %v682
    %2631 = vmatpush.msra.mxu0 %v681
    %2632 = vmatpush.msra.mxu0 %v680
    %2633 = vmatmul.f32.gmra.mxu0 %v2503
    %v2634 = vpop.f32.mrf.mxu0
    %v2635 = vadd.f32 %v2591, %v2634
    %2636 = vmatmul.f32.gmra.mxu0 %v2506
    %v2637 = vpop.f32.mrf.mxu0
    %v2638 = vadd.f32 %v2594, %v2637
    %2639 = vmatmul.f32.gmra.mxu0 %v2509
    %v2640 = vpop.f32.mrf.mxu0
    %v2641 = vadd.f32 %v2597, %v2640
    %2642 = vmatmul.f32.gmra.mxu0 %v2512
    %v2643 = vpop.f32.mrf.mxu0
    %v2644 = vadd.f32 %v2600, %v2643
    %2645 = vmatmul.f32.gmra.mxu0 %v2515
    %v2646 = vpop.f32.mrf.mxu0
    %v2647 = vadd.f32 %v2603, %v2646
    %2648 = vmatmul.f32.gmra.mxu0 %v2518
    %v2649 = vpop.f32.mrf.mxu0
    %v2650 = vadd.f32 %v2606, %v2649
    %2651 = vmatmul.f32.gmra.mxu0 %v2521
    %v2652 = vpop.f32.mrf.mxu0
    %v2653 = vadd.f32 %v2609, %v2652
    %2654 = vmatmul.f32.gmra.mxu0 %v2524
    %v2655 = vpop.f32.mrf.mxu0
    %v2656 = vadd.f32 %v2612, %v2655
    %2657 = vmatmul.f32.gmra.mxu0 %v2527
    %v2658 = vpop.f32.mrf.mxu0
    %v2659 = vadd.f32 %v2615, %v2658
    %2660 = vdwg.mxu0
    %s2661 = scalar_lea.vmem [#allocation2], 896
    %v2662 = vld [vmem:[%s2661] sm:$0xff]
    %v2663 = vld [vmem:[%s2661 + $0x8] sm:$0xff]
    %v2664 = vld [vmem:[%s2661 + $0x10] sm:$0xff]
    %v2665 = vld [vmem:[%s2661 + $0x18] sm:$0xff]
    %v2666 = vld [vmem:[%s2661 + $0x20] sm:$0xff]
    %v2667 = vld [vmem:[%s2661 + $0x28] sm:$0xff]
    %v2668 = vld [vmem:[%s2661 + $0x30] sm:$0xff]
    %v2669 = vld [vmem:[%s2661 + $0x38] sm:$0xff]
    %v2670 = vld [vmem:[%s2661 + $0x40] sm:$0xff]
    %v2671 = vld [vmem:[%s2661 + $0x48] sm:$0xff]
    %v2672 = vld [vmem:[%s2661 + $0x50] sm:$0xff]
    %v2673 = vld [vmem:[%s2661 + $0x58] sm:$0xff]
    %v2674 = vld [vmem:[%s2661 + $0x60] sm:$0xff]
    %v2675 = vld [vmem:[%s2661 + $0x68] sm:$0xff]
    %v2676 = vld [vmem:[%s2661 + $0x70] sm:$0xff]
    %v2677 = vld [vmem:[%s2661 + $0x78] sm:$0xff]
    %2678 = vmatpush.msra.mxu0 %v2677
    %2679 = vmatpush.msra.mxu0 %v2676
    %2680 = vmatpush.msra.mxu0 %v2675
    %2681 = vmatpush.msra.mxu0 %v2674
    %2682 = vmatpush.msra.mxu0 %v2673
    %2683 = vmatpush.msra.mxu0 %v2672
    %2684 = vmatpush.msra.mxu0 %v2671
    %2685 = vmatpush.msra.mxu0 %v2670
    %2686 = vmatpush.msra.mxu0 %v2669
    %2687 = vmatpush.msra.mxu0 %v2668
    %2688 = vmatpush.msra.mxu0 %v2667
    %2689 = vmatpush.msra.mxu0 %v2666
    %2690 = vmatpush.msra.mxu0 %v2665
    %2691 = vmatpush.msra.mxu0 %v2664
    %2692 = vmatpush.msra.mxu0 %v2663
    %2693 = vmatpush.msra.mxu0 %v2662
    %2694 = vmatmul.f32.gmra.mxu0 %v2635
    %v2695 = vpop.f32.mrf.mxu0
    %v2696 = vadd.f32 0.0, %v2695
    %2697 = vmatmul.f32.gmra.mxu0 %v2638
    %v2698 = vpop.f32.mrf.mxu0
    %v2699 = vadd.f32 0.0, %v2698
    %2700 = vmatmul.f32.gmra.mxu0 %v2641
    %v2701 = vpop.f32.mrf.mxu0
    %v2702 = vadd.f32 0.0, %v2701
    %2703 = vmatmul.f32.gmra.mxu0 %v2644
    %v2704 = vpop.f32.mrf.mxu0
    %v2705 = vadd.f32 0.0, %v2704
    %2706 = vmatmul.f32.gmra.mxu0 %v2647
    %v2707 = vpop.f32.mrf.mxu0
    %v2708 = vadd.f32 0.0, %v2707
    %2709 = vmatmul.f32.gmra.mxu0 %v2650
    %v2710 = vpop.f32.mrf.mxu0
    %v2711 = vadd.f32 0.0, %v2710
    %2712 = vmatmul.f32.gmra.mxu0 %v2653
    %v2713 = vpop.f32.mrf.mxu0
    %v2714 = vadd.f32 0.0, %v2713
    %2715 = vmatmul.f32.gmra.mxu0 %v2656
    %v2716 = vpop.f32.mrf.mxu0
    %v2717 = vadd.f32 0.0, %v2716
    %2718 = vmatmul.f32.gmra.mxu0 %v2659
    %v2719 = vpop.f32.mrf.mxu0
    %v2720 = vadd.f32 0.0, %v2719
    %2721 = vdwg.mxu0
    %v2722 = vadd.f32 %v2465, %v2696
    %v2723 = vadd.f32 %v2466, %v2699
    %v2724 = vadd.f32 %v2467, %v2702
    %v2725 = vadd.f32 %v2468, %v2705
    %v2726 = vadd.f32 %v2469, %v2708
    %v2727 = vadd.f32 %v2470, %v2711
    %v2728 = vadd.f32 %v2471, %v2714
    %v2729 = vadd.f32 %v2472, %v2717
    %v2730 = vadd.f32 %v2473, %v2720
    %s2731 = scalar_lea.vmem %s4, 1728
    %v2732 = vld [vmem:[%s2731] sm:$0xff]
    %v2733 = vld [vmem:[%s2731 + $0x8] sm:$0xff]
    %v2734 = vld [vmem:[%s2731 + $0x10] sm:$0xff]
    %v2735 = vld [vmem:[%s2731 + $0x18] sm:$0xff]
    %v2736 = vld [vmem:[%s2731 + $0x20] sm:$0xff]
    %v2737 = vld [vmem:[%s2731 + $0x28] sm:$0xff]
    %v2738 = vld [vmem:[%s2731 + $0x30] sm:$0xff]
    %v2739 = vld [vmem:[%s2731 + $0x38] sm:$0xff]
    %v2740 = vld [vmem:[%s2731 + $0x40] sm:$0xff]
    %v2741 = vld [vmem:[%s2731 + $0x48] sm:$0xff]
    %v2742 = vld [vmem:[%s2731 + $0x50] sm:$0xff]
    %v2743 = vld [vmem:[%s2731 + $0x58] sm:$0xff]
    %v2744 = vld [vmem:[%s2731 + $0x60] sm:$0xff]
    %v2745 = vld [vmem:[%s2731 + $0x68] sm:$0xff]
    %v2746 = vld [vmem:[%s2731 + $0x70] sm:$0xff]
    %v2747 = vld [vmem:[%s2731 + $0x78] sm:$0xff]
    %v2748 = vld [vmem:[%s2731 + $0x80] sm:$0xff]
    %v2749 = vld [vmem:[%s2731 + $0x88] sm:$0xff]
    %v2750 = vld [vmem:[%s2731 + $0x90] sm:$0xff]
    %v2751 = vld [vmem:[%s2731 + $0x98] sm:$0xff]
    %v2752 = vld [vmem:[%s2731 + $0xa0] sm:$0xff]
    %v2753 = vld [vmem:[%s2731 + $0xa8] sm:$0xff]
    %v2754 = vld [vmem:[%s2731 + $0xb0] sm:$0xff]
    %v2755 = vld [vmem:[%s2731 + $0xb8] sm:$0xff]
    %v2756 = vld [vmem:[%s2731 + $0xc0] sm:$0xff]
    %v2757 = vld [vmem:[%s2731 + $0xc8] sm:$0xff]
    %v2758 = vld [vmem:[%s2731 + $0xd0] sm:$0xff]
    %v2760 = vsel %vm718, %v2734, 0
    %v2763 = vsel %vm718, %v2737, 0
    %v2766 = vsel %vm718, %v2740, 0
    %v2769 = vsel %vm718, %v2743, 0
    %v2772 = vsel %vm718, %v2746, 0
    %v2775 = vsel %vm718, %v2749, 0
    %v2778 = vsel %vm718, %v2752, 0
    %v2781 = vsel %vm718, %v2755, 0
    %v2784 = vsel %vm718, %v2758, 0
    %2786 = vmatpush.msra.mxu0 %v663
    %2787 = vmatpush.msra.mxu0 %v662
    %2788 = vmatpush.msra.mxu0 %v661
    %2789 = vmatpush.msra.mxu0 %v660
    %2790 = vmatpush.msra.mxu0 %v659
    %2791 = vmatpush.msra.mxu0 %v658
    %2792 = vmatpush.msra.mxu0 %v657
    %2793 = vmatpush.msra.mxu0 %v656
    %2794 = vmatpush.msra.mxu0 %v655
    %2795 = vmatpush.msra.mxu0 %v654
    %2796 = vmatpush.msra.mxu0 %v653
    %2797 = vmatpush.msra.mxu0 %v652
    %2798 = vmatpush.msra.mxu0 %v651
    %2799 = vmatpush.msra.mxu0 %v650
    %2800 = vmatpush.msra.mxu0 %v649
    %2801 = vmatpush.msra.mxu0 %v648
    %2802 = vmatmul.f32.gmra.mxu0 %v2732
    %v2803 = vpop.f32.mrf.mxu0
    %v2804 = vadd.f32 0.0, %v2803
    %2805 = vmatmul.f32.gmra.mxu0 %v2735
    %v2806 = vpop.f32.mrf.mxu0
    %v2807 = vadd.f32 0.0, %v2806
    %2808 = vmatmul.f32.gmra.mxu0 %v2738
    %v2809 = vpop.f32.mrf.mxu0
    %v2810 = vadd.f32 0.0, %v2809
    %2811 = vmatmul.f32.gmra.mxu0 %v2741
    %v2812 = vpop.f32.mrf.mxu0
    %v2813 = vadd.f32 0.0, %v2812
    %2814 = vmatmul.f32.gmra.mxu0 %v2744
    %v2815 = vpop.f32.mrf.mxu0
    %v2816 = vadd.f32 0.0, %v2815
    %2817 = vmatmul.f32.gmra.mxu0 %v2747
    %v2818 = vpop.f32.mrf.mxu0
    %v2819 = vadd.f32 0.0, %v2818
    %2820 = vmatmul.f32.gmra.mxu0 %v2750
    %v2821 = vpop.f32.mrf.mxu0
    %v2822 = vadd.f32 0.0, %v2821
    %2823 = vmatmul.f32.gmra.mxu0 %v2753
    %v2824 = vpop.f32.mrf.mxu0
    %v2825 = vadd.f32 0.0, %v2824
    %2826 = vmatmul.f32.gmra.mxu0 %v2756
    %v2827 = vpop.f32.mrf.mxu0
    %v2828 = vadd.f32 0.0, %v2827
    %2829 = vdwg.mxu0
    %2830 = vmatpush.msra.mxu0 %v679
    %2831 = vmatpush.msra.mxu0 %v678
    %2832 = vmatpush.msra.mxu0 %v677
    %2833 = vmatpush.msra.mxu0 %v676
    %2834 = vmatpush.msra.mxu0 %v675
    %2835 = vmatpush.msra.mxu0 %v674
    %2836 = vmatpush.msra.mxu0 %v673
    %2837 = vmatpush.msra.mxu0 %v672
    %2838 = vmatpush.msra.mxu0 %v671
    %2839 = vmatpush.msra.mxu0 %v670
    %2840 = vmatpush.msra.mxu0 %v669
    %2841 = vmatpush.msra.mxu0 %v668
    %2842 = vmatpush.msra.mxu0 %v667
    %2843 = vmatpush.msra.mxu0 %v666
    %2844 = vmatpush.msra.mxu0 %v665
    %2845 = vmatpush.msra.mxu0 %v664
    %2846 = vmatmul.f32.gmra.mxu0 %v2733
    %v2847 = vpop.f32.mrf.mxu0
    %v2848 = vadd.f32 %v2804, %v2847
    %2849 = vmatmul.f32.gmra.mxu0 %v2736
    %v2850 = vpop.f32.mrf.mxu0
    %v2851 = vadd.f32 %v2807, %v2850
    %2852 = vmatmul.f32.gmra.mxu0 %v2739
    %v2853 = vpop.f32.mrf.mxu0
    %v2854 = vadd.f32 %v2810, %v2853
    %2855 = vmatmul.f32.gmra.mxu0 %v2742
    %v2856 = vpop.f32.mrf.mxu0
    %v2857 = vadd.f32 %v2813, %v2856
    %2858 = vmatmul.f32.gmra.mxu0 %v2745
    %v2859 = vpop.f32.mrf.mxu0
    %v2860 = vadd.f32 %v2816, %v2859
    %2861 = vmatmul.f32.gmra.mxu0 %v2748
    %v2862 = vpop.f32.mrf.mxu0
    %v2863 = vadd.f32 %v2819, %v2862
    %2864 = vmatmul.f32.gmra.mxu0 %v2751
    %v2865 = vpop.f32.mrf.mxu0
    %v2866 = vadd.f32 %v2822, %v2865
    %2867 = vmatmul.f32.gmra.mxu0 %v2754
    %v2868 = vpop.f32.mrf.mxu0
    %v2869 = vadd.f32 %v2825, %v2868
    %2870 = vmatmul.f32.gmra.mxu0 %v2757
    %v2871 = vpop.f32.mrf.mxu0
    %v2872 = vadd.f32 %v2828, %v2871
    %2873 = vdwg.mxu0
    %2874 = vmatpush.msra.mxu0 0.0
    %2875 = vmatpush.msra.mxu0 0.0
    %2876 = vmatpush.msra.mxu0 0.0
    %2877 = vmatpush.msra.mxu0 0.0
    %2878 = vmatpush.msra.mxu0 0.0
    %2879 = vmatpush.msra.mxu0 %v747
    %2880 = vmatpush.msra.mxu0 %v689
    %2881 = vmatpush.msra.mxu0 %v688
    %2882 = vmatpush.msra.mxu0 %v687
    %2883 = vmatpush.msra.mxu0 %v686
    %2884 = vmatpush.msra.mxu0 %v685
    %2885 = vmatpush.msra.mxu0 %v684
    %2886 = vmatpush.msra.mxu0 %v683
    %2887 = vmatpush.msra.mxu0 %v682
    %2888 = vmatpush.msra.mxu0 %v681
    %2889 = vmatpush.msra.mxu0 %v680
    %2890 = vmatmul.f32.gmra.mxu0 %v2760
    %v2891 = vpop.f32.mrf.mxu0
    %v2892 = vadd.f32 %v2848, %v2891
    %2893 = vmatmul.f32.gmra.mxu0 %v2763
    %v2894 = vpop.f32.mrf.mxu0
    %v2895 = vadd.f32 %v2851, %v2894
    %2896 = vmatmul.f32.gmra.mxu0 %v2766
    %v2897 = vpop.f32.mrf.mxu0
    %v2898 = vadd.f32 %v2854, %v2897
    %2899 = vmatmul.f32.gmra.mxu0 %v2769
    %v2900 = vpop.f32.mrf.mxu0
    %v2901 = vadd.f32 %v2857, %v2900
    %2902 = vmatmul.f32.gmra.mxu0 %v2772
    %v2903 = vpop.f32.mrf.mxu0
    %v2904 = vadd.f32 %v2860, %v2903
    %2905 = vmatmul.f32.gmra.mxu0 %v2775
    %v2906 = vpop.f32.mrf.mxu0
    %v2907 = vadd.f32 %v2863, %v2906
    %2908 = vmatmul.f32.gmra.mxu0 %v2778
    %v2909 = vpop.f32.mrf.mxu0
    %v2910 = vadd.f32 %v2866, %v2909
    %2911 = vmatmul.f32.gmra.mxu0 %v2781
    %v2912 = vpop.f32.mrf.mxu0
    %v2913 = vadd.f32 %v2869, %v2912
    %2914 = vmatmul.f32.gmra.mxu0 %v2784
    %v2915 = vpop.f32.mrf.mxu0
    %v2916 = vadd.f32 %v2872, %v2915
    %2917 = vdwg.mxu0
    %s2918 = scalar_lea.vmem [#allocation2], 1024
    %v2919 = vld [vmem:[%s2918] sm:$0xff]
    %v2920 = vld [vmem:[%s2918 + $0x8] sm:$0xff]
    %v2921 = vld [vmem:[%s2918 + $0x10] sm:$0xff]
    %v2922 = vld [vmem:[%s2918 + $0x18] sm:$0xff]
    %v2923 = vld [vmem:[%s2918 + $0x20] sm:$0xff]
    %v2924 = vld [vmem:[%s2918 + $0x28] sm:$0xff]
    %v2925 = vld [vmem:[%s2918 + $0x30] sm:$0xff]
    %v2926 = vld [vmem:[%s2918 + $0x38] sm:$0xff]
    %v2927 = vld [vmem:[%s2918 + $0x40] sm:$0xff]
    %v2928 = vld [vmem:[%s2918 + $0x48] sm:$0xff]
    %v2929 = vld [vmem:[%s2918 + $0x50] sm:$0xff]
    %v2930 = vld [vmem:[%s2918 + $0x58] sm:$0xff]
    %v2931 = vld [vmem:[%s2918 + $0x60] sm:$0xff]
    %v2932 = vld [vmem:[%s2918 + $0x68] sm:$0xff]
    %v2933 = vld [vmem:[%s2918 + $0x70] sm:$0xff]
    %v2934 = vld [vmem:[%s2918 + $0x78] sm:$0xff]
    %2935 = vmatpush.msra.mxu0 %v2934
    %2936 = vmatpush.msra.mxu0 %v2933
    %2937 = vmatpush.msra.mxu0 %v2932
    %2938 = vmatpush.msra.mxu0 %v2931
    %2939 = vmatpush.msra.mxu0 %v2930
    %2940 = vmatpush.msra.mxu0 %v2929
    %2941 = vmatpush.msra.mxu0 %v2928
    %2942 = vmatpush.msra.mxu0 %v2927
    %2943 = vmatpush.msra.mxu0 %v2926
    %2944 = vmatpush.msra.mxu0 %v2925
    %2945 = vmatpush.msra.mxu0 %v2924
    %2946 = vmatpush.msra.mxu0 %v2923
    %2947 = vmatpush.msra.mxu0 %v2922
    %2948 = vmatpush.msra.mxu0 %v2921
    %2949 = vmatpush.msra.mxu0 %v2920
    %2950 = vmatpush.msra.mxu0 %v2919
    %2951 = vmatmul.f32.gmra.mxu0 %v2892
    %v2952 = vpop.f32.mrf.mxu0
    %v2953 = vadd.f32 0.0, %v2952
    %2954 = vmatmul.f32.gmra.mxu0 %v2895
    %v2955 = vpop.f32.mrf.mxu0
    %v2956 = vadd.f32 0.0, %v2955
    %2957 = vmatmul.f32.gmra.mxu0 %v2898
    %v2958 = vpop.f32.mrf.mxu0
    %v2959 = vadd.f32 0.0, %v2958
    %2960 = vmatmul.f32.gmra.mxu0 %v2901
    %v2961 = vpop.f32.mrf.mxu0
    %v2962 = vadd.f32 0.0, %v2961
    %2963 = vmatmul.f32.gmra.mxu0 %v2904
    %v2964 = vpop.f32.mrf.mxu0
    %v2965 = vadd.f32 0.0, %v2964
    %2966 = vmatmul.f32.gmra.mxu0 %v2907
    %v2967 = vpop.f32.mrf.mxu0
    %v2968 = vadd.f32 0.0, %v2967
    %2969 = vmatmul.f32.gmra.mxu0 %v2910
    %v2970 = vpop.f32.mrf.mxu0
    %v2971 = vadd.f32 0.0, %v2970
    %2972 = vmatmul.f32.gmra.mxu0 %v2913
    %v2973 = vpop.f32.mrf.mxu0
    %v2974 = vadd.f32 0.0, %v2973
    %2975 = vmatmul.f32.gmra.mxu0 %v2916
    %v2976 = vpop.f32.mrf.mxu0
    %v2977 = vadd.f32 0.0, %v2976
    %2978 = vdwg.mxu0
    %v2979 = vadd.f32 %v2722, %v2953
    %v2980 = vadd.f32 %v2723, %v2956
    %v2981 = vadd.f32 %v2724, %v2959
    %v2982 = vadd.f32 %v2725, %v2962
    %v2983 = vadd.f32 %v2726, %v2965
    %v2984 = vadd.f32 %v2727, %v2968
    %v2985 = vadd.f32 %v2728, %v2971
    %v2986 = vadd.f32 %v2729, %v2974
    %v2987 = vadd.f32 %v2730, %v2977
    %s2988 = scalar_lea.vmem %s4, 1944
    %v2989 = vld [vmem:[%s2988] sm:$0xff]
    %v2990 = vld [vmem:[%s2988 + $0x8] sm:$0xff]
    %v2991 = vld [vmem:[%s2988 + $0x10] sm:$0xff]
    %v2992 = vld [vmem:[%s2988 + $0x18] sm:$0xff]
    %v2993 = vld [vmem:[%s2988 + $0x20] sm:$0xff]
    %v2994 = vld [vmem:[%s2988 + $0x28] sm:$0xff]
    %v2995 = vld [vmem:[%s2988 + $0x30] sm:$0xff]
    %v2996 = vld [vmem:[%s2988 + $0x38] sm:$0xff]
    %v2997 = vld [vmem:[%s2988 + $0x40] sm:$0xff]
    %v2998 = vld [vmem:[%s2988 + $0x48] sm:$0xff]
    %v2999 = vld [vmem:[%s2988 + $0x50] sm:$0xff]
    %v3000 = vld [vmem:[%s2988 + $0x58] sm:$0xff]
    %v3001 = vld [vmem:[%s2988 + $0x60] sm:$0xff]
    %v3002 = vld [vmem:[%s2988 + $0x68] sm:$0xff]
    %v3003 = vld [vmem:[%s2988 + $0x70] sm:$0xff]
    %v3004 = vld [vmem:[%s2988 + $0x78] sm:$0xff]
    %v3005 = vld [vmem:[%s2988 + $0x80] sm:$0xff]
    %v3006 = vld [vmem:[%s2988 + $0x88] sm:$0xff]
    %v3007 = vld [vmem:[%s2988 + $0x90] sm:$0xff]
    %v3008 = vld [vmem:[%s2988 + $0x98] sm:$0xff]
    %v3009 = vld [vmem:[%s2988 + $0xa0] sm:$0xff]
    %v3010 = vld [vmem:[%s2988 + $0xa8] sm:$0xff]
    %v3011 = vld [vmem:[%s2988 + $0xb0] sm:$0xff]
    %v3012 = vld [vmem:[%s2988 + $0xb8] sm:$0xff]
    %v3013 = vld [vmem:[%s2988 + $0xc0] sm:$0xff]
    %v3014 = vld [vmem:[%s2988 + $0xc8] sm:$0xff]
    %v3015 = vld [vmem:[%s2988 + $0xd0] sm:$0xff]
    %v3017 = vsel %vm718, %v2991, 0
    %v3020 = vsel %vm718, %v2994, 0
    %v3023 = vsel %vm718, %v2997, 0
    %v3026 = vsel %vm718, %v3000, 0
    %v3029 = vsel %vm718, %v3003, 0
    %v3032 = vsel %vm718, %v3006, 0
    %v3035 = vsel %vm718, %v3009, 0
    %v3038 = vsel %vm718, %v3012, 0
    %v3041 = vsel %vm718, %v3015, 0
    %3043 = vmatpush.msra.mxu0 %v663
    %3044 = vmatpush.msra.mxu0 %v662
    %3045 = vmatpush.msra.mxu0 %v661
    %3046 = vmatpush.msra.mxu0 %v660
    %3047 = vmatpush.msra.mxu0 %v659
    %3048 = vmatpush.msra.mxu0 %v658
    %3049 = vmatpush.msra.mxu0 %v657
    %3050 = vmatpush.msra.mxu0 %v656
    %3051 = vmatpush.msra.mxu0 %v655
    %3052 = vmatpush.msra.mxu0 %v654
    %3053 = vmatpush.msra.mxu0 %v653
    %3054 = vmatpush.msra.mxu0 %v652
    %3055 = vmatpush.msra.mxu0 %v651
    %3056 = vmatpush.msra.mxu0 %v650
    %3057 = vmatpush.msra.mxu0 %v649
    %3058 = vmatpush.msra.mxu0 %v648
    %3059 = vmatmul.f32.gmra.mxu0 %v2989
    %v3060 = vpop.f32.mrf.mxu0
    %v3061 = vadd.f32 0.0, %v3060
    %3062 = vmatmul.f32.gmra.mxu0 %v2992
    %v3063 = vpop.f32.mrf.mxu0
    %v3064 = vadd.f32 0.0, %v3063
    %3065 = vmatmul.f32.gmra.mxu0 %v2995
    %v3066 = vpop.f32.mrf.mxu0
    %v3067 = vadd.f32 0.0, %v3066
    %3068 = vmatmul.f32.gmra.mxu0 %v2998
    %v3069 = vpop.f32.mrf.mxu0
    %v3070 = vadd.f32 0.0, %v3069
    %3071 = vmatmul.f32.gmra.mxu0 %v3001
    %v3072 = vpop.f32.mrf.mxu0
    %v3073 = vadd.f32 0.0, %v3072
    %3074 = vmatmul.f32.gmra.mxu0 %v3004
    %v3075 = vpop.f32.mrf.mxu0
    %v3076 = vadd.f32 0.0, %v3075
    %3077 = vmatmul.f32.gmra.mxu0 %v3007
    %v3078 = vpop.f32.mrf.mxu0
    %v3079 = vadd.f32 0.0, %v3078
    %3080 = vmatmul.f32.gmra.mxu0 %v3010
    %v3081 = vpop.f32.mrf.mxu0
    %v3082 = vadd.f32 0.0, %v3081
    %3083 = vmatmul.f32.gmra.mxu0 %v3013
    %v3084 = vpop.f32.mrf.mxu0
    %v3085 = vadd.f32 0.0, %v3084
    %3086 = vdwg.mxu0
    %3087 = vmatpush.msra.mxu0 %v679
    %3088 = vmatpush.msra.mxu0 %v678
    %3089 = vmatpush.msra.mxu0 %v677
    %3090 = vmatpush.msra.mxu0 %v676
    %3091 = vmatpush.msra.mxu0 %v675
    %3092 = vmatpush.msra.mxu0 %v674
    %3093 = vmatpush.msra.mxu0 %v673
    %3094 = vmatpush.msra.mxu0 %v672
    %3095 = vmatpush.msra.mxu0 %v671
    %3096 = vmatpush.msra.mxu0 %v670
    %3097 = vmatpush.msra.mxu0 %v669
    %3098 = vmatpush.msra.mxu0 %v668
    %3099 = vmatpush.msra.mxu0 %v667
    %3100 = vmatpush.msra.mxu0 %v666
    %3101 = vmatpush.msra.mxu0 %v665
    %3102 = vmatpush.msra.mxu0 %v664
    %3103 = vmatmul.f32.gmra.mxu0 %v2990
    %v3104 = vpop.f32.mrf.mxu0
    %v3105 = vadd.f32 %v3061, %v3104
    %3106 = vmatmul.f32.gmra.mxu0 %v2993
    %v3107 = vpop.f32.mrf.mxu0
    %v3108 = vadd.f32 %v3064, %v3107
    %3109 = vmatmul.f32.gmra.mxu0 %v2996
    %v3110 = vpop.f32.mrf.mxu0
    %v3111 = vadd.f32 %v3067, %v3110
    %3112 = vmatmul.f32.gmra.mxu0 %v2999
    %v3113 = vpop.f32.mrf.mxu0
    %v3114 = vadd.f32 %v3070, %v3113
    %3115 = vmatmul.f32.gmra.mxu0 %v3002
    %v3116 = vpop.f32.mrf.mxu0
    %v3117 = vadd.f32 %v3073, %v3116
    %3118 = vmatmul.f32.gmra.mxu0 %v3005
    %v3119 = vpop.f32.mrf.mxu0
    %v3120 = vadd.f32 %v3076, %v3119
    %3121 = vmatmul.f32.gmra.mxu0 %v3008
    %v3122 = vpop.f32.mrf.mxu0
    %v3123 = vadd.f32 %v3079, %v3122
    %3124 = vmatmul.f32.gmra.mxu0 %v3011
    %v3125 = vpop.f32.mrf.mxu0
    %v3126 = vadd.f32 %v3082, %v3125
    %3127 = vmatmul.f32.gmra.mxu0 %v3014
    %v3128 = vpop.f32.mrf.mxu0
    %v3129 = vadd.f32 %v3085, %v3128
    %3130 = vdwg.mxu0
    %3131 = vmatpush.msra.mxu0 0.0
    %3132 = vmatpush.msra.mxu0 0.0
    %3133 = vmatpush.msra.mxu0 0.0
    %3134 = vmatpush.msra.mxu0 0.0
    %3135 = vmatpush.msra.mxu0 0.0
    %3136 = vmatpush.msra.mxu0 %v747
    %3137 = vmatpush.msra.mxu0 %v689
    %3138 = vmatpush.msra.mxu0 %v688
    %3139 = vmatpush.msra.mxu0 %v687
    %3140 = vmatpush.msra.mxu0 %v686
    %3141 = vmatpush.msra.mxu0 %v685
    %3142 = vmatpush.msra.mxu0 %v684
    %3143 = vmatpush.msra.mxu0 %v683
    %3144 = vmatpush.msra.mxu0 %v682
    %3145 = vmatpush.msra.mxu0 %v681
    %3146 = vmatpush.msra.mxu0 %v680
    %3147 = vmatmul.f32.gmra.mxu0 %v3017
    %v3148 = vpop.f32.mrf.mxu0
    %v3149 = vadd.f32 %v3105, %v3148
    %3150 = vmatmul.f32.gmra.mxu0 %v3020
    %v3151 = vpop.f32.mrf.mxu0
    %v3152 = vadd.f32 %v3108, %v3151
    %3153 = vmatmul.f32.gmra.mxu0 %v3023
    %v3154 = vpop.f32.mrf.mxu0
    %v3155 = vadd.f32 %v3111, %v3154
    %3156 = vmatmul.f32.gmra.mxu0 %v3026
    %v3157 = vpop.f32.mrf.mxu0
    %v3158 = vadd.f32 %v3114, %v3157
    %3159 = vmatmul.f32.gmra.mxu0 %v3029
    %v3160 = vpop.f32.mrf.mxu0
    %v3161 = vadd.f32 %v3117, %v3160
    %3162 = vmatmul.f32.gmra.mxu0 %v3032
    %v3163 = vpop.f32.mrf.mxu0
    %v3164 = vadd.f32 %v3120, %v3163
    %3165 = vmatmul.f32.gmra.mxu0 %v3035
    %v3166 = vpop.f32.mrf.mxu0
    %v3167 = vadd.f32 %v3123, %v3166
    %3168 = vmatmul.f32.gmra.mxu0 %v3038
    %v3169 = vpop.f32.mrf.mxu0
    %v3170 = vadd.f32 %v3126, %v3169
    %3171 = vmatmul.f32.gmra.mxu0 %v3041
    %v3172 = vpop.f32.mrf.mxu0
    %v3173 = vadd.f32 %v3129, %v3172
    %3174 = vdwg.mxu0
    %s3175 = scalar_lea.vmem [#allocation2], 1152
    %v3176 = vld [vmem:[%s3175] sm:$0xff]
    %v3177 = vld [vmem:[%s3175 + $0x8] sm:$0xff]
    %v3178 = vld [vmem:[%s3175 + $0x10] sm:$0xff]
    %v3179 = vld [vmem:[%s3175 + $0x18] sm:$0xff]
    %v3180 = vld [vmem:[%s3175 + $0x20] sm:$0xff]
    %v3181 = vld [vmem:[%s3175 + $0x28] sm:$0xff]
    %v3182 = vld [vmem:[%s3175 + $0x30] sm:$0xff]
    %v3183 = vld [vmem:[%s3175 + $0x38] sm:$0xff]
    %v3184 = vld [vmem:[%s3175 + $0x40] sm:$0xff]
    %v3185 = vld [vmem:[%s3175 + $0x48] sm:$0xff]
    %v3186 = vld [vmem:[%s3175 + $0x50] sm:$0xff]
    %v3187 = vld [vmem:[%s3175 + $0x58] sm:$0xff]
    %v3188 = vld [vmem:[%s3175 + $0x60] sm:$0xff]
    %v3189 = vld [vmem:[%s3175 + $0x68] sm:$0xff]
    %v3190 = vld [vmem:[%s3175 + $0x70] sm:$0xff]
    %v3191 = vld [vmem:[%s3175 + $0x78] sm:$0xff]
    %3192 = vmatpush.msra.mxu0 %v3191
    %3193 = vmatpush.msra.mxu0 %v3190
    %3194 = vmatpush.msra.mxu0 %v3189
    %3195 = vmatpush.msra.mxu0 %v3188
    %3196 = vmatpush.msra.mxu0 %v3187
    %3197 = vmatpush.msra.mxu0 %v3186
    %3198 = vmatpush.msra.mxu0 %v3185
    %3199 = vmatpush.msra.mxu0 %v3184
    %3200 = vmatpush.msra.mxu0 %v3183
    %3201 = vmatpush.msra.mxu0 %v3182
    %3202 = vmatpush.msra.mxu0 %v3181
    %3203 = vmatpush.msra.mxu0 %v3180
    %3204 = vmatpush.msra.mxu0 %v3179
    %3205 = vmatpush.msra.mxu0 %v3178
    %3206 = vmatpush.msra.mxu0 %v3177
    %3207 = vmatpush.msra.mxu0 %v3176
    %3208 = vmatmul.f32.gmra.mxu0 %v3149
    %v3209 = vpop.f32.mrf.mxu0
    %v3210 = vadd.f32 0.0, %v3209
    %3211 = vmatmul.f32.gmra.mxu0 %v3152
    %v3212 = vpop.f32.mrf.mxu0
    %v3213 = vadd.f32 0.0, %v3212
    %3214 = vmatmul.f32.gmra.mxu0 %v3155
    %v3215 = vpop.f32.mrf.mxu0
    %v3216 = vadd.f32 0.0, %v3215
    %3217 = vmatmul.f32.gmra.mxu0 %v3158
    %v3218 = vpop.f32.mrf.mxu0
    %v3219 = vadd.f32 0.0, %v3218
    %3220 = vmatmul.f32.gmra.mxu0 %v3161
    %v3221 = vpop.f32.mrf.mxu0
    %v3222 = vadd.f32 0.0, %v3221
    %3223 = vmatmul.f32.gmra.mxu0 %v3164
    %v3224 = vpop.f32.mrf.mxu0
    %v3225 = vadd.f32 0.0, %v3224
    %3226 = vmatmul.f32.gmra.mxu0 %v3167
    %v3227 = vpop.f32.mrf.mxu0
    %v3228 = vadd.f32 0.0, %v3227
    %3229 = vmatmul.f32.gmra.mxu0 %v3170
    %v3230 = vpop.f32.mrf.mxu0
    %v3231 = vadd.f32 0.0, %v3230
    %3232 = vmatmul.f32.gmra.mxu0 %v3173
    %v3233 = vpop.f32.mrf.mxu0
    %v3234 = vadd.f32 0.0, %v3233
    %3235 = vdwg.mxu0
    %v3236 = vadd.f32 %v2979, %v3210
    %v3237 = vadd.f32 %v2980, %v3213
    %v3238 = vadd.f32 %v2981, %v3216
    %v3239 = vadd.f32 %v2982, %v3219
    %v3240 = vadd.f32 %v2983, %v3222
    %v3241 = vadd.f32 %v2984, %v3225
    %v3242 = vadd.f32 %v2985, %v3228
    %v3243 = vadd.f32 %v2986, %v3231
    %v3244 = vadd.f32 %v2987, %v3234
    %s3245 = scalar_lea.vmem %s4, 2160
    %v3246 = vld [vmem:[%s3245] sm:$0xff]
    %v3247 = vld [vmem:[%s3245 + $0x8] sm:$0xff]
    %v3248 = vld [vmem:[%s3245 + $0x10] sm:$0xff]
    %v3249 = vld [vmem:[%s3245 + $0x18] sm:$0xff]
    %v3250 = vld [vmem:[%s3245 + $0x20] sm:$0xff]
    %v3251 = vld [vmem:[%s3245 + $0x28] sm:$0xff]
    %v3252 = vld [vmem:[%s3245 + $0x30] sm:$0xff]
    %v3253 = vld [vmem:[%s3245 + $0x38] sm:$0xff]
    %v3254 = vld [vmem:[%s3245 + $0x40] sm:$0xff]
    %v3255 = vld [vmem:[%s3245 + $0x48] sm:$0xff]
    %v3256 = vld [vmem:[%s3245 + $0x50] sm:$0xff]
    %v3257 = vld [vmem:[%s3245 + $0x58] sm:$0xff]
    %v3258 = vld [vmem:[%s3245 + $0x60] sm:$0xff]
    %v3259 = vld [vmem:[%s3245 + $0x68] sm:$0xff]
    %v3260 = vld [vmem:[%s3245 + $0x70] sm:$0xff]
    %v3261 = vld [vmem:[%s3245 + $0x78] sm:$0xff]
    %v3262 = vld [vmem:[%s3245 + $0x80] sm:$0xff]
    %v3263 = vld [vmem:[%s3245 + $0x88] sm:$0xff]
    %v3264 = vld [vmem:[%s3245 + $0x90] sm:$0xff]
    %v3265 = vld [vmem:[%s3245 + $0x98] sm:$0xff]
    %v3266 = vld [vmem:[%s3245 + $0xa0] sm:$0xff]
    %v3267 = vld [vmem:[%s3245 + $0xa8] sm:$0xff]
    %v3268 = vld [vmem:[%s3245 + $0xb0] sm:$0xff]
    %v3269 = vld [vmem:[%s3245 + $0xb8] sm:$0xff]
    %v3270 = vld [vmem:[%s3245 + $0xc0] sm:$0xff]
    %v3271 = vld [vmem:[%s3245 + $0xc8] sm:$0xff]
    %v3272 = vld [vmem:[%s3245 + $0xd0] sm:$0xff]
    %v3274 = vsel %vm718, %v3248, 0
    %v3277 = vsel %vm718, %v3251, 0
    %v3280 = vsel %vm718, %v3254, 0
    %v3283 = vsel %vm718, %v3257, 0
    %v3286 = vsel %vm718, %v3260, 0
    %v3289 = vsel %vm718, %v3263, 0
    %v3292 = vsel %vm718, %v3266, 0
    %v3295 = vsel %vm718, %v3269, 0
    %v3298 = vsel %vm718, %v3272, 0
    %3300 = vmatpush.msra.mxu0 %v663
    %3301 = vmatpush.msra.mxu0 %v662
    %3302 = vmatpush.msra.mxu0 %v661
    %3303 = vmatpush.msra.mxu0 %v660
    %3304 = vmatpush.msra.mxu0 %v659
    %3305 = vmatpush.msra.mxu0 %v658
    %3306 = vmatpush.msra.mxu0 %v657
    %3307 = vmatpush.msra.mxu0 %v656
    %3308 = vmatpush.msra.mxu0 %v655
    %3309 = vmatpush.msra.mxu0 %v654
    %3310 = vmatpush.msra.mxu0 %v653
    %3311 = vmatpush.msra.mxu0 %v652
    %3312 = vmatpush.msra.mxu0 %v651
    %3313 = vmatpush.msra.mxu0 %v650
    %3314 = vmatpush.msra.mxu0 %v649
    %3315 = vmatpush.msra.mxu0 %v648
    %3316 = vmatmul.f32.gmra.mxu0 %v3246
    %v3317 = vpop.f32.mrf.mxu0
    %v3318 = vadd.f32 0.0, %v3317
    %3319 = vmatmul.f32.gmra.mxu0 %v3249
    %v3320 = vpop.f32.mrf.mxu0
    %v3321 = vadd.f32 0.0, %v3320
    %3322 = vmatmul.f32.gmra.mxu0 %v3252
    %v3323 = vpop.f32.mrf.mxu0
    %v3324 = vadd.f32 0.0, %v3323
    %3325 = vmatmul.f32.gmra.mxu0 %v3255
    %v3326 = vpop.f32.mrf.mxu0
    %v3327 = vadd.f32 0.0, %v3326
    %3328 = vmatmul.f32.gmra.mxu0 %v3258
    %v3329 = vpop.f32.mrf.mxu0
    %v3330 = vadd.f32 0.0, %v3329
    %3331 = vmatmul.f32.gmra.mxu0 %v3261
    %v3332 = vpop.f32.mrf.mxu0
    %v3333 = vadd.f32 0.0, %v3332
    %3334 = vmatmul.f32.gmra.mxu0 %v3264
    %v3335 = vpop.f32.mrf.mxu0
    %v3336 = vadd.f32 0.0, %v3335
    %3337 = vmatmul.f32.gmra.mxu0 %v3267
    %v3338 = vpop.f32.mrf.mxu0
    %v3339 = vadd.f32 0.0, %v3338
    %3340 = vmatmul.f32.gmra.mxu0 %v3270
    %v3341 = vpop.f32.mrf.mxu0
    %v3342 = vadd.f32 0.0, %v3341
    %3343 = vdwg.mxu0
    %3344 = vmatpush.msra.mxu0 %v679
    %3345 = vmatpush.msra.mxu0 %v678
    %3346 = vmatpush.msra.mxu0 %v677
    %3347 = vmatpush.msra.mxu0 %v676
    %3348 = vmatpush.msra.mxu0 %v675
    %3349 = vmatpush.msra.mxu0 %v674
    %3350 = vmatpush.msra.mxu0 %v673
    %3351 = vmatpush.msra.mxu0 %v672
    %3352 = vmatpush.msra.mxu0 %v671
    %3353 = vmatpush.msra.mxu0 %v670
    %3354 = vmatpush.msra.mxu0 %v669
    %3355 = vmatpush.msra.mxu0 %v668
    %3356 = vmatpush.msra.mxu0 %v667
    %3357 = vmatpush.msra.mxu0 %v666
    %3358 = vmatpush.msra.mxu0 %v665
    %3359 = vmatpush.msra.mxu0 %v664
    %3360 = vmatmul.f32.gmra.mxu0 %v3247
    %v3361 = vpop.f32.mrf.mxu0
    %v3362 = vadd.f32 %v3318, %v3361
    %3363 = vmatmul.f32.gmra.mxu0 %v3250
    %v3364 = vpop.f32.mrf.mxu0
    %v3365 = vadd.f32 %v3321, %v3364
    %3366 = vmatmul.f32.gmra.mxu0 %v3253
    %v3367 = vpop.f32.mrf.mxu0
    %v3368 = vadd.f32 %v3324, %v3367
    %3369 = vmatmul.f32.gmra.mxu0 %v3256
    %v3370 = vpop.f32.mrf.mxu0
    %v3371 = vadd.f32 %v3327, %v3370
    %3372 = vmatmul.f32.gmra.mxu0 %v3259
    %v3373 = vpop.f32.mrf.mxu0
    %v3374 = vadd.f32 %v3330, %v3373
    %3375 = vmatmul.f32.gmra.mxu0 %v3262
    %v3376 = vpop.f32.mrf.mxu0
    %v3377 = vadd.f32 %v3333, %v3376
    %3378 = vmatmul.f32.gmra.mxu0 %v3265
    %v3379 = vpop.f32.mrf.mxu0
    %v3380 = vadd.f32 %v3336, %v3379
    %3381 = vmatmul.f32.gmra.mxu0 %v3268
    %v3382 = vpop.f32.mrf.mxu0
    %v3383 = vadd.f32 %v3339, %v3382
    %3384 = vmatmul.f32.gmra.mxu0 %v3271
    %v3385 = vpop.f32.mrf.mxu0
    %v3386 = vadd.f32 %v3342, %v3385
    %3387 = vdwg.mxu0
    %3388 = vmatpush.msra.mxu0 0.0
    %3389 = vmatpush.msra.mxu0 0.0
    %3390 = vmatpush.msra.mxu0 0.0
    %3391 = vmatpush.msra.mxu0 0.0
    %3392 = vmatpush.msra.mxu0 0.0
    %3393 = vmatpush.msra.mxu0 %v747
    %3394 = vmatpush.msra.mxu0 %v689
    %3395 = vmatpush.msra.mxu0 %v688
    %3396 = vmatpush.msra.mxu0 %v687
    %3397 = vmatpush.msra.mxu0 %v686
    %3398 = vmatpush.msra.mxu0 %v685
    %3399 = vmatpush.msra.mxu0 %v684
    %3400 = vmatpush.msra.mxu0 %v683
    %3401 = vmatpush.msra.mxu0 %v682
    %3402 = vmatpush.msra.mxu0 %v681
    %3403 = vmatpush.msra.mxu0 %v680
    %3404 = vmatmul.f32.gmra.mxu0 %v3274
    %v3405 = vpop.f32.mrf.mxu0
    %v3406 = vadd.f32 %v3362, %v3405
    %3407 = vmatmul.f32.gmra.mxu0 %v3277
    %v3408 = vpop.f32.mrf.mxu0
    %v3409 = vadd.f32 %v3365, %v3408
    %3410 = vmatmul.f32.gmra.mxu0 %v3280
    %v3411 = vpop.f32.mrf.mxu0
    %v3412 = vadd.f32 %v3368, %v3411
    %3413 = vmatmul.f32.gmra.mxu0 %v3283
    %v3414 = vpop.f32.mrf.mxu0
    %v3415 = vadd.f32 %v3371, %v3414
    %3416 = vmatmul.f32.gmra.mxu0 %v3286
    %v3417 = vpop.f32.mrf.mxu0
    %v3418 = vadd.f32 %v3374, %v3417
    %3419 = vmatmul.f32.gmra.mxu0 %v3289
    %v3420 = vpop.f32.mrf.mxu0
    %v3421 = vadd.f32 %v3377, %v3420
    %3422 = vmatmul.f32.gmra.mxu0 %v3292
    %v3423 = vpop.f32.mrf.mxu0
    %v3424 = vadd.f32 %v3380, %v3423
    %3425 = vmatmul.f32.gmra.mxu0 %v3295
    %v3426 = vpop.f32.mrf.mxu0
    %v3427 = vadd.f32 %v3383, %v3426
    %3428 = vmatmul.f32.gmra.mxu0 %v3298
    %v3429 = vpop.f32.mrf.mxu0
    %v3430 = vadd.f32 %v3386, %v3429
    %3431 = vdwg.mxu0
    %s3432 = scalar_lea.vmem [#allocation2], 1280
    %v3433 = vld [vmem:[%s3432] sm:$0xff]
    %v3434 = vld [vmem:[%s3432 + $0x8] sm:$0xff]
    %v3435 = vld [vmem:[%s3432 + $0x10] sm:$0xff]
    %v3436 = vld [vmem:[%s3432 + $0x18] sm:$0xff]
    %v3437 = vld [vmem:[%s3432 + $0x20] sm:$0xff]
    %v3438 = vld [vmem:[%s3432 + $0x28] sm:$0xff]
    %v3439 = vld [vmem:[%s3432 + $0x30] sm:$0xff]
    %v3440 = vld [vmem:[%s3432 + $0x38] sm:$0xff]
    %v3441 = vld [vmem:[%s3432 + $0x40] sm:$0xff]
    %v3442 = vld [vmem:[%s3432 + $0x48] sm:$0xff]
    %v3443 = vld [vmem:[%s3432 + $0x50] sm:$0xff]
    %v3444 = vld [vmem:[%s3432 + $0x58] sm:$0xff]
    %v3445 = vld [vmem:[%s3432 + $0x60] sm:$0xff]
    %v3446 = vld [vmem:[%s3432 + $0x68] sm:$0xff]
    %v3447 = vld [vmem:[%s3432 + $0x70] sm:$0xff]
    %v3448 = vld [vmem:[%s3432 + $0x78] sm:$0xff]
    %3449 = vmatpush.msra.mxu0 %v3448
    %3450 = vmatpush.msra.mxu0 %v3447
    %3451 = vmatpush.msra.mxu0 %v3446
    %3452 = vmatpush.msra.mxu0 %v3445
    %3453 = vmatpush.msra.mxu0 %v3444
    %3454 = vmatpush.msra.mxu0 %v3443
    %3455 = vmatpush.msra.mxu0 %v3442
    %3456 = vmatpush.msra.mxu0 %v3441
    %3457 = vmatpush.msra.mxu0 %v3440
    %3458 = vmatpush.msra.mxu0 %v3439
    %3459 = vmatpush.msra.mxu0 %v3438
    %3460 = vmatpush.msra.mxu0 %v3437
    %3461 = vmatpush.msra.mxu0 %v3436
    %3462 = vmatpush.msra.mxu0 %v3435
    %3463 = vmatpush.msra.mxu0 %v3434
    %3464 = vmatpush.msra.mxu0 %v3433
    %3465 = vmatmul.f32.gmra.mxu0 %v3406
    %v3466 = vpop.f32.mrf.mxu0
    %v3467 = vadd.f32 0.0, %v3466
    %3468 = vmatmul.f32.gmra.mxu0 %v3409
    %v3469 = vpop.f32.mrf.mxu0
    %v3470 = vadd.f32 0.0, %v3469
    %3471 = vmatmul.f32.gmra.mxu0 %v3412
    %v3472 = vpop.f32.mrf.mxu0
    %v3473 = vadd.f32 0.0, %v3472
    %3474 = vmatmul.f32.gmra.mxu0 %v3415
    %v3475 = vpop.f32.mrf.mxu0
    %v3476 = vadd.f32 0.0, %v3475
    %3477 = vmatmul.f32.gmra.mxu0 %v3418
    %v3478 = vpop.f32.mrf.mxu0
    %v3479 = vadd.f32 0.0, %v3478
    %3480 = vmatmul.f32.gmra.mxu0 %v3421
    %v3481 = vpop.f32.mrf.mxu0
    %v3482 = vadd.f32 0.0, %v3481
    %3483 = vmatmul.f32.gmra.mxu0 %v3424
    %v3484 = vpop.f32.mrf.mxu0
    %v3485 = vadd.f32 0.0, %v3484
    %3486 = vmatmul.f32.gmra.mxu0 %v3427
    %v3487 = vpop.f32.mrf.mxu0
    %v3488 = vadd.f32 0.0, %v3487
    %3489 = vmatmul.f32.gmra.mxu0 %v3430
    %v3490 = vpop.f32.mrf.mxu0
    %v3491 = vadd.f32 0.0, %v3490
    %3492 = vdwg.mxu0
    %v3493 = vadd.f32 %v3236, %v3467
    %v3494 = vadd.f32 %v3237, %v3470
    %v3495 = vadd.f32 %v3238, %v3473
    %v3496 = vadd.f32 %v3239, %v3476
    %v3497 = vadd.f32 %v3240, %v3479
    %v3498 = vadd.f32 %v3241, %v3482
    %v3499 = vadd.f32 %v3242, %v3485
    %v3500 = vadd.f32 %v3243, %v3488
    %v3501 = vadd.f32 %v3244, %v3491
    %s3502 = scalar_lea.vmem %s4, 2376
    %v3503 = vld [vmem:[%s3502] sm:$0xff]
    %v3504 = vld [vmem:[%s3502 + $0x8] sm:$0xff]
    %v3505 = vld [vmem:[%s3502 + $0x10] sm:$0xff]
    %v3506 = vld [vmem:[%s3502 + $0x18] sm:$0xff]
    %v3507 = vld [vmem:[%s3502 + $0x20] sm:$0xff]
    %v3508 = vld [vmem:[%s3502 + $0x28] sm:$0xff]
    %v3509 = vld [vmem:[%s3502 + $0x30] sm:$0xff]
    %v3510 = vld [vmem:[%s3502 + $0x38] sm:$0xff]
    %v3511 = vld [vmem:[%s3502 + $0x40] sm:$0xff]
    %v3512 = vld [vmem:[%s3502 + $0x48] sm:$0xff]
    %v3513 = vld [vmem:[%s3502 + $0x50] sm:$0xff]
    %v3514 = vld [vmem:[%s3502 + $0x58] sm:$0xff]
    %v3515 = vld [vmem:[%s3502 + $0x60] sm:$0xff]
    %v3516 = vld [vmem:[%s3502 + $0x68] sm:$0xff]
    %v3517 = vld [vmem:[%s3502 + $0x70] sm:$0xff]
    %v3518 = vld [vmem:[%s3502 + $0x78] sm:$0xff]
    %v3519 = vld [vmem:[%s3502 + $0x80] sm:$0xff]
    %v3520 = vld [vmem:[%s3502 + $0x88] sm:$0xff]
    %v3521 = vld [vmem:[%s3502 + $0x90] sm:$0xff]
    %v3522 = vld [vmem:[%s3502 + $0x98] sm:$0xff]
    %v3523 = vld [vmem:[%s3502 + $0xa0] sm:$0xff]
    %v3524 = vld [vmem:[%s3502 + $0xa8] sm:$0xff]
    %v3525 = vld [vmem:[%s3502 + $0xb0] sm:$0xff]
    %v3526 = vld [vmem:[%s3502 + $0xb8] sm:$0xff]
    %v3527 = vld [vmem:[%s3502 + $0xc0] sm:$0xff]
    %v3528 = vld [vmem:[%s3502 + $0xc8] sm:$0xff]
    %v3529 = vld [vmem:[%s3502 + $0xd0] sm:$0xff]
    %v3531 = vsel %vm718, %v3505, 0
    %v3534 = vsel %vm718, %v3508, 0
    %v3537 = vsel %vm718, %v3511, 0
    %v3540 = vsel %vm718, %v3514, 0
    %v3543 = vsel %vm718, %v3517, 0
    %v3546 = vsel %vm718, %v3520, 0
    %v3549 = vsel %vm718, %v3523, 0
    %v3552 = vsel %vm718, %v3526, 0
    %v3555 = vsel %vm718, %v3529, 0
    %3557 = vmatpush.msra.mxu0 %v663
    %3558 = vmatpush.msra.mxu0 %v662
    %3559 = vmatpush.msra.mxu0 %v661
    %3560 = vmatpush.msra.mxu0 %v660
    %3561 = vmatpush.msra.mxu0 %v659
    %3562 = vmatpush.msra.mxu0 %v658
    %3563 = vmatpush.msra.mxu0 %v657
    %3564 = vmatpush.msra.mxu0 %v656
    %3565 = vmatpush.msra.mxu0 %v655
    %3566 = vmatpush.msra.mxu0 %v654
    %3567 = vmatpush.msra.mxu0 %v653
    %3568 = vmatpush.msra.mxu0 %v652
    %3569 = vmatpush.msra.mxu0 %v651
    %3570 = vmatpush.msra.mxu0 %v650
    %3571 = vmatpush.msra.mxu0 %v649
    %3572 = vmatpush.msra.mxu0 %v648
    %3573 = vmatmul.f32.gmra.mxu0 %v3503
    %v3574 = vpop.f32.mrf.mxu0
    %v3575 = vadd.f32 0.0, %v3574
    %3576 = vmatmul.f32.gmra.mxu0 %v3506
    %v3577 = vpop.f32.mrf.mxu0
    %v3578 = vadd.f32 0.0, %v3577
    %3579 = vmatmul.f32.gmra.mxu0 %v3509
    %v3580 = vpop.f32.mrf.mxu0
    %v3581 = vadd.f32 0.0, %v3580
    %3582 = vmatmul.f32.gmra.mxu0 %v3512
    %v3583 = vpop.f32.mrf.mxu0
    %v3584 = vadd.f32 0.0, %v3583
    %3585 = vmatmul.f32.gmra.mxu0 %v3515
    %v3586 = vpop.f32.mrf.mxu0
    %v3587 = vadd.f32 0.0, %v3586
    %3588 = vmatmul.f32.gmra.mxu0 %v3518
    %v3589 = vpop.f32.mrf.mxu0
    %v3590 = vadd.f32 0.0, %v3589
    %3591 = vmatmul.f32.gmra.mxu0 %v3521
    %v3592 = vpop.f32.mrf.mxu0
    %v3593 = vadd.f32 0.0, %v3592
    %3594 = vmatmul.f32.gmra.mxu0 %v3524
    %v3595 = vpop.f32.mrf.mxu0
    %v3596 = vadd.f32 0.0, %v3595
    %3597 = vmatmul.f32.gmra.mxu0 %v3527
    %v3598 = vpop.f32.mrf.mxu0
    %v3599 = vadd.f32 0.0, %v3598
    %3600 = vdwg.mxu0
    %3601 = vmatpush.msra.mxu0 %v679
    %3602 = vmatpush.msra.mxu0 %v678
    %3603 = vmatpush.msra.mxu0 %v677
    %3604 = vmatpush.msra.mxu0 %v676
    %3605 = vmatpush.msra.mxu0 %v675
    %3606 = vmatpush.msra.mxu0 %v674
    %3607 = vmatpush.msra.mxu0 %v673
    %3608 = vmatpush.msra.mxu0 %v672
    %3609 = vmatpush.msra.mxu0 %v671
    %3610 = vmatpush.msra.mxu0 %v670
    %3611 = vmatpush.msra.mxu0 %v669
    %3612 = vmatpush.msra.mxu0 %v668
    %3613 = vmatpush.msra.mxu0 %v667
    %3614 = vmatpush.msra.mxu0 %v666
    %3615 = vmatpush.msra.mxu0 %v665
    %3616 = vmatpush.msra.mxu0 %v664
    %3617 = vmatmul.f32.gmra.mxu0 %v3504
    %v3618 = vpop.f32.mrf.mxu0
    %v3619 = vadd.f32 %v3575, %v3618
    %3620 = vmatmul.f32.gmra.mxu0 %v3507
    %v3621 = vpop.f32.mrf.mxu0
    %v3622 = vadd.f32 %v3578, %v3621
    %3623 = vmatmul.f32.gmra.mxu0 %v3510
    %v3624 = vpop.f32.mrf.mxu0
    %v3625 = vadd.f32 %v3581, %v3624
    %3626 = vmatmul.f32.gmra.mxu0 %v3513
    %v3627 = vpop.f32.mrf.mxu0
    %v3628 = vadd.f32 %v3584, %v3627
    %3629 = vmatmul.f32.gmra.mxu0 %v3516
    %v3630 = vpop.f32.mrf.mxu0
    %v3631 = vadd.f32 %v3587, %v3630
    %3632 = vmatmul.f32.gmra.mxu0 %v3519
    %v3633 = vpop.f32.mrf.mxu0
    %v3634 = vadd.f32 %v3590, %v3633
    %3635 = vmatmul.f32.gmra.mxu0 %v3522
    %v3636 = vpop.f32.mrf.mxu0
    %v3637 = vadd.f32 %v3593, %v3636
    %3638 = vmatmul.f32.gmra.mxu0 %v3525
    %v3639 = vpop.f32.mrf.mxu0
    %v3640 = vadd.f32 %v3596, %v3639
    %3641 = vmatmul.f32.gmra.mxu0 %v3528
    %v3642 = vpop.f32.mrf.mxu0
    %v3643 = vadd.f32 %v3599, %v3642
    %3644 = vdwg.mxu0
    %3645 = vmatpush.msra.mxu0 0.0
    %3646 = vmatpush.msra.mxu0 0.0
    %3647 = vmatpush.msra.mxu0 0.0
    %3648 = vmatpush.msra.mxu0 0.0
    %3649 = vmatpush.msra.mxu0 0.0
    %3650 = vmatpush.msra.mxu0 %v747
    %3651 = vmatpush.msra.mxu0 %v689
    %3652 = vmatpush.msra.mxu0 %v688
    %3653 = vmatpush.msra.mxu0 %v687
    %3654 = vmatpush.msra.mxu0 %v686
    %3655 = vmatpush.msra.mxu0 %v685
    %3656 = vmatpush.msra.mxu0 %v684
    %3657 = vmatpush.msra.mxu0 %v683
    %3658 = vmatpush.msra.mxu0 %v682
    %3659 = vmatpush.msra.mxu0 %v681
    %3660 = vmatpush.msra.mxu0 %v680
    %3661 = vmatmul.f32.gmra.mxu0 %v3531
    %v3662 = vpop.f32.mrf.mxu0
    %v3663 = vadd.f32 %v3619, %v3662
    %3664 = vmatmul.f32.gmra.mxu0 %v3534
    %v3665 = vpop.f32.mrf.mxu0
    %v3666 = vadd.f32 %v3622, %v3665
    %3667 = vmatmul.f32.gmra.mxu0 %v3537
    %v3668 = vpop.f32.mrf.mxu0
    %v3669 = vadd.f32 %v3625, %v3668
    %3670 = vmatmul.f32.gmra.mxu0 %v3540
    %v3671 = vpop.f32.mrf.mxu0
    %v3672 = vadd.f32 %v3628, %v3671
    %3673 = vmatmul.f32.gmra.mxu0 %v3543
    %v3674 = vpop.f32.mrf.mxu0
    %v3675 = vadd.f32 %v3631, %v3674
    %3676 = vmatmul.f32.gmra.mxu0 %v3546
    %v3677 = vpop.f32.mrf.mxu0
    %v3678 = vadd.f32 %v3634, %v3677
    %3679 = vmatmul.f32.gmra.mxu0 %v3549
    %v3680 = vpop.f32.mrf.mxu0
    %v3681 = vadd.f32 %v3637, %v3680
    %3682 = vmatmul.f32.gmra.mxu0 %v3552
    %v3683 = vpop.f32.mrf.mxu0
    %v3684 = vadd.f32 %v3640, %v3683
    %3685 = vmatmul.f32.gmra.mxu0 %v3555
    %v3686 = vpop.f32.mrf.mxu0
    %v3687 = vadd.f32 %v3643, %v3686
    %3688 = vdwg.mxu0
    %s3689 = scalar_lea.vmem [#allocation2], 1408
    %v3690 = vld [vmem:[%s3689] sm:$0xff]
    %v3691 = vld [vmem:[%s3689 + $0x8] sm:$0xff]
    %v3692 = vld [vmem:[%s3689 + $0x10] sm:$0xff]
    %v3693 = vld [vmem:[%s3689 + $0x18] sm:$0xff]
    %v3694 = vld [vmem:[%s3689 + $0x20] sm:$0xff]
    %v3695 = vld [vmem:[%s3689 + $0x28] sm:$0xff]
    %v3696 = vld [vmem:[%s3689 + $0x30] sm:$0xff]
    %v3697 = vld [vmem:[%s3689 + $0x38] sm:$0xff]
    %v3698 = vld [vmem:[%s3689 + $0x40] sm:$0xff]
    %v3699 = vld [vmem:[%s3689 + $0x48] sm:$0xff]
    %v3700 = vld [vmem:[%s3689 + $0x50] sm:$0xff]
    %v3701 = vld [vmem:[%s3689 + $0x58] sm:$0xff]
    %v3702 = vld [vmem:[%s3689 + $0x60] sm:$0xff]
    %v3703 = vld [vmem:[%s3689 + $0x68] sm:$0xff]
    %v3704 = vld [vmem:[%s3689 + $0x70] sm:$0xff]
    %v3705 = vld [vmem:[%s3689 + $0x78] sm:$0xff]
    %3706 = vmatpush.msra.mxu0 %v3705
    %3707 = vmatpush.msra.mxu0 %v3704
    %3708 = vmatpush.msra.mxu0 %v3703
    %3709 = vmatpush.msra.mxu0 %v3702
    %3710 = vmatpush.msra.mxu0 %v3701
    %3711 = vmatpush.msra.mxu0 %v3700
    %3712 = vmatpush.msra.mxu0 %v3699
    %3713 = vmatpush.msra.mxu0 %v3698
    %3714 = vmatpush.msra.mxu0 %v3697
    %3715 = vmatpush.msra.mxu0 %v3696
    %3716 = vmatpush.msra.mxu0 %v3695
    %3717 = vmatpush.msra.mxu0 %v3694
    %3718 = vmatpush.msra.mxu0 %v3693
    %3719 = vmatpush.msra.mxu0 %v3692
    %3720 = vmatpush.msra.mxu0 %v3691
    %3721 = vmatpush.msra.mxu0 %v3690
    %3722 = vmatmul.f32.gmra.mxu0 %v3663
    %v3723 = vpop.f32.mrf.mxu0
    %v3724 = vadd.f32 0.0, %v3723
    %3725 = vmatmul.f32.gmra.mxu0 %v3666
    %v3726 = vpop.f32.mrf.mxu0
    %v3727 = vadd.f32 0.0, %v3726
    %3728 = vmatmul.f32.gmra.mxu0 %v3669
    %v3729 = vpop.f32.mrf.mxu0
    %v3730 = vadd.f32 0.0, %v3729
    %3731 = vmatmul.f32.gmra.mxu0 %v3672
    %v3732 = vpop.f32.mrf.mxu0
    %v3733 = vadd.f32 0.0, %v3732
    %3734 = vmatmul.f32.gmra.mxu0 %v3675
    %v3735 = vpop.f32.mrf.mxu0
    %v3736 = vadd.f32 0.0, %v3735
    %3737 = vmatmul.f32.gmra.mxu0 %v3678
    %v3738 = vpop.f32.mrf.mxu0
    %v3739 = vadd.f32 0.0, %v3738
    %3740 = vmatmul.f32.gmra.mxu0 %v3681
    %v3741 = vpop.f32.mrf.mxu0
    %v3742 = vadd.f32 0.0, %v3741
    %3743 = vmatmul.f32.gmra.mxu0 %v3684
    %v3744 = vpop.f32.mrf.mxu0
    %v3745 = vadd.f32 0.0, %v3744
    %3746 = vmatmul.f32.gmra.mxu0 %v3687
    %v3747 = vpop.f32.mrf.mxu0
    %v3748 = vadd.f32 0.0, %v3747
    %3749 = vdwg.mxu0
    %v3750 = vadd.f32 %v3493, %v3724
    %v3751 = vadd.f32 %v3494, %v3727
    %v3752 = vadd.f32 %v3495, %v3730
    %v3753 = vadd.f32 %v3496, %v3733
    %v3754 = vadd.f32 %v3497, %v3736
    %v3755 = vadd.f32 %v3498, %v3739
    %v3756 = vadd.f32 %v3499, %v3742
    %v3757 = vadd.f32 %v3500, %v3745
    %v3758 = vadd.f32 %v3501, %v3748
    %s3759 = scalar_lea.vmem %s4, 2592
    %v3760 = vld [vmem:[%s3759] sm:$0xff]
    %v3761 = vld [vmem:[%s3759 + $0x8] sm:$0xff]
    %v3762 = vld [vmem:[%s3759 + $0x10] sm:$0xff]
    %v3763 = vld [vmem:[%s3759 + $0x18] sm:$0xff]
    %v3764 = vld [vmem:[%s3759 + $0x20] sm:$0xff]
    %v3765 = vld [vmem:[%s3759 + $0x28] sm:$0xff]
    %v3766 = vld [vmem:[%s3759 + $0x30] sm:$0xff]
    %v3767 = vld [vmem:[%s3759 + $0x38] sm:$0xff]
    %v3768 = vld [vmem:[%s3759 + $0x40] sm:$0xff]
    %v3769 = vld [vmem:[%s3759 + $0x48] sm:$0xff]
    %v3770 = vld [vmem:[%s3759 + $0x50] sm:$0xff]
    %v3771 = vld [vmem:[%s3759 + $0x58] sm:$0xff]
    %v3772 = vld [vmem:[%s3759 + $0x60] sm:$0xff]
    %v3773 = vld [vmem:[%s3759 + $0x68] sm:$0xff]
    %v3774 = vld [vmem:[%s3759 + $0x70] sm:$0xff]
    %v3775 = vld [vmem:[%s3759 + $0x78] sm:$0xff]
    %v3776 = vld [vmem:[%s3759 + $0x80] sm:$0xff]
    %v3777 = vld [vmem:[%s3759 + $0x88] sm:$0xff]
    %v3778 = vld [vmem:[%s3759 + $0x90] sm:$0xff]
    %v3779 = vld [vmem:[%s3759 + $0x98] sm:$0xff]
    %v3780 = vld [vmem:[%s3759 + $0xa0] sm:$0xff]
    %v3781 = vld [vmem:[%s3759 + $0xa8] sm:$0xff]
    %v3782 = vld [vmem:[%s3759 + $0xb0] sm:$0xff]
    %v3783 = vld [vmem:[%s3759 + $0xb8] sm:$0xff]
    %v3784 = vld [vmem:[%s3759 + $0xc0] sm:$0xff]
    %v3785 = vld [vmem:[%s3759 + $0xc8] sm:$0xff]
    %v3786 = vld [vmem:[%s3759 + $0xd0] sm:$0xff]
    %v3788 = vsel %vm718, %v3762, 0
    %v3791 = vsel %vm718, %v3765, 0
    %v3794 = vsel %vm718, %v3768, 0
    %v3797 = vsel %vm718, %v3771, 0
    %v3800 = vsel %vm718, %v3774, 0
    %v3803 = vsel %vm718, %v3777, 0
    %v3806 = vsel %vm718, %v3780, 0
    %v3809 = vsel %vm718, %v3783, 0
    %v3812 = vsel %vm718, %v3786, 0
    %3814 = vmatpush.msra.mxu0 %v663
    %3815 = vmatpush.msra.mxu0 %v662
    %3816 = vmatpush.msra.mxu0 %v661
    %3817 = vmatpush.msra.mxu0 %v660
    %3818 = vmatpush.msra.mxu0 %v659
    %3819 = vmatpush.msra.mxu0 %v658
    %3820 = vmatpush.msra.mxu0 %v657
    %3821 = vmatpush.msra.mxu0 %v656
    %3822 = vmatpush.msra.mxu0 %v655
    %3823 = vmatpush.msra.mxu0 %v654
    %3824 = vmatpush.msra.mxu0 %v653
    %3825 = vmatpush.msra.mxu0 %v652
    %3826 = vmatpush.msra.mxu0 %v651
    %3827 = vmatpush.msra.mxu0 %v650
    %3828 = vmatpush.msra.mxu0 %v649
    %3829 = vmatpush.msra.mxu0 %v648
    %3830 = vmatmul.f32.gmra.mxu0 %v3760
    %v3831 = vpop.f32.mrf.mxu0
    %v3832 = vadd.f32 0.0, %v3831
    %3833 = vmatmul.f32.gmra.mxu0 %v3763
    %v3834 = vpop.f32.mrf.mxu0
    %v3835 = vadd.f32 0.0, %v3834
    %3836 = vmatmul.f32.gmra.mxu0 %v3766
    %v3837 = vpop.f32.mrf.mxu0
    %v3838 = vadd.f32 0.0, %v3837
    %3839 = vmatmul.f32.gmra.mxu0 %v3769
    %v3840 = vpop.f32.mrf.mxu0
    %v3841 = vadd.f32 0.0, %v3840
    %3842 = vmatmul.f32.gmra.mxu0 %v3772
    %v3843 = vpop.f32.mrf.mxu0
    %v3844 = vadd.f32 0.0, %v3843
    %3845 = vmatmul.f32.gmra.mxu0 %v3775
    %v3846 = vpop.f32.mrf.mxu0
    %v3847 = vadd.f32 0.0, %v3846
    %3848 = vmatmul.f32.gmra.mxu0 %v3778
    %v3849 = vpop.f32.mrf.mxu0
    %v3850 = vadd.f32 0.0, %v3849
    %3851 = vmatmul.f32.gmra.mxu0 %v3781
    %v3852 = vpop.f32.mrf.mxu0
    %v3853 = vadd.f32 0.0, %v3852
    %3854 = vmatmul.f32.gmra.mxu0 %v3784
    %v3855 = vpop.f32.mrf.mxu0
    %v3856 = vadd.f32 0.0, %v3855
    %3857 = vdwg.mxu0
    %3858 = vmatpush.msra.mxu0 %v679
    %3859 = vmatpush.msra.mxu0 %v678
    %3860 = vmatpush.msra.mxu0 %v677
    %3861 = vmatpush.msra.mxu0 %v676
    %3862 = vmatpush.msra.mxu0 %v675
    %3863 = vmatpush.msra.mxu0 %v674
    %3864 = vmatpush.msra.mxu0 %v673
    %3865 = vmatpush.msra.mxu0 %v672
    %3866 = vmatpush.msra.mxu0 %v671
    %3867 = vmatpush.msra.mxu0 %v670
    %3868 = vmatpush.msra.mxu0 %v669
    %3869 = vmatpush.msra.mxu0 %v668
    %3870 = vmatpush.msra.mxu0 %v667
    %3871 = vmatpush.msra.mxu0 %v666
    %3872 = vmatpush.msra.mxu0 %v665
    %3873 = vmatpush.msra.mxu0 %v664
    %3874 = vmatmul.f32.gmra.mxu0 %v3761
    %v3875 = vpop.f32.mrf.mxu0
    %v3876 = vadd.f32 %v3832, %v3875
    %3877 = vmatmul.f32.gmra.mxu0 %v3764
    %v3878 = vpop.f32.mrf.mxu0
    %v3879 = vadd.f32 %v3835, %v3878
    %3880 = vmatmul.f32.gmra.mxu0 %v3767
    %v3881 = vpop.f32.mrf.mxu0
    %v3882 = vadd.f32 %v3838, %v3881
    %3883 = vmatmul.f32.gmra.mxu0 %v3770
    %v3884 = vpop.f32.mrf.mxu0
    %v3885 = vadd.f32 %v3841, %v3884
    %3886 = vmatmul.f32.gmra.mxu0 %v3773
    %v3887 = vpop.f32.mrf.mxu0
    %v3888 = vadd.f32 %v3844, %v3887
    %3889 = vmatmul.f32.gmra.mxu0 %v3776
    %v3890 = vpop.f32.mrf.mxu0
    %v3891 = vadd.f32 %v3847, %v3890
    %3892 = vmatmul.f32.gmra.mxu0 %v3779
    %v3893 = vpop.f32.mrf.mxu0
    %v3894 = vadd.f32 %v3850, %v3893
    %3895 = vmatmul.f32.gmra.mxu0 %v3782
    %v3896 = vpop.f32.mrf.mxu0
    %v3897 = vadd.f32 %v3853, %v3896
    %3898 = vmatmul.f32.gmra.mxu0 %v3785
    %v3899 = vpop.f32.mrf.mxu0
    %v3900 = vadd.f32 %v3856, %v3899
    %3901 = vdwg.mxu0
    %3902 = vmatpush.msra.mxu0 0.0
    %3903 = vmatpush.msra.mxu0 0.0
    %3904 = vmatpush.msra.mxu0 0.0
    %3905 = vmatpush.msra.mxu0 0.0
    %3906 = vmatpush.msra.mxu0 0.0
    %3907 = vmatpush.msra.mxu0 %v747
    %3908 = vmatpush.msra.mxu0 %v689
    %3909 = vmatpush.msra.mxu0 %v688
    %3910 = vmatpush.msra.mxu0 %v687
    %3911 = vmatpush.msra.mxu0 %v686
    %3912 = vmatpush.msra.mxu0 %v685
    %3913 = vmatpush.msra.mxu0 %v684
    %3914 = vmatpush.msra.mxu0 %v683
    %3915 = vmatpush.msra.mxu0 %v682
    %3916 = vmatpush.msra.mxu0 %v681
    %3917 = vmatpush.msra.mxu0 %v680
    %3918 = vmatmul.f32.gmra.mxu0 %v3788
    %v3919 = vpop.f32.mrf.mxu0
    %v3920 = vadd.f32 %v3876, %v3919
    %3921 = vmatmul.f32.gmra.mxu0 %v3791
    %v3922 = vpop.f32.mrf.mxu0
    %v3923 = vadd.f32 %v3879, %v3922
    %3924 = vmatmul.f32.gmra.mxu0 %v3794
    %v3925 = vpop.f32.mrf.mxu0
    %v3926 = vadd.f32 %v3882, %v3925
    %3927 = vmatmul.f32.gmra.mxu0 %v3797
    %v3928 = vpop.f32.mrf.mxu0
    %v3929 = vadd.f32 %v3885, %v3928
    %3930 = vmatmul.f32.gmra.mxu0 %v3800
    %v3931 = vpop.f32.mrf.mxu0
    %v3932 = vadd.f32 %v3888, %v3931
    %3933 = vmatmul.f32.gmra.mxu0 %v3803
    %v3934 = vpop.f32.mrf.mxu0
    %v3935 = vadd.f32 %v3891, %v3934
    %3936 = vmatmul.f32.gmra.mxu0 %v3806
    %v3937 = vpop.f32.mrf.mxu0
    %v3938 = vadd.f32 %v3894, %v3937
    %3939 = vmatmul.f32.gmra.mxu0 %v3809
    %v3940 = vpop.f32.mrf.mxu0
    %v3941 = vadd.f32 %v3897, %v3940
    %3942 = vmatmul.f32.gmra.mxu0 %v3812
    %v3943 = vpop.f32.mrf.mxu0
    %v3944 = vadd.f32 %v3900, %v3943
    %3945 = vdwg.mxu0
    %s3946 = scalar_lea.vmem [#allocation2], 1536
    %v3947 = vld [vmem:[%s3946] sm:$0xff]
    %v3948 = vld [vmem:[%s3946 + $0x8] sm:$0xff]
    %v3949 = vld [vmem:[%s3946 + $0x10] sm:$0xff]
    %v3950 = vld [vmem:[%s3946 + $0x18] sm:$0xff]
    %v3951 = vld [vmem:[%s3946 + $0x20] sm:$0xff]
    %v3952 = vld [vmem:[%s3946 + $0x28] sm:$0xff]
    %v3953 = vld [vmem:[%s3946 + $0x30] sm:$0xff]
    %v3954 = vld [vmem:[%s3946 + $0x38] sm:$0xff]
    %v3955 = vld [vmem:[%s3946 + $0x40] sm:$0xff]
    %v3956 = vld [vmem:[%s3946 + $0x48] sm:$0xff]
    %v3957 = vld [vmem:[%s3946 + $0x50] sm:$0xff]
    %v3958 = vld [vmem:[%s3946 + $0x58] sm:$0xff]
    %v3959 = vld [vmem:[%s3946 + $0x60] sm:$0xff]
    %v3960 = vld [vmem:[%s3946 + $0x68] sm:$0xff]
    %v3961 = vld [vmem:[%s3946 + $0x70] sm:$0xff]
    %v3962 = vld [vmem:[%s3946 + $0x78] sm:$0xff]
    %3963 = vmatpush.msra.mxu0 %v3962
    %3964 = vmatpush.msra.mxu0 %v3961
    %3965 = vmatpush.msra.mxu0 %v3960
    %3966 = vmatpush.msra.mxu0 %v3959
    %3967 = vmatpush.msra.mxu0 %v3958
    %3968 = vmatpush.msra.mxu0 %v3957
    %3969 = vmatpush.msra.mxu0 %v3956
    %3970 = vmatpush.msra.mxu0 %v3955
    %3971 = vmatpush.msra.mxu0 %v3954
    %3972 = vmatpush.msra.mxu0 %v3953
    %3973 = vmatpush.msra.mxu0 %v3952
    %3974 = vmatpush.msra.mxu0 %v3951
    %3975 = vmatpush.msra.mxu0 %v3950
    %3976 = vmatpush.msra.mxu0 %v3949
    %3977 = vmatpush.msra.mxu0 %v3948
    %3978 = vmatpush.msra.mxu0 %v3947
    %3979 = vmatmul.f32.gmra.mxu0 %v3920
    %v3980 = vpop.f32.mrf.mxu0
    %v3981 = vadd.f32 0.0, %v3980
    %3982 = vmatmul.f32.gmra.mxu0 %v3923
    %v3983 = vpop.f32.mrf.mxu0
    %v3984 = vadd.f32 0.0, %v3983
    %3985 = vmatmul.f32.gmra.mxu0 %v3926
    %v3986 = vpop.f32.mrf.mxu0
    %v3987 = vadd.f32 0.0, %v3986
    %3988 = vmatmul.f32.gmra.mxu0 %v3929
    %v3989 = vpop.f32.mrf.mxu0
    %v3990 = vadd.f32 0.0, %v3989
    %3991 = vmatmul.f32.gmra.mxu0 %v3932
    %v3992 = vpop.f32.mrf.mxu0
    %v3993 = vadd.f32 0.0, %v3992
    %3994 = vmatmul.f32.gmra.mxu0 %v3935
    %v3995 = vpop.f32.mrf.mxu0
    %v3996 = vadd.f32 0.0, %v3995
    %3997 = vmatmul.f32.gmra.mxu0 %v3938
    %v3998 = vpop.f32.mrf.mxu0
    %v3999 = vadd.f32 0.0, %v3998
    %4000 = vmatmul.f32.gmra.mxu0 %v3941
    %v4001 = vpop.f32.mrf.mxu0
    %v4002 = vadd.f32 0.0, %v4001
    %4003 = vmatmul.f32.gmra.mxu0 %v3944
    %v4004 = vpop.f32.mrf.mxu0
    %v4005 = vadd.f32 0.0, %v4004
    %4006 = vdwg.mxu0
    %v4007 = vadd.f32 %v3750, %v3981
    %v4008 = vadd.f32 %v3751, %v3984
    %v4009 = vadd.f32 %v3752, %v3987
    %v4010 = vadd.f32 %v3753, %v3990
    %v4011 = vadd.f32 %v3754, %v3993
    %v4012 = vadd.f32 %v3755, %v3996
    %v4013 = vadd.f32 %v3756, %v3999
    %v4014 = vadd.f32 %v3757, %v4002
    %v4015 = vadd.f32 %v3758, %v4005
    %s4016 = scalar_lea.vmem %s4, 2808
    %v4017 = vld [vmem:[%s4016] sm:$0xff]
    %v4018 = vld [vmem:[%s4016 + $0x8] sm:$0xff]
    %v4019 = vld [vmem:[%s4016 + $0x10] sm:$0xff]
    %v4020 = vld [vmem:[%s4016 + $0x18] sm:$0xff]
    %v4021 = vld [vmem:[%s4016 + $0x20] sm:$0xff]
    %v4022 = vld [vmem:[%s4016 + $0x28] sm:$0xff]
    %v4023 = vld [vmem:[%s4016 + $0x30] sm:$0xff]
    %v4024 = vld [vmem:[%s4016 + $0x38] sm:$0xff]
    %v4025 = vld [vmem:[%s4016 + $0x40] sm:$0xff]
    %v4026 = vld [vmem:[%s4016 + $0x48] sm:$0xff]
    %v4027 = vld [vmem:[%s4016 + $0x50] sm:$0xff]
    %v4028 = vld [vmem:[%s4016 + $0x58] sm:$0xff]
    %v4029 = vld [vmem:[%s4016 + $0x60] sm:$0xff]
    %v4030 = vld [vmem:[%s4016 + $0x68] sm:$0xff]
    %v4031 = vld [vmem:[%s4016 + $0x70] sm:$0xff]
    %v4032 = vld [vmem:[%s4016 + $0x78] sm:$0xff]
    %v4033 = vld [vmem:[%s4016 + $0x80] sm:$0xff]
    %v4034 = vld [vmem:[%s4016 + $0x88] sm:$0xff]
    %v4035 = vld [vmem:[%s4016 + $0x90] sm:$0xff]
    %v4036 = vld [vmem:[%s4016 + $0x98] sm:$0xff]
    %v4037 = vld [vmem:[%s4016 + $0xa0] sm:$0xff]
    %v4038 = vld [vmem:[%s4016 + $0xa8] sm:$0xff]
    %v4039 = vld [vmem:[%s4016 + $0xb0] sm:$0xff]
    %v4040 = vld [vmem:[%s4016 + $0xb8] sm:$0xff]
    %v4041 = vld [vmem:[%s4016 + $0xc0] sm:$0xff]
    %v4042 = vld [vmem:[%s4016 + $0xc8] sm:$0xff]
    %v4043 = vld [vmem:[%s4016 + $0xd0] sm:$0xff]
    %v4045 = vsel %vm718, %v4019, 0
    %v4048 = vsel %vm718, %v4022, 0
    %v4051 = vsel %vm718, %v4025, 0
    %v4054 = vsel %vm718, %v4028, 0
    %v4057 = vsel %vm718, %v4031, 0
    %v4060 = vsel %vm718, %v4034, 0
    %v4063 = vsel %vm718, %v4037, 0
    %v4066 = vsel %vm718, %v4040, 0
    %v4069 = vsel %vm718, %v4043, 0
    %4071 = vmatpush.msra.mxu0 %v663
    %4072 = vmatpush.msra.mxu0 %v662
    %4073 = vmatpush.msra.mxu0 %v661
    %4074 = vmatpush.msra.mxu0 %v660
    %4075 = vmatpush.msra.mxu0 %v659
    %4076 = vmatpush.msra.mxu0 %v658
    %4077 = vmatpush.msra.mxu0 %v657
    %4078 = vmatpush.msra.mxu0 %v656
    %4079 = vmatpush.msra.mxu0 %v655
    %4080 = vmatpush.msra.mxu0 %v654
    %4081 = vmatpush.msra.mxu0 %v653
    %4082 = vmatpush.msra.mxu0 %v652
    %4083 = vmatpush.msra.mxu0 %v651
    %4084 = vmatpush.msra.mxu0 %v650
    %4085 = vmatpush.msra.mxu0 %v649
    %4086 = vmatpush.msra.mxu0 %v648
    %4087 = vmatmul.f32.gmra.mxu0 %v4017
    %v4088 = vpop.f32.mrf.mxu0
    %v4089 = vadd.f32 0.0, %v4088
    %4090 = vmatmul.f32.gmra.mxu0 %v4020
    %v4091 = vpop.f32.mrf.mxu0
    %v4092 = vadd.f32 0.0, %v4091
    %4093 = vmatmul.f32.gmra.mxu0 %v4023
    %v4094 = vpop.f32.mrf.mxu0
    %v4095 = vadd.f32 0.0, %v4094
    %4096 = vmatmul.f32.gmra.mxu0 %v4026
    %v4097 = vpop.f32.mrf.mxu0
    %v4098 = vadd.f32 0.0, %v4097
    %4099 = vmatmul.f32.gmra.mxu0 %v4029
    %v4100 = vpop.f32.mrf.mxu0
    %v4101 = vadd.f32 0.0, %v4100
    %4102 = vmatmul.f32.gmra.mxu0 %v4032
    %v4103 = vpop.f32.mrf.mxu0
    %v4104 = vadd.f32 0.0, %v4103
    %4105 = vmatmul.f32.gmra.mxu0 %v4035
    %v4106 = vpop.f32.mrf.mxu0
    %v4107 = vadd.f32 0.0, %v4106
    %4108 = vmatmul.f32.gmra.mxu0 %v4038
    %v4109 = vpop.f32.mrf.mxu0
    %v4110 = vadd.f32 0.0, %v4109
    %4111 = vmatmul.f32.gmra.mxu0 %v4041
    %v4112 = vpop.f32.mrf.mxu0
    %v4113 = vadd.f32 0.0, %v4112
    %4114 = vdwg.mxu0
    %4115 = vmatpush.msra.mxu0 %v679
    %4116 = vmatpush.msra.mxu0 %v678
    %4117 = vmatpush.msra.mxu0 %v677
    %4118 = vmatpush.msra.mxu0 %v676
    %4119 = vmatpush.msra.mxu0 %v675
    %4120 = vmatpush.msra.mxu0 %v674
    %4121 = vmatpush.msra.mxu0 %v673
    %4122 = vmatpush.msra.mxu0 %v672
    %4123 = vmatpush.msra.mxu0 %v671
    %4124 = vmatpush.msra.mxu0 %v670
    %4125 = vmatpush.msra.mxu0 %v669
    %4126 = vmatpush.msra.mxu0 %v668
    %4127 = vmatpush.msra.mxu0 %v667
    %4128 = vmatpush.msra.mxu0 %v666
    %4129 = vmatpush.msra.mxu0 %v665
    %4130 = vmatpush.msra.mxu0 %v664
    %4131 = vmatmul.f32.gmra.mxu0 %v4018
    %v4132 = vpop.f32.mrf.mxu0
    %v4133 = vadd.f32 %v4089, %v4132
    %4134 = vmatmul.f32.gmra.mxu0 %v4021
    %v4135 = vpop.f32.mrf.mxu0
    %v4136 = vadd.f32 %v4092, %v4135
    %4137 = vmatmul.f32.gmra.mxu0 %v4024
    %v4138 = vpop.f32.mrf.mxu0
    %v4139 = vadd.f32 %v4095, %v4138
    %4140 = vmatmul.f32.gmra.mxu0 %v4027
    %v4141 = vpop.f32.mrf.mxu0
    %v4142 = vadd.f32 %v4098, %v4141
    %4143 = vmatmul.f32.gmra.mxu0 %v4030
    %v4144 = vpop.f32.mrf.mxu0
    %v4145 = vadd.f32 %v4101, %v4144
    %4146 = vmatmul.f32.gmra.mxu0 %v4033
    %v4147 = vpop.f32.mrf.mxu0
    %v4148 = vadd.f32 %v4104, %v4147
    %4149 = vmatmul.f32.gmra.mxu0 %v4036
    %v4150 = vpop.f32.mrf.mxu0
    %v4151 = vadd.f32 %v4107, %v4150
    %4152 = vmatmul.f32.gmra.mxu0 %v4039
    %v4153 = vpop.f32.mrf.mxu0
    %v4154 = vadd.f32 %v4110, %v4153
    %4155 = vmatmul.f32.gmra.mxu0 %v4042
    %v4156 = vpop.f32.mrf.mxu0
    %v4157 = vadd.f32 %v4113, %v4156
    %4158 = vdwg.mxu0
    %4159 = vmatpush.msra.mxu0 0.0
    %4160 = vmatpush.msra.mxu0 0.0
    %4161 = vmatpush.msra.mxu0 0.0
    %4162 = vmatpush.msra.mxu0 0.0
    %4163 = vmatpush.msra.mxu0 0.0
    %4164 = vmatpush.msra.mxu0 %v747
    %4165 = vmatpush.msra.mxu0 %v689
    %4166 = vmatpush.msra.mxu0 %v688
    %4167 = vmatpush.msra.mxu0 %v687
    %4168 = vmatpush.msra.mxu0 %v686
    %4169 = vmatpush.msra.mxu0 %v685
    %4170 = vmatpush.msra.mxu0 %v684
    %4171 = vmatpush.msra.mxu0 %v683
    %4172 = vmatpush.msra.mxu0 %v682
    %4173 = vmatpush.msra.mxu0 %v681
    %4174 = vmatpush.msra.mxu0 %v680
    %4175 = vmatmul.f32.gmra.mxu0 %v4045
    %v4176 = vpop.f32.mrf.mxu0
    %v4177 = vadd.f32 %v4133, %v4176
    %4178 = vmatmul.f32.gmra.mxu0 %v4048
    %v4179 = vpop.f32.mrf.mxu0
    %v4180 = vadd.f32 %v4136, %v4179
    %4181 = vmatmul.f32.gmra.mxu0 %v4051
    %v4182 = vpop.f32.mrf.mxu0
    %v4183 = vadd.f32 %v4139, %v4182
    %4184 = vmatmul.f32.gmra.mxu0 %v4054
    %v4185 = vpop.f32.mrf.mxu0
    %v4186 = vadd.f32 %v4142, %v4185
    %4187 = vmatmul.f32.gmra.mxu0 %v4057
    %v4188 = vpop.f32.mrf.mxu0
    %v4189 = vadd.f32 %v4145, %v4188
    %4190 = vmatmul.f32.gmra.mxu0 %v4060
    %v4191 = vpop.f32.mrf.mxu0
    %v4192 = vadd.f32 %v4148, %v4191
    %4193 = vmatmul.f32.gmra.mxu0 %v4063
    %v4194 = vpop.f32.mrf.mxu0
    %v4195 = vadd.f32 %v4151, %v4194
    %4196 = vmatmul.f32.gmra.mxu0 %v4066
    %v4197 = vpop.f32.mrf.mxu0
    %v4198 = vadd.f32 %v4154, %v4197
    %4199 = vmatmul.f32.gmra.mxu0 %v4069
    %v4200 = vpop.f32.mrf.mxu0
    %v4201 = vadd.f32 %v4157, %v4200
    %4202 = vdwg.mxu0
    %s4203 = scalar_lea.vmem [#allocation2], 1664
    %v4204 = vld [vmem:[%s4203] sm:$0xff]
    %v4205 = vld [vmem:[%s4203 + $0x8] sm:$0xff]
    %v4206 = vld [vmem:[%s4203 + $0x10] sm:$0xff]
    %v4207 = vld [vmem:[%s4203 + $0x18] sm:$0xff]
    %v4208 = vld [vmem:[%s4203 + $0x20] sm:$0xff]
    %v4209 = vld [vmem:[%s4203 + $0x28] sm:$0xff]
    %v4210 = vld [vmem:[%s4203 + $0x30] sm:$0xff]
    %v4211 = vld [vmem:[%s4203 + $0x38] sm:$0xff]
    %v4212 = vld [vmem:[%s4203 + $0x40] sm:$0xff]
    %v4213 = vld [vmem:[%s4203 + $0x48] sm:$0xff]
    %v4214 = vld [vmem:[%s4203 + $0x50] sm:$0xff]
    %v4215 = vld [vmem:[%s4203 + $0x58] sm:$0xff]
    %v4216 = vld [vmem:[%s4203 + $0x60] sm:$0xff]
    %v4217 = vld [vmem:[%s4203 + $0x68] sm:$0xff]
    %v4218 = vld [vmem:[%s4203 + $0x70] sm:$0xff]
    %v4219 = vld [vmem:[%s4203 + $0x78] sm:$0xff]
    %4220 = vmatpush.msra.mxu0 %v4219
    %4221 = vmatpush.msra.mxu0 %v4218
    %4222 = vmatpush.msra.mxu0 %v4217
    %4223 = vmatpush.msra.mxu0 %v4216
    %4224 = vmatpush.msra.mxu0 %v4215
    %4225 = vmatpush.msra.mxu0 %v4214
    %4226 = vmatpush.msra.mxu0 %v4213
    %4227 = vmatpush.msra.mxu0 %v4212
    %4228 = vmatpush.msra.mxu0 %v4211
    %4229 = vmatpush.msra.mxu0 %v4210
    %4230 = vmatpush.msra.mxu0 %v4209
    %4231 = vmatpush.msra.mxu0 %v4208
    %4232 = vmatpush.msra.mxu0 %v4207
    %4233 = vmatpush.msra.mxu0 %v4206
    %4234 = vmatpush.msra.mxu0 %v4205
    %4235 = vmatpush.msra.mxu0 %v4204
    %4236 = vmatmul.f32.gmra.mxu0 %v4177
    %v4237 = vpop.f32.mrf.mxu0
    %v4238 = vadd.f32 0.0, %v4237
    %4239 = vmatmul.f32.gmra.mxu0 %v4180
    %v4240 = vpop.f32.mrf.mxu0
    %v4241 = vadd.f32 0.0, %v4240
    %4242 = vmatmul.f32.gmra.mxu0 %v4183
    %v4243 = vpop.f32.mrf.mxu0
    %v4244 = vadd.f32 0.0, %v4243
    %4245 = vmatmul.f32.gmra.mxu0 %v4186
    %v4246 = vpop.f32.mrf.mxu0
    %v4247 = vadd.f32 0.0, %v4246
    %4248 = vmatmul.f32.gmra.mxu0 %v4189
    %v4249 = vpop.f32.mrf.mxu0
    %v4250 = vadd.f32 0.0, %v4249
    %4251 = vmatmul.f32.gmra.mxu0 %v4192
    %v4252 = vpop.f32.mrf.mxu0
    %v4253 = vadd.f32 0.0, %v4252
    %4254 = vmatmul.f32.gmra.mxu0 %v4195
    %v4255 = vpop.f32.mrf.mxu0
    %v4256 = vadd.f32 0.0, %v4255
    %4257 = vmatmul.f32.gmra.mxu0 %v4198
    %v4258 = vpop.f32.mrf.mxu0
    %v4259 = vadd.f32 0.0, %v4258
    %4260 = vmatmul.f32.gmra.mxu0 %v4201
    %v4261 = vpop.f32.mrf.mxu0
    %v4262 = vadd.f32 0.0, %v4261
    %4263 = vdwg.mxu0
    %v4264 = vadd.f32 %v4007, %v4238
    %v4265 = vadd.f32 %v4008, %v4241
    %v4266 = vadd.f32 %v4009, %v4244
    %v4267 = vadd.f32 %v4010, %v4247
    %v4268 = vadd.f32 %v4011, %v4250
    %v4269 = vadd.f32 %v4012, %v4253
    %v4270 = vadd.f32 %v4013, %v4256
    %v4271 = vadd.f32 %v4014, %v4259
    %v4272 = vadd.f32 %v4015, %v4262
    %s4273 = scalar_lea.vmem %s4, 3024
    %v4274 = vld [vmem:[%s4273] sm:$0xff]
    %v4275 = vld [vmem:[%s4273 + $0x8] sm:$0xff]
    %v4276 = vld [vmem:[%s4273 + $0x10] sm:$0xff]
    %v4277 = vld [vmem:[%s4273 + $0x18] sm:$0xff]
    %v4278 = vld [vmem:[%s4273 + $0x20] sm:$0xff]
    %v4279 = vld [vmem:[%s4273 + $0x28] sm:$0xff]
    %v4280 = vld [vmem:[%s4273 + $0x30] sm:$0xff]
    %v4281 = vld [vmem:[%s4273 + $0x38] sm:$0xff]
    %v4282 = vld [vmem:[%s4273 + $0x40] sm:$0xff]
    %v4283 = vld [vmem:[%s4273 + $0x48] sm:$0xff]
    %v4284 = vld [vmem:[%s4273 + $0x50] sm:$0xff]
    %v4285 = vld [vmem:[%s4273 + $0x58] sm:$0xff]
    %v4286 = vld [vmem:[%s4273 + $0x60] sm:$0xff]
    %v4287 = vld [vmem:[%s4273 + $0x68] sm:$0xff]
    %v4288 = vld [vmem:[%s4273 + $0x70] sm:$0xff]
    %v4289 = vld [vmem:[%s4273 + $0x78] sm:$0xff]
    %v4290 = vld [vmem:[%s4273 + $0x80] sm:$0xff]
    %v4291 = vld [vmem:[%s4273 + $0x88] sm:$0xff]
    %v4292 = vld [vmem:[%s4273 + $0x90] sm:$0xff]
    %v4293 = vld [vmem:[%s4273 + $0x98] sm:$0xff]
    %v4294 = vld [vmem:[%s4273 + $0xa0] sm:$0xff]
    %v4295 = vld [vmem:[%s4273 + $0xa8] sm:$0xff]
    %v4296 = vld [vmem:[%s4273 + $0xb0] sm:$0xff]
    %v4297 = vld [vmem:[%s4273 + $0xb8] sm:$0xff]
    %v4298 = vld [vmem:[%s4273 + $0xc0] sm:$0xff]
    %v4299 = vld [vmem:[%s4273 + $0xc8] sm:$0xff]
    %v4300 = vld [vmem:[%s4273 + $0xd0] sm:$0xff]
    %v4302 = vsel %vm718, %v4276, 0
    %v4305 = vsel %vm718, %v4279, 0
    %v4308 = vsel %vm718, %v4282, 0
    %v4311 = vsel %vm718, %v4285, 0
    %v4314 = vsel %vm718, %v4288, 0
    %v4317 = vsel %vm718, %v4291, 0
    %v4320 = vsel %vm718, %v4294, 0
    %v4323 = vsel %vm718, %v4297, 0
    %v4326 = vsel %vm718, %v4300, 0
    %4328 = vmatpush.msra.mxu0 %v663
    %4329 = vmatpush.msra.mxu0 %v662
    %4330 = vmatpush.msra.mxu0 %v661
    %4331 = vmatpush.msra.mxu0 %v660
    %4332 = vmatpush.msra.mxu0 %v659
    %4333 = vmatpush.msra.mxu0 %v658
    %4334 = vmatpush.msra.mxu0 %v657
    %4335 = vmatpush.msra.mxu0 %v656
    %4336 = vmatpush.msra.mxu0 %v655
    %4337 = vmatpush.msra.mxu0 %v654
    %4338 = vmatpush.msra.mxu0 %v653
    %4339 = vmatpush.msra.mxu0 %v652
    %4340 = vmatpush.msra.mxu0 %v651
    %4341 = vmatpush.msra.mxu0 %v650
    %4342 = vmatpush.msra.mxu0 %v649
    %4343 = vmatpush.msra.mxu0 %v648
    %4344 = vmatmul.f32.gmra.mxu0 %v4274
    %v4345 = vpop.f32.mrf.mxu0
    %v4346 = vadd.f32 0.0, %v4345
    %4347 = vmatmul.f32.gmra.mxu0 %v4277
    %v4348 = vpop.f32.mrf.mxu0
    %v4349 = vadd.f32 0.0, %v4348
    %4350 = vmatmul.f32.gmra.mxu0 %v4280
    %v4351 = vpop.f32.mrf.mxu0
    %v4352 = vadd.f32 0.0, %v4351
    %4353 = vmatmul.f32.gmra.mxu0 %v4283
    %v4354 = vpop.f32.mrf.mxu0
    %v4355 = vadd.f32 0.0, %v4354
    %4356 = vmatmul.f32.gmra.mxu0 %v4286
    %v4357 = vpop.f32.mrf.mxu0
    %v4358 = vadd.f32 0.0, %v4357
    %4359 = vmatmul.f32.gmra.mxu0 %v4289
    %v4360 = vpop.f32.mrf.mxu0
    %v4361 = vadd.f32 0.0, %v4360
    %4362 = vmatmul.f32.gmra.mxu0 %v4292
    %v4363 = vpop.f32.mrf.mxu0
    %v4364 = vadd.f32 0.0, %v4363
    %4365 = vmatmul.f32.gmra.mxu0 %v4295
    %v4366 = vpop.f32.mrf.mxu0
    %v4367 = vadd.f32 0.0, %v4366
    %4368 = vmatmul.f32.gmra.mxu0 %v4298
    %v4369 = vpop.f32.mrf.mxu0
    %v4370 = vadd.f32 0.0, %v4369
    %4371 = vdwg.mxu0
    %4372 = vmatpush.msra.mxu0 %v679
    %4373 = vmatpush.msra.mxu0 %v678
    %4374 = vmatpush.msra.mxu0 %v677
    %4375 = vmatpush.msra.mxu0 %v676
    %4376 = vmatpush.msra.mxu0 %v675
    %4377 = vmatpush.msra.mxu0 %v674
    %4378 = vmatpush.msra.mxu0 %v673
    %4379 = vmatpush.msra.mxu0 %v672
    %4380 = vmatpush.msra.mxu0 %v671
    %4381 = vmatpush.msra.mxu0 %v670
    %4382 = vmatpush.msra.mxu0 %v669
    %4383 = vmatpush.msra.mxu0 %v668
    %4384 = vmatpush.msra.mxu0 %v667
    %4385 = vmatpush.msra.mxu0 %v666
    %4386 = vmatpush.msra.mxu0 %v665
    %4387 = vmatpush.msra.mxu0 %v664
    %4388 = vmatmul.f32.gmra.mxu0 %v4275
    %v4389 = vpop.f32.mrf.mxu0
    %v4390 = vadd.f32 %v4346, %v4389
    %4391 = vmatmul.f32.gmra.mxu0 %v4278
    %v4392 = vpop.f32.mrf.mxu0
    %v4393 = vadd.f32 %v4349, %v4392
    %4394 = vmatmul.f32.gmra.mxu0 %v4281
    %v4395 = vpop.f32.mrf.mxu0
    %v4396 = vadd.f32 %v4352, %v4395
    %4397 = vmatmul.f32.gmra.mxu0 %v4284
    %v4398 = vpop.f32.mrf.mxu0
    %v4399 = vadd.f32 %v4355, %v4398
    %4400 = vmatmul.f32.gmra.mxu0 %v4287
    %v4401 = vpop.f32.mrf.mxu0
    %v4402 = vadd.f32 %v4358, %v4401
    %4403 = vmatmul.f32.gmra.mxu0 %v4290
    %v4404 = vpop.f32.mrf.mxu0
    %v4405 = vadd.f32 %v4361, %v4404
    %4406 = vmatmul.f32.gmra.mxu0 %v4293
    %v4407 = vpop.f32.mrf.mxu0
    %v4408 = vadd.f32 %v4364, %v4407
    %4409 = vmatmul.f32.gmra.mxu0 %v4296
    %v4410 = vpop.f32.mrf.mxu0
    %v4411 = vadd.f32 %v4367, %v4410
    %4412 = vmatmul.f32.gmra.mxu0 %v4299
    %v4413 = vpop.f32.mrf.mxu0
    %v4414 = vadd.f32 %v4370, %v4413
    %4415 = vdwg.mxu0
    %4416 = vmatpush.msra.mxu0 0.0
    %4417 = vmatpush.msra.mxu0 0.0
    %4418 = vmatpush.msra.mxu0 0.0
    %4419 = vmatpush.msra.mxu0 0.0
    %4420 = vmatpush.msra.mxu0 0.0
    %4421 = vmatpush.msra.mxu0 %v747
    %4422 = vmatpush.msra.mxu0 %v689
    %4423 = vmatpush.msra.mxu0 %v688
    %4424 = vmatpush.msra.mxu0 %v687
    %4425 = vmatpush.msra.mxu0 %v686
    %4426 = vmatpush.msra.mxu0 %v685
    %4427 = vmatpush.msra.mxu0 %v684
    %4428 = vmatpush.msra.mxu0 %v683
    %4429 = vmatpush.msra.mxu0 %v682
    %4430 = vmatpush.msra.mxu0 %v681
    %4431 = vmatpush.msra.mxu0 %v680
    %4432 = vmatmul.f32.gmra.mxu0 %v4302
    %v4433 = vpop.f32.mrf.mxu0
    %v4434 = vadd.f32 %v4390, %v4433
    %4435 = vmatmul.f32.gmra.mxu0 %v4305
    %v4436 = vpop.f32.mrf.mxu0
    %v4437 = vadd.f32 %v4393, %v4436
    %4438 = vmatmul.f32.gmra.mxu0 %v4308
    %v4439 = vpop.f32.mrf.mxu0
    %v4440 = vadd.f32 %v4396, %v4439
    %4441 = vmatmul.f32.gmra.mxu0 %v4311
    %v4442 = vpop.f32.mrf.mxu0
    %v4443 = vadd.f32 %v4399, %v4442
    %4444 = vmatmul.f32.gmra.mxu0 %v4314
    %v4445 = vpop.f32.mrf.mxu0
    %v4446 = vadd.f32 %v4402, %v4445
    %4447 = vmatmul.f32.gmra.mxu0 %v4317
    %v4448 = vpop.f32.mrf.mxu0
    %v4449 = vadd.f32 %v4405, %v4448
    %4450 = vmatmul.f32.gmra.mxu0 %v4320
    %v4451 = vpop.f32.mrf.mxu0
    %v4452 = vadd.f32 %v4408, %v4451
    %4453 = vmatmul.f32.gmra.mxu0 %v4323
    %v4454 = vpop.f32.mrf.mxu0
    %v4455 = vadd.f32 %v4411, %v4454
    %4456 = vmatmul.f32.gmra.mxu0 %v4326
    %v4457 = vpop.f32.mrf.mxu0
    %v4458 = vadd.f32 %v4414, %v4457
    %4459 = vdwg.mxu0
    %s4460 = scalar_lea.vmem [#allocation2], 1792
    %v4461 = vld [vmem:[%s4460] sm:$0xff]
    %v4462 = vld [vmem:[%s4460 + $0x8] sm:$0xff]
    %v4463 = vld [vmem:[%s4460 + $0x10] sm:$0xff]
    %v4464 = vld [vmem:[%s4460 + $0x18] sm:$0xff]
    %v4465 = vld [vmem:[%s4460 + $0x20] sm:$0xff]
    %v4466 = vld [vmem:[%s4460 + $0x28] sm:$0xff]
    %v4467 = vld [vmem:[%s4460 + $0x30] sm:$0xff]
    %v4468 = vld [vmem:[%s4460 + $0x38] sm:$0xff]
    %v4469 = vld [vmem:[%s4460 + $0x40] sm:$0xff]
    %v4470 = vld [vmem:[%s4460 + $0x48] sm:$0xff]
    %v4471 = vld [vmem:[%s4460 + $0x50] sm:$0xff]
    %v4472 = vld [vmem:[%s4460 + $0x58] sm:$0xff]
    %v4473 = vld [vmem:[%s4460 + $0x60] sm:$0xff]
    %v4474 = vld [vmem:[%s4460 + $0x68] sm:$0xff]
    %v4475 = vld [vmem:[%s4460 + $0x70] sm:$0xff]
    %v4476 = vld [vmem:[%s4460 + $0x78] sm:$0xff]
    %4477 = vmatpush.msra.mxu0 %v4476
    %4478 = vmatpush.msra.mxu0 %v4475
    %4479 = vmatpush.msra.mxu0 %v4474
    %4480 = vmatpush.msra.mxu0 %v4473
    %4481 = vmatpush.msra.mxu0 %v4472
    %4482 = vmatpush.msra.mxu0 %v4471
    %4483 = vmatpush.msra.mxu0 %v4470
    %4484 = vmatpush.msra.mxu0 %v4469
    %4485 = vmatpush.msra.mxu0 %v4468
    %4486 = vmatpush.msra.mxu0 %v4467
    %4487 = vmatpush.msra.mxu0 %v4466
    %4488 = vmatpush.msra.mxu0 %v4465
    %4489 = vmatpush.msra.mxu0 %v4464
    %4490 = vmatpush.msra.mxu0 %v4463
    %4491 = vmatpush.msra.mxu0 %v4462
    %4492 = vmatpush.msra.mxu0 %v4461
    %4493 = vmatmul.f32.gmra.mxu0 %v4434
    %v4494 = vpop.f32.mrf.mxu0
    %v4495 = vadd.f32 0.0, %v4494
    %4496 = vmatmul.f32.gmra.mxu0 %v4437
    %v4497 = vpop.f32.mrf.mxu0
    %v4498 = vadd.f32 0.0, %v4497
    %4499 = vmatmul.f32.gmra.mxu0 %v4440
    %v4500 = vpop.f32.mrf.mxu0
    %v4501 = vadd.f32 0.0, %v4500
    %4502 = vmatmul.f32.gmra.mxu0 %v4443
    %v4503 = vpop.f32.mrf.mxu0
    %v4504 = vadd.f32 0.0, %v4503
    %4505 = vmatmul.f32.gmra.mxu0 %v4446
    %v4506 = vpop.f32.mrf.mxu0
    %v4507 = vadd.f32 0.0, %v4506
    %4508 = vmatmul.f32.gmra.mxu0 %v4449
    %v4509 = vpop.f32.mrf.mxu0
    %v4510 = vadd.f32 0.0, %v4509
    %4511 = vmatmul.f32.gmra.mxu0 %v4452
    %v4512 = vpop.f32.mrf.mxu0
    %v4513 = vadd.f32 0.0, %v4512
    %4514 = vmatmul.f32.gmra.mxu0 %v4455
    %v4515 = vpop.f32.mrf.mxu0
    %v4516 = vadd.f32 0.0, %v4515
    %4517 = vmatmul.f32.gmra.mxu0 %v4458
    %v4518 = vpop.f32.mrf.mxu0
    %v4519 = vadd.f32 0.0, %v4518
    %4520 = vdwg.mxu0
    %v4521 = vadd.f32 %v4264, %v4495
    %v4522 = vadd.f32 %v4265, %v4498
    %v4523 = vadd.f32 %v4266, %v4501
    %v4524 = vadd.f32 %v4267, %v4504
    %v4525 = vadd.f32 %v4268, %v4507
    %v4526 = vadd.f32 %v4269, %v4510
    %v4527 = vadd.f32 %v4270, %v4513
    %v4528 = vadd.f32 %v4271, %v4516
    %v4529 = vadd.f32 %v4272, %v4519
    %s4530 = scalar_lea.vmem %s4, 3240
    %v4531 = vld [vmem:[%s4530] sm:$0xff]
    %v4532 = vld [vmem:[%s4530 + $0x8] sm:$0xff]
    %v4533 = vld [vmem:[%s4530 + $0x10] sm:$0xff]
    %v4534 = vld [vmem:[%s4530 + $0x18] sm:$0xff]
    %v4535 = vld [vmem:[%s4530 + $0x20] sm:$0xff]
    %v4536 = vld [vmem:[%s4530 + $0x28] sm:$0xff]
    %v4537 = vld [vmem:[%s4530 + $0x30] sm:$0xff]
    %v4538 = vld [vmem:[%s4530 + $0x38] sm:$0xff]
    %v4539 = vld [vmem:[%s4530 + $0x40] sm:$0xff]
    %v4540 = vld [vmem:[%s4530 + $0x48] sm:$0xff]
    %v4541 = vld [vmem:[%s4530 + $0x50] sm:$0xff]
    %v4542 = vld [vmem:[%s4530 + $0x58] sm:$0xff]
    %v4543 = vld [vmem:[%s4530 + $0x60] sm:$0xff]
    %v4544 = vld [vmem:[%s4530 + $0x68] sm:$0xff]
    %v4545 = vld [vmem:[%s4530 + $0x70] sm:$0xff]
    %v4546 = vld [vmem:[%s4530 + $0x78] sm:$0xff]
    %v4547 = vld [vmem:[%s4530 + $0x80] sm:$0xff]
    %v4548 = vld [vmem:[%s4530 + $0x88] sm:$0xff]
    %v4549 = vld [vmem:[%s4530 + $0x90] sm:$0xff]
    %v4550 = vld [vmem:[%s4530 + $0x98] sm:$0xff]
    %v4551 = vld [vmem:[%s4530 + $0xa0] sm:$0xff]
    %v4552 = vld [vmem:[%s4530 + $0xa8] sm:$0xff]
    %v4553 = vld [vmem:[%s4530 + $0xb0] sm:$0xff]
    %v4554 = vld [vmem:[%s4530 + $0xb8] sm:$0xff]
    %v4555 = vld [vmem:[%s4530 + $0xc0] sm:$0xff]
    %v4556 = vld [vmem:[%s4530 + $0xc8] sm:$0xff]
    %v4557 = vld [vmem:[%s4530 + $0xd0] sm:$0xff]
    %v4559 = vsel %vm718, %v4533, 0
    %v4562 = vsel %vm718, %v4536, 0
    %v4565 = vsel %vm718, %v4539, 0
    %v4568 = vsel %vm718, %v4542, 0
    %v4571 = vsel %vm718, %v4545, 0
    %v4574 = vsel %vm718, %v4548, 0
    %v4577 = vsel %vm718, %v4551, 0
    %v4580 = vsel %vm718, %v4554, 0
    %v4583 = vsel %vm718, %v4557, 0
    %4585 = vmatpush.msra.mxu0 %v663
    %4586 = vmatpush.msra.mxu0 %v662
    %4587 = vmatpush.msra.mxu0 %v661
    %4588 = vmatpush.msra.mxu0 %v660
    %4589 = vmatpush.msra.mxu0 %v659
    %4590 = vmatpush.msra.mxu0 %v658
    %4591 = vmatpush.msra.mxu0 %v657
    %4592 = vmatpush.msra.mxu0 %v656
    %4593 = vmatpush.msra.mxu0 %v655
    %4594 = vmatpush.msra.mxu0 %v654
    %4595 = vmatpush.msra.mxu0 %v653
    %4596 = vmatpush.msra.mxu0 %v652
    %4597 = vmatpush.msra.mxu0 %v651
    %4598 = vmatpush.msra.mxu0 %v650
    %4599 = vmatpush.msra.mxu0 %v649
    %4600 = vmatpush.msra.mxu0 %v648
    %4601 = vmatmul.f32.gmra.mxu0 %v4531
    %v4602 = vpop.f32.mrf.mxu0
    %v4603 = vadd.f32 0.0, %v4602
    %4604 = vmatmul.f32.gmra.mxu0 %v4534
    %v4605 = vpop.f32.mrf.mxu0
    %v4606 = vadd.f32 0.0, %v4605
    %4607 = vmatmul.f32.gmra.mxu0 %v4537
    %v4608 = vpop.f32.mrf.mxu0
    %v4609 = vadd.f32 0.0, %v4608
    %4610 = vmatmul.f32.gmra.mxu0 %v4540
    %v4611 = vpop.f32.mrf.mxu0
    %v4612 = vadd.f32 0.0, %v4611
    %4613 = vmatmul.f32.gmra.mxu0 %v4543
    %v4614 = vpop.f32.mrf.mxu0
    %v4615 = vadd.f32 0.0, %v4614
    %4616 = vmatmul.f32.gmra.mxu0 %v4546
    %v4617 = vpop.f32.mrf.mxu0
    %v4618 = vadd.f32 0.0, %v4617
    %4619 = vmatmul.f32.gmra.mxu0 %v4549
    %v4620 = vpop.f32.mrf.mxu0
    %v4621 = vadd.f32 0.0, %v4620
    %4622 = vmatmul.f32.gmra.mxu0 %v4552
    %v4623 = vpop.f32.mrf.mxu0
    %v4624 = vadd.f32 0.0, %v4623
    %4625 = vmatmul.f32.gmra.mxu0 %v4555
    %v4626 = vpop.f32.mrf.mxu0
    %v4627 = vadd.f32 0.0, %v4626
    %4628 = vdwg.mxu0
    %4629 = vmatpush.msra.mxu0 %v679
    %4630 = vmatpush.msra.mxu0 %v678
    %4631 = vmatpush.msra.mxu0 %v677
    %4632 = vmatpush.msra.mxu0 %v676
    %4633 = vmatpush.msra.mxu0 %v675
    %4634 = vmatpush.msra.mxu0 %v674
    %4635 = vmatpush.msra.mxu0 %v673
    %4636 = vmatpush.msra.mxu0 %v672
    %4637 = vmatpush.msra.mxu0 %v671
    %4638 = vmatpush.msra.mxu0 %v670
    %4639 = vmatpush.msra.mxu0 %v669
    %4640 = vmatpush.msra.mxu0 %v668
    %4641 = vmatpush.msra.mxu0 %v667
    %4642 = vmatpush.msra.mxu0 %v666
    %4643 = vmatpush.msra.mxu0 %v665
    %4644 = vmatpush.msra.mxu0 %v664
    %4645 = vmatmul.f32.gmra.mxu0 %v4532
    %v4646 = vpop.f32.mrf.mxu0
    %v4647 = vadd.f32 %v4603, %v4646
    %4648 = vmatmul.f32.gmra.mxu0 %v4535
    %v4649 = vpop.f32.mrf.mxu0
    %v4650 = vadd.f32 %v4606, %v4649
    %4651 = vmatmul.f32.gmra.mxu0 %v4538
    %v4652 = vpop.f32.mrf.mxu0
    %v4653 = vadd.f32 %v4609, %v4652
    %4654 = vmatmul.f32.gmra.mxu0 %v4541
    %v4655 = vpop.f32.mrf.mxu0
    %v4656 = vadd.f32 %v4612, %v4655
    %4657 = vmatmul.f32.gmra.mxu0 %v4544
    %v4658 = vpop.f32.mrf.mxu0
    %v4659 = vadd.f32 %v4615, %v4658
    %4660 = vmatmul.f32.gmra.mxu0 %v4547
    %v4661 = vpop.f32.mrf.mxu0
    %v4662 = vadd.f32 %v4618, %v4661
    %4663 = vmatmul.f32.gmra.mxu0 %v4550
    %v4664 = vpop.f32.mrf.mxu0
    %v4665 = vadd.f32 %v4621, %v4664
    %4666 = vmatmul.f32.gmra.mxu0 %v4553
    %v4667 = vpop.f32.mrf.mxu0
    %v4668 = vadd.f32 %v4624, %v4667
    %4669 = vmatmul.f32.gmra.mxu0 %v4556
    %v4670 = vpop.f32.mrf.mxu0
    %v4671 = vadd.f32 %v4627, %v4670
    %4672 = vdwg.mxu0
    %4673 = vmatpush.msra.mxu0 0.0
    %4674 = vmatpush.msra.mxu0 0.0
    %4675 = vmatpush.msra.mxu0 0.0
    %4676 = vmatpush.msra.mxu0 0.0
    %4677 = vmatpush.msra.mxu0 0.0
    %4678 = vmatpush.msra.mxu0 %v747
    %4679 = vmatpush.msra.mxu0 %v689
    %4680 = vmatpush.msra.mxu0 %v688
    %4681 = vmatpush.msra.mxu0 %v687
    %4682 = vmatpush.msra.mxu0 %v686
    %4683 = vmatpush.msra.mxu0 %v685
    %4684 = vmatpush.msra.mxu0 %v684
    %4685 = vmatpush.msra.mxu0 %v683
    %4686 = vmatpush.msra.mxu0 %v682
    %4687 = vmatpush.msra.mxu0 %v681
    %4688 = vmatpush.msra.mxu0 %v680
    %4689 = vmatmul.f32.gmra.mxu0 %v4559
    %v4690 = vpop.f32.mrf.mxu0
    %v4691 = vadd.f32 %v4647, %v4690
    %4692 = vmatmul.f32.gmra.mxu0 %v4562
    %v4693 = vpop.f32.mrf.mxu0
    %v4694 = vadd.f32 %v4650, %v4693
    %4695 = vmatmul.f32.gmra.mxu0 %v4565
    %v4696 = vpop.f32.mrf.mxu0
    %v4697 = vadd.f32 %v4653, %v4696
    %4698 = vmatmul.f32.gmra.mxu0 %v4568
    %v4699 = vpop.f32.mrf.mxu0
    %v4700 = vadd.f32 %v4656, %v4699
    %4701 = vmatmul.f32.gmra.mxu0 %v4571
    %v4702 = vpop.f32.mrf.mxu0
    %v4703 = vadd.f32 %v4659, %v4702
    %4704 = vmatmul.f32.gmra.mxu0 %v4574
    %v4705 = vpop.f32.mrf.mxu0
    %v4706 = vadd.f32 %v4662, %v4705
    %4707 = vmatmul.f32.gmra.mxu0 %v4577
    %v4708 = vpop.f32.mrf.mxu0
    %v4709 = vadd.f32 %v4665, %v4708
    %4710 = vmatmul.f32.gmra.mxu0 %v4580
    %v4711 = vpop.f32.mrf.mxu0
    %v4712 = vadd.f32 %v4668, %v4711
    %4713 = vmatmul.f32.gmra.mxu0 %v4583
    %v4714 = vpop.f32.mrf.mxu0
    %v4715 = vadd.f32 %v4671, %v4714
    %4716 = vdwg.mxu0
    %s4717 = scalar_lea.vmem [#allocation2], 1920
    %v4718 = vld [vmem:[%s4717] sm:$0xff]
    %v4719 = vld [vmem:[%s4717 + $0x8] sm:$0xff]
    %v4720 = vld [vmem:[%s4717 + $0x10] sm:$0xff]
    %v4721 = vld [vmem:[%s4717 + $0x18] sm:$0xff]
    %v4722 = vld [vmem:[%s4717 + $0x20] sm:$0xff]
    %v4723 = vld [vmem:[%s4717 + $0x28] sm:$0xff]
    %v4724 = vld [vmem:[%s4717 + $0x30] sm:$0xff]
    %v4725 = vld [vmem:[%s4717 + $0x38] sm:$0xff]
    %v4726 = vld [vmem:[%s4717 + $0x40] sm:$0xff]
    %v4727 = vld [vmem:[%s4717 + $0x48] sm:$0xff]
    %v4728 = vld [vmem:[%s4717 + $0x50] sm:$0xff]
    %v4729 = vld [vmem:[%s4717 + $0x58] sm:$0xff]
    %v4730 = vld [vmem:[%s4717 + $0x60] sm:$0xff]
    %v4731 = vld [vmem:[%s4717 + $0x68] sm:$0xff]
    %v4732 = vld [vmem:[%s4717 + $0x70] sm:$0xff]
    %v4733 = vld [vmem:[%s4717 + $0x78] sm:$0xff]
    %4734 = vmatpush.msra.mxu0 %v4733
    %4735 = vmatpush.msra.mxu0 %v4732
    %4736 = vmatpush.msra.mxu0 %v4731
    %4737 = vmatpush.msra.mxu0 %v4730
    %4738 = vmatpush.msra.mxu0 %v4729
    %4739 = vmatpush.msra.mxu0 %v4728
    %4740 = vmatpush.msra.mxu0 %v4727
    %4741 = vmatpush.msra.mxu0 %v4726
    %4742 = vmatpush.msra.mxu0 %v4725
    %4743 = vmatpush.msra.mxu0 %v4724
    %4744 = vmatpush.msra.mxu0 %v4723
    %4745 = vmatpush.msra.mxu0 %v4722
    %4746 = vmatpush.msra.mxu0 %v4721
    %4747 = vmatpush.msra.mxu0 %v4720
    %4748 = vmatpush.msra.mxu0 %v4719
    %4749 = vmatpush.msra.mxu0 %v4718
    %4750 = vmatmul.f32.gmra.mxu0 %v4691
    %v4751 = vpop.f32.mrf.mxu0
    %v4752 = vadd.f32 0.0, %v4751
    %4753 = vmatmul.f32.gmra.mxu0 %v4694
    %v4754 = vpop.f32.mrf.mxu0
    %v4755 = vadd.f32 0.0, %v4754
    %4756 = vmatmul.f32.gmra.mxu0 %v4697
    %v4757 = vpop.f32.mrf.mxu0
    %v4758 = vadd.f32 0.0, %v4757
    %4759 = vmatmul.f32.gmra.mxu0 %v4700
    %v4760 = vpop.f32.mrf.mxu0
    %v4761 = vadd.f32 0.0, %v4760
    %4762 = vmatmul.f32.gmra.mxu0 %v4703
    %v4763 = vpop.f32.mrf.mxu0
    %v4764 = vadd.f32 0.0, %v4763
    %4765 = vmatmul.f32.gmra.mxu0 %v4706
    %v4766 = vpop.f32.mrf.mxu0
    %v4767 = vadd.f32 0.0, %v4766
    %4768 = vmatmul.f32.gmra.mxu0 %v4709
    %v4769 = vpop.f32.mrf.mxu0
    %v4770 = vadd.f32 0.0, %v4769
    %4771 = vmatmul.f32.gmra.mxu0 %v4712
    %v4772 = vpop.f32.mrf.mxu0
    %v4773 = vadd.f32 0.0, %v4772
    %4774 = vmatmul.f32.gmra.mxu0 %v4715
    %v4775 = vpop.f32.mrf.mxu0
    %v4776 = vadd.f32 0.0, %v4775
    %4777 = vdwg.mxu0
    %v4778 = vadd.f32 %v4521, %v4752
    %v4779 = vadd.f32 %v4522, %v4755
    %v4780 = vadd.f32 %v4523, %v4758
    %v4781 = vadd.f32 %v4524, %v4761
    %v4782 = vadd.f32 %v4525, %v4764
    %v4783 = vadd.f32 %v4526, %v4767
    %v4784 = vadd.f32 %v4527, %v4770
    %v4785 = vadd.f32 %v4528, %v4773
    %v4786 = vadd.f32 %v4529, %v4776
    %s4787 = scalar_lea.vmem %s4, 3456
    %v4788 = vld [vmem:[%s4787] sm:$0xff]
    %v4789 = vld [vmem:[%s4787 + $0x8] sm:$0xff]
    %v4790 = vld [vmem:[%s4787 + $0x10] sm:$0xff]
    %v4791 = vld [vmem:[%s4787 + $0x18] sm:$0xff]
    %v4792 = vld [vmem:[%s4787 + $0x20] sm:$0xff]
    %v4793 = vld [vmem:[%s4787 + $0x28] sm:$0xff]
    %v4794 = vld [vmem:[%s4787 + $0x30] sm:$0xff]
    %v4795 = vld [vmem:[%s4787 + $0x38] sm:$0xff]
    %v4796 = vld [vmem:[%s4787 + $0x40] sm:$0xff]
    %v4797 = vld [vmem:[%s4787 + $0x48] sm:$0xff]
    %v4798 = vld [vmem:[%s4787 + $0x50] sm:$0xff]
    %v4799 = vld [vmem:[%s4787 + $0x58] sm:$0xff]
    %v4800 = vld [vmem:[%s4787 + $0x60] sm:$0xff]
    %v4801 = vld [vmem:[%s4787 + $0x68] sm:$0xff]
    %v4802 = vld [vmem:[%s4787 + $0x70] sm:$0xff]
    %v4803 = vld [vmem:[%s4787 + $0x78] sm:$0xff]
    %v4804 = vld [vmem:[%s4787 + $0x80] sm:$0xff]
    %v4805 = vld [vmem:[%s4787 + $0x88] sm:$0xff]
    %v4806 = vld [vmem:[%s4787 + $0x90] sm:$0xff]
    %v4807 = vld [vmem:[%s4787 + $0x98] sm:$0xff]
    %v4808 = vld [vmem:[%s4787 + $0xa0] sm:$0xff]
    %v4809 = vld [vmem:[%s4787 + $0xa8] sm:$0xff]
    %v4810 = vld [vmem:[%s4787 + $0xb0] sm:$0xff]
    %v4811 = vld [vmem:[%s4787 + $0xb8] sm:$0xff]
    %v4812 = vld [vmem:[%s4787 + $0xc0] sm:$0xff]
    %v4813 = vld [vmem:[%s4787 + $0xc8] sm:$0xff]
    %v4814 = vld [vmem:[%s4787 + $0xd0] sm:$0xff]
    %v4816 = vsel %vm718, %v4790, 0
    %v4819 = vsel %vm718, %v4793, 0
    %v4822 = vsel %vm718, %v4796, 0
    %v4825 = vsel %vm718, %v4799, 0
    %v4828 = vsel %vm718, %v4802, 0
    %v4831 = vsel %vm718, %v4805, 0
    %v4834 = vsel %vm718, %v4808, 0
    %v4837 = vsel %vm718, %v4811, 0
    %v4840 = vsel %vm718, %v4814, 0
    %4842 = vmatpush.msra.mxu0 %v663
    %4843 = vmatpush.msra.mxu0 %v662
    %4844 = vmatpush.msra.mxu0 %v661
    %4845 = vmatpush.msra.mxu0 %v660
    %4846 = vmatpush.msra.mxu0 %v659
    %4847 = vmatpush.msra.mxu0 %v658
    %4848 = vmatpush.msra.mxu0 %v657
    %4849 = vmatpush.msra.mxu0 %v656
    %4850 = vmatpush.msra.mxu0 %v655
    %4851 = vmatpush.msra.mxu0 %v654
    %4852 = vmatpush.msra.mxu0 %v653
    %4853 = vmatpush.msra.mxu0 %v652
    %4854 = vmatpush.msra.mxu0 %v651
    %4855 = vmatpush.msra.mxu0 %v650
    %4856 = vmatpush.msra.mxu0 %v649
    %4857 = vmatpush.msra.mxu0 %v648
    %4858 = vmatmul.f32.gmra.mxu0 %v4788
    %v4859 = vpop.f32.mrf.mxu0
    %v4860 = vadd.f32 0.0, %v4859
    %4861 = vmatmul.f32.gmra.mxu0 %v4791
    %v4862 = vpop.f32.mrf.mxu0
    %v4863 = vadd.f32 0.0, %v4862
    %4864 = vmatmul.f32.gmra.mxu0 %v4794
    %v4865 = vpop.f32.mrf.mxu0
    %v4866 = vadd.f32 0.0, %v4865
    %4867 = vmatmul.f32.gmra.mxu0 %v4797
    %v4868 = vpop.f32.mrf.mxu0
    %v4869 = vadd.f32 0.0, %v4868
    %4870 = vmatmul.f32.gmra.mxu0 %v4800
    %v4871 = vpop.f32.mrf.mxu0
    %v4872 = vadd.f32 0.0, %v4871
    %4873 = vmatmul.f32.gmra.mxu0 %v4803
    %v4874 = vpop.f32.mrf.mxu0
    %v4875 = vadd.f32 0.0, %v4874
    %4876 = vmatmul.f32.gmra.mxu0 %v4806
    %v4877 = vpop.f32.mrf.mxu0
    %v4878 = vadd.f32 0.0, %v4877
    %4879 = vmatmul.f32.gmra.mxu0 %v4809
    %v4880 = vpop.f32.mrf.mxu0
    %v4881 = vadd.f32 0.0, %v4880
    %4882 = vmatmul.f32.gmra.mxu0 %v4812
    %v4883 = vpop.f32.mrf.mxu0
    %v4884 = vadd.f32 0.0, %v4883
    %4885 = vdwg.mxu0
    %4886 = vmatpush.msra.mxu0 %v679
    %4887 = vmatpush.msra.mxu0 %v678
    %4888 = vmatpush.msra.mxu0 %v677
    %4889 = vmatpush.msra.mxu0 %v676
    %4890 = vmatpush.msra.mxu0 %v675
    %4891 = vmatpush.msra.mxu0 %v674
    %4892 = vmatpush.msra.mxu0 %v673
    %4893 = vmatpush.msra.mxu0 %v672
    %4894 = vmatpush.msra.mxu0 %v671
    %4895 = vmatpush.msra.mxu0 %v670
    %4896 = vmatpush.msra.mxu0 %v669
    %4897 = vmatpush.msra.mxu0 %v668
    %4898 = vmatpush.msra.mxu0 %v667
    %4899 = vmatpush.msra.mxu0 %v666
    %4900 = vmatpush.msra.mxu0 %v665
    %4901 = vmatpush.msra.mxu0 %v664
    %4902 = vmatmul.f32.gmra.mxu0 %v4789
    %v4903 = vpop.f32.mrf.mxu0
    %v4904 = vadd.f32 %v4860, %v4903
    %4905 = vmatmul.f32.gmra.mxu0 %v4792
    %v4906 = vpop.f32.mrf.mxu0
    %v4907 = vadd.f32 %v4863, %v4906
    %4908 = vmatmul.f32.gmra.mxu0 %v4795
    %v4909 = vpop.f32.mrf.mxu0
    %v4910 = vadd.f32 %v4866, %v4909
    %4911 = vmatmul.f32.gmra.mxu0 %v4798
    %v4912 = vpop.f32.mrf.mxu0
    %v4913 = vadd.f32 %v4869, %v4912
    %4914 = vmatmul.f32.gmra.mxu0 %v4801
    %v4915 = vpop.f32.mrf.mxu0
    %v4916 = vadd.f32 %v4872, %v4915
    %4917 = vmatmul.f32.gmra.mxu0 %v4804
    %v4918 = vpop.f32.mrf.mxu0
    %v4919 = vadd.f32 %v4875, %v4918
    %4920 = vmatmul.f32.gmra.mxu0 %v4807
    %v4921 = vpop.f32.mrf.mxu0
    %v4922 = vadd.f32 %v4878, %v4921
    %4923 = vmatmul.f32.gmra.mxu0 %v4810
    %v4924 = vpop.f32.mrf.mxu0
    %v4925 = vadd.f32 %v4881, %v4924
    %4926 = vmatmul.f32.gmra.mxu0 %v4813
    %v4927 = vpop.f32.mrf.mxu0
    %v4928 = vadd.f32 %v4884, %v4927
    %4929 = vdwg.mxu0
    %4930 = vmatpush.msra.mxu0 0.0
    %4931 = vmatpush.msra.mxu0 0.0
    %4932 = vmatpush.msra.mxu0 0.0
    %4933 = vmatpush.msra.mxu0 0.0
    %4934 = vmatpush.msra.mxu0 0.0
    %4935 = vmatpush.msra.mxu0 %v747
    %4936 = vmatpush.msra.mxu0 %v689
    %4937 = vmatpush.msra.mxu0 %v688
    %4938 = vmatpush.msra.mxu0 %v687
    %4939 = vmatpush.msra.mxu0 %v686
    %4940 = vmatpush.msra.mxu0 %v685
    %4941 = vmatpush.msra.mxu0 %v684
    %4942 = vmatpush.msra.mxu0 %v683
    %4943 = vmatpush.msra.mxu0 %v682
    %4944 = vmatpush.msra.mxu0 %v681
    %4945 = vmatpush.msra.mxu0 %v680
    %4946 = vmatmul.f32.gmra.mxu0 %v4816
    %v4947 = vpop.f32.mrf.mxu0
    %v4948 = vadd.f32 %v4904, %v4947
    %4949 = vmatmul.f32.gmra.mxu0 %v4819
    %v4950 = vpop.f32.mrf.mxu0
    %v4951 = vadd.f32 %v4907, %v4950
    %4952 = vmatmul.f32.gmra.mxu0 %v4822
    %v4953 = vpop.f32.mrf.mxu0
    %v4954 = vadd.f32 %v4910, %v4953
    %4955 = vmatmul.f32.gmra.mxu0 %v4825
    %v4956 = vpop.f32.mrf.mxu0
    %v4957 = vadd.f32 %v4913, %v4956
    %4958 = vmatmul.f32.gmra.mxu0 %v4828
    %v4959 = vpop.f32.mrf.mxu0
    %v4960 = vadd.f32 %v4916, %v4959
    %4961 = vmatmul.f32.gmra.mxu0 %v4831
    %v4962 = vpop.f32.mrf.mxu0
    %v4963 = vadd.f32 %v4919, %v4962
    %4964 = vmatmul.f32.gmra.mxu0 %v4834
    %v4965 = vpop.f32.mrf.mxu0
    %v4966 = vadd.f32 %v4922, %v4965
    %4967 = vmatmul.f32.gmra.mxu0 %v4837
    %v4968 = vpop.f32.mrf.mxu0
    %v4969 = vadd.f32 %v4925, %v4968
    %4970 = vmatmul.f32.gmra.mxu0 %v4840
    %v4971 = vpop.f32.mrf.mxu0
    %v4972 = vadd.f32 %v4928, %v4971
    %4973 = vdwg.mxu0
    %s4974 = scalar_lea.vmem [#allocation2], 2048
    %v4975 = vld [vmem:[%s4974] sm:$0xff]
    %v4976 = vld [vmem:[%s4974 + $0x8] sm:$0xff]
    %v4977 = vld [vmem:[%s4974 + $0x10] sm:$0xff]
    %v4978 = vld [vmem:[%s4974 + $0x18] sm:$0xff]
    %v4979 = vld [vmem:[%s4974 + $0x20] sm:$0xff]
    %v4980 = vld [vmem:[%s4974 + $0x28] sm:$0xff]
    %v4981 = vld [vmem:[%s4974 + $0x30] sm:$0xff]
    %v4982 = vld [vmem:[%s4974 + $0x38] sm:$0xff]
    %v4983 = vld [vmem:[%s4974 + $0x40] sm:$0xff]
    %v4984 = vld [vmem:[%s4974 + $0x48] sm:$0xff]
    %v4985 = vld [vmem:[%s4974 + $0x50] sm:$0xff]
    %v4986 = vld [vmem:[%s4974 + $0x58] sm:$0xff]
    %v4987 = vld [vmem:[%s4974 + $0x60] sm:$0xff]
    %v4988 = vld [vmem:[%s4974 + $0x68] sm:$0xff]
    %v4989 = vld [vmem:[%s4974 + $0x70] sm:$0xff]
    %v4990 = vld [vmem:[%s4974 + $0x78] sm:$0xff]
    %4991 = vmatpush.msra.mxu0 %v4990
    %4992 = vmatpush.msra.mxu0 %v4989
    %4993 = vmatpush.msra.mxu0 %v4988
    %4994 = vmatpush.msra.mxu0 %v4987
    %4995 = vmatpush.msra.mxu0 %v4986
    %4996 = vmatpush.msra.mxu0 %v4985
    %4997 = vmatpush.msra.mxu0 %v4984
    %4998 = vmatpush.msra.mxu0 %v4983
    %4999 = vmatpush.msra.mxu0 %v4982
    %5000 = vmatpush.msra.mxu0 %v4981
    %5001 = vmatpush.msra.mxu0 %v4980
    %5002 = vmatpush.msra.mxu0 %v4979
    %5003 = vmatpush.msra.mxu0 %v4978
    %5004 = vmatpush.msra.mxu0 %v4977
    %5005 = vmatpush.msra.mxu0 %v4976
    %5006 = vmatpush.msra.mxu0 %v4975
    %5007 = vmatmul.f32.gmra.mxu0 %v4948
    %v5008 = vpop.f32.mrf.mxu0
    %v5009 = vadd.f32 0.0, %v5008
    %5010 = vmatmul.f32.gmra.mxu0 %v4951
    %v5011 = vpop.f32.mrf.mxu0
    %v5012 = vadd.f32 0.0, %v5011
    %5013 = vmatmul.f32.gmra.mxu0 %v4954
    %v5014 = vpop.f32.mrf.mxu0
    %v5015 = vadd.f32 0.0, %v5014
    %5016 = vmatmul.f32.gmra.mxu0 %v4957
    %v5017 = vpop.f32.mrf.mxu0
    %v5018 = vadd.f32 0.0, %v5017
    %5019 = vmatmul.f32.gmra.mxu0 %v4960
    %v5020 = vpop.f32.mrf.mxu0
    %v5021 = vadd.f32 0.0, %v5020
    %5022 = vmatmul.f32.gmra.mxu0 %v4963
    %v5023 = vpop.f32.mrf.mxu0
    %v5024 = vadd.f32 0.0, %v5023
    %5025 = vmatmul.f32.gmra.mxu0 %v4966
    %v5026 = vpop.f32.mrf.mxu0
    %v5027 = vadd.f32 0.0, %v5026
    %5028 = vmatmul.f32.gmra.mxu0 %v4969
    %v5029 = vpop.f32.mrf.mxu0
    %v5030 = vadd.f32 0.0, %v5029
    %5031 = vmatmul.f32.gmra.mxu0 %v4972
    %v5032 = vpop.f32.mrf.mxu0
    %v5033 = vadd.f32 0.0, %v5032
    %5034 = vdwg.mxu0
    %v5035 = vadd.f32 %v4778, %v5009
    %v5036 = vadd.f32 %v4779, %v5012
    %v5037 = vadd.f32 %v4780, %v5015
    %v5038 = vadd.f32 %v4781, %v5018
    %v5039 = vadd.f32 %v4782, %v5021
    %v5040 = vadd.f32 %v4783, %v5024
    %v5041 = vadd.f32 %v4784, %v5027
    %v5042 = vadd.f32 %v4785, %v5030
    %v5043 = vadd.f32 %v4786, %v5033
    %s5044 = scalar_lea.vmem %s4, 3672
    %v5045 = vld [vmem:[%s5044] sm:$0xff]
    %v5046 = vld [vmem:[%s5044 + $0x8] sm:$0xff]
    %v5047 = vld [vmem:[%s5044 + $0x10] sm:$0xff]
    %v5048 = vld [vmem:[%s5044 + $0x18] sm:$0xff]
    %v5049 = vld [vmem:[%s5044 + $0x20] sm:$0xff]
    %v5050 = vld [vmem:[%s5044 + $0x28] sm:$0xff]
    %v5051 = vld [vmem:[%s5044 + $0x30] sm:$0xff]
    %v5052 = vld [vmem:[%s5044 + $0x38] sm:$0xff]
    %v5053 = vld [vmem:[%s5044 + $0x40] sm:$0xff]
    %v5054 = vld [vmem:[%s5044 + $0x48] sm:$0xff]
    %v5055 = vld [vmem:[%s5044 + $0x50] sm:$0xff]
    %v5056 = vld [vmem:[%s5044 + $0x58] sm:$0xff]
    %v5057 = vld [vmem:[%s5044 + $0x60] sm:$0xff]
    %v5058 = vld [vmem:[%s5044 + $0x68] sm:$0xff]
    %v5059 = vld [vmem:[%s5044 + $0x70] sm:$0xff]
    %v5060 = vld [vmem:[%s5044 + $0x78] sm:$0xff]
    %v5061 = vld [vmem:[%s5044 + $0x80] sm:$0xff]
    %v5062 = vld [vmem:[%s5044 + $0x88] sm:$0xff]
    %v5063 = vld [vmem:[%s5044 + $0x90] sm:$0xff]
    %v5064 = vld [vmem:[%s5044 + $0x98] sm:$0xff]
    %v5065 = vld [vmem:[%s5044 + $0xa0] sm:$0xff]
    %v5066 = vld [vmem:[%s5044 + $0xa8] sm:$0xff]
    %v5067 = vld [vmem:[%s5044 + $0xb0] sm:$0xff]
    %v5068 = vld [vmem:[%s5044 + $0xb8] sm:$0xff]
    %v5069 = vld [vmem:[%s5044 + $0xc0] sm:$0xff]
    %v5070 = vld [vmem:[%s5044 + $0xc8] sm:$0xff]
    %v5071 = vld [vmem:[%s5044 + $0xd0] sm:$0xff]
    %v5073 = vsel %vm718, %v5047, 0
    %v5076 = vsel %vm718, %v5050, 0
    %v5079 = vsel %vm718, %v5053, 0
    %v5082 = vsel %vm718, %v5056, 0
    %v5085 = vsel %vm718, %v5059, 0
    %v5088 = vsel %vm718, %v5062, 0
    %v5091 = vsel %vm718, %v5065, 0
    %v5094 = vsel %vm718, %v5068, 0
    %v5097 = vsel %vm718, %v5071, 0
    %5099 = vmatpush.msra.mxu0 %v663
    %5100 = vmatpush.msra.mxu0 %v662
    %5101 = vmatpush.msra.mxu0 %v661
    %5102 = vmatpush.msra.mxu0 %v660
    %5103 = vmatpush.msra.mxu0 %v659
    %5104 = vmatpush.msra.mxu0 %v658
    %5105 = vmatpush.msra.mxu0 %v657
    %5106 = vmatpush.msra.mxu0 %v656
    %5107 = vmatpush.msra.mxu0 %v655
    %5108 = vmatpush.msra.mxu0 %v654
    %5109 = vmatpush.msra.mxu0 %v653
    %5110 = vmatpush.msra.mxu0 %v652
    %5111 = vmatpush.msra.mxu0 %v651
    %5112 = vmatpush.msra.mxu0 %v650
    %5113 = vmatpush.msra.mxu0 %v649
    %5114 = vmatpush.msra.mxu0 %v648
    %5115 = vmatmul.f32.gmra.mxu0 %v5045
    %v5116 = vpop.f32.mrf.mxu0
    %v5117 = vadd.f32 0.0, %v5116
    %5118 = vmatmul.f32.gmra.mxu0 %v5048
    %v5119 = vpop.f32.mrf.mxu0
    %v5120 = vadd.f32 0.0, %v5119
    %5121 = vmatmul.f32.gmra.mxu0 %v5051
    %v5122 = vpop.f32.mrf.mxu0
    %v5123 = vadd.f32 0.0, %v5122
    %5124 = vmatmul.f32.gmra.mxu0 %v5054
    %v5125 = vpop.f32.mrf.mxu0
    %v5126 = vadd.f32 0.0, %v5125
    %5127 = vmatmul.f32.gmra.mxu0 %v5057
    %v5128 = vpop.f32.mrf.mxu0
    %v5129 = vadd.f32 0.0, %v5128
    %5130 = vmatmul.f32.gmra.mxu0 %v5060
    %v5131 = vpop.f32.mrf.mxu0
    %v5132 = vadd.f32 0.0, %v5131
    %5133 = vmatmul.f32.gmra.mxu0 %v5063
    %v5134 = vpop.f32.mrf.mxu0
    %v5135 = vadd.f32 0.0, %v5134
    %5136 = vmatmul.f32.gmra.mxu0 %v5066
    %v5137 = vpop.f32.mrf.mxu0
    %v5138 = vadd.f32 0.0, %v5137
    %5139 = vmatmul.f32.gmra.mxu0 %v5069
    %v5140 = vpop.f32.mrf.mxu0
    %v5141 = vadd.f32 0.0, %v5140
    %5142 = vdwg.mxu0
    %5143 = vmatpush.msra.mxu0 %v679
    %5144 = vmatpush.msra.mxu0 %v678
    %5145 = vmatpush.msra.mxu0 %v677
    %5146 = vmatpush.msra.mxu0 %v676
    %5147 = vmatpush.msra.mxu0 %v675
    %5148 = vmatpush.msra.mxu0 %v674
    %5149 = vmatpush.msra.mxu0 %v673
    %5150 = vmatpush.msra.mxu0 %v672
    %5151 = vmatpush.msra.mxu0 %v671
    %5152 = vmatpush.msra.mxu0 %v670
    %5153 = vmatpush.msra.mxu0 %v669
    %5154 = vmatpush.msra.mxu0 %v668
    %5155 = vmatpush.msra.mxu0 %v667
    %5156 = vmatpush.msra.mxu0 %v666
    %5157 = vmatpush.msra.mxu0 %v665
    %5158 = vmatpush.msra.mxu0 %v664
    %5159 = vmatmul.f32.gmra.mxu0 %v5046
    %v5160 = vpop.f32.mrf.mxu0
    %v5161 = vadd.f32 %v5117, %v5160
    %5162 = vmatmul.f32.gmra.mxu0 %v5049
    %v5163 = vpop.f32.mrf.mxu0
    %v5164 = vadd.f32 %v5120, %v5163
    %5165 = vmatmul.f32.gmra.mxu0 %v5052
    %v5166 = vpop.f32.mrf.mxu0
    %v5167 = vadd.f32 %v5123, %v5166
    %5168 = vmatmul.f32.gmra.mxu0 %v5055
    %v5169 = vpop.f32.mrf.mxu0
    %v5170 = vadd.f32 %v5126, %v5169
    %5171 = vmatmul.f32.gmra.mxu0 %v5058
    %v5172 = vpop.f32.mrf.mxu0
    %v5173 = vadd.f32 %v5129, %v5172
    %5174 = vmatmul.f32.gmra.mxu0 %v5061
    %v5175 = vpop.f32.mrf.mxu0
    %v5176 = vadd.f32 %v5132, %v5175
    %5177 = vmatmul.f32.gmra.mxu0 %v5064
    %v5178 = vpop.f32.mrf.mxu0
    %v5179 = vadd.f32 %v5135, %v5178
    %5180 = vmatmul.f32.gmra.mxu0 %v5067
    %v5181 = vpop.f32.mrf.mxu0
    %v5182 = vadd.f32 %v5138, %v5181
    %5183 = vmatmul.f32.gmra.mxu0 %v5070
    %v5184 = vpop.f32.mrf.mxu0
    %v5185 = vadd.f32 %v5141, %v5184
    %5186 = vdwg.mxu0
    %5187 = vmatpush.msra.mxu0 0.0
    %5188 = vmatpush.msra.mxu0 0.0
    %5189 = vmatpush.msra.mxu0 0.0
    %5190 = vmatpush.msra.mxu0 0.0
    %5191 = vmatpush.msra.mxu0 0.0
    %5192 = vmatpush.msra.mxu0 %v747
    %5193 = vmatpush.msra.mxu0 %v689
    %5194 = vmatpush.msra.mxu0 %v688
    %5195 = vmatpush.msra.mxu0 %v687
    %5196 = vmatpush.msra.mxu0 %v686
    %5197 = vmatpush.msra.mxu0 %v685
    %5198 = vmatpush.msra.mxu0 %v684
    %5199 = vmatpush.msra.mxu0 %v683
    %5200 = vmatpush.msra.mxu0 %v682
    %5201 = vmatpush.msra.mxu0 %v681
    %5202 = vmatpush.msra.mxu0 %v680
    %5203 = vmatmul.f32.gmra.mxu0 %v5073
    %v5204 = vpop.f32.mrf.mxu0
    %v5205 = vadd.f32 %v5161, %v5204
    %5206 = vmatmul.f32.gmra.mxu0 %v5076
    %v5207 = vpop.f32.mrf.mxu0
    %v5208 = vadd.f32 %v5164, %v5207
    %5209 = vmatmul.f32.gmra.mxu0 %v5079
    %v5210 = vpop.f32.mrf.mxu0
    %v5211 = vadd.f32 %v5167, %v5210
    %5212 = vmatmul.f32.gmra.mxu0 %v5082
    %v5213 = vpop.f32.mrf.mxu0
    %v5214 = vadd.f32 %v5170, %v5213
    %5215 = vmatmul.f32.gmra.mxu0 %v5085
    %v5216 = vpop.f32.mrf.mxu0
    %v5217 = vadd.f32 %v5173, %v5216
    %5218 = vmatmul.f32.gmra.mxu0 %v5088
    %v5219 = vpop.f32.mrf.mxu0
    %v5220 = vadd.f32 %v5176, %v5219
    %5221 = vmatmul.f32.gmra.mxu0 %v5091
    %v5222 = vpop.f32.mrf.mxu0
    %v5223 = vadd.f32 %v5179, %v5222
    %5224 = vmatmul.f32.gmra.mxu0 %v5094
    %v5225 = vpop.f32.mrf.mxu0
    %v5226 = vadd.f32 %v5182, %v5225
    %5227 = vmatmul.f32.gmra.mxu0 %v5097
    %v5228 = vpop.f32.mrf.mxu0
    %v5229 = vadd.f32 %v5185, %v5228
    %5230 = vdwg.mxu0
    %s5231 = scalar_lea.vmem [#allocation2], 2176
    %v5232 = vld [vmem:[%s5231] sm:$0xff]
    %v5233 = vld [vmem:[%s5231 + $0x8] sm:$0xff]
    %v5234 = vld [vmem:[%s5231 + $0x10] sm:$0xff]
    %v5235 = vld [vmem:[%s5231 + $0x18] sm:$0xff]
    %v5236 = vld [vmem:[%s5231 + $0x20] sm:$0xff]
    %v5237 = vld [vmem:[%s5231 + $0x28] sm:$0xff]
    %v5238 = vld [vmem:[%s5231 + $0x30] sm:$0xff]
    %v5239 = vld [vmem:[%s5231 + $0x38] sm:$0xff]
    %v5240 = vld [vmem:[%s5231 + $0x40] sm:$0xff]
    %v5241 = vld [vmem:[%s5231 + $0x48] sm:$0xff]
    %v5242 = vld [vmem:[%s5231 + $0x50] sm:$0xff]
    %v5243 = vld [vmem:[%s5231 + $0x58] sm:$0xff]
    %v5244 = vld [vmem:[%s5231 + $0x60] sm:$0xff]
    %v5245 = vld [vmem:[%s5231 + $0x68] sm:$0xff]
    %v5246 = vld [vmem:[%s5231 + $0x70] sm:$0xff]
    %v5247 = vld [vmem:[%s5231 + $0x78] sm:$0xff]
    %5248 = vmatpush.msra.mxu0 %v5247
    %5249 = vmatpush.msra.mxu0 %v5246
    %5250 = vmatpush.msra.mxu0 %v5245
    %5251 = vmatpush.msra.mxu0 %v5244
    %5252 = vmatpush.msra.mxu0 %v5243
    %5253 = vmatpush.msra.mxu0 %v5242
    %5254 = vmatpush.msra.mxu0 %v5241
    %5255 = vmatpush.msra.mxu0 %v5240
    %5256 = vmatpush.msra.mxu0 %v5239
    %5257 = vmatpush.msra.mxu0 %v5238
    %5258 = vmatpush.msra.mxu0 %v5237
    %5259 = vmatpush.msra.mxu0 %v5236
    %5260 = vmatpush.msra.mxu0 %v5235
    %5261 = vmatpush.msra.mxu0 %v5234
    %5262 = vmatpush.msra.mxu0 %v5233
    %5263 = vmatpush.msra.mxu0 %v5232
    %5264 = vmatmul.f32.gmra.mxu0 %v5205
    %v5265 = vpop.f32.mrf.mxu0
    %v5266 = vadd.f32 0.0, %v5265
    %5267 = vmatmul.f32.gmra.mxu0 %v5208
    %v5268 = vpop.f32.mrf.mxu0
    %v5269 = vadd.f32 0.0, %v5268
    %5270 = vmatmul.f32.gmra.mxu0 %v5211
    %v5271 = vpop.f32.mrf.mxu0
    %v5272 = vadd.f32 0.0, %v5271
    %5273 = vmatmul.f32.gmra.mxu0 %v5214
    %v5274 = vpop.f32.mrf.mxu0
    %v5275 = vadd.f32 0.0, %v5274
    %5276 = vmatmul.f32.gmra.mxu0 %v5217
    %v5277 = vpop.f32.mrf.mxu0
    %v5278 = vadd.f32 0.0, %v5277
    %5279 = vmatmul.f32.gmra.mxu0 %v5220
    %v5280 = vpop.f32.mrf.mxu0
    %v5281 = vadd.f32 0.0, %v5280
    %5282 = vmatmul.f32.gmra.mxu0 %v5223
    %v5283 = vpop.f32.mrf.mxu0
    %v5284 = vadd.f32 0.0, %v5283
    %5285 = vmatmul.f32.gmra.mxu0 %v5226
    %v5286 = vpop.f32.mrf.mxu0
    %v5287 = vadd.f32 0.0, %v5286
    %5288 = vmatmul.f32.gmra.mxu0 %v5229
    %v5289 = vpop.f32.mrf.mxu0
    %v5290 = vadd.f32 0.0, %v5289
    %5291 = vdwg.mxu0
    %v5292 = vadd.f32 %v5035, %v5266
    %v5293 = vadd.f32 %v5036, %v5269
    %v5294 = vadd.f32 %v5037, %v5272
    %v5295 = vadd.f32 %v5038, %v5275
    %v5296 = vadd.f32 %v5039, %v5278
    %v5297 = vadd.f32 %v5040, %v5281
    %v5298 = vadd.f32 %v5041, %v5284
    %v5299 = vadd.f32 %v5042, %v5287
    %v5300 = vadd.f32 %v5043, %v5290
    %s5301 = scalar_lea.vmem %s4, 3888
    %v5302 = vld [vmem:[%s5301] sm:$0xff]
    %v5303 = vld [vmem:[%s5301 + $0x8] sm:$0xff]
    %v5304 = vld [vmem:[%s5301 + $0x10] sm:$0xff]
    %v5305 = vld [vmem:[%s5301 + $0x18] sm:$0xff]
    %v5306 = vld [vmem:[%s5301 + $0x20] sm:$0xff]
    %v5307 = vld [vmem:[%s5301 + $0x28] sm:$0xff]
    %v5308 = vld [vmem:[%s5301 + $0x30] sm:$0xff]
    %v5309 = vld [vmem:[%s5301 + $0x38] sm:$0xff]
    %v5310 = vld [vmem:[%s5301 + $0x40] sm:$0xff]
    %v5311 = vld [vmem:[%s5301 + $0x48] sm:$0xff]
    %v5312 = vld [vmem:[%s5301 + $0x50] sm:$0xff]
    %v5313 = vld [vmem:[%s5301 + $0x58] sm:$0xff]
    %v5314 = vld [vmem:[%s5301 + $0x60] sm:$0xff]
    %v5315 = vld [vmem:[%s5301 + $0x68] sm:$0xff]
    %v5316 = vld [vmem:[%s5301 + $0x70] sm:$0xff]
    %v5317 = vld [vmem:[%s5301 + $0x78] sm:$0xff]
    %v5318 = vld [vmem:[%s5301 + $0x80] sm:$0xff]
    %v5319 = vld [vmem:[%s5301 + $0x88] sm:$0xff]
    %v5320 = vld [vmem:[%s5301 + $0x90] sm:$0xff]
    %v5321 = vld [vmem:[%s5301 + $0x98] sm:$0xff]
    %v5322 = vld [vmem:[%s5301 + $0xa0] sm:$0xff]
    %v5323 = vld [vmem:[%s5301 + $0xa8] sm:$0xff]
    %v5324 = vld [vmem:[%s5301 + $0xb0] sm:$0xff]
    %v5325 = vld [vmem:[%s5301 + $0xb8] sm:$0xff]
    %v5326 = vld [vmem:[%s5301 + $0xc0] sm:$0xff]
    %v5327 = vld [vmem:[%s5301 + $0xc8] sm:$0xff]
    %v5328 = vld [vmem:[%s5301 + $0xd0] sm:$0xff]
    %v5330 = vsel %vm718, %v5304, 0
    %v5333 = vsel %vm718, %v5307, 0
    %v5336 = vsel %vm718, %v5310, 0
    %v5339 = vsel %vm718, %v5313, 0
    %v5342 = vsel %vm718, %v5316, 0
    %v5345 = vsel %vm718, %v5319, 0
    %v5348 = vsel %vm718, %v5322, 0
    %v5351 = vsel %vm718, %v5325, 0
    %v5354 = vsel %vm718, %v5328, 0
    %5356 = vmatpush.msra.mxu0 %v663
    %5357 = vmatpush.msra.mxu0 %v662
    %5358 = vmatpush.msra.mxu0 %v661
    %5359 = vmatpush.msra.mxu0 %v660
    %5360 = vmatpush.msra.mxu0 %v659
    %5361 = vmatpush.msra.mxu0 %v658
    %5362 = vmatpush.msra.mxu0 %v657
    %5363 = vmatpush.msra.mxu0 %v656
    %5364 = vmatpush.msra.mxu0 %v655
    %5365 = vmatpush.msra.mxu0 %v654
    %5366 = vmatpush.msra.mxu0 %v653
    %5367 = vmatpush.msra.mxu0 %v652
    %5368 = vmatpush.msra.mxu0 %v651
    %5369 = vmatpush.msra.mxu0 %v650
    %5370 = vmatpush.msra.mxu0 %v649
    %5371 = vmatpush.msra.mxu0 %v648
    %5372 = vmatmul.f32.gmra.mxu0 %v5302
    %v5373 = vpop.f32.mrf.mxu0
    %v5374 = vadd.f32 0.0, %v5373
    %5375 = vmatmul.f32.gmra.mxu0 %v5305
    %v5376 = vpop.f32.mrf.mxu0
    %v5377 = vadd.f32 0.0, %v5376
    %5378 = vmatmul.f32.gmra.mxu0 %v5308
    %v5379 = vpop.f32.mrf.mxu0
    %v5380 = vadd.f32 0.0, %v5379
    %5381 = vmatmul.f32.gmra.mxu0 %v5311
    %v5382 = vpop.f32.mrf.mxu0
    %v5383 = vadd.f32 0.0, %v5382
    %5384 = vmatmul.f32.gmra.mxu0 %v5314
    %v5385 = vpop.f32.mrf.mxu0
    %v5386 = vadd.f32 0.0, %v5385
    %5387 = vmatmul.f32.gmra.mxu0 %v5317
    %v5388 = vpop.f32.mrf.mxu0
    %v5389 = vadd.f32 0.0, %v5388
    %5390 = vmatmul.f32.gmra.mxu0 %v5320
    %v5391 = vpop.f32.mrf.mxu0
    %v5392 = vadd.f32 0.0, %v5391
    %5393 = vmatmul.f32.gmra.mxu0 %v5323
    %v5394 = vpop.f32.mrf.mxu0
    %v5395 = vadd.f32 0.0, %v5394
    %5396 = vmatmul.f32.gmra.mxu0 %v5326
    %v5397 = vpop.f32.mrf.mxu0
    %v5398 = vadd.f32 0.0, %v5397
    %5399 = vdwg.mxu0
    %5400 = vmatpush.msra.mxu0 %v679
    %5401 = vmatpush.msra.mxu0 %v678
    %5402 = vmatpush.msra.mxu0 %v677
    %5403 = vmatpush.msra.mxu0 %v676
    %5404 = vmatpush.msra.mxu0 %v675
    %5405 = vmatpush.msra.mxu0 %v674
    %5406 = vmatpush.msra.mxu0 %v673
    %5407 = vmatpush.msra.mxu0 %v672
    %5408 = vmatpush.msra.mxu0 %v671
    %5409 = vmatpush.msra.mxu0 %v670
    %5410 = vmatpush.msra.mxu0 %v669
    %5411 = vmatpush.msra.mxu0 %v668
    %5412 = vmatpush.msra.mxu0 %v667
    %5413 = vmatpush.msra.mxu0 %v666
    %5414 = vmatpush.msra.mxu0 %v665
    %5415 = vmatpush.msra.mxu0 %v664
    %5416 = vmatmul.f32.gmra.mxu0 %v5303
    %v5417 = vpop.f32.mrf.mxu0
    %v5418 = vadd.f32 %v5374, %v5417
    %5419 = vmatmul.f32.gmra.mxu0 %v5306
    %v5420 = vpop.f32.mrf.mxu0
    %v5421 = vadd.f32 %v5377, %v5420
    %5422 = vmatmul.f32.gmra.mxu0 %v5309
    %v5423 = vpop.f32.mrf.mxu0
    %v5424 = vadd.f32 %v5380, %v5423
    %5425 = vmatmul.f32.gmra.mxu0 %v5312
    %v5426 = vpop.f32.mrf.mxu0
    %v5427 = vadd.f32 %v5383, %v5426
    %5428 = vmatmul.f32.gmra.mxu0 %v5315
    %v5429 = vpop.f32.mrf.mxu0
    %v5430 = vadd.f32 %v5386, %v5429
    %5431 = vmatmul.f32.gmra.mxu0 %v5318
    %v5432 = vpop.f32.mrf.mxu0
    %v5433 = vadd.f32 %v5389, %v5432
    %5434 = vmatmul.f32.gmra.mxu0 %v5321
    %v5435 = vpop.f32.mrf.mxu0
    %v5436 = vadd.f32 %v5392, %v5435
    %5437 = vmatmul.f32.gmra.mxu0 %v5324
    %v5438 = vpop.f32.mrf.mxu0
    %v5439 = vadd.f32 %v5395, %v5438
    %5440 = vmatmul.f32.gmra.mxu0 %v5327
    %v5441 = vpop.f32.mrf.mxu0
    %v5442 = vadd.f32 %v5398, %v5441
    %5443 = vdwg.mxu0
    %5444 = vmatpush.msra.mxu0 0.0
    %5445 = vmatpush.msra.mxu0 0.0
    %5446 = vmatpush.msra.mxu0 0.0
    %5447 = vmatpush.msra.mxu0 0.0
    %5448 = vmatpush.msra.mxu0 0.0
    %5449 = vmatpush.msra.mxu0 %v747
    %5450 = vmatpush.msra.mxu0 %v689
    %5451 = vmatpush.msra.mxu0 %v688
    %5452 = vmatpush.msra.mxu0 %v687
    %5453 = vmatpush.msra.mxu0 %v686
    %5454 = vmatpush.msra.mxu0 %v685
    %5455 = vmatpush.msra.mxu0 %v684
    %5456 = vmatpush.msra.mxu0 %v683
    %5457 = vmatpush.msra.mxu0 %v682
    %5458 = vmatpush.msra.mxu0 %v681
    %5459 = vmatpush.msra.mxu0 %v680
    %5460 = vmatmul.f32.gmra.mxu0 %v5330
    %v5461 = vpop.f32.mrf.mxu0
    %v5462 = vadd.f32 %v5418, %v5461
    %5463 = vmatmul.f32.gmra.mxu0 %v5333
    %v5464 = vpop.f32.mrf.mxu0
    %v5465 = vadd.f32 %v5421, %v5464
    %5466 = vmatmul.f32.gmra.mxu0 %v5336
    %v5467 = vpop.f32.mrf.mxu0
    %v5468 = vadd.f32 %v5424, %v5467
    %5469 = vmatmul.f32.gmra.mxu0 %v5339
    %v5470 = vpop.f32.mrf.mxu0
    %v5471 = vadd.f32 %v5427, %v5470
    %5472 = vmatmul.f32.gmra.mxu0 %v5342
    %v5473 = vpop.f32.mrf.mxu0
    %v5474 = vadd.f32 %v5430, %v5473
    %5475 = vmatmul.f32.gmra.mxu0 %v5345
    %v5476 = vpop.f32.mrf.mxu0
    %v5477 = vadd.f32 %v5433, %v5476
    %5478 = vmatmul.f32.gmra.mxu0 %v5348
    %v5479 = vpop.f32.mrf.mxu0
    %v5480 = vadd.f32 %v5436, %v5479
    %5481 = vmatmul.f32.gmra.mxu0 %v5351
    %v5482 = vpop.f32.mrf.mxu0
    %v5483 = vadd.f32 %v5439, %v5482
    %5484 = vmatmul.f32.gmra.mxu0 %v5354
    %v5485 = vpop.f32.mrf.mxu0
    %v5486 = vadd.f32 %v5442, %v5485
    %5487 = vdwg.mxu0
    %s5488 = scalar_lea.vmem [#allocation2], 2304
    %v5489 = vld [vmem:[%s5488] sm:$0xff]
    %v5490 = vld [vmem:[%s5488 + $0x8] sm:$0xff]
    %v5491 = vld [vmem:[%s5488 + $0x10] sm:$0xff]
    %v5492 = vld [vmem:[%s5488 + $0x18] sm:$0xff]
    %v5493 = vld [vmem:[%s5488 + $0x20] sm:$0xff]
    %v5494 = vld [vmem:[%s5488 + $0x28] sm:$0xff]
    %v5495 = vld [vmem:[%s5488 + $0x30] sm:$0xff]
    %v5496 = vld [vmem:[%s5488 + $0x38] sm:$0xff]
    %v5497 = vld [vmem:[%s5488 + $0x40] sm:$0xff]
    %v5498 = vld [vmem:[%s5488 + $0x48] sm:$0xff]
    %v5499 = vld [vmem:[%s5488 + $0x50] sm:$0xff]
    %v5500 = vld [vmem:[%s5488 + $0x58] sm:$0xff]
    %v5501 = vld [vmem:[%s5488 + $0x60] sm:$0xff]
    %v5502 = vld [vmem:[%s5488 + $0x68] sm:$0xff]
    %v5503 = vld [vmem:[%s5488 + $0x70] sm:$0xff]
    %v5504 = vld [vmem:[%s5488 + $0x78] sm:$0xff]
    %5505 = vmatpush.msra.mxu0 %v5504
    %5506 = vmatpush.msra.mxu0 %v5503
    %5507 = vmatpush.msra.mxu0 %v5502
    %5508 = vmatpush.msra.mxu0 %v5501
    %5509 = vmatpush.msra.mxu0 %v5500
    %5510 = vmatpush.msra.mxu0 %v5499
    %5511 = vmatpush.msra.mxu0 %v5498
    %5512 = vmatpush.msra.mxu0 %v5497
    %5513 = vmatpush.msra.mxu0 %v5496
    %5514 = vmatpush.msra.mxu0 %v5495
    %5515 = vmatpush.msra.mxu0 %v5494
    %5516 = vmatpush.msra.mxu0 %v5493
    %5517 = vmatpush.msra.mxu0 %v5492
    %5518 = vmatpush.msra.mxu0 %v5491
    %5519 = vmatpush.msra.mxu0 %v5490
    %5520 = vmatpush.msra.mxu0 %v5489
    %5521 = vmatmul.f32.gmra.mxu0 %v5462
    %v5522 = vpop.f32.mrf.mxu0
    %v5523 = vadd.f32 0.0, %v5522
    %5524 = vmatmul.f32.gmra.mxu0 %v5465
    %v5525 = vpop.f32.mrf.mxu0
    %v5526 = vadd.f32 0.0, %v5525
    %5527 = vmatmul.f32.gmra.mxu0 %v5468
    %v5528 = vpop.f32.mrf.mxu0
    %v5529 = vadd.f32 0.0, %v5528
    %5530 = vmatmul.f32.gmra.mxu0 %v5471
    %v5531 = vpop.f32.mrf.mxu0
    %v5532 = vadd.f32 0.0, %v5531
    %5533 = vmatmul.f32.gmra.mxu0 %v5474
    %v5534 = vpop.f32.mrf.mxu0
    %v5535 = vadd.f32 0.0, %v5534
    %5536 = vmatmul.f32.gmra.mxu0 %v5477
    %v5537 = vpop.f32.mrf.mxu0
    %v5538 = vadd.f32 0.0, %v5537
    %5539 = vmatmul.f32.gmra.mxu0 %v5480
    %v5540 = vpop.f32.mrf.mxu0
    %v5541 = vadd.f32 0.0, %v5540
    %5542 = vmatmul.f32.gmra.mxu0 %v5483
    %v5543 = vpop.f32.mrf.mxu0
    %v5544 = vadd.f32 0.0, %v5543
    %5545 = vmatmul.f32.gmra.mxu0 %v5486
    %v5546 = vpop.f32.mrf.mxu0
    %v5547 = vadd.f32 0.0, %v5546
    %5548 = vdwg.mxu0
    %v5549 = vadd.f32 %v5292, %v5523
    %v5550 = vadd.f32 %v5293, %v5526
    %v5551 = vadd.f32 %v5294, %v5529
    %v5552 = vadd.f32 %v5295, %v5532
    %v5553 = vadd.f32 %v5296, %v5535
    %v5554 = vadd.f32 %v5297, %v5538
    %v5555 = vadd.f32 %v5298, %v5541
    %v5556 = vadd.f32 %v5299, %v5544
    %v5557 = vadd.f32 %v5300, %v5547
    %s5558 = scalar_lea.vmem %s4, 4104
    %v5559 = vld [vmem:[%s5558] sm:$0xff]
    %v5560 = vld [vmem:[%s5558 + $0x8] sm:$0xff]
    %v5561 = vld [vmem:[%s5558 + $0x10] sm:$0xff]
    %v5562 = vld [vmem:[%s5558 + $0x18] sm:$0xff]
    %v5563 = vld [vmem:[%s5558 + $0x20] sm:$0xff]
    %v5564 = vld [vmem:[%s5558 + $0x28] sm:$0xff]
    %v5565 = vld [vmem:[%s5558 + $0x30] sm:$0xff]
    %v5566 = vld [vmem:[%s5558 + $0x38] sm:$0xff]
    %v5567 = vld [vmem:[%s5558 + $0x40] sm:$0xff]
    %v5568 = vld [vmem:[%s5558 + $0x48] sm:$0xff]
    %v5569 = vld [vmem:[%s5558 + $0x50] sm:$0xff]
    %v5570 = vld [vmem:[%s5558 + $0x58] sm:$0xff]
    %v5571 = vld [vmem:[%s5558 + $0x60] sm:$0xff]
    %v5572 = vld [vmem:[%s5558 + $0x68] sm:$0xff]
    %v5573 = vld [vmem:[%s5558 + $0x70] sm:$0xff]
    %v5574 = vld [vmem:[%s5558 + $0x78] sm:$0xff]
    %v5575 = vld [vmem:[%s5558 + $0x80] sm:$0xff]
    %v5576 = vld [vmem:[%s5558 + $0x88] sm:$0xff]
    %v5577 = vld [vmem:[%s5558 + $0x90] sm:$0xff]
    %v5578 = vld [vmem:[%s5558 + $0x98] sm:$0xff]
    %v5579 = vld [vmem:[%s5558 + $0xa0] sm:$0xff]
    %v5580 = vld [vmem:[%s5558 + $0xa8] sm:$0xff]
    %v5581 = vld [vmem:[%s5558 + $0xb0] sm:$0xff]
    %v5582 = vld [vmem:[%s5558 + $0xb8] sm:$0xff]
    %v5583 = vld [vmem:[%s5558 + $0xc0] sm:$0xff]
    %v5584 = vld [vmem:[%s5558 + $0xc8] sm:$0xff]
    %v5585 = vld [vmem:[%s5558 + $0xd0] sm:$0xff]
    %v5587 = vsel %vm718, %v5561, 0
    %v5590 = vsel %vm718, %v5564, 0
    %v5593 = vsel %vm718, %v5567, 0
    %v5596 = vsel %vm718, %v5570, 0
    %v5599 = vsel %vm718, %v5573, 0
    %v5602 = vsel %vm718, %v5576, 0
    %v5605 = vsel %vm718, %v5579, 0
    %v5608 = vsel %vm718, %v5582, 0
    %v5611 = vsel %vm718, %v5585, 0
    %5613 = vmatpush.msra.mxu0 %v663
    %5614 = vmatpush.msra.mxu0 %v662
    %5615 = vmatpush.msra.mxu0 %v661
    %5616 = vmatpush.msra.mxu0 %v660
    %5617 = vmatpush.msra.mxu0 %v659
    %5618 = vmatpush.msra.mxu0 %v658
    %5619 = vmatpush.msra.mxu0 %v657
    %5620 = vmatpush.msra.mxu0 %v656
    %5621 = vmatpush.msra.mxu0 %v655
    %5622 = vmatpush.msra.mxu0 %v654
    %5623 = vmatpush.msra.mxu0 %v653
    %5624 = vmatpush.msra.mxu0 %v652
    %5625 = vmatpush.msra.mxu0 %v651
    %5626 = vmatpush.msra.mxu0 %v650
    %5627 = vmatpush.msra.mxu0 %v649
    %5628 = vmatpush.msra.mxu0 %v648
    %5629 = vmatmul.f32.gmra.mxu0 %v5559
    %v5630 = vpop.f32.mrf.mxu0
    %v5631 = vadd.f32 0.0, %v5630
    %5632 = vmatmul.f32.gmra.mxu0 %v5562
    %v5633 = vpop.f32.mrf.mxu0
    %v5634 = vadd.f32 0.0, %v5633
    %5635 = vmatmul.f32.gmra.mxu0 %v5565
    %v5636 = vpop.f32.mrf.mxu0
    %v5637 = vadd.f32 0.0, %v5636
    %5638 = vmatmul.f32.gmra.mxu0 %v5568
    %v5639 = vpop.f32.mrf.mxu0
    %v5640 = vadd.f32 0.0, %v5639
    %5641 = vmatmul.f32.gmra.mxu0 %v5571
    %v5642 = vpop.f32.mrf.mxu0
    %v5643 = vadd.f32 0.0, %v5642
    %5644 = vmatmul.f32.gmra.mxu0 %v5574
    %v5645 = vpop.f32.mrf.mxu0
    %v5646 = vadd.f32 0.0, %v5645
    %5647 = vmatmul.f32.gmra.mxu0 %v5577
    %v5648 = vpop.f32.mrf.mxu0
    %v5649 = vadd.f32 0.0, %v5648
    %5650 = vmatmul.f32.gmra.mxu0 %v5580
    %v5651 = vpop.f32.mrf.mxu0
    %v5652 = vadd.f32 0.0, %v5651
    %5653 = vmatmul.f32.gmra.mxu0 %v5583
    %v5654 = vpop.f32.mrf.mxu0
    %v5655 = vadd.f32 0.0, %v5654
    %5656 = vdwg.mxu0
    %5657 = vmatpush.msra.mxu0 %v679
    %5658 = vmatpush.msra.mxu0 %v678
    %5659 = vmatpush.msra.mxu0 %v677
    %5660 = vmatpush.msra.mxu0 %v676
    %5661 = vmatpush.msra.mxu0 %v675
    %5662 = vmatpush.msra.mxu0 %v674
    %5663 = vmatpush.msra.mxu0 %v673
    %5664 = vmatpush.msra.mxu0 %v672
    %5665 = vmatpush.msra.mxu0 %v671
    %5666 = vmatpush.msra.mxu0 %v670
    %5667 = vmatpush.msra.mxu0 %v669
    %5668 = vmatpush.msra.mxu0 %v668
    %5669 = vmatpush.msra.mxu0 %v667
    %5670 = vmatpush.msra.mxu0 %v666
    %5671 = vmatpush.msra.mxu0 %v665
    %5672 = vmatpush.msra.mxu0 %v664
    %5673 = vmatmul.f32.gmra.mxu0 %v5560
    %v5674 = vpop.f32.mrf.mxu0
    %v5675 = vadd.f32 %v5631, %v5674
    %5676 = vmatmul.f32.gmra.mxu0 %v5563
    %v5677 = vpop.f32.mrf.mxu0
    %v5678 = vadd.f32 %v5634, %v5677
    %5679 = vmatmul.f32.gmra.mxu0 %v5566
    %v5680 = vpop.f32.mrf.mxu0
    %v5681 = vadd.f32 %v5637, %v5680
    %5682 = vmatmul.f32.gmra.mxu0 %v5569
    %v5683 = vpop.f32.mrf.mxu0
    %v5684 = vadd.f32 %v5640, %v5683
    %5685 = vmatmul.f32.gmra.mxu0 %v5572
    %v5686 = vpop.f32.mrf.mxu0
    %v5687 = vadd.f32 %v5643, %v5686
    %5688 = vmatmul.f32.gmra.mxu0 %v5575
    %v5689 = vpop.f32.mrf.mxu0
    %v5690 = vadd.f32 %v5646, %v5689
    %5691 = vmatmul.f32.gmra.mxu0 %v5578
    %v5692 = vpop.f32.mrf.mxu0
    %v5693 = vadd.f32 %v5649, %v5692
    %5694 = vmatmul.f32.gmra.mxu0 %v5581
    %v5695 = vpop.f32.mrf.mxu0
    %v5696 = vadd.f32 %v5652, %v5695
    %5697 = vmatmul.f32.gmra.mxu0 %v5584
    %v5698 = vpop.f32.mrf.mxu0
    %v5699 = vadd.f32 %v5655, %v5698
    %5700 = vdwg.mxu0
    %5701 = vmatpush.msra.mxu0 0.0
    %5702 = vmatpush.msra.mxu0 0.0
    %5703 = vmatpush.msra.mxu0 0.0
    %5704 = vmatpush.msra.mxu0 0.0
    %5705 = vmatpush.msra.mxu0 0.0
    %5706 = vmatpush.msra.mxu0 %v747
    %5707 = vmatpush.msra.mxu0 %v689
    %5708 = vmatpush.msra.mxu0 %v688
    %5709 = vmatpush.msra.mxu0 %v687
    %5710 = vmatpush.msra.mxu0 %v686
    %5711 = vmatpush.msra.mxu0 %v685
    %5712 = vmatpush.msra.mxu0 %v684
    %5713 = vmatpush.msra.mxu0 %v683
    %5714 = vmatpush.msra.mxu0 %v682
    %5715 = vmatpush.msra.mxu0 %v681
    %5716 = vmatpush.msra.mxu0 %v680
    %5717 = vmatmul.f32.gmra.mxu0 %v5587
    %v5718 = vpop.f32.mrf.mxu0
    %v5719 = vadd.f32 %v5675, %v5718
    %5720 = vmatmul.f32.gmra.mxu0 %v5590
    %v5721 = vpop.f32.mrf.mxu0
    %v5722 = vadd.f32 %v5678, %v5721
    %5723 = vmatmul.f32.gmra.mxu0 %v5593
    %v5724 = vpop.f32.mrf.mxu0
    %v5725 = vadd.f32 %v5681, %v5724
    %5726 = vmatmul.f32.gmra.mxu0 %v5596
    %v5727 = vpop.f32.mrf.mxu0
    %v5728 = vadd.f32 %v5684, %v5727
    %5729 = vmatmul.f32.gmra.mxu0 %v5599
    %v5730 = vpop.f32.mrf.mxu0
    %v5731 = vadd.f32 %v5687, %v5730
    %5732 = vmatmul.f32.gmra.mxu0 %v5602
    %v5733 = vpop.f32.mrf.mxu0
    %v5734 = vadd.f32 %v5690, %v5733
    %5735 = vmatmul.f32.gmra.mxu0 %v5605
    %v5736 = vpop.f32.mrf.mxu0
    %v5737 = vadd.f32 %v5693, %v5736
    %5738 = vmatmul.f32.gmra.mxu0 %v5608
    %v5739 = vpop.f32.mrf.mxu0
    %v5740 = vadd.f32 %v5696, %v5739
    %5741 = vmatmul.f32.gmra.mxu0 %v5611
    %v5742 = vpop.f32.mrf.mxu0
    %v5743 = vadd.f32 %v5699, %v5742
    %5744 = vdwg.mxu0
    %s5745 = scalar_lea.vmem [#allocation2], 2432
    %v5746 = vld [vmem:[%s5745] sm:$0xff]
    %v5747 = vld [vmem:[%s5745 + $0x8] sm:$0xff]
    %v5748 = vld [vmem:[%s5745 + $0x10] sm:$0xff]
    %v5749 = vld [vmem:[%s5745 + $0x18] sm:$0xff]
    %v5750 = vld [vmem:[%s5745 + $0x20] sm:$0xff]
    %v5751 = vld [vmem:[%s5745 + $0x28] sm:$0xff]
    %v5752 = vld [vmem:[%s5745 + $0x30] sm:$0xff]
    %v5753 = vld [vmem:[%s5745 + $0x38] sm:$0xff]
    %v5754 = vld [vmem:[%s5745 + $0x40] sm:$0xff]
    %v5755 = vld [vmem:[%s5745 + $0x48] sm:$0xff]
    %v5756 = vld [vmem:[%s5745 + $0x50] sm:$0xff]
    %v5757 = vld [vmem:[%s5745 + $0x58] sm:$0xff]
    %v5758 = vld [vmem:[%s5745 + $0x60] sm:$0xff]
    %v5759 = vld [vmem:[%s5745 + $0x68] sm:$0xff]
    %v5760 = vld [vmem:[%s5745 + $0x70] sm:$0xff]
    %v5761 = vld [vmem:[%s5745 + $0x78] sm:$0xff]
    %5762 = vmatpush.msra.mxu0 %v5761
    %5763 = vmatpush.msra.mxu0 %v5760
    %5764 = vmatpush.msra.mxu0 %v5759
    %5765 = vmatpush.msra.mxu0 %v5758
    %5766 = vmatpush.msra.mxu0 %v5757
    %5767 = vmatpush.msra.mxu0 %v5756
    %5768 = vmatpush.msra.mxu0 %v5755
    %5769 = vmatpush.msra.mxu0 %v5754
    %5770 = vmatpush.msra.mxu0 %v5753
    %5771 = vmatpush.msra.mxu0 %v5752
    %5772 = vmatpush.msra.mxu0 %v5751
    %5773 = vmatpush.msra.mxu0 %v5750
    %5774 = vmatpush.msra.mxu0 %v5749
    %5775 = vmatpush.msra.mxu0 %v5748
    %5776 = vmatpush.msra.mxu0 %v5747
    %5777 = vmatpush.msra.mxu0 %v5746
    %5778 = vmatmul.f32.gmra.mxu0 %v5719
    %v5779 = vpop.f32.mrf.mxu0
    %v5780 = vadd.f32 0.0, %v5779
    %5781 = vmatmul.f32.gmra.mxu0 %v5722
    %v5782 = vpop.f32.mrf.mxu0
    %v5783 = vadd.f32 0.0, %v5782
    %5784 = vmatmul.f32.gmra.mxu0 %v5725
    %v5785 = vpop.f32.mrf.mxu0
    %v5786 = vadd.f32 0.0, %v5785
    %5787 = vmatmul.f32.gmra.mxu0 %v5728
    %v5788 = vpop.f32.mrf.mxu0
    %v5789 = vadd.f32 0.0, %v5788
    %5790 = vmatmul.f32.gmra.mxu0 %v5731
    %v5791 = vpop.f32.mrf.mxu0
    %v5792 = vadd.f32 0.0, %v5791
    %5793 = vmatmul.f32.gmra.mxu0 %v5734
    %v5794 = vpop.f32.mrf.mxu0
    %v5795 = vadd.f32 0.0, %v5794
    %5796 = vmatmul.f32.gmra.mxu0 %v5737
    %v5797 = vpop.f32.mrf.mxu0
    %v5798 = vadd.f32 0.0, %v5797
    %5799 = vmatmul.f32.gmra.mxu0 %v5740
    %v5800 = vpop.f32.mrf.mxu0
    %v5801 = vadd.f32 0.0, %v5800
    %5802 = vmatmul.f32.gmra.mxu0 %v5743
    %v5803 = vpop.f32.mrf.mxu0
    %v5804 = vadd.f32 0.0, %v5803
    %5805 = vdwg.mxu0
    %v5806 = vadd.f32 %v5549, %v5780
    %v5807 = vadd.f32 %v5550, %v5783
    %v5808 = vadd.f32 %v5551, %v5786
    %v5809 = vadd.f32 %v5552, %v5789
    %v5810 = vadd.f32 %v5553, %v5792
    %v5811 = vadd.f32 %v5554, %v5795
    %v5812 = vadd.f32 %v5555, %v5798
    %v5813 = vadd.f32 %v5556, %v5801
    %v5814 = vadd.f32 %v5557, %v5804
    %s5815 = scalar_lea.vmem %s4, 4320
    %v5816 = vld [vmem:[%s5815] sm:$0xff]
    %v5817 = vld [vmem:[%s5815 + $0x8] sm:$0xff]
    %v5818 = vld [vmem:[%s5815 + $0x10] sm:$0xff]
    %v5819 = vld [vmem:[%s5815 + $0x18] sm:$0xff]
    %v5820 = vld [vmem:[%s5815 + $0x20] sm:$0xff]
    %v5821 = vld [vmem:[%s5815 + $0x28] sm:$0xff]
    %v5822 = vld [vmem:[%s5815 + $0x30] sm:$0xff]
    %v5823 = vld [vmem:[%s5815 + $0x38] sm:$0xff]
    %v5824 = vld [vmem:[%s5815 + $0x40] sm:$0xff]
    %v5825 = vld [vmem:[%s5815 + $0x48] sm:$0xff]
    %v5826 = vld [vmem:[%s5815 + $0x50] sm:$0xff]
    %v5827 = vld [vmem:[%s5815 + $0x58] sm:$0xff]
    %v5828 = vld [vmem:[%s5815 + $0x60] sm:$0xff]
    %v5829 = vld [vmem:[%s5815 + $0x68] sm:$0xff]
    %v5830 = vld [vmem:[%s5815 + $0x70] sm:$0xff]
    %v5831 = vld [vmem:[%s5815 + $0x78] sm:$0xff]
    %v5832 = vld [vmem:[%s5815 + $0x80] sm:$0xff]
    %v5833 = vld [vmem:[%s5815 + $0x88] sm:$0xff]
    %v5834 = vld [vmem:[%s5815 + $0x90] sm:$0xff]
    %v5835 = vld [vmem:[%s5815 + $0x98] sm:$0xff]
    %v5836 = vld [vmem:[%s5815 + $0xa0] sm:$0xff]
    %v5837 = vld [vmem:[%s5815 + $0xa8] sm:$0xff]
    %v5838 = vld [vmem:[%s5815 + $0xb0] sm:$0xff]
    %v5839 = vld [vmem:[%s5815 + $0xb8] sm:$0xff]
    %v5840 = vld [vmem:[%s5815 + $0xc0] sm:$0xff]
    %v5841 = vld [vmem:[%s5815 + $0xc8] sm:$0xff]
    %v5842 = vld [vmem:[%s5815 + $0xd0] sm:$0xff]
    %v5844 = vsel %vm718, %v5818, 0
    %v5847 = vsel %vm718, %v5821, 0
    %v5850 = vsel %vm718, %v5824, 0
    %v5853 = vsel %vm718, %v5827, 0
    %v5856 = vsel %vm718, %v5830, 0
    %v5859 = vsel %vm718, %v5833, 0
    %v5862 = vsel %vm718, %v5836, 0
    %v5865 = vsel %vm718, %v5839, 0
    %v5868 = vsel %vm718, %v5842, 0
    %5870 = vmatpush.msra.mxu0 %v663
    %5871 = vmatpush.msra.mxu0 %v662
    %5872 = vmatpush.msra.mxu0 %v661
    %5873 = vmatpush.msra.mxu0 %v660
    %5874 = vmatpush.msra.mxu0 %v659
    %5875 = vmatpush.msra.mxu0 %v658
    %5876 = vmatpush.msra.mxu0 %v657
    %5877 = vmatpush.msra.mxu0 %v656
    %5878 = vmatpush.msra.mxu0 %v655
    %5879 = vmatpush.msra.mxu0 %v654
    %5880 = vmatpush.msra.mxu0 %v653
    %5881 = vmatpush.msra.mxu0 %v652
    %5882 = vmatpush.msra.mxu0 %v651
    %5883 = vmatpush.msra.mxu0 %v650
    %5884 = vmatpush.msra.mxu0 %v649
    %5885 = vmatpush.msra.mxu0 %v648
    %5886 = vmatmul.f32.gmra.mxu0 %v5816
    %v5887 = vpop.f32.mrf.mxu0
    %v5888 = vadd.f32 0.0, %v5887
    %5889 = vmatmul.f32.gmra.mxu0 %v5819
    %v5890 = vpop.f32.mrf.mxu0
    %v5891 = vadd.f32 0.0, %v5890
    %5892 = vmatmul.f32.gmra.mxu0 %v5822
    %v5893 = vpop.f32.mrf.mxu0
    %v5894 = vadd.f32 0.0, %v5893
    %5895 = vmatmul.f32.gmra.mxu0 %v5825
    %v5896 = vpop.f32.mrf.mxu0
    %v5897 = vadd.f32 0.0, %v5896
    %5898 = vmatmul.f32.gmra.mxu0 %v5828
    %v5899 = vpop.f32.mrf.mxu0
    %v5900 = vadd.f32 0.0, %v5899
    %5901 = vmatmul.f32.gmra.mxu0 %v5831
    %v5902 = vpop.f32.mrf.mxu0
    %v5903 = vadd.f32 0.0, %v5902
    %5904 = vmatmul.f32.gmra.mxu0 %v5834
    %v5905 = vpop.f32.mrf.mxu0
    %v5906 = vadd.f32 0.0, %v5905
    %5907 = vmatmul.f32.gmra.mxu0 %v5837
    %v5908 = vpop.f32.mrf.mxu0
    %v5909 = vadd.f32 0.0, %v5908
    %5910 = vmatmul.f32.gmra.mxu0 %v5840
    %v5911 = vpop.f32.mrf.mxu0
    %v5912 = vadd.f32 0.0, %v5911
    %5913 = vdwg.mxu0
    %5914 = vmatpush.msra.mxu0 %v679
    %5915 = vmatpush.msra.mxu0 %v678
    %5916 = vmatpush.msra.mxu0 %v677
    %5917 = vmatpush.msra.mxu0 %v676
    %5918 = vmatpush.msra.mxu0 %v675
    %5919 = vmatpush.msra.mxu0 %v674
    %5920 = vmatpush.msra.mxu0 %v673
    %5921 = vmatpush.msra.mxu0 %v672
    %5922 = vmatpush.msra.mxu0 %v671
    %5923 = vmatpush.msra.mxu0 %v670
    %5924 = vmatpush.msra.mxu0 %v669
    %5925 = vmatpush.msra.mxu0 %v668
    %5926 = vmatpush.msra.mxu0 %v667
    %5927 = vmatpush.msra.mxu0 %v666
    %5928 = vmatpush.msra.mxu0 %v665
    %5929 = vmatpush.msra.mxu0 %v664
    %5930 = vmatmul.f32.gmra.mxu0 %v5817
    %v5931 = vpop.f32.mrf.mxu0
    %v5932 = vadd.f32 %v5888, %v5931
    %5933 = vmatmul.f32.gmra.mxu0 %v5820
    %v5934 = vpop.f32.mrf.mxu0
    %v5935 = vadd.f32 %v5891, %v5934
    %5936 = vmatmul.f32.gmra.mxu0 %v5823
    %v5937 = vpop.f32.mrf.mxu0
    %v5938 = vadd.f32 %v5894, %v5937
    %5939 = vmatmul.f32.gmra.mxu0 %v5826
    %v5940 = vpop.f32.mrf.mxu0
    %v5941 = vadd.f32 %v5897, %v5940
    %5942 = vmatmul.f32.gmra.mxu0 %v5829
    %v5943 = vpop.f32.mrf.mxu0
    %v5944 = vadd.f32 %v5900, %v5943
    %5945 = vmatmul.f32.gmra.mxu0 %v5832
    %v5946 = vpop.f32.mrf.mxu0
    %v5947 = vadd.f32 %v5903, %v5946
    %5948 = vmatmul.f32.gmra.mxu0 %v5835
    %v5949 = vpop.f32.mrf.mxu0
    %v5950 = vadd.f32 %v5906, %v5949
    %5951 = vmatmul.f32.gmra.mxu0 %v5838
    %v5952 = vpop.f32.mrf.mxu0
    %v5953 = vadd.f32 %v5909, %v5952
    %5954 = vmatmul.f32.gmra.mxu0 %v5841
    %v5955 = vpop.f32.mrf.mxu0
    %v5956 = vadd.f32 %v5912, %v5955
    %5957 = vdwg.mxu0
    %5958 = vmatpush.msra.mxu0 0.0
    %5959 = vmatpush.msra.mxu0 0.0
    %5960 = vmatpush.msra.mxu0 0.0
    %5961 = vmatpush.msra.mxu0 0.0
    %5962 = vmatpush.msra.mxu0 0.0
    %5963 = vmatpush.msra.mxu0 %v747
    %5964 = vmatpush.msra.mxu0 %v689
    %5965 = vmatpush.msra.mxu0 %v688
    %5966 = vmatpush.msra.mxu0 %v687
    %5967 = vmatpush.msra.mxu0 %v686
    %5968 = vmatpush.msra.mxu0 %v685
    %5969 = vmatpush.msra.mxu0 %v684
    %5970 = vmatpush.msra.mxu0 %v683
    %5971 = vmatpush.msra.mxu0 %v682
    %5972 = vmatpush.msra.mxu0 %v681
    %5973 = vmatpush.msra.mxu0 %v680
    %5974 = vmatmul.f32.gmra.mxu0 %v5844
    %v5975 = vpop.f32.mrf.mxu0
    %v5976 = vadd.f32 %v5932, %v5975
    %5977 = vmatmul.f32.gmra.mxu0 %v5847
    %v5978 = vpop.f32.mrf.mxu0
    %v5979 = vadd.f32 %v5935, %v5978
    %5980 = vmatmul.f32.gmra.mxu0 %v5850
    %v5981 = vpop.f32.mrf.mxu0
    %v5982 = vadd.f32 %v5938, %v5981
    %5983 = vmatmul.f32.gmra.mxu0 %v5853
    %v5984 = vpop.f32.mrf.mxu0
    %v5985 = vadd.f32 %v5941, %v5984
    %5986 = vmatmul.f32.gmra.mxu0 %v5856
    %v5987 = vpop.f32.mrf.mxu0
    %v5988 = vadd.f32 %v5944, %v5987
    %5989 = vmatmul.f32.gmra.mxu0 %v5859
    %v5990 = vpop.f32.mrf.mxu0
    %v5991 = vadd.f32 %v5947, %v5990
    %5992 = vmatmul.f32.gmra.mxu0 %v5862
    %v5993 = vpop.f32.mrf.mxu0
    %v5994 = vadd.f32 %v5950, %v5993
    %5995 = vmatmul.f32.gmra.mxu0 %v5865
    %v5996 = vpop.f32.mrf.mxu0
    %v5997 = vadd.f32 %v5953, %v5996
    %5998 = vmatmul.f32.gmra.mxu0 %v5868
    %v5999 = vpop.f32.mrf.mxu0
    %v6000 = vadd.f32 %v5956, %v5999
    %6001 = vdwg.mxu0
    %s6002 = scalar_lea.vmem [#allocation2], 2560
    %v6003 = vld [vmem:[%s6002] sm:$0xff]
    %v6004 = vld [vmem:[%s6002 + $0x8] sm:$0xff]
    %v6005 = vld [vmem:[%s6002 + $0x10] sm:$0xff]
    %v6006 = vld [vmem:[%s6002 + $0x18] sm:$0xff]
    %v6007 = vld [vmem:[%s6002 + $0x20] sm:$0xff]
    %v6008 = vld [vmem:[%s6002 + $0x28] sm:$0xff]
    %v6009 = vld [vmem:[%s6002 + $0x30] sm:$0xff]
    %v6010 = vld [vmem:[%s6002 + $0x38] sm:$0xff]
    %v6011 = vld [vmem:[%s6002 + $0x40] sm:$0xff]
    %v6012 = vld [vmem:[%s6002 + $0x48] sm:$0xff]
    %v6013 = vld [vmem:[%s6002 + $0x50] sm:$0xff]
    %v6014 = vld [vmem:[%s6002 + $0x58] sm:$0xff]
    %v6015 = vld [vmem:[%s6002 + $0x60] sm:$0xff]
    %v6016 = vld [vmem:[%s6002 + $0x68] sm:$0xff]
    %v6017 = vld [vmem:[%s6002 + $0x70] sm:$0xff]
    %v6018 = vld [vmem:[%s6002 + $0x78] sm:$0xff]
    %6019 = vmatpush.msra.mxu0 %v6018
    %6020 = vmatpush.msra.mxu0 %v6017
    %6021 = vmatpush.msra.mxu0 %v6016
    %6022 = vmatpush.msra.mxu0 %v6015
    %6023 = vmatpush.msra.mxu0 %v6014
    %6024 = vmatpush.msra.mxu0 %v6013
    %6025 = vmatpush.msra.mxu0 %v6012
    %6026 = vmatpush.msra.mxu0 %v6011
    %6027 = vmatpush.msra.mxu0 %v6010
    %6028 = vmatpush.msra.mxu0 %v6009
    %6029 = vmatpush.msra.mxu0 %v6008
    %6030 = vmatpush.msra.mxu0 %v6007
    %6031 = vmatpush.msra.mxu0 %v6006
    %6032 = vmatpush.msra.mxu0 %v6005
    %6033 = vmatpush.msra.mxu0 %v6004
    %6034 = vmatpush.msra.mxu0 %v6003
    %6035 = vmatmul.f32.gmra.mxu0 %v5976
    %v6036 = vpop.f32.mrf.mxu0
    %v6037 = vadd.f32 0.0, %v6036
    %6038 = vmatmul.f32.gmra.mxu0 %v5979
    %v6039 = vpop.f32.mrf.mxu0
    %v6040 = vadd.f32 0.0, %v6039
    %6041 = vmatmul.f32.gmra.mxu0 %v5982
    %v6042 = vpop.f32.mrf.mxu0
    %v6043 = vadd.f32 0.0, %v6042
    %6044 = vmatmul.f32.gmra.mxu0 %v5985
    %v6045 = vpop.f32.mrf.mxu0
    %v6046 = vadd.f32 0.0, %v6045
    %6047 = vmatmul.f32.gmra.mxu0 %v5988
    %v6048 = vpop.f32.mrf.mxu0
    %v6049 = vadd.f32 0.0, %v6048
    %6050 = vmatmul.f32.gmra.mxu0 %v5991
    %v6051 = vpop.f32.mrf.mxu0
    %v6052 = vadd.f32 0.0, %v6051
    %6053 = vmatmul.f32.gmra.mxu0 %v5994
    %v6054 = vpop.f32.mrf.mxu0
    %v6055 = vadd.f32 0.0, %v6054
    %6056 = vmatmul.f32.gmra.mxu0 %v5997
    %v6057 = vpop.f32.mrf.mxu0
    %v6058 = vadd.f32 0.0, %v6057
    %6059 = vmatmul.f32.gmra.mxu0 %v6000
    %v6060 = vpop.f32.mrf.mxu0
    %v6061 = vadd.f32 0.0, %v6060
    %6062 = vdwg.mxu0
    %v6063 = vadd.f32 %v5806, %v6037
    %v6064 = vadd.f32 %v5807, %v6040
    %v6065 = vadd.f32 %v5808, %v6043
    %v6066 = vadd.f32 %v5809, %v6046
    %v6067 = vadd.f32 %v5810, %v6049
    %v6068 = vadd.f32 %v5811, %v6052
    %v6069 = vadd.f32 %v5812, %v6055
    %v6070 = vadd.f32 %v5813, %v6058
    %v6071 = vadd.f32 %v5814, %v6061
    %s6072 = scalar_lea.vmem %s4, 4536
    %v6073 = vld [vmem:[%s6072] sm:$0xff]
    %v6074 = vld [vmem:[%s6072 + $0x8] sm:$0xff]
    %v6075 = vld [vmem:[%s6072 + $0x10] sm:$0xff]
    %v6076 = vld [vmem:[%s6072 + $0x18] sm:$0xff]
    %v6077 = vld [vmem:[%s6072 + $0x20] sm:$0xff]
    %v6078 = vld [vmem:[%s6072 + $0x28] sm:$0xff]
    %v6079 = vld [vmem:[%s6072 + $0x30] sm:$0xff]
    %v6080 = vld [vmem:[%s6072 + $0x38] sm:$0xff]
    %v6081 = vld [vmem:[%s6072 + $0x40] sm:$0xff]
    %v6082 = vld [vmem:[%s6072 + $0x48] sm:$0xff]
    %v6083 = vld [vmem:[%s6072 + $0x50] sm:$0xff]
    %v6084 = vld [vmem:[%s6072 + $0x58] sm:$0xff]
    %v6085 = vld [vmem:[%s6072 + $0x60] sm:$0xff]
    %v6086 = vld [vmem:[%s6072 + $0x68] sm:$0xff]
    %v6087 = vld [vmem:[%s6072 + $0x70] sm:$0xff]
    %v6088 = vld [vmem:[%s6072 + $0x78] sm:$0xff]
    %v6089 = vld [vmem:[%s6072 + $0x80] sm:$0xff]
    %v6090 = vld [vmem:[%s6072 + $0x88] sm:$0xff]
    %v6091 = vld [vmem:[%s6072 + $0x90] sm:$0xff]
    %v6092 = vld [vmem:[%s6072 + $0x98] sm:$0xff]
    %v6093 = vld [vmem:[%s6072 + $0xa0] sm:$0xff]
    %v6094 = vld [vmem:[%s6072 + $0xa8] sm:$0xff]
    %v6095 = vld [vmem:[%s6072 + $0xb0] sm:$0xff]
    %v6096 = vld [vmem:[%s6072 + $0xb8] sm:$0xff]
    %v6097 = vld [vmem:[%s6072 + $0xc0] sm:$0xff]
    %v6098 = vld [vmem:[%s6072 + $0xc8] sm:$0xff]
    %v6099 = vld [vmem:[%s6072 + $0xd0] sm:$0xff]
    %v6101 = vsel %vm718, %v6075, 0
    %v6104 = vsel %vm718, %v6078, 0
    %v6107 = vsel %vm718, %v6081, 0
    %v6110 = vsel %vm718, %v6084, 0
    %v6113 = vsel %vm718, %v6087, 0
    %v6116 = vsel %vm718, %v6090, 0
    %v6119 = vsel %vm718, %v6093, 0
    %v6122 = vsel %vm718, %v6096, 0
    %v6125 = vsel %vm718, %v6099, 0
    %6127 = vmatpush.msra.mxu0 %v663
    %6128 = vmatpush.msra.mxu0 %v662
    %6129 = vmatpush.msra.mxu0 %v661
    %6130 = vmatpush.msra.mxu0 %v660
    %6131 = vmatpush.msra.mxu0 %v659
    %6132 = vmatpush.msra.mxu0 %v658
    %6133 = vmatpush.msra.mxu0 %v657
    %6134 = vmatpush.msra.mxu0 %v656
    %6135 = vmatpush.msra.mxu0 %v655
    %6136 = vmatpush.msra.mxu0 %v654
    %6137 = vmatpush.msra.mxu0 %v653
    %6138 = vmatpush.msra.mxu0 %v652
    %6139 = vmatpush.msra.mxu0 %v651
    %6140 = vmatpush.msra.mxu0 %v650
    %6141 = vmatpush.msra.mxu0 %v649
    %6142 = vmatpush.msra.mxu0 %v648
    %6143 = vmatmul.f32.gmra.mxu0 %v6073
    %v6144 = vpop.f32.mrf.mxu0
    %v6145 = vadd.f32 0.0, %v6144
    %6146 = vmatmul.f32.gmra.mxu0 %v6076
    %v6147 = vpop.f32.mrf.mxu0
    %v6148 = vadd.f32 0.0, %v6147
    %6149 = vmatmul.f32.gmra.mxu0 %v6079
    %v6150 = vpop.f32.mrf.mxu0
    %v6151 = vadd.f32 0.0, %v6150
    %6152 = vmatmul.f32.gmra.mxu0 %v6082
    %v6153 = vpop.f32.mrf.mxu0
    %v6154 = vadd.f32 0.0, %v6153
    %6155 = vmatmul.f32.gmra.mxu0 %v6085
    %v6156 = vpop.f32.mrf.mxu0
    %v6157 = vadd.f32 0.0, %v6156
    %6158 = vmatmul.f32.gmra.mxu0 %v6088
    %v6159 = vpop.f32.mrf.mxu0
    %v6160 = vadd.f32 0.0, %v6159
    %6161 = vmatmul.f32.gmra.mxu0 %v6091
    %v6162 = vpop.f32.mrf.mxu0
    %v6163 = vadd.f32 0.0, %v6162
    %6164 = vmatmul.f32.gmra.mxu0 %v6094
    %v6165 = vpop.f32.mrf.mxu0
    %v6166 = vadd.f32 0.0, %v6165
    %6167 = vmatmul.f32.gmra.mxu0 %v6097
    %v6168 = vpop.f32.mrf.mxu0
    %v6169 = vadd.f32 0.0, %v6168
    %6170 = vdwg.mxu0
    %6171 = vmatpush.msra.mxu0 %v679
    %6172 = vmatpush.msra.mxu0 %v678
    %6173 = vmatpush.msra.mxu0 %v677
    %6174 = vmatpush.msra.mxu0 %v676
    %6175 = vmatpush.msra.mxu0 %v675
    %6176 = vmatpush.msra.mxu0 %v674
    %6177 = vmatpush.msra.mxu0 %v673
    %6178 = vmatpush.msra.mxu0 %v672
    %6179 = vmatpush.msra.mxu0 %v671
    %6180 = vmatpush.msra.mxu0 %v670
    %6181 = vmatpush.msra.mxu0 %v669
    %6182 = vmatpush.msra.mxu0 %v668
    %6183 = vmatpush.msra.mxu0 %v667
    %6184 = vmatpush.msra.mxu0 %v666
    %6185 = vmatpush.msra.mxu0 %v665
    %6186 = vmatpush.msra.mxu0 %v664
    %6187 = vmatmul.f32.gmra.mxu0 %v6074
    %v6188 = vpop.f32.mrf.mxu0
    %v6189 = vadd.f32 %v6145, %v6188
    %6190 = vmatmul.f32.gmra.mxu0 %v6077
    %v6191 = vpop.f32.mrf.mxu0
    %v6192 = vadd.f32 %v6148, %v6191
    %6193 = vmatmul.f32.gmra.mxu0 %v6080
    %v6194 = vpop.f32.mrf.mxu0
    %v6195 = vadd.f32 %v6151, %v6194
    %6196 = vmatmul.f32.gmra.mxu0 %v6083
    %v6197 = vpop.f32.mrf.mxu0
    %v6198 = vadd.f32 %v6154, %v6197
    %6199 = vmatmul.f32.gmra.mxu0 %v6086
    %v6200 = vpop.f32.mrf.mxu0
    %v6201 = vadd.f32 %v6157, %v6200
    %6202 = vmatmul.f32.gmra.mxu0 %v6089
    %v6203 = vpop.f32.mrf.mxu0
    %v6204 = vadd.f32 %v6160, %v6203
    %6205 = vmatmul.f32.gmra.mxu0 %v6092
    %v6206 = vpop.f32.mrf.mxu0
    %v6207 = vadd.f32 %v6163, %v6206
    %6208 = vmatmul.f32.gmra.mxu0 %v6095
    %v6209 = vpop.f32.mrf.mxu0
    %v6210 = vadd.f32 %v6166, %v6209
    %6211 = vmatmul.f32.gmra.mxu0 %v6098
    %v6212 = vpop.f32.mrf.mxu0
    %v6213 = vadd.f32 %v6169, %v6212
    %6214 = vdwg.mxu0
    %6215 = vmatpush.msra.mxu0 0.0
    %6216 = vmatpush.msra.mxu0 0.0
    %6217 = vmatpush.msra.mxu0 0.0
    %6218 = vmatpush.msra.mxu0 0.0
    %6219 = vmatpush.msra.mxu0 0.0
    %6220 = vmatpush.msra.mxu0 %v747
    %6221 = vmatpush.msra.mxu0 %v689
    %6222 = vmatpush.msra.mxu0 %v688
    %6223 = vmatpush.msra.mxu0 %v687
    %6224 = vmatpush.msra.mxu0 %v686
    %6225 = vmatpush.msra.mxu0 %v685
    %6226 = vmatpush.msra.mxu0 %v684
    %6227 = vmatpush.msra.mxu0 %v683
    %6228 = vmatpush.msra.mxu0 %v682
    %6229 = vmatpush.msra.mxu0 %v681
    %6230 = vmatpush.msra.mxu0 %v680
    %6231 = vmatmul.f32.gmra.mxu0 %v6101
    %v6232 = vpop.f32.mrf.mxu0
    %v6233 = vadd.f32 %v6189, %v6232
    %6234 = vmatmul.f32.gmra.mxu0 %v6104
    %v6235 = vpop.f32.mrf.mxu0
    %v6236 = vadd.f32 %v6192, %v6235
    %6237 = vmatmul.f32.gmra.mxu0 %v6107
    %v6238 = vpop.f32.mrf.mxu0
    %v6239 = vadd.f32 %v6195, %v6238
    %6240 = vmatmul.f32.gmra.mxu0 %v6110
    %v6241 = vpop.f32.mrf.mxu0
    %v6242 = vadd.f32 %v6198, %v6241
    %6243 = vmatmul.f32.gmra.mxu0 %v6113
    %v6244 = vpop.f32.mrf.mxu0
    %v6245 = vadd.f32 %v6201, %v6244
    %6246 = vmatmul.f32.gmra.mxu0 %v6116
    %v6247 = vpop.f32.mrf.mxu0
    %v6248 = vadd.f32 %v6204, %v6247
    %6249 = vmatmul.f32.gmra.mxu0 %v6119
    %v6250 = vpop.f32.mrf.mxu0
    %v6251 = vadd.f32 %v6207, %v6250
    %6252 = vmatmul.f32.gmra.mxu0 %v6122
    %v6253 = vpop.f32.mrf.mxu0
    %v6254 = vadd.f32 %v6210, %v6253
    %6255 = vmatmul.f32.gmra.mxu0 %v6125
    %v6256 = vpop.f32.mrf.mxu0
    %v6257 = vadd.f32 %v6213, %v6256
    %6258 = vdwg.mxu0
    %s6259 = scalar_lea.vmem [#allocation2], 2688
    %v6260 = vld [vmem:[%s6259] sm:$0xff]
    %v6261 = vld [vmem:[%s6259 + $0x8] sm:$0xff]
    %v6262 = vld [vmem:[%s6259 + $0x10] sm:$0xff]
    %v6263 = vld [vmem:[%s6259 + $0x18] sm:$0xff]
    %v6264 = vld [vmem:[%s6259 + $0x20] sm:$0xff]
    %v6265 = vld [vmem:[%s6259 + $0x28] sm:$0xff]
    %v6266 = vld [vmem:[%s6259 + $0x30] sm:$0xff]
    %v6267 = vld [vmem:[%s6259 + $0x38] sm:$0xff]
    %v6268 = vld [vmem:[%s6259 + $0x40] sm:$0xff]
    %v6269 = vld [vmem:[%s6259 + $0x48] sm:$0xff]
    %v6270 = vld [vmem:[%s6259 + $0x50] sm:$0xff]
    %v6271 = vld [vmem:[%s6259 + $0x58] sm:$0xff]
    %v6272 = vld [vmem:[%s6259 + $0x60] sm:$0xff]
    %v6273 = vld [vmem:[%s6259 + $0x68] sm:$0xff]
    %v6274 = vld [vmem:[%s6259 + $0x70] sm:$0xff]
    %v6275 = vld [vmem:[%s6259 + $0x78] sm:$0xff]
    %6276 = vmatpush.msra.mxu0 %v6275
    %6277 = vmatpush.msra.mxu0 %v6274
    %6278 = vmatpush.msra.mxu0 %v6273
    %6279 = vmatpush.msra.mxu0 %v6272
    %6280 = vmatpush.msra.mxu0 %v6271
    %6281 = vmatpush.msra.mxu0 %v6270
    %6282 = vmatpush.msra.mxu0 %v6269
    %6283 = vmatpush.msra.mxu0 %v6268
    %6284 = vmatpush.msra.mxu0 %v6267
    %6285 = vmatpush.msra.mxu0 %v6266
    %6286 = vmatpush.msra.mxu0 %v6265
    %6287 = vmatpush.msra.mxu0 %v6264
    %6288 = vmatpush.msra.mxu0 %v6263
    %6289 = vmatpush.msra.mxu0 %v6262
    %6290 = vmatpush.msra.mxu0 %v6261
    %6291 = vmatpush.msra.mxu0 %v6260
    %6292 = vmatmul.f32.gmra.mxu0 %v6233
    %v6293 = vpop.f32.mrf.mxu0
    %v6294 = vadd.f32 0.0, %v6293
    %6295 = vmatmul.f32.gmra.mxu0 %v6236
    %v6296 = vpop.f32.mrf.mxu0
    %v6297 = vadd.f32 0.0, %v6296
    %6298 = vmatmul.f32.gmra.mxu0 %v6239
    %v6299 = vpop.f32.mrf.mxu0
    %v6300 = vadd.f32 0.0, %v6299
    %6301 = vmatmul.f32.gmra.mxu0 %v6242
    %v6302 = vpop.f32.mrf.mxu0
    %v6303 = vadd.f32 0.0, %v6302
    %6304 = vmatmul.f32.gmra.mxu0 %v6245
    %v6305 = vpop.f32.mrf.mxu0
    %v6306 = vadd.f32 0.0, %v6305
    %6307 = vmatmul.f32.gmra.mxu0 %v6248
    %v6308 = vpop.f32.mrf.mxu0
    %v6309 = vadd.f32 0.0, %v6308
    %6310 = vmatmul.f32.gmra.mxu0 %v6251
    %v6311 = vpop.f32.mrf.mxu0
    %v6312 = vadd.f32 0.0, %v6311
    %6313 = vmatmul.f32.gmra.mxu0 %v6254
    %v6314 = vpop.f32.mrf.mxu0
    %v6315 = vadd.f32 0.0, %v6314
    %6316 = vmatmul.f32.gmra.mxu0 %v6257
    %v6317 = vpop.f32.mrf.mxu0
    %v6318 = vadd.f32 0.0, %v6317
    %6319 = vdwg.mxu0
    %v6320 = vadd.f32 %v6063, %v6294
    %v6321 = vadd.f32 %v6064, %v6297
    %v6322 = vadd.f32 %v6065, %v6300
    %v6323 = vadd.f32 %v6066, %v6303
    %v6324 = vadd.f32 %v6067, %v6306
    %v6325 = vadd.f32 %v6068, %v6309
    %v6326 = vadd.f32 %v6069, %v6312
    %v6327 = vadd.f32 %v6070, %v6315
    %v6328 = vadd.f32 %v6071, %v6318
    %s6329 = scalar_lea.vmem %s4, 4752
    %v6330 = vld [vmem:[%s6329] sm:$0xff]
    %v6331 = vld [vmem:[%s6329 + $0x8] sm:$0xff]
    %v6332 = vld [vmem:[%s6329 + $0x10] sm:$0xff]
    %v6333 = vld [vmem:[%s6329 + $0x18] sm:$0xff]
    %v6334 = vld [vmem:[%s6329 + $0x20] sm:$0xff]
    %v6335 = vld [vmem:[%s6329 + $0x28] sm:$0xff]
    %v6336 = vld [vmem:[%s6329 + $0x30] sm:$0xff]
    %v6337 = vld [vmem:[%s6329 + $0x38] sm:$0xff]
    %v6338 = vld [vmem:[%s6329 + $0x40] sm:$0xff]
    %v6339 = vld [vmem:[%s6329 + $0x48] sm:$0xff]
    %v6340 = vld [vmem:[%s6329 + $0x50] sm:$0xff]
    %v6341 = vld [vmem:[%s6329 + $0x58] sm:$0xff]
    %v6342 = vld [vmem:[%s6329 + $0x60] sm:$0xff]
    %v6343 = vld [vmem:[%s6329 + $0x68] sm:$0xff]
    %v6344 = vld [vmem:[%s6329 + $0x70] sm:$0xff]
    %v6345 = vld [vmem:[%s6329 + $0x78] sm:$0xff]
    %v6346 = vld [vmem:[%s6329 + $0x80] sm:$0xff]
    %v6347 = vld [vmem:[%s6329 + $0x88] sm:$0xff]
    %v6348 = vld [vmem:[%s6329 + $0x90] sm:$0xff]
    %v6349 = vld [vmem:[%s6329 + $0x98] sm:$0xff]
    %v6350 = vld [vmem:[%s6329 + $0xa0] sm:$0xff]
    %v6351 = vld [vmem:[%s6329 + $0xa8] sm:$0xff]
    %v6352 = vld [vmem:[%s6329 + $0xb0] sm:$0xff]
    %v6353 = vld [vmem:[%s6329 + $0xb8] sm:$0xff]
    %v6354 = vld [vmem:[%s6329 + $0xc0] sm:$0xff]
    %v6355 = vld [vmem:[%s6329 + $0xc8] sm:$0xff]
    %v6356 = vld [vmem:[%s6329 + $0xd0] sm:$0xff]
    %v6358 = vsel %vm718, %v6332, 0
    %v6361 = vsel %vm718, %v6335, 0
    %v6364 = vsel %vm718, %v6338, 0
    %v6367 = vsel %vm718, %v6341, 0
    %v6370 = vsel %vm718, %v6344, 0
    %v6373 = vsel %vm718, %v6347, 0
    %v6376 = vsel %vm718, %v6350, 0
    %v6379 = vsel %vm718, %v6353, 0
    %v6382 = vsel %vm718, %v6356, 0
    %6384 = vmatpush.msra.mxu0 %v663
    %6385 = vmatpush.msra.mxu0 %v662
    %6386 = vmatpush.msra.mxu0 %v661
    %6387 = vmatpush.msra.mxu0 %v660
    %6388 = vmatpush.msra.mxu0 %v659
    %6389 = vmatpush.msra.mxu0 %v658
    %6390 = vmatpush.msra.mxu0 %v657
    %6391 = vmatpush.msra.mxu0 %v656
    %6392 = vmatpush.msra.mxu0 %v655
    %6393 = vmatpush.msra.mxu0 %v654
    %6394 = vmatpush.msra.mxu0 %v653
    %6395 = vmatpush.msra.mxu0 %v652
    %6396 = vmatpush.msra.mxu0 %v651
    %6397 = vmatpush.msra.mxu0 %v650
    %6398 = vmatpush.msra.mxu0 %v649
    %6399 = vmatpush.msra.mxu0 %v648
    %6400 = vmatmul.f32.gmra.mxu0 %v6330
    %v6401 = vpop.f32.mrf.mxu0
    %v6402 = vadd.f32 0.0, %v6401
    %6403 = vmatmul.f32.gmra.mxu0 %v6333
    %v6404 = vpop.f32.mrf.mxu0
    %v6405 = vadd.f32 0.0, %v6404
    %6406 = vmatmul.f32.gmra.mxu0 %v6336
    %v6407 = vpop.f32.mrf.mxu0
    %v6408 = vadd.f32 0.0, %v6407
    %6409 = vmatmul.f32.gmra.mxu0 %v6339
    %v6410 = vpop.f32.mrf.mxu0
    %v6411 = vadd.f32 0.0, %v6410
    %6412 = vmatmul.f32.gmra.mxu0 %v6342
    %v6413 = vpop.f32.mrf.mxu0
    %v6414 = vadd.f32 0.0, %v6413
    %6415 = vmatmul.f32.gmra.mxu0 %v6345
    %v6416 = vpop.f32.mrf.mxu0
    %v6417 = vadd.f32 0.0, %v6416
    %6418 = vmatmul.f32.gmra.mxu0 %v6348
    %v6419 = vpop.f32.mrf.mxu0
    %v6420 = vadd.f32 0.0, %v6419
    %6421 = vmatmul.f32.gmra.mxu0 %v6351
    %v6422 = vpop.f32.mrf.mxu0
    %v6423 = vadd.f32 0.0, %v6422
    %6424 = vmatmul.f32.gmra.mxu0 %v6354
    %v6425 = vpop.f32.mrf.mxu0
    %v6426 = vadd.f32 0.0, %v6425
    %6427 = vdwg.mxu0
    %6428 = vmatpush.msra.mxu0 %v679
    %6429 = vmatpush.msra.mxu0 %v678
    %6430 = vmatpush.msra.mxu0 %v677
    %6431 = vmatpush.msra.mxu0 %v676
    %6432 = vmatpush.msra.mxu0 %v675
    %6433 = vmatpush.msra.mxu0 %v674
    %6434 = vmatpush.msra.mxu0 %v673
    %6435 = vmatpush.msra.mxu0 %v672
    %6436 = vmatpush.msra.mxu0 %v671
    %6437 = vmatpush.msra.mxu0 %v670
    %6438 = vmatpush.msra.mxu0 %v669
    %6439 = vmatpush.msra.mxu0 %v668
    %6440 = vmatpush.msra.mxu0 %v667
    %6441 = vmatpush.msra.mxu0 %v666
    %6442 = vmatpush.msra.mxu0 %v665
    %6443 = vmatpush.msra.mxu0 %v664
    %6444 = vmatmul.f32.gmra.mxu0 %v6331
    %v6445 = vpop.f32.mrf.mxu0
    %v6446 = vadd.f32 %v6402, %v6445
    %6447 = vmatmul.f32.gmra.mxu0 %v6334
    %v6448 = vpop.f32.mrf.mxu0
    %v6449 = vadd.f32 %v6405, %v6448
    %6450 = vmatmul.f32.gmra.mxu0 %v6337
    %v6451 = vpop.f32.mrf.mxu0
    %v6452 = vadd.f32 %v6408, %v6451
    %6453 = vmatmul.f32.gmra.mxu0 %v6340
    %v6454 = vpop.f32.mrf.mxu0
    %v6455 = vadd.f32 %v6411, %v6454
    %6456 = vmatmul.f32.gmra.mxu0 %v6343
    %v6457 = vpop.f32.mrf.mxu0
    %v6458 = vadd.f32 %v6414, %v6457
    %6459 = vmatmul.f32.gmra.mxu0 %v6346
    %v6460 = vpop.f32.mrf.mxu0
    %v6461 = vadd.f32 %v6417, %v6460
    %6462 = vmatmul.f32.gmra.mxu0 %v6349
    %v6463 = vpop.f32.mrf.mxu0
    %v6464 = vadd.f32 %v6420, %v6463
    %6465 = vmatmul.f32.gmra.mxu0 %v6352
    %v6466 = vpop.f32.mrf.mxu0
    %v6467 = vadd.f32 %v6423, %v6466
    %6468 = vmatmul.f32.gmra.mxu0 %v6355
    %v6469 = vpop.f32.mrf.mxu0
    %v6470 = vadd.f32 %v6426, %v6469
    %6471 = vdwg.mxu0
    %6472 = vmatpush.msra.mxu0 0.0
    %6473 = vmatpush.msra.mxu0 0.0
    %6474 = vmatpush.msra.mxu0 0.0
    %6475 = vmatpush.msra.mxu0 0.0
    %6476 = vmatpush.msra.mxu0 0.0
    %6477 = vmatpush.msra.mxu0 %v747
    %6478 = vmatpush.msra.mxu0 %v689
    %6479 = vmatpush.msra.mxu0 %v688
    %6480 = vmatpush.msra.mxu0 %v687
    %6481 = vmatpush.msra.mxu0 %v686
    %6482 = vmatpush.msra.mxu0 %v685
    %6483 = vmatpush.msra.mxu0 %v684
    %6484 = vmatpush.msra.mxu0 %v683
    %6485 = vmatpush.msra.mxu0 %v682
    %6486 = vmatpush.msra.mxu0 %v681
    %6487 = vmatpush.msra.mxu0 %v680
    %6488 = vmatmul.f32.gmra.mxu0 %v6358
    %v6489 = vpop.f32.mrf.mxu0
    %v6490 = vadd.f32 %v6446, %v6489
    %6491 = vmatmul.f32.gmra.mxu0 %v6361
    %v6492 = vpop.f32.mrf.mxu0
    %v6493 = vadd.f32 %v6449, %v6492
    %6494 = vmatmul.f32.gmra.mxu0 %v6364
    %v6495 = vpop.f32.mrf.mxu0
    %v6496 = vadd.f32 %v6452, %v6495
    %6497 = vmatmul.f32.gmra.mxu0 %v6367
    %v6498 = vpop.f32.mrf.mxu0
    %v6499 = vadd.f32 %v6455, %v6498
    %6500 = vmatmul.f32.gmra.mxu0 %v6370
    %v6501 = vpop.f32.mrf.mxu0
    %v6502 = vadd.f32 %v6458, %v6501
    %6503 = vmatmul.f32.gmra.mxu0 %v6373
    %v6504 = vpop.f32.mrf.mxu0
    %v6505 = vadd.f32 %v6461, %v6504
    %6506 = vmatmul.f32.gmra.mxu0 %v6376
    %v6507 = vpop.f32.mrf.mxu0
    %v6508 = vadd.f32 %v6464, %v6507
    %6509 = vmatmul.f32.gmra.mxu0 %v6379
    %v6510 = vpop.f32.mrf.mxu0
    %v6511 = vadd.f32 %v6467, %v6510
    %6512 = vmatmul.f32.gmra.mxu0 %v6382
    %v6513 = vpop.f32.mrf.mxu0
    %v6514 = vadd.f32 %v6470, %v6513
    %6515 = vdwg.mxu0
    %s6516 = scalar_lea.vmem [#allocation2], 2816
    %v6517 = vld [vmem:[%s6516] sm:$0xff]
    %v6518 = vld [vmem:[%s6516 + $0x8] sm:$0xff]
    %v6519 = vld [vmem:[%s6516 + $0x10] sm:$0xff]
    %v6520 = vld [vmem:[%s6516 + $0x18] sm:$0xff]
    %v6521 = vld [vmem:[%s6516 + $0x20] sm:$0xff]
    %v6522 = vld [vmem:[%s6516 + $0x28] sm:$0xff]
    %v6523 = vld [vmem:[%s6516 + $0x30] sm:$0xff]
    %v6524 = vld [vmem:[%s6516 + $0x38] sm:$0xff]
    %v6525 = vld [vmem:[%s6516 + $0x40] sm:$0xff]
    %v6526 = vld [vmem:[%s6516 + $0x48] sm:$0xff]
    %v6527 = vld [vmem:[%s6516 + $0x50] sm:$0xff]
    %v6528 = vld [vmem:[%s6516 + $0x58] sm:$0xff]
    %v6529 = vld [vmem:[%s6516 + $0x60] sm:$0xff]
    %v6530 = vld [vmem:[%s6516 + $0x68] sm:$0xff]
    %v6531 = vld [vmem:[%s6516 + $0x70] sm:$0xff]
    %v6532 = vld [vmem:[%s6516 + $0x78] sm:$0xff]
    %6533 = vmatpush.msra.mxu0 %v6532
    %6534 = vmatpush.msra.mxu0 %v6531
    %6535 = vmatpush.msra.mxu0 %v6530
    %6536 = vmatpush.msra.mxu0 %v6529
    %6537 = vmatpush.msra.mxu0 %v6528
    %6538 = vmatpush.msra.mxu0 %v6527
    %6539 = vmatpush.msra.mxu0 %v6526
    %6540 = vmatpush.msra.mxu0 %v6525
    %6541 = vmatpush.msra.mxu0 %v6524
    %6542 = vmatpush.msra.mxu0 %v6523
    %6543 = vmatpush.msra.mxu0 %v6522
    %6544 = vmatpush.msra.mxu0 %v6521
    %6545 = vmatpush.msra.mxu0 %v6520
    %6546 = vmatpush.msra.mxu0 %v6519
    %6547 = vmatpush.msra.mxu0 %v6518
    %6548 = vmatpush.msra.mxu0 %v6517
    %6549 = vmatmul.f32.gmra.mxu0 %v6490
    %v6550 = vpop.f32.mrf.mxu0
    %v6551 = vadd.f32 0.0, %v6550
    %6552 = vmatmul.f32.gmra.mxu0 %v6493
    %v6553 = vpop.f32.mrf.mxu0
    %v6554 = vadd.f32 0.0, %v6553
    %6555 = vmatmul.f32.gmra.mxu0 %v6496
    %v6556 = vpop.f32.mrf.mxu0
    %v6557 = vadd.f32 0.0, %v6556
    %6558 = vmatmul.f32.gmra.mxu0 %v6499
    %v6559 = vpop.f32.mrf.mxu0
    %v6560 = vadd.f32 0.0, %v6559
    %6561 = vmatmul.f32.gmra.mxu0 %v6502
    %v6562 = vpop.f32.mrf.mxu0
    %v6563 = vadd.f32 0.0, %v6562
    %6564 = vmatmul.f32.gmra.mxu0 %v6505
    %v6565 = vpop.f32.mrf.mxu0
    %v6566 = vadd.f32 0.0, %v6565
    %6567 = vmatmul.f32.gmra.mxu0 %v6508
    %v6568 = vpop.f32.mrf.mxu0
    %v6569 = vadd.f32 0.0, %v6568
    %6570 = vmatmul.f32.gmra.mxu0 %v6511
    %v6571 = vpop.f32.mrf.mxu0
    %v6572 = vadd.f32 0.0, %v6571
    %6573 = vmatmul.f32.gmra.mxu0 %v6514
    %v6574 = vpop.f32.mrf.mxu0
    %v6575 = vadd.f32 0.0, %v6574
    %6576 = vdwg.mxu0
    %v6577 = vadd.f32 %v6320, %v6551
    %v6578 = vadd.f32 %v6321, %v6554
    %v6579 = vadd.f32 %v6322, %v6557
    %v6580 = vadd.f32 %v6323, %v6560
    %v6581 = vadd.f32 %v6324, %v6563
    %v6582 = vadd.f32 %v6325, %v6566
    %v6583 = vadd.f32 %v6326, %v6569
    %v6584 = vadd.f32 %v6327, %v6572
    %v6585 = vadd.f32 %v6328, %v6575
    %s6586 = scalar_lea.vmem %s4, 4968
    %v6587 = vld [vmem:[%s6586] sm:$0xff]
    %v6588 = vld [vmem:[%s6586 + $0x8] sm:$0xff]
    %v6589 = vld [vmem:[%s6586 + $0x10] sm:$0xff]
    %v6590 = vld [vmem:[%s6586 + $0x18] sm:$0xff]
    %v6591 = vld [vmem:[%s6586 + $0x20] sm:$0xff]
    %v6592 = vld [vmem:[%s6586 + $0x28] sm:$0xff]
    %v6593 = vld [vmem:[%s6586 + $0x30] sm:$0xff]
    %v6594 = vld [vmem:[%s6586 + $0x38] sm:$0xff]
    %v6595 = vld [vmem:[%s6586 + $0x40] sm:$0xff]
    %v6596 = vld [vmem:[%s6586 + $0x48] sm:$0xff]
    %v6597 = vld [vmem:[%s6586 + $0x50] sm:$0xff]
    %v6598 = vld [vmem:[%s6586 + $0x58] sm:$0xff]
    %v6599 = vld [vmem:[%s6586 + $0x60] sm:$0xff]
    %v6600 = vld [vmem:[%s6586 + $0x68] sm:$0xff]
    %v6601 = vld [vmem:[%s6586 + $0x70] sm:$0xff]
    %v6602 = vld [vmem:[%s6586 + $0x78] sm:$0xff]
    %v6603 = vld [vmem:[%s6586 + $0x80] sm:$0xff]
    %v6604 = vld [vmem:[%s6586 + $0x88] sm:$0xff]
    %v6605 = vld [vmem:[%s6586 + $0x90] sm:$0xff]
    %v6606 = vld [vmem:[%s6586 + $0x98] sm:$0xff]
    %v6607 = vld [vmem:[%s6586 + $0xa0] sm:$0xff]
    %v6608 = vld [vmem:[%s6586 + $0xa8] sm:$0xff]
    %v6609 = vld [vmem:[%s6586 + $0xb0] sm:$0xff]
    %v6610 = vld [vmem:[%s6586 + $0xb8] sm:$0xff]
    %v6611 = vld [vmem:[%s6586 + $0xc0] sm:$0xff]
    %v6612 = vld [vmem:[%s6586 + $0xc8] sm:$0xff]
    %v6613 = vld [vmem:[%s6586 + $0xd0] sm:$0xff]
    %v6615 = vsel %vm718, %v6589, 0
    %v6618 = vsel %vm718, %v6592, 0
    %v6621 = vsel %vm718, %v6595, 0
    %v6624 = vsel %vm718, %v6598, 0
    %v6627 = vsel %vm718, %v6601, 0
    %v6630 = vsel %vm718, %v6604, 0
    %v6633 = vsel %vm718, %v6607, 0
    %v6636 = vsel %vm718, %v6610, 0
    %v6639 = vsel %vm718, %v6613, 0
    %6641 = vmatpush.msra.mxu0 %v663
    %6642 = vmatpush.msra.mxu0 %v662
    %6643 = vmatpush.msra.mxu0 %v661
    %6644 = vmatpush.msra.mxu0 %v660
    %6645 = vmatpush.msra.mxu0 %v659
    %6646 = vmatpush.msra.mxu0 %v658
    %6647 = vmatpush.msra.mxu0 %v657
    %6648 = vmatpush.msra.mxu0 %v656
    %6649 = vmatpush.msra.mxu0 %v655
    %6650 = vmatpush.msra.mxu0 %v654
    %6651 = vmatpush.msra.mxu0 %v653
    %6652 = vmatpush.msra.mxu0 %v652
    %6653 = vmatpush.msra.mxu0 %v651
    %6654 = vmatpush.msra.mxu0 %v650
    %6655 = vmatpush.msra.mxu0 %v649
    %6656 = vmatpush.msra.mxu0 %v648
    %6657 = vmatmul.f32.gmra.mxu0 %v6587
    %v6658 = vpop.f32.mrf.mxu0
    %v6659 = vadd.f32 0.0, %v6658
    %6660 = vmatmul.f32.gmra.mxu0 %v6590
    %v6661 = vpop.f32.mrf.mxu0
    %v6662 = vadd.f32 0.0, %v6661
    %6663 = vmatmul.f32.gmra.mxu0 %v6593
    %v6664 = vpop.f32.mrf.mxu0
    %v6665 = vadd.f32 0.0, %v6664
    %6666 = vmatmul.f32.gmra.mxu0 %v6596
    %v6667 = vpop.f32.mrf.mxu0
    %v6668 = vadd.f32 0.0, %v6667
    %6669 = vmatmul.f32.gmra.mxu0 %v6599
    %v6670 = vpop.f32.mrf.mxu0
    %v6671 = vadd.f32 0.0, %v6670
    %6672 = vmatmul.f32.gmra.mxu0 %v6602
    %v6673 = vpop.f32.mrf.mxu0
    %v6674 = vadd.f32 0.0, %v6673
    %6675 = vmatmul.f32.gmra.mxu0 %v6605
    %v6676 = vpop.f32.mrf.mxu0
    %v6677 = vadd.f32 0.0, %v6676
    %6678 = vmatmul.f32.gmra.mxu0 %v6608
    %v6679 = vpop.f32.mrf.mxu0
    %v6680 = vadd.f32 0.0, %v6679
    %6681 = vmatmul.f32.gmra.mxu0 %v6611
    %v6682 = vpop.f32.mrf.mxu0
    %v6683 = vadd.f32 0.0, %v6682
    %6684 = vdwg.mxu0
    %6685 = vmatpush.msra.mxu0 %v679
    %6686 = vmatpush.msra.mxu0 %v678
    %6687 = vmatpush.msra.mxu0 %v677
    %6688 = vmatpush.msra.mxu0 %v676
    %6689 = vmatpush.msra.mxu0 %v675
    %6690 = vmatpush.msra.mxu0 %v674
    %6691 = vmatpush.msra.mxu0 %v673
    %6692 = vmatpush.msra.mxu0 %v672
    %6693 = vmatpush.msra.mxu0 %v671
    %6694 = vmatpush.msra.mxu0 %v670
    %6695 = vmatpush.msra.mxu0 %v669
    %6696 = vmatpush.msra.mxu0 %v668
    %6697 = vmatpush.msra.mxu0 %v667
    %6698 = vmatpush.msra.mxu0 %v666
    %6699 = vmatpush.msra.mxu0 %v665
    %6700 = vmatpush.msra.mxu0 %v664
    %6701 = vmatmul.f32.gmra.mxu0 %v6588
    %v6702 = vpop.f32.mrf.mxu0
    %v6703 = vadd.f32 %v6659, %v6702
    %6704 = vmatmul.f32.gmra.mxu0 %v6591
    %v6705 = vpop.f32.mrf.mxu0
    %v6706 = vadd.f32 %v6662, %v6705
    %6707 = vmatmul.f32.gmra.mxu0 %v6594
    %v6708 = vpop.f32.mrf.mxu0
    %v6709 = vadd.f32 %v6665, %v6708
    %6710 = vmatmul.f32.gmra.mxu0 %v6597
    %v6711 = vpop.f32.mrf.mxu0
    %v6712 = vadd.f32 %v6668, %v6711
    %6713 = vmatmul.f32.gmra.mxu0 %v6600
    %v6714 = vpop.f32.mrf.mxu0
    %v6715 = vadd.f32 %v6671, %v6714
    %6716 = vmatmul.f32.gmra.mxu0 %v6603
    %v6717 = vpop.f32.mrf.mxu0
    %v6718 = vadd.f32 %v6674, %v6717
    %6719 = vmatmul.f32.gmra.mxu0 %v6606
    %v6720 = vpop.f32.mrf.mxu0
    %v6721 = vadd.f32 %v6677, %v6720
    %6722 = vmatmul.f32.gmra.mxu0 %v6609
    %v6723 = vpop.f32.mrf.mxu0
    %v6724 = vadd.f32 %v6680, %v6723
    %6725 = vmatmul.f32.gmra.mxu0 %v6612
    %v6726 = vpop.f32.mrf.mxu0
    %v6727 = vadd.f32 %v6683, %v6726
    %6728 = vdwg.mxu0
    %6729 = vmatpush.msra.mxu0 0.0
    %6730 = vmatpush.msra.mxu0 0.0
    %6731 = vmatpush.msra.mxu0 0.0
    %6732 = vmatpush.msra.mxu0 0.0
    %6733 = vmatpush.msra.mxu0 0.0
    %6734 = vmatpush.msra.mxu0 %v747
    %6735 = vmatpush.msra.mxu0 %v689
    %6736 = vmatpush.msra.mxu0 %v688
    %6737 = vmatpush.msra.mxu0 %v687
    %6738 = vmatpush.msra.mxu0 %v686
    %6739 = vmatpush.msra.mxu0 %v685
    %6740 = vmatpush.msra.mxu0 %v684
    %6741 = vmatpush.msra.mxu0 %v683
    %6742 = vmatpush.msra.mxu0 %v682
    %6743 = vmatpush.msra.mxu0 %v681
    %6744 = vmatpush.msra.mxu0 %v680
    %6745 = vmatmul.f32.gmra.mxu0 %v6615
    %v6746 = vpop.f32.mrf.mxu0
    %v6747 = vadd.f32 %v6703, %v6746
    %6748 = vmatmul.f32.gmra.mxu0 %v6618
    %v6749 = vpop.f32.mrf.mxu0
    %v6750 = vadd.f32 %v6706, %v6749
    %6751 = vmatmul.f32.gmra.mxu0 %v6621
    %v6752 = vpop.f32.mrf.mxu0
    %v6753 = vadd.f32 %v6709, %v6752
    %6754 = vmatmul.f32.gmra.mxu0 %v6624
    %v6755 = vpop.f32.mrf.mxu0
    %v6756 = vadd.f32 %v6712, %v6755
    %6757 = vmatmul.f32.gmra.mxu0 %v6627
    %v6758 = vpop.f32.mrf.mxu0
    %v6759 = vadd.f32 %v6715, %v6758
    %6760 = vmatmul.f32.gmra.mxu0 %v6630
    %v6761 = vpop.f32.mrf.mxu0
    %v6762 = vadd.f32 %v6718, %v6761
    %6763 = vmatmul.f32.gmra.mxu0 %v6633
    %v6764 = vpop.f32.mrf.mxu0
    %v6765 = vadd.f32 %v6721, %v6764
    %6766 = vmatmul.f32.gmra.mxu0 %v6636
    %v6767 = vpop.f32.mrf.mxu0
    %v6768 = vadd.f32 %v6724, %v6767
    %6769 = vmatmul.f32.gmra.mxu0 %v6639
    %v6770 = vpop.f32.mrf.mxu0
    %v6771 = vadd.f32 %v6727, %v6770
    %6772 = vdwg.mxu0
    %s6773 = scalar_lea.vmem [#allocation2], 2944
    %v6774 = vld [vmem:[%s6773] sm:$0xff]
    %v6775 = vld [vmem:[%s6773 + $0x8] sm:$0xff]
    %v6776 = vld [vmem:[%s6773 + $0x10] sm:$0xff]
    %v6777 = vld [vmem:[%s6773 + $0x18] sm:$0xff]
    %v6778 = vld [vmem:[%s6773 + $0x20] sm:$0xff]
    %v6779 = vld [vmem:[%s6773 + $0x28] sm:$0xff]
    %v6780 = vld [vmem:[%s6773 + $0x30] sm:$0xff]
    %v6781 = vld [vmem:[%s6773 + $0x38] sm:$0xff]
    %v6782 = vld [vmem:[%s6773 + $0x40] sm:$0xff]
    %v6783 = vld [vmem:[%s6773 + $0x48] sm:$0xff]
    %v6784 = vld [vmem:[%s6773 + $0x50] sm:$0xff]
    %v6785 = vld [vmem:[%s6773 + $0x58] sm:$0xff]
    %v6786 = vld [vmem:[%s6773 + $0x60] sm:$0xff]
    %v6787 = vld [vmem:[%s6773 + $0x68] sm:$0xff]
    %v6788 = vld [vmem:[%s6773 + $0x70] sm:$0xff]
    %v6789 = vld [vmem:[%s6773 + $0x78] sm:$0xff]
    %6790 = vmatpush.msra.mxu0 %v6789
    %6791 = vmatpush.msra.mxu0 %v6788
    %6792 = vmatpush.msra.mxu0 %v6787
    %6793 = vmatpush.msra.mxu0 %v6786
    %6794 = vmatpush.msra.mxu0 %v6785
    %6795 = vmatpush.msra.mxu0 %v6784
    %6796 = vmatpush.msra.mxu0 %v6783
    %6797 = vmatpush.msra.mxu0 %v6782
    %6798 = vmatpush.msra.mxu0 %v6781
    %6799 = vmatpush.msra.mxu0 %v6780
    %6800 = vmatpush.msra.mxu0 %v6779
    %6801 = vmatpush.msra.mxu0 %v6778
    %6802 = vmatpush.msra.mxu0 %v6777
    %6803 = vmatpush.msra.mxu0 %v6776
    %6804 = vmatpush.msra.mxu0 %v6775
    %6805 = vmatpush.msra.mxu0 %v6774
    %6806 = vmatmul.f32.gmra.mxu0 %v6747
    %v6807 = vpop.f32.mrf.mxu0
    %v6808 = vadd.f32 0.0, %v6807
    %6809 = vmatmul.f32.gmra.mxu0 %v6750
    %v6810 = vpop.f32.mrf.mxu0
    %v6811 = vadd.f32 0.0, %v6810
    %6812 = vmatmul.f32.gmra.mxu0 %v6753
    %v6813 = vpop.f32.mrf.mxu0
    %v6814 = vadd.f32 0.0, %v6813
    %6815 = vmatmul.f32.gmra.mxu0 %v6756
    %v6816 = vpop.f32.mrf.mxu0
    %v6817 = vadd.f32 0.0, %v6816
    %6818 = vmatmul.f32.gmra.mxu0 %v6759
    %v6819 = vpop.f32.mrf.mxu0
    %v6820 = vadd.f32 0.0, %v6819
    %6821 = vmatmul.f32.gmra.mxu0 %v6762
    %v6822 = vpop.f32.mrf.mxu0
    %v6823 = vadd.f32 0.0, %v6822
    %6824 = vmatmul.f32.gmra.mxu0 %v6765
    %v6825 = vpop.f32.mrf.mxu0
    %v6826 = vadd.f32 0.0, %v6825
    %6827 = vmatmul.f32.gmra.mxu0 %v6768
    %v6828 = vpop.f32.mrf.mxu0
    %v6829 = vadd.f32 0.0, %v6828
    %6830 = vmatmul.f32.gmra.mxu0 %v6771
    %v6831 = vpop.f32.mrf.mxu0
    %v6832 = vadd.f32 0.0, %v6831
    %6833 = vdwg.mxu0
    %v6834 = vadd.f32 %v6577, %v6808
    %v6835 = vadd.f32 %v6578, %v6811
    %v6836 = vadd.f32 %v6579, %v6814
    %v6837 = vadd.f32 %v6580, %v6817
    %v6838 = vadd.f32 %v6581, %v6820
    %v6839 = vadd.f32 %v6582, %v6823
    %v6840 = vadd.f32 %v6583, %v6826
    %v6841 = vadd.f32 %v6584, %v6829
    %v6842 = vadd.f32 %v6585, %v6832
    %s6843 = scalar_lea.vmem %s4, 5184
    %v6844 = vld [vmem:[%s6843] sm:$0xff]
    %v6845 = vld [vmem:[%s6843 + $0x8] sm:$0xff]
    %v6846 = vld [vmem:[%s6843 + $0x10] sm:$0xff]
    %v6847 = vld [vmem:[%s6843 + $0x18] sm:$0xff]
    %v6848 = vld [vmem:[%s6843 + $0x20] sm:$0xff]
    %v6849 = vld [vmem:[%s6843 + $0x28] sm:$0xff]
    %v6850 = vld [vmem:[%s6843 + $0x30] sm:$0xff]
    %v6851 = vld [vmem:[%s6843 + $0x38] sm:$0xff]
    %v6852 = vld [vmem:[%s6843 + $0x40] sm:$0xff]
    %v6853 = vld [vmem:[%s6843 + $0x48] sm:$0xff]
    %v6854 = vld [vmem:[%s6843 + $0x50] sm:$0xff]
    %v6855 = vld [vmem:[%s6843 + $0x58] sm:$0xff]
    %v6856 = vld [vmem:[%s6843 + $0x60] sm:$0xff]
    %v6857 = vld [vmem:[%s6843 + $0x68] sm:$0xff]
    %v6858 = vld [vmem:[%s6843 + $0x70] sm:$0xff]
    %v6859 = vld [vmem:[%s6843 + $0x78] sm:$0xff]
    %v6860 = vld [vmem:[%s6843 + $0x80] sm:$0xff]
    %v6861 = vld [vmem:[%s6843 + $0x88] sm:$0xff]
    %v6862 = vld [vmem:[%s6843 + $0x90] sm:$0xff]
    %v6863 = vld [vmem:[%s6843 + $0x98] sm:$0xff]
    %v6864 = vld [vmem:[%s6843 + $0xa0] sm:$0xff]
    %v6865 = vld [vmem:[%s6843 + $0xa8] sm:$0xff]
    %v6866 = vld [vmem:[%s6843 + $0xb0] sm:$0xff]
    %v6867 = vld [vmem:[%s6843 + $0xb8] sm:$0xff]
    %v6868 = vld [vmem:[%s6843 + $0xc0] sm:$0xff]
    %v6869 = vld [vmem:[%s6843 + $0xc8] sm:$0xff]
    %v6870 = vld [vmem:[%s6843 + $0xd0] sm:$0xff]
    %v6872 = vsel %vm718, %v6846, 0
    %v6875 = vsel %vm718, %v6849, 0
    %v6878 = vsel %vm718, %v6852, 0
    %v6881 = vsel %vm718, %v6855, 0
    %v6884 = vsel %vm718, %v6858, 0
    %v6887 = vsel %vm718, %v6861, 0
    %v6890 = vsel %vm718, %v6864, 0
    %v6893 = vsel %vm718, %v6867, 0
    %v6896 = vsel %vm718, %v6870, 0
    %6898 = vmatpush.msra.mxu0 %v663
    %6899 = vmatpush.msra.mxu0 %v662
    %6900 = vmatpush.msra.mxu0 %v661
    %6901 = vmatpush.msra.mxu0 %v660
    %6902 = vmatpush.msra.mxu0 %v659
    %6903 = vmatpush.msra.mxu0 %v658
    %6904 = vmatpush.msra.mxu0 %v657
    %6905 = vmatpush.msra.mxu0 %v656
    %6906 = vmatpush.msra.mxu0 %v655
    %6907 = vmatpush.msra.mxu0 %v654
    %6908 = vmatpush.msra.mxu0 %v653
    %6909 = vmatpush.msra.mxu0 %v652
    %6910 = vmatpush.msra.mxu0 %v651
    %6911 = vmatpush.msra.mxu0 %v650
    %6912 = vmatpush.msra.mxu0 %v649
    %6913 = vmatpush.msra.mxu0 %v648
    %6914 = vmatmul.f32.gmra.mxu0 %v6844
    %v6915 = vpop.f32.mrf.mxu0
    %v6916 = vadd.f32 0.0, %v6915
    %6917 = vmatmul.f32.gmra.mxu0 %v6847
    %v6918 = vpop.f32.mrf.mxu0
    %v6919 = vadd.f32 0.0, %v6918
    %6920 = vmatmul.f32.gmra.mxu0 %v6850
    %v6921 = vpop.f32.mrf.mxu0
    %v6922 = vadd.f32 0.0, %v6921
    %6923 = vmatmul.f32.gmra.mxu0 %v6853
    %v6924 = vpop.f32.mrf.mxu0
    %v6925 = vadd.f32 0.0, %v6924
    %6926 = vmatmul.f32.gmra.mxu0 %v6856
    %v6927 = vpop.f32.mrf.mxu0
    %v6928 = vadd.f32 0.0, %v6927
    %6929 = vmatmul.f32.gmra.mxu0 %v6859
    %v6930 = vpop.f32.mrf.mxu0
    %v6931 = vadd.f32 0.0, %v6930
    %6932 = vmatmul.f32.gmra.mxu0 %v6862
    %v6933 = vpop.f32.mrf.mxu0
    %v6934 = vadd.f32 0.0, %v6933
    %6935 = vmatmul.f32.gmra.mxu0 %v6865
    %v6936 = vpop.f32.mrf.mxu0
    %v6937 = vadd.f32 0.0, %v6936
    %6938 = vmatmul.f32.gmra.mxu0 %v6868
    %v6939 = vpop.f32.mrf.mxu0
    %v6940 = vadd.f32 0.0, %v6939
    %6941 = vdwg.mxu0
    %6942 = vmatpush.msra.mxu0 %v679
    %6943 = vmatpush.msra.mxu0 %v678
    %6944 = vmatpush.msra.mxu0 %v677
    %6945 = vmatpush.msra.mxu0 %v676
    %6946 = vmatpush.msra.mxu0 %v675
    %6947 = vmatpush.msra.mxu0 %v674
    %6948 = vmatpush.msra.mxu0 %v673
    %6949 = vmatpush.msra.mxu0 %v672
    %6950 = vmatpush.msra.mxu0 %v671
    %6951 = vmatpush.msra.mxu0 %v670
    %6952 = vmatpush.msra.mxu0 %v669
    %6953 = vmatpush.msra.mxu0 %v668
    %6954 = vmatpush.msra.mxu0 %v667
    %6955 = vmatpush.msra.mxu0 %v666
    %6956 = vmatpush.msra.mxu0 %v665
    %6957 = vmatpush.msra.mxu0 %v664
    %6958 = vmatmul.f32.gmra.mxu0 %v6845
    %v6959 = vpop.f32.mrf.mxu0
    %v6960 = vadd.f32 %v6916, %v6959
    %6961 = vmatmul.f32.gmra.mxu0 %v6848
    %v6962 = vpop.f32.mrf.mxu0
    %v6963 = vadd.f32 %v6919, %v6962
    %6964 = vmatmul.f32.gmra.mxu0 %v6851
    %v6965 = vpop.f32.mrf.mxu0
    %v6966 = vadd.f32 %v6922, %v6965
    %6967 = vmatmul.f32.gmra.mxu0 %v6854
    %v6968 = vpop.f32.mrf.mxu0
    %v6969 = vadd.f32 %v6925, %v6968
    %6970 = vmatmul.f32.gmra.mxu0 %v6857
    %v6971 = vpop.f32.mrf.mxu0
    %v6972 = vadd.f32 %v6928, %v6971
    %6973 = vmatmul.f32.gmra.mxu0 %v6860
    %v6974 = vpop.f32.mrf.mxu0
    %v6975 = vadd.f32 %v6931, %v6974
    %6976 = vmatmul.f32.gmra.mxu0 %v6863
    %v6977 = vpop.f32.mrf.mxu0
    %v6978 = vadd.f32 %v6934, %v6977
    %6979 = vmatmul.f32.gmra.mxu0 %v6866
    %v6980 = vpop.f32.mrf.mxu0
    %v6981 = vadd.f32 %v6937, %v6980
    %6982 = vmatmul.f32.gmra.mxu0 %v6869
    %v6983 = vpop.f32.mrf.mxu0
    %v6984 = vadd.f32 %v6940, %v6983
    %6985 = vdwg.mxu0
    %6986 = vmatpush.msra.mxu0 0.0
    %6987 = vmatpush.msra.mxu0 0.0
    %6988 = vmatpush.msra.mxu0 0.0
    %6989 = vmatpush.msra.mxu0 0.0
    %6990 = vmatpush.msra.mxu0 0.0
    %6991 = vmatpush.msra.mxu0 %v747
    %6992 = vmatpush.msra.mxu0 %v689
    %6993 = vmatpush.msra.mxu0 %v688
    %6994 = vmatpush.msra.mxu0 %v687
    %6995 = vmatpush.msra.mxu0 %v686
    %6996 = vmatpush.msra.mxu0 %v685
    %6997 = vmatpush.msra.mxu0 %v684
    %6998 = vmatpush.msra.mxu0 %v683
    %6999 = vmatpush.msra.mxu0 %v682
    %7000 = vmatpush.msra.mxu0 %v681
    %7001 = vmatpush.msra.mxu0 %v680
    %7002 = vmatmul.f32.gmra.mxu0 %v6872
    %v7003 = vpop.f32.mrf.mxu0
    %v7004 = vadd.f32 %v6960, %v7003
    %7005 = vmatmul.f32.gmra.mxu0 %v6875
    %v7006 = vpop.f32.mrf.mxu0
    %v7007 = vadd.f32 %v6963, %v7006
    %7008 = vmatmul.f32.gmra.mxu0 %v6878
    %v7009 = vpop.f32.mrf.mxu0
    %v7010 = vadd.f32 %v6966, %v7009
    %7011 = vmatmul.f32.gmra.mxu0 %v6881
    %v7012 = vpop.f32.mrf.mxu0
    %v7013 = vadd.f32 %v6969, %v7012
    %7014 = vmatmul.f32.gmra.mxu0 %v6884
    %v7015 = vpop.f32.mrf.mxu0
    %v7016 = vadd.f32 %v6972, %v7015
    %7017 = vmatmul.f32.gmra.mxu0 %v6887
    %v7018 = vpop.f32.mrf.mxu0
    %v7019 = vadd.f32 %v6975, %v7018
    %7020 = vmatmul.f32.gmra.mxu0 %v6890
    %v7021 = vpop.f32.mrf.mxu0
    %v7022 = vadd.f32 %v6978, %v7021
    %7023 = vmatmul.f32.gmra.mxu0 %v6893
    %v7024 = vpop.f32.mrf.mxu0
    %v7025 = vadd.f32 %v6981, %v7024
    %7026 = vmatmul.f32.gmra.mxu0 %v6896
    %v7027 = vpop.f32.mrf.mxu0
    %v7028 = vadd.f32 %v6984, %v7027
    %7029 = vdwg.mxu0
    %s7030 = scalar_lea.vmem [#allocation2], 3072
    %v7031 = vld [vmem:[%s7030] sm:$0xff]
    %v7032 = vld [vmem:[%s7030 + $0x8] sm:$0xff]
    %v7033 = vld [vmem:[%s7030 + $0x10] sm:$0xff]
    %v7034 = vld [vmem:[%s7030 + $0x18] sm:$0xff]
    %v7035 = vld [vmem:[%s7030 + $0x20] sm:$0xff]
    %v7036 = vld [vmem:[%s7030 + $0x28] sm:$0xff]
    %v7037 = vld [vmem:[%s7030 + $0x30] sm:$0xff]
    %v7038 = vld [vmem:[%s7030 + $0x38] sm:$0xff]
    %v7039 = vld [vmem:[%s7030 + $0x40] sm:$0xff]
    %v7040 = vld [vmem:[%s7030 + $0x48] sm:$0xff]
    %v7041 = vld [vmem:[%s7030 + $0x50] sm:$0xff]
    %v7042 = vld [vmem:[%s7030 + $0x58] sm:$0xff]
    %v7043 = vld [vmem:[%s7030 + $0x60] sm:$0xff]
    %v7044 = vld [vmem:[%s7030 + $0x68] sm:$0xff]
    %v7045 = vld [vmem:[%s7030 + $0x70] sm:$0xff]
    %v7046 = vld [vmem:[%s7030 + $0x78] sm:$0xff]
    %7047 = vmatpush.msra.mxu0 %v7046
    %7048 = vmatpush.msra.mxu0 %v7045
    %7049 = vmatpush.msra.mxu0 %v7044
    %7050 = vmatpush.msra.mxu0 %v7043
    %7051 = vmatpush.msra.mxu0 %v7042
    %7052 = vmatpush.msra.mxu0 %v7041
    %7053 = vmatpush.msra.mxu0 %v7040
    %7054 = vmatpush.msra.mxu0 %v7039
    %7055 = vmatpush.msra.mxu0 %v7038
    %7056 = vmatpush.msra.mxu0 %v7037
    %7057 = vmatpush.msra.mxu0 %v7036
    %7058 = vmatpush.msra.mxu0 %v7035
    %7059 = vmatpush.msra.mxu0 %v7034
    %7060 = vmatpush.msra.mxu0 %v7033
    %7061 = vmatpush.msra.mxu0 %v7032
    %7062 = vmatpush.msra.mxu0 %v7031
    %7063 = vmatmul.f32.gmra.mxu0 %v7004
    %v7064 = vpop.f32.mrf.mxu0
    %v7065 = vadd.f32 0.0, %v7064
    %7066 = vmatmul.f32.gmra.mxu0 %v7007
    %v7067 = vpop.f32.mrf.mxu0
    %v7068 = vadd.f32 0.0, %v7067
    %7069 = vmatmul.f32.gmra.mxu0 %v7010
    %v7070 = vpop.f32.mrf.mxu0
    %v7071 = vadd.f32 0.0, %v7070
    %7072 = vmatmul.f32.gmra.mxu0 %v7013
    %v7073 = vpop.f32.mrf.mxu0
    %v7074 = vadd.f32 0.0, %v7073
    %7075 = vmatmul.f32.gmra.mxu0 %v7016
    %v7076 = vpop.f32.mrf.mxu0
    %v7077 = vadd.f32 0.0, %v7076
    %7078 = vmatmul.f32.gmra.mxu0 %v7019
    %v7079 = vpop.f32.mrf.mxu0
    %v7080 = vadd.f32 0.0, %v7079
    %7081 = vmatmul.f32.gmra.mxu0 %v7022
    %v7082 = vpop.f32.mrf.mxu0
    %v7083 = vadd.f32 0.0, %v7082
    %7084 = vmatmul.f32.gmra.mxu0 %v7025
    %v7085 = vpop.f32.mrf.mxu0
    %v7086 = vadd.f32 0.0, %v7085
    %7087 = vmatmul.f32.gmra.mxu0 %v7028
    %v7088 = vpop.f32.mrf.mxu0
    %v7089 = vadd.f32 0.0, %v7088
    %7090 = vdwg.mxu0
    %v7091 = vadd.f32 %v6834, %v7065
    %v7092 = vadd.f32 %v6835, %v7068
    %v7093 = vadd.f32 %v6836, %v7071
    %v7094 = vadd.f32 %v6837, %v7074
    %v7095 = vadd.f32 %v6838, %v7077
    %v7096 = vadd.f32 %v6839, %v7080
    %v7097 = vadd.f32 %v6840, %v7083
    %v7098 = vadd.f32 %v6841, %v7086
    %v7099 = vadd.f32 %v6842, %v7089
    %v7100 = vld [vmem:[%s6] sm:$0x1]
    %v7101 = vld [vmem:[%s7] sm:$0x1]
    %v7102 = vadd.f32 %v7091, %v7092
    %v7103 = vadd.f32 %v7102, %v7093
    %v7104 = vadd.f32 %v7103, %v7094
    %v7105 = vadd.f32 %v7104, %v7095
    %v7106 = vadd.f32 %v7105, %v7096
    %v7107 = vadd.f32 %v7106, %v7097
    %v7108 = vadd.f32 %v7107, %v7098
    %v7109 = vadd.f32 %v7108, %v7099
    %v7110 = vrot.slane %v7109, 4
    %v7111 = vadd.f32 %v7109, %v7110
    %v7112 = vrot.slane %v7111, 2
    %v7113 = vadd.f32 %v7111, %v7112
    %v7114 = vrot.slane %v7113, 1
    %v7115 = vadd.f32 %v7113, %v7114
    %v7116 = vrcp.pop 72.0
    %v7117 = vmul.f32 72.0, %v7116
    %v7118 = vsub.f32 1.0, %v7117
    %v7119 = vmul.f32 %v7116, %v7118
    %v7120 = vadd.f32 %v7116, %v7119
    %vm7121 = vweird.f32 %v7116
    %v7122 = vsel %vm7121, %v7116, %v7120
    %v7123 = vmul.f32 %v7115, %v7122
    %v7124 = vsub.f32 %v7091, %v7123
    %v7125 = vsub.f32 %v7092, %v7123
    %v7126 = vsub.f32 %v7093, %v7123
    %v7127 = vsub.f32 %v7094, %v7123
    %v7128 = vsub.f32 %v7095, %v7123
    %v7129 = vsub.f32 %v7096, %v7123
    %v7130 = vsub.f32 %v7097, %v7123
    %v7131 = vsub.f32 %v7098, %v7123
    %v7132 = vsub.f32 %v7099, %v7123
    %v7133 = vmul.f32 %v7124, %v7124
    %v7134 = vmul.f32 %v7125, %v7125
    %v7135 = vmul.f32 %v7126, %v7126
    %v7136 = vmul.f32 %v7127, %v7127
    %v7137 = vmul.f32 %v7128, %v7128
    %v7138 = vmul.f32 %v7129, %v7129
    %v7139 = vmul.f32 %v7130, %v7130
    %v7140 = vmul.f32 %v7131, %v7131
    %v7141 = vmul.f32 %v7132, %v7132
    %v7142 = vadd.f32 %v7133, %v7134
    %v7143 = vadd.f32 %v7142, %v7135
    %v7144 = vadd.f32 %v7143, %v7136
    %v7145 = vadd.f32 %v7144, %v7137
    %v7146 = vadd.f32 %v7145, %v7138
    %v7147 = vadd.f32 %v7146, %v7139
    %v7148 = vadd.f32 %v7147, %v7140
    %v7149 = vadd.f32 %v7148, %v7141
    %v7150 = vrot.slane %v7149, 4
    %v7151 = vadd.f32 %v7149, %v7150
    %v7152 = vrot.slane %v7151, 2
    %v7153 = vadd.f32 %v7151, %v7152
    %v7154 = vrot.slane %v7153, 1
    %v7155 = vadd.f32 %v7153, %v7154
    %v7156 = vmul.f32 %v7155, %v7122
    %v7158 = vperm.slane %v7100, 0
    %v7160 = vmul.f32 %v7158, %v7124
    %v7161 = vmul.f32 %v7158, %v7125
    %v7162 = vmul.f32 %v7158, %v7126
    %v7163 = vmul.f32 %v7158, %v7127
    %v7164 = vmul.f32 %v7158, %v7128
    %v7165 = vmul.f32 %v7158, %v7129
    %v7166 = vmul.f32 %v7158, %v7130
    %v7167 = vmul.f32 %v7158, %v7131
    %v7168 = vmul.f32 %v7158, %v7132
    %v7169 = vadd.f32 %v7156, 1e-05
    %v7170 = vrsqrt.pop %v7169
    %v7171 = vmul.f32 %v7170, %v7169
    %v7172 = vmul.f32 %v7171, %v7170
    %v7173 = vmul.f32 0.5, %v7172
    %v7174 = vsub.f32 1.5, %v7173
    %v7175 = vmul.f32 %v7170, %v7174
    %vm7176 = vweird.f32 %v7169
    %vm7177 = vweird.f32 %v7170
    %vm7178 = vmor %vm7176, %vm7177
    %v7179 = vsel %vm7178, %v7170, %v7175
    %v7180 = vmul.f32 %v7160, %v7179
    %v7181 = vmul.f32 %v7161, %v7179
    %v7182 = vmul.f32 %v7162, %v7179
    %v7183 = vmul.f32 %v7163, %v7179
    %v7184 = vmul.f32 %v7164, %v7179
    %v7185 = vmul.f32 %v7165, %v7179
    %v7186 = vmul.f32 %v7166, %v7179
    %v7187 = vmul.f32 %v7167, %v7179
    %v7188 = vmul.f32 %v7168, %v7179
    %v7190 = vperm.slane %v7101, 0
    %v7192 = vadd.f32 %v7180, %v7190
    %v7193 = vadd.f32 %v7181, %v7190
    %v7194 = vadd.f32 %v7182, %v7190
    %v7195 = vadd.f32 %v7183, %v7190
    %v7196 = vadd.f32 %v7184, %v7190
    %v7197 = vadd.f32 %v7185, %v7190
    %v7198 = vadd.f32 %v7186, %v7190
    %v7199 = vadd.f32 %v7187, %v7190
    %v7200 = vadd.f32 %v7188, %v7190
    %v7201 = vmax.f32 %v7192, 0.0
    %v7202 = vmax.f32 %v7193, 0.0
    %v7203 = vmax.f32 %v7194, 0.0
    %v7204 = vmax.f32 %v7195, 0.0
    %v7205 = vmax.f32 %v7196, 0.0
    %v7206 = vmax.f32 %v7197, 0.0
    %v7207 = vmax.f32 %v7198, 0.0
    %v7208 = vmax.f32 %v7199, 0.0
    %v7209 = vmax.f32 %v7200, 0.0
    %v7210 = vld [vmem:[%s8] sm:$0xff]
    %v7211 = vld [vmem:[%s8 + $0x8] sm:$0xff]
    %v7212 = vld [vmem:[%s8 + $0x10] sm:$0x3]
    %vm7213 = vcmask 588800
    %v7215 = vsel %vm7213, %v7210, 0
    %v7218 = vsel %vm7213, %v7211, 0
    %v7221 = vsel %vm7213, %v7212, 0
    %7223 = vmatpush.msra.mxu0 0.0
    %7224 = vmatpush.msra.mxu0 0.0
    %7225 = vmatpush.msra.mxu0 0.0
    %7226 = vmatpush.msra.mxu0 0.0
    %7227 = vmatpush.msra.mxu0 0.0
    %7228 = vmatpush.msra.mxu0 0.0
    %7229 = vmatpush.msra.mxu0 0.0
    %7230 = vmatpush.msra.mxu0 %v7209
    %7231 = vmatpush.msra.mxu0 %v7208
    %7232 = vmatpush.msra.mxu0 %v7207
    %7233 = vmatpush.msra.mxu0 %v7206
    %7234 = vmatpush.msra.mxu0 %v7205
    %7235 = vmatpush.msra.mxu0 %v7204
    %7236 = vmatpush.msra.mxu0 %v7203
    %7237 = vmatpush.msra.mxu0 %v7202
    %7238 = vmatpush.msra.mxu0 %v7201
    %7239 = vmatmul.f32.gmra.mxu0 %v7215
    %v7240 = vpop.f32.mrf.mxu0
    %v7241 = vadd.f32 0.0, %v7240
    %7242 = vmatmul.f32.gmra.mxu0 %v7218
    %v7243 = vpop.f32.mrf.mxu0
    %v7244 = vadd.f32 0.0, %v7243
    %7245 = vmatmul.f32.gmra.mxu0 %v7221
    %v7246 = vpop.f32.mrf.mxu0
    %v7247 = vadd.f32 0.0, %v7246
    %7248 = vdwg.mxu0
    %v7249 = vld [vmem:[#allocation5] sm:$0xff]
    %v7250 = vld [vmem:[#allocation5 + $0x8] sm:$0xff]
    %v7251 = vld [vmem:[#allocation5 + $0x10] sm:$0xff]
    %v7252 = vld [vmem:[#allocation5 + $0x18] sm:$0xff]
    %v7253 = vld [vmem:[#allocation5 + $0x20] sm:$0xff]
    %v7254 = vld [vmem:[#allocation5 + $0x28] sm:$0xff]
    %v7255 = vld [vmem:[#allocation5 + $0x30] sm:$0xff]
    %v7256 = vld [vmem:[#allocation5 + $0x38] sm:$0xff]
    %v7257 = vld [vmem:[#allocation5 + $0x40] sm:$0xff]
    %v7258 = vld [vmem:[#allocation5 + $0x48] sm:$0xff]
    %v7259 = vld [vmem:[#allocation5 + $0x50] sm:$0xff]
    %v7260 = vld [vmem:[#allocation5 + $0x58] sm:$0xff]
    %v7261 = vld [vmem:[#allocation5 + $0x60] sm:$0xff]
    %v7262 = vld [vmem:[#allocation5 + $0x68] sm:$0xff]
    %v7263 = vld [vmem:[#allocation5 + $0x70] sm:$0xff]
    %v7264 = vld [vmem:[#allocation5 + $0x78] sm:$0xff]
    %s7265 = scalar_lea.vmem %s8, 24
    %v7266 = vld [vmem:[%s7265] sm:$0xff]
    %v7267 = vld [vmem:[%s7265 + $0x8] sm:$0xff]
    %v7268 = vld [vmem:[%s7265 + $0x10] sm:$0x3]
    %v7270 = vsel %vm7213, %v7266, 0
    %v7273 = vsel %vm7213, %v7267, 0
    %v7276 = vsel %vm7213, %v7268, 0
    %7278 = vmatpush.msra.mxu0 0.0
    %7279 = vmatpush.msra.mxu0 0.0
    %7280 = vmatpush.msra.mxu0 0.0
    %7281 = vmatpush.msra.mxu0 0.0
    %7282 = vmatpush.msra.mxu0 0.0
    %7283 = vmatpush.msra.mxu0 0.0
    %7284 = vmatpush.msra.mxu0 0.0
    %7285 = vmatpush.msra.mxu0 %v7209
    %7286 = vmatpush.msra.mxu0 %v7208
    %7287 = vmatpush.msra.mxu0 %v7207
    %7288 = vmatpush.msra.mxu0 %v7206
    %7289 = vmatpush.msra.mxu0 %v7205
    %7290 = vmatpush.msra.mxu0 %v7204
    %7291 = vmatpush.msra.mxu0 %v7203
    %7292 = vmatpush.msra.mxu0 %v7202
    %7293 = vmatpush.msra.mxu0 %v7201
    %7294 = vmatmul.f32.gmra.mxu0 %v7270
    %v7295 = vpop.f32.mrf.mxu0
    %v7296 = vadd.f32 0.0, %v7295
    %7297 = vmatmul.f32.gmra.mxu0 %v7273
    %v7298 = vpop.f32.mrf.mxu0
    %v7299 = vadd.f32 0.0, %v7298
    %7300 = vmatmul.f32.gmra.mxu0 %v7276
    %v7301 = vpop.f32.mrf.mxu0
    %v7302 = vadd.f32 0.0, %v7301
    %7303 = vdwg.mxu0
    %s7304 = scalar_lea.vmem [#allocation5], 128
    %v7305 = vld [vmem:[%s7304] sm:$0xff]
    %v7306 = vld [vmem:[%s7304 + $0x8] sm:$0xff]
    %v7307 = vld [vmem:[%s7304 + $0x10] sm:$0xff]
    %v7308 = vld [vmem:[%s7304 + $0x18] sm:$0xff]
    %v7309 = vld [vmem:[%s7304 + $0x20] sm:$0xff]
    %v7310 = vld [vmem:[%s7304 + $0x28] sm:$0xff]
    %v7311 = vld [vmem:[%s7304 + $0x30] sm:$0xff]
    %v7312 = vld [vmem:[%s7304 + $0x38] sm:$0xff]
    %v7313 = vld [vmem:[%s7304 + $0x40] sm:$0xff]
    %v7314 = vld [vmem:[%s7304 + $0x48] sm:$0xff]
    %v7315 = vld [vmem:[%s7304 + $0x50] sm:$0xff]
    %v7316 = vld [vmem:[%s7304 + $0x58] sm:$0xff]
    %v7317 = vld [vmem:[%s7304 + $0x60] sm:$0xff]
    %v7318 = vld [vmem:[%s7304 + $0x68] sm:$0xff]
    %v7319 = vld [vmem:[%s7304 + $0x70] sm:$0xff]
    %v7320 = vld [vmem:[%s7304 + $0x78] sm:$0xff]
    %7321 = vmatpush.msra.mxu0 %v7320
    %7322 = vmatpush.msra.mxu0 %v7319
    %7323 = vmatpush.msra.mxu0 %v7318
    %7324 = vmatpush.msra.mxu0 %v7317
    %7325 = vmatpush.msra.mxu0 %v7316
    %7326 = vmatpush.msra.mxu0 %v7315
    %7327 = vmatpush.msra.mxu0 %v7314
    %7328 = vmatpush.msra.mxu0 %v7313
    %7329 = vmatpush.msra.mxu0 %v7312
    %7330 = vmatpush.msra.mxu0 %v7311
    %7331 = vmatpush.msra.mxu0 %v7310
    %7332 = vmatpush.msra.mxu0 %v7309
    %7333 = vmatpush.msra.mxu0 %v7308
    %7334 = vmatpush.msra.mxu0 %v7307
    %7335 = vmatpush.msra.mxu0 %v7306
    %7336 = vmatpush.msra.mxu0 %v7305
    %7337 = vmatmul.f32.gmra.mxu0 %v7296
    %v7338 = vpop.f32.mrf.mxu0
    %v7339 = vadd.f32 0.0, %v7338
    %7340 = vmatmul.f32.gmra.mxu0 %v7299
    %v7341 = vpop.f32.mrf.mxu0
    %v7342 = vadd.f32 0.0, %v7341
    %7343 = vmatmul.f32.gmra.mxu0 %v7302
    %v7344 = vpop.f32.mrf.mxu0
    %v7345 = vadd.f32 0.0, %v7344
    %7346 = vdwg.mxu0
    %7347 = vmatpush.msra.mxu0 %v7264
    %7348 = vmatpush.msra.mxu0 %v7263
    %7349 = vmatpush.msra.mxu0 %v7262
    %7350 = vmatpush.msra.mxu0 %v7261
    %7351 = vmatpush.msra.mxu0 %v7260
    %7352 = vmatpush.msra.mxu0 %v7259
    %7353 = vmatpush.msra.mxu0 %v7258
    %7354 = vmatpush.msra.mxu0 %v7257
    %7355 = vmatpush.msra.mxu0 %v7256
    %7356 = vmatpush.msra.mxu0 %v7255
    %7357 = vmatpush.msra.mxu0 %v7254
    %7358 = vmatpush.msra.mxu0 %v7253
    %7359 = vmatpush.msra.mxu0 %v7252
    %7360 = vmatpush.msra.mxu0 %v7251
    %7361 = vmatpush.msra.mxu0 %v7250
    %7362 = vmatpush.msra.mxu0 %v7249
    %7363 = vmatmul.f32.gmra.mxu0 %v7241
    %v7364 = vpop.f32.mrf.mxu0
    %v7365 = vadd.f32 %v7339, %v7364
    %7366 = vmatmul.f32.gmra.mxu0 %v7244
    %v7367 = vpop.f32.mrf.mxu0
    %v7368 = vadd.f32 %v7342, %v7367
    %7369 = vmatmul.f32.gmra.mxu0 %v7247
    %v7370 = vpop.f32.mrf.mxu0
    %v7371 = vadd.f32 %v7345, %v7370
    %7372 = vdwg.mxu0
    %s7373 = scalar_lea.vmem %s8, 48
    %v7374 = vld [vmem:[%s7373] sm:$0xff]
    %v7375 = vld [vmem:[%s7373 + $0x8] sm:$0xff]
    %v7376 = vld [vmem:[%s7373 + $0x10] sm:$0x3]
    %v7378 = vsel %vm7213, %v7374, 0
    %v7381 = vsel %vm7213, %v7375, 0
    %v7384 = vsel %vm7213, %v7376, 0
    %7386 = vmatpush.msra.mxu0 0.0
    %7387 = vmatpush.msra.mxu0 0.0
    %7388 = vmatpush.msra.mxu0 0.0
    %7389 = vmatpush.msra.mxu0 0.0
    %7390 = vmatpush.msra.mxu0 0.0
    %7391 = vmatpush.msra.mxu0 0.0
    %7392 = vmatpush.msra.mxu0 0.0
    %7393 = vmatpush.msra.mxu0 %v7209
    %7394 = vmatpush.msra.mxu0 %v7208
    %7395 = vmatpush.msra.mxu0 %v7207
    %7396 = vmatpush.msra.mxu0 %v7206
    %7397 = vmatpush.msra.mxu0 %v7205
    %7398 = vmatpush.msra.mxu0 %v7204
    %7399 = vmatpush.msra.mxu0 %v7203
    %7400 = vmatpush.msra.mxu0 %v7202
    %7401 = vmatpush.msra.mxu0 %v7201
    %7402 = vmatmul.f32.gmra.mxu0 %v7378
    %v7403 = vpop.f32.mrf.mxu0
    %v7404 = vadd.f32 0.0, %v7403
    %7405 = vmatmul.f32.gmra.mxu0 %v7381
    %v7406 = vpop.f32.mrf.mxu0
    %v7407 = vadd.f32 0.0, %v7406
    %7408 = vmatmul.f32.gmra.mxu0 %v7384
    %v7409 = vpop.f32.mrf.mxu0
    %v7410 = vadd.f32 0.0, %v7409
    %7411 = vdwg.mxu0
    %s7412 = scalar_lea.vmem [#allocation5], 256
    %v7413 = vld [vmem:[%s7412] sm:$0xff]
    %v7414 = vld [vmem:[%s7412 + $0x8] sm:$0xff]
    %v7415 = vld [vmem:[%s7412 + $0x10] sm:$0xff]
    %v7416 = vld [vmem:[%s7412 + $0x18] sm:$0xff]
    %v7417 = vld [vmem:[%s7412 + $0x20] sm:$0xff]
    %v7418 = vld [vmem:[%s7412 + $0x28] sm:$0xff]
    %v7419 = vld [vmem:[%s7412 + $0x30] sm:$0xff]
    %v7420 = vld [vmem:[%s7412 + $0x38] sm:$0xff]
    %v7421 = vld [vmem:[%s7412 + $0x40] sm:$0xff]
    %v7422 = vld [vmem:[%s7412 + $0x48] sm:$0xff]
    %v7423 = vld [vmem:[%s7412 + $0x50] sm:$0xff]
    %v7424 = vld [vmem:[%s7412 + $0x58] sm:$0xff]
    %v7425 = vld [vmem:[%s7412 + $0x60] sm:$0xff]
    %v7426 = vld [vmem:[%s7412 + $0x68] sm:$0xff]
    %v7427 = vld [vmem:[%s7412 + $0x70] sm:$0xff]
    %v7428 = vld [vmem:[%s7412 + $0x78] sm:$0xff]
    %7429 = vmatpush.msra.mxu0 %v7428
    %7430 = vmatpush.msra.mxu0 %v7427
    %7431 = vmatpush.msra.mxu0 %v7426
    %7432 = vmatpush.msra.mxu0 %v7425
    %7433 = vmatpush.msra.mxu0 %v7424
    %7434 = vmatpush.msra.mxu0 %v7423
    %7435 = vmatpush.msra.mxu0 %v7422
    %7436 = vmatpush.msra.mxu0 %v7421
    %7437 = vmatpush.msra.mxu0 %v7420
    %7438 = vmatpush.msra.mxu0 %v7419
    %7439 = vmatpush.msra.mxu0 %v7418
    %7440 = vmatpush.msra.mxu0 %v7417
    %7441 = vmatpush.msra.mxu0 %v7416
    %7442 = vmatpush.msra.mxu0 %v7415
    %7443 = vmatpush.msra.mxu0 %v7414
    %7444 = vmatpush.msra.mxu0 %v7413
    %7445 = vmatmul.f32.gmra.mxu0 %v7404
    %v7446 = vpop.f32.mrf.mxu0
    %v7447 = vadd.f32 0.0, %v7446
    %7448 = vmatmul.f32.gmra.mxu0 %v7407
    %v7449 = vpop.f32.mrf.mxu0
    %v7450 = vadd.f32 0.0, %v7449
    %7451 = vmatmul.f32.gmra.mxu0 %v7410
    %v7452 = vpop.f32.mrf.mxu0
    %v7453 = vadd.f32 0.0, %v7452
    %7454 = vdwg.mxu0
    %v7455 = vadd.f32 %v7365, %v7447
    %v7456 = vadd.f32 %v7368, %v7450
    %v7457 = vadd.f32 %v7371, %v7453
    %s7458 = scalar_lea.vmem %s8, 72
    %v7459 = vld [vmem:[%s7458] sm:$0xff]
    %v7460 = vld [vmem:[%s7458 + $0x8] sm:$0xff]
    %v7461 = vld [vmem:[%s7458 + $0x10] sm:$0x3]
    %v7463 = vsel %vm7213, %v7459, 0
    %v7466 = vsel %vm7213, %v7460, 0
    %v7469 = vsel %vm7213, %v7461, 0
    %7471 = vmatpush.msra.mxu0 0.0
    %7472 = vmatpush.msra.mxu0 0.0
    %7473 = vmatpush.msra.mxu0 0.0
    %7474 = vmatpush.msra.mxu0 0.0
    %7475 = vmatpush.msra.mxu0 0.0
    %7476 = vmatpush.msra.mxu0 0.0
    %7477 = vmatpush.msra.mxu0 0.0
    %7478 = vmatpush.msra.mxu0 %v7209
    %7479 = vmatpush.msra.mxu0 %v7208
    %7480 = vmatpush.msra.mxu0 %v7207
    %7481 = vmatpush.msra.mxu0 %v7206
    %7482 = vmatpush.msra.mxu0 %v7205
    %7483 = vmatpush.msra.mxu0 %v7204
    %7484 = vmatpush.msra.mxu0 %v7203
    %7485 = vmatpush.msra.mxu0 %v7202
    %7486 = vmatpush.msra.mxu0 %v7201
    %7487 = vmatmul.f32.gmra.mxu0 %v7463
    %v7488 = vpop.f32.mrf.mxu0
    %v7489 = vadd.f32 0.0, %v7488
    %7490 = vmatmul.f32.gmra.mxu0 %v7466
    %v7491 = vpop.f32.mrf.mxu0
    %v7492 = vadd.f32 0.0, %v7491
    %7493 = vmatmul.f32.gmra.mxu0 %v7469
    %v7494 = vpop.f32.mrf.mxu0
    %v7495 = vadd.f32 0.0, %v7494
    %7496 = vdwg.mxu0
    %s7497 = scalar_lea.vmem [#allocation5], 384
    %v7498 = vld [vmem:[%s7497] sm:$0xff]
    %v7499 = vld [vmem:[%s7497 + $0x8] sm:$0xff]
    %v7500 = vld [vmem:[%s7497 + $0x10] sm:$0xff]
    %v7501 = vld [vmem:[%s7497 + $0x18] sm:$0xff]
    %v7502 = vld [vmem:[%s7497 + $0x20] sm:$0xff]
    %v7503 = vld [vmem:[%s7497 + $0x28] sm:$0xff]
    %v7504 = vld [vmem:[%s7497 + $0x30] sm:$0xff]
    %v7505 = vld [vmem:[%s7497 + $0x38] sm:$0xff]
    %v7506 = vld [vmem:[%s7497 + $0x40] sm:$0xff]
    %v7507 = vld [vmem:[%s7497 + $0x48] sm:$0xff]
    %v7508 = vld [vmem:[%s7497 + $0x50] sm:$0xff]
    %v7509 = vld [vmem:[%s7497 + $0x58] sm:$0xff]
    %v7510 = vld [vmem:[%s7497 + $0x60] sm:$0xff]
    %v7511 = vld [vmem:[%s7497 + $0x68] sm:$0xff]
    %v7512 = vld [vmem:[%s7497 + $0x70] sm:$0xff]
    %v7513 = vld [vmem:[%s7497 + $0x78] sm:$0xff]
    %7514 = vmatpush.msra.mxu0 %v7513
    %7515 = vmatpush.msra.mxu0 %v7512
    %7516 = vmatpush.msra.mxu0 %v7511
    %7517 = vmatpush.msra.mxu0 %v7510
    %7518 = vmatpush.msra.mxu0 %v7509
    %7519 = vmatpush.msra.mxu0 %v7508
    %7520 = vmatpush.msra.mxu0 %v7507
    %7521 = vmatpush.msra.mxu0 %v7506
    %7522 = vmatpush.msra.mxu0 %v7505
    %7523 = vmatpush.msra.mxu0 %v7504
    %7524 = vmatpush.msra.mxu0 %v7503
    %7525 = vmatpush.msra.mxu0 %v7502
    %7526 = vmatpush.msra.mxu0 %v7501
    %7527 = vmatpush.msra.mxu0 %v7500
    %7528 = vmatpush.msra.mxu0 %v7499
    %7529 = vmatpush.msra.mxu0 %v7498
    %7530 = vmatmul.f32.gmra.mxu0 %v7489
    %v7531 = vpop.f32.mrf.mxu0
    %v7532 = vadd.f32 0.0, %v7531
    %7533 = vmatmul.f32.gmra.mxu0 %v7492
    %v7534 = vpop.f32.mrf.mxu0
    %v7535 = vadd.f32 0.0, %v7534
    %7536 = vmatmul.f32.gmra.mxu0 %v7495
    %v7537 = vpop.f32.mrf.mxu0
    %v7538 = vadd.f32 0.0, %v7537
    %7539 = vdwg.mxu0
    %v7540 = vadd.f32 %v7455, %v7532
    %v7541 = vadd.f32 %v7456, %v7535
    %v7542 = vadd.f32 %v7457, %v7538
    %s7543 = scalar_lea.vmem %s8, 96
    %v7544 = vld [vmem:[%s7543] sm:$0xff]
    %v7545 = vld [vmem:[%s7543 + $0x8] sm:$0xff]
    %v7546 = vld [vmem:[%s7543 + $0x10] sm:$0x3]
    %v7548 = vsel %vm7213, %v7544, 0
    %v7551 = vsel %vm7213, %v7545, 0
    %v7554 = vsel %vm7213, %v7546, 0
    %7556 = vmatpush.msra.mxu0 0.0
    %7557 = vmatpush.msra.mxu0 0.0
    %7558 = vmatpush.msra.mxu0 0.0
    %7559 = vmatpush.msra.mxu0 0.0
    %7560 = vmatpush.msra.mxu0 0.0
    %7561 = vmatpush.msra.mxu0 0.0
    %7562 = vmatpush.msra.mxu0 0.0
    %7563 = vmatpush.msra.mxu0 %v7209
    %7564 = vmatpush.msra.mxu0 %v7208
    %7565 = vmatpush.msra.mxu0 %v7207
    %7566 = vmatpush.msra.mxu0 %v7206
    %7567 = vmatpush.msra.mxu0 %v7205
    %7568 = vmatpush.msra.mxu0 %v7204
    %7569 = vmatpush.msra.mxu0 %v7203
    %7570 = vmatpush.msra.mxu0 %v7202
    %7571 = vmatpush.msra.mxu0 %v7201
    %7572 = vmatmul.f32.gmra.mxu0 %v7548
    %v7573 = vpop.f32.mrf.mxu0
    %v7574 = vadd.f32 0.0, %v7573
    %7575 = vmatmul.f32.gmra.mxu0 %v7551
    %v7576 = vpop.f32.mrf.mxu0
    %v7577 = vadd.f32 0.0, %v7576
    %7578 = vmatmul.f32.gmra.mxu0 %v7554
    %v7579 = vpop.f32.mrf.mxu0
    %v7580 = vadd.f32 0.0, %v7579
    %7581 = vdwg.mxu0
    %s7582 = scalar_lea.vmem [#allocation5], 512
    %v7583 = vld [vmem:[%s7582] sm:$0xff]
    %v7584 = vld [vmem:[%s7582 + $0x8] sm:$0xff]
    %v7585 = vld [vmem:[%s7582 + $0x10] sm:$0xff]
    %v7586 = vld [vmem:[%s7582 + $0x18] sm:$0xff]
    %v7587 = vld [vmem:[%s7582 + $0x20] sm:$0xff]
    %v7588 = vld [vmem:[%s7582 + $0x28] sm:$0xff]
    %v7589 = vld [vmem:[%s7582 + $0x30] sm:$0xff]
    %v7590 = vld [vmem:[%s7582 + $0x38] sm:$0xff]
    %v7591 = vld [vmem:[%s7582 + $0x40] sm:$0xff]
    %v7592 = vld [vmem:[%s7582 + $0x48] sm:$0xff]
    %v7593 = vld [vmem:[%s7582 + $0x50] sm:$0xff]
    %v7594 = vld [vmem:[%s7582 + $0x58] sm:$0xff]
    %v7595 = vld [vmem:[%s7582 + $0x60] sm:$0xff]
    %v7596 = vld [vmem:[%s7582 + $0x68] sm:$0xff]
    %v7597 = vld [vmem:[%s7582 + $0x70] sm:$0xff]
    %v7598 = vld [vmem:[%s7582 + $0x78] sm:$0xff]
    %7599 = vmatpush.msra.mxu0 %v7598
    %7600 = vmatpush.msra.mxu0 %v7597
    %7601 = vmatpush.msra.mxu0 %v7596
    %7602 = vmatpush.msra.mxu0 %v7595
    %7603 = vmatpush.msra.mxu0 %v7594
    %7604 = vmatpush.msra.mxu0 %v7593
    %7605 = vmatpush.msra.mxu0 %v7592
    %7606 = vmatpush.msra.mxu0 %v7591
    %7607 = vmatpush.msra.mxu0 %v7590
    %7608 = vmatpush.msra.mxu0 %v7589
    %7609 = vmatpush.msra.mxu0 %v7588
    %7610 = vmatpush.msra.mxu0 %v7587
    %7611 = vmatpush.msra.mxu0 %v7586
    %7612 = vmatpush.msra.mxu0 %v7585
    %7613 = vmatpush.msra.mxu0 %v7584
    %7614 = vmatpush.msra.mxu0 %v7583
    %7615 = vmatmul.f32.gmra.mxu0 %v7574
    %v7616 = vpop.f32.mrf.mxu0
    %v7617 = vadd.f32 0.0, %v7616
    %7618 = vmatmul.f32.gmra.mxu0 %v7577
    %v7619 = vpop.f32.mrf.mxu0
    %v7620 = vadd.f32 0.0, %v7619
    %7621 = vmatmul.f32.gmra.mxu0 %v7580
    %v7622 = vpop.f32.mrf.mxu0
    %v7623 = vadd.f32 0.0, %v7622
    %7624 = vdwg.mxu0
    %v7625 = vadd.f32 %v7540, %v7617
    %v7626 = vadd.f32 %v7541, %v7620
    %v7627 = vadd.f32 %v7542, %v7623
    %s7628 = scalar_lea.vmem %s8, 120
    %v7629 = vld [vmem:[%s7628] sm:$0xff]
    %v7630 = vld [vmem:[%s7628 + $0x8] sm:$0xff]
    %v7631 = vld [vmem:[%s7628 + $0x10] sm:$0x3]
    %v7633 = vsel %vm7213, %v7629, 0
    %v7636 = vsel %vm7213, %v7630, 0
    %v7639 = vsel %vm7213, %v7631, 0
    %7641 = vmatpush.msra.mxu0 0.0
    %7642 = vmatpush.msra.mxu0 0.0
    %7643 = vmatpush.msra.mxu0 0.0
    %7644 = vmatpush.msra.mxu0 0.0
    %7645 = vmatpush.msra.mxu0 0.0
    %7646 = vmatpush.msra.mxu0 0.0
    %7647 = vmatpush.msra.mxu0 0.0
    %7648 = vmatpush.msra.mxu0 %v7209
    %7649 = vmatpush.msra.mxu0 %v7208
    %7650 = vmatpush.msra.mxu0 %v7207
    %7651 = vmatpush.msra.mxu0 %v7206
    %7652 = vmatpush.msra.mxu0 %v7205
    %7653 = vmatpush.msra.mxu0 %v7204
    %7654 = vmatpush.msra.mxu0 %v7203
    %7655 = vmatpush.msra.mxu0 %v7202
    %7656 = vmatpush.msra.mxu0 %v7201
    %7657 = vmatmul.f32.gmra.mxu0 %v7633
    %v7658 = vpop.f32.mrf.mxu0
    %v7659 = vadd.f32 0.0, %v7658
    %7660 = vmatmul.f32.gmra.mxu0 %v7636
    %v7661 = vpop.f32.mrf.mxu0
    %v7662 = vadd.f32 0.0, %v7661
    %7663 = vmatmul.f32.gmra.mxu0 %v7639
    %v7664 = vpop.f32.mrf.mxu0
    %v7665 = vadd.f32 0.0, %v7664
    %7666 = vdwg.mxu0
    %s7667 = scalar_lea.vmem [#allocation5], 640
    %v7668 = vld [vmem:[%s7667] sm:$0xff]
    %v7669 = vld [vmem:[%s7667 + $0x8] sm:$0xff]
    %v7670 = vld [vmem:[%s7667 + $0x10] sm:$0xff]
    %v7671 = vld [vmem:[%s7667 + $0x18] sm:$0xff]
    %v7672 = vld [vmem:[%s7667 + $0x20] sm:$0xff]
    %v7673 = vld [vmem:[%s7667 + $0x28] sm:$0xff]
    %v7674 = vld [vmem:[%s7667 + $0x30] sm:$0xff]
    %v7675 = vld [vmem:[%s7667 + $0x38] sm:$0xff]
    %v7676 = vld [vmem:[%s7667 + $0x40] sm:$0xff]
    %v7677 = vld [vmem:[%s7667 + $0x48] sm:$0xff]
    %v7678 = vld [vmem:[%s7667 + $0x50] sm:$0xff]
    %v7679 = vld [vmem:[%s7667 + $0x58] sm:$0xff]
    %v7680 = vld [vmem:[%s7667 + $0x60] sm:$0xff]
    %v7681 = vld [vmem:[%s7667 + $0x68] sm:$0xff]
    %v7682 = vld [vmem:[%s7667 + $0x70] sm:$0xff]
    %v7683 = vld [vmem:[%s7667 + $0x78] sm:$0xff]
    %7684 = vmatpush.msra.mxu0 %v7683
    %7685 = vmatpush.msra.mxu0 %v7682
    %7686 = vmatpush.msra.mxu0 %v7681
    %7687 = vmatpush.msra.mxu0 %v7680
    %7688 = vmatpush.msra.mxu0 %v7679
    %7689 = vmatpush.msra.mxu0 %v7678
    %7690 = vmatpush.msra.mxu0 %v7677
    %7691 = vmatpush.msra.mxu0 %v7676
    %7692 = vmatpush.msra.mxu0 %v7675
    %7693 = vmatpush.msra.mxu0 %v7674
    %7694 = vmatpush.msra.mxu0 %v7673
    %7695 = vmatpush.msra.mxu0 %v7672
    %7696 = vmatpush.msra.mxu0 %v7671
    %7697 = vmatpush.msra.mxu0 %v7670
    %7698 = vmatpush.msra.mxu0 %v7669
    %7699 = vmatpush.msra.mxu0 %v7668
    %7700 = vmatmul.f32.gmra.mxu0 %v7659
    %v7701 = vpop.f32.mrf.mxu0
    %v7702 = vadd.f32 0.0, %v7701
    %7703 = vmatmul.f32.gmra.mxu0 %v7662
    %v7704 = vpop.f32.mrf.mxu0
    %v7705 = vadd.f32 0.0, %v7704
    %7706 = vmatmul.f32.gmra.mxu0 %v7665
    %v7707 = vpop.f32.mrf.mxu0
    %v7708 = vadd.f32 0.0, %v7707
    %7709 = vdwg.mxu0
    %v7710 = vadd.f32 %v7625, %v7702
    %v7711 = vadd.f32 %v7626, %v7705
    %v7712 = vadd.f32 %v7627, %v7708
    %s7713 = scalar_lea.vmem %s8, 144
    %v7714 = vld [vmem:[%s7713] sm:$0xff]
    %v7715 = vld [vmem:[%s7713 + $0x8] sm:$0xff]
    %v7716 = vld [vmem:[%s7713 + $0x10] sm:$0x3]
    %v7718 = vsel %vm7213, %v7714, 0
    %v7721 = vsel %vm7213, %v7715, 0
    %v7724 = vsel %vm7213, %v7716, 0
    %7726 = vmatpush.msra.mxu0 0.0
    %7727 = vmatpush.msra.mxu0 0.0
    %7728 = vmatpush.msra.mxu0 0.0
    %7729 = vmatpush.msra.mxu0 0.0
    %7730 = vmatpush.msra.mxu0 0.0
    %7731 = vmatpush.msra.mxu0 0.0
    %7732 = vmatpush.msra.mxu0 0.0
    %7733 = vmatpush.msra.mxu0 %v7209
    %7734 = vmatpush.msra.mxu0 %v7208
    %7735 = vmatpush.msra.mxu0 %v7207
    %7736 = vmatpush.msra.mxu0 %v7206
    %7737 = vmatpush.msra.mxu0 %v7205
    %7738 = vmatpush.msra.mxu0 %v7204
    %7739 = vmatpush.msra.mxu0 %v7203
    %7740 = vmatpush.msra.mxu0 %v7202
    %7741 = vmatpush.msra.mxu0 %v7201
    %7742 = vmatmul.f32.gmra.mxu0 %v7718
    %v7743 = vpop.f32.mrf.mxu0
    %v7744 = vadd.f32 0.0, %v7743
    %7745 = vmatmul.f32.gmra.mxu0 %v7721
    %v7746 = vpop.f32.mrf.mxu0
    %v7747 = vadd.f32 0.0, %v7746
    %7748 = vmatmul.f32.gmra.mxu0 %v7724
    %v7749 = vpop.f32.mrf.mxu0
    %v7750 = vadd.f32 0.0, %v7749
    %7751 = vdwg.mxu0
    %s7752 = scalar_lea.vmem [#allocation5], 768
    %v7753 = vld [vmem:[%s7752] sm:$0xff]
    %v7754 = vld [vmem:[%s7752 + $0x8] sm:$0xff]
    %v7755 = vld [vmem:[%s7752 + $0x10] sm:$0xff]
    %v7756 = vld [vmem:[%s7752 + $0x18] sm:$0xff]
    %v7757 = vld [vmem:[%s7752 + $0x20] sm:$0xff]
    %v7758 = vld [vmem:[%s7752 + $0x28] sm:$0xff]
    %v7759 = vld [vmem:[%s7752 + $0x30] sm:$0xff]
    %v7760 = vld [vmem:[%s7752 + $0x38] sm:$0xff]
    %v7761 = vld [vmem:[%s7752 + $0x40] sm:$0xff]
    %v7762 = vld [vmem:[%s7752 + $0x48] sm:$0xff]
    %v7763 = vld [vmem:[%s7752 + $0x50] sm:$0xff]
    %v7764 = vld [vmem:[%s7752 + $0x58] sm:$0xff]
    %v7765 = vld [vmem:[%s7752 + $0x60] sm:$0xff]
    %v7766 = vld [vmem:[%s7752 + $0x68] sm:$0xff]
    %v7767 = vld [vmem:[%s7752 + $0x70] sm:$0xff]
    %v7768 = vld [vmem:[%s7752 + $0x78] sm:$0xff]
    %7769 = vmatpush.msra.mxu0 %v7768
    %7770 = vmatpush.msra.mxu0 %v7767
    %7771 = vmatpush.msra.mxu0 %v7766
    %7772 = vmatpush.msra.mxu0 %v7765
    %7773 = vmatpush.msra.mxu0 %v7764
    %7774 = vmatpush.msra.mxu0 %v7763
    %7775 = vmatpush.msra.mxu0 %v7762
    %7776 = vmatpush.msra.mxu0 %v7761
    %7777 = vmatpush.msra.mxu0 %v7760
    %7778 = vmatpush.msra.mxu0 %v7759
    %7779 = vmatpush.msra.mxu0 %v7758
    %7780 = vmatpush.msra.mxu0 %v7757
    %7781 = vmatpush.msra.mxu0 %v7756
    %7782 = vmatpush.msra.mxu0 %v7755
    %7783 = vmatpush.msra.mxu0 %v7754
    %7784 = vmatpush.msra.mxu0 %v7753
    %7785 = vmatmul.f32.gmra.mxu0 %v7744
    %v7786 = vpop.f32.mrf.mxu0
    %v7787 = vadd.f32 0.0, %v7786
    %7788 = vmatmul.f32.gmra.mxu0 %v7747
    %v7789 = vpop.f32.mrf.mxu0
    %v7790 = vadd.f32 0.0, %v7789
    %7791 = vmatmul.f32.gmra.mxu0 %v7750
    %v7792 = vpop.f32.mrf.mxu0
    %v7793 = vadd.f32 0.0, %v7792
    %7794 = vdwg.mxu0
    %v7795 = vadd.f32 %v7710, %v7787
    %v7796 = vadd.f32 %v7711, %v7790
    %v7797 = vadd.f32 %v7712, %v7793
    %s7798 = scalar_lea.vmem %s8, 168
    %v7799 = vld [vmem:[%s7798] sm:$0xff]
    %v7800 = vld [vmem:[%s7798 + $0x8] sm:$0xff]
    %v7801 = vld [vmem:[%s7798 + $0x10] sm:$0x3]
    %v7803 = vsel %vm7213, %v7799, 0
    %v7806 = vsel %vm7213, %v7800, 0
    %v7809 = vsel %vm7213, %v7801, 0
    %7811 = vmatpush.msra.mxu0 0.0
    %7812 = vmatpush.msra.mxu0 0.0
    %7813 = vmatpush.msra.mxu0 0.0
    %7814 = vmatpush.msra.mxu0 0.0
    %7815 = vmatpush.msra.mxu0 0.0
    %7816 = vmatpush.msra.mxu0 0.0
    %7817 = vmatpush.msra.mxu0 0.0
    %7818 = vmatpush.msra.mxu0 %v7209
    %7819 = vmatpush.msra.mxu0 %v7208
    %7820 = vmatpush.msra.mxu0 %v7207
    %7821 = vmatpush.msra.mxu0 %v7206
    %7822 = vmatpush.msra.mxu0 %v7205
    %7823 = vmatpush.msra.mxu0 %v7204
    %7824 = vmatpush.msra.mxu0 %v7203
    %7825 = vmatpush.msra.mxu0 %v7202
    %7826 = vmatpush.msra.mxu0 %v7201
    %7827 = vmatmul.f32.gmra.mxu0 %v7803
    %v7828 = vpop.f32.mrf.mxu0
    %v7829 = vadd.f32 0.0, %v7828
    %7830 = vmatmul.f32.gmra.mxu0 %v7806
    %v7831 = vpop.f32.mrf.mxu0
    %v7832 = vadd.f32 0.0, %v7831
    %7833 = vmatmul.f32.gmra.mxu0 %v7809
    %v7834 = vpop.f32.mrf.mxu0
    %v7835 = vadd.f32 0.0, %v7834
    %7836 = vdwg.mxu0
    %s7837 = scalar_lea.vmem [#allocation5], 896
    %v7838 = vld [vmem:[%s7837] sm:$0xff]
    %v7839 = vld [vmem:[%s7837 + $0x8] sm:$0xff]
    %v7840 = vld [vmem:[%s7837 + $0x10] sm:$0xff]
    %v7841 = vld [vmem:[%s7837 + $0x18] sm:$0xff]
    %v7842 = vld [vmem:[%s7837 + $0x20] sm:$0xff]
    %v7843 = vld [vmem:[%s7837 + $0x28] sm:$0xff]
    %v7844 = vld [vmem:[%s7837 + $0x30] sm:$0xff]
    %v7845 = vld [vmem:[%s7837 + $0x38] sm:$0xff]
    %v7846 = vld [vmem:[%s7837 + $0x40] sm:$0xff]
    %v7847 = vld [vmem:[%s7837 + $0x48] sm:$0xff]
    %v7848 = vld [vmem:[%s7837 + $0x50] sm:$0xff]
    %v7849 = vld [vmem:[%s7837 + $0x58] sm:$0xff]
    %v7850 = vld [vmem:[%s7837 + $0x60] sm:$0xff]
    %v7851 = vld [vmem:[%s7837 + $0x68] sm:$0xff]
    %v7852 = vld [vmem:[%s7837 + $0x70] sm:$0xff]
    %v7853 = vld [vmem:[%s7837 + $0x78] sm:$0xff]
    %7854 = vmatpush.msra.mxu0 %v7853
    %7855 = vmatpush.msra.mxu0 %v7852
    %7856 = vmatpush.msra.mxu0 %v7851
    %7857 = vmatpush.msra.mxu0 %v7850
    %7858 = vmatpush.msra.mxu0 %v7849
    %7859 = vmatpush.msra.mxu0 %v7848
    %7860 = vmatpush.msra.mxu0 %v7847
    %7861 = vmatpush.msra.mxu0 %v7846
    %7862 = vmatpush.msra.mxu0 %v7845
    %7863 = vmatpush.msra.mxu0 %v7844
    %7864 = vmatpush.msra.mxu0 %v7843
    %7865 = vmatpush.msra.mxu0 %v7842
    %7866 = vmatpush.msra.mxu0 %v7841
    %7867 = vmatpush.msra.mxu0 %v7840
    %7868 = vmatpush.msra.mxu0 %v7839
    %7869 = vmatpush.msra.mxu0 %v7838
    %7870 = vmatmul.f32.gmra.mxu0 %v7829
    %v7871 = vpop.f32.mrf.mxu0
    %v7872 = vadd.f32 0.0, %v7871
    %7873 = vmatmul.f32.gmra.mxu0 %v7832
    %v7874 = vpop.f32.mrf.mxu0
    %v7875 = vadd.f32 0.0, %v7874
    %7876 = vmatmul.f32.gmra.mxu0 %v7835
    %v7877 = vpop.f32.mrf.mxu0
    %v7878 = vadd.f32 0.0, %v7877
    %7879 = vdwg.mxu0
    %v7880 = vadd.f32 %v7795, %v7872
    %v7881 = vadd.f32 %v7796, %v7875
    %v7882 = vadd.f32 %v7797, %v7878
    %s7883 = scalar_lea.vmem %s8, 192
    %v7884 = vld [vmem:[%s7883] sm:$0xff]
    %v7885 = vld [vmem:[%s7883 + $0x8] sm:$0xff]
    %v7886 = vld [vmem:[%s7883 + $0x10] sm:$0x3]
    %v7888 = vsel %vm7213, %v7884, 0
    %v7891 = vsel %vm7213, %v7885, 0
    %v7894 = vsel %vm7213, %v7886, 0
    %7896 = vmatpush.msra.mxu0 0.0
    %7897 = vmatpush.msra.mxu0 0.0
    %7898 = vmatpush.msra.mxu0 0.0
    %7899 = vmatpush.msra.mxu0 0.0
    %7900 = vmatpush.msra.mxu0 0.0
    %7901 = vmatpush.msra.mxu0 0.0
    %7902 = vmatpush.msra.mxu0 0.0
    %7903 = vmatpush.msra.mxu0 %v7209
    %7904 = vmatpush.msra.mxu0 %v7208
    %7905 = vmatpush.msra.mxu0 %v7207
    %7906 = vmatpush.msra.mxu0 %v7206
    %7907 = vmatpush.msra.mxu0 %v7205
    %7908 = vmatpush.msra.mxu0 %v7204
    %7909 = vmatpush.msra.mxu0 %v7203
    %7910 = vmatpush.msra.mxu0 %v7202
    %7911 = vmatpush.msra.mxu0 %v7201
    %7912 = vmatmul.f32.gmra.mxu0 %v7888
    %v7913 = vpop.f32.mrf.mxu0
    %v7914 = vadd.f32 0.0, %v7913
    %7915 = vmatmul.f32.gmra.mxu0 %v7891
    %v7916 = vpop.f32.mrf.mxu0
    %v7917 = vadd.f32 0.0, %v7916
    %7918 = vmatmul.f32.gmra.mxu0 %v7894
    %v7919 = vpop.f32.mrf.mxu0
    %v7920 = vadd.f32 0.0, %v7919
    %7921 = vdwg.mxu0
    %s7922 = scalar_lea.vmem [#allocation5], 1024
    %v7923 = vld [vmem:[%s7922] sm:$0xff]
    %v7924 = vld [vmem:[%s7922 + $0x8] sm:$0xff]
    %v7925 = vld [vmem:[%s7922 + $0x10] sm:$0xff]
    %v7926 = vld [vmem:[%s7922 + $0x18] sm:$0xff]
    %v7927 = vld [vmem:[%s7922 + $0x20] sm:$0xff]
    %v7928 = vld [vmem:[%s7922 + $0x28] sm:$0xff]
    %v7929 = vld [vmem:[%s7922 + $0x30] sm:$0xff]
    %v7930 = vld [vmem:[%s7922 + $0x38] sm:$0xff]
    %v7931 = vld [vmem:[%s7922 + $0x40] sm:$0xff]
    %v7932 = vld [vmem:[%s7922 + $0x48] sm:$0xff]
    %v7933 = vld [vmem:[%s7922 + $0x50] sm:$0xff]
    %v7934 = vld [vmem:[%s7922 + $0x58] sm:$0xff]
    %v7935 = vld [vmem:[%s7922 + $0x60] sm:$0xff]
    %v7936 = vld [vmem:[%s7922 + $0x68] sm:$0xff]
    %v7937 = vld [vmem:[%s7922 + $0x70] sm:$0xff]
    %v7938 = vld [vmem:[%s7922 + $0x78] sm:$0xff]
    %7939 = vmatpush.msra.mxu0 %v7938
    %7940 = vmatpush.msra.mxu0 %v7937
    %7941 = vmatpush.msra.mxu0 %v7936
    %7942 = vmatpush.msra.mxu0 %v7935
    %7943 = vmatpush.msra.mxu0 %v7934
    %7944 = vmatpush.msra.mxu0 %v7933
    %7945 = vmatpush.msra.mxu0 %v7932
    %7946 = vmatpush.msra.mxu0 %v7931
    %7947 = vmatpush.msra.mxu0 %v7930
    %7948 = vmatpush.msra.mxu0 %v7929
    %7949 = vmatpush.msra.mxu0 %v7928
    %7950 = vmatpush.msra.mxu0 %v7927
    %7951 = vmatpush.msra.mxu0 %v7926
    %7952 = vmatpush.msra.mxu0 %v7925
    %7953 = vmatpush.msra.mxu0 %v7924
    %7954 = vmatpush.msra.mxu0 %v7923
    %7955 = vmatmul.f32.gmra.mxu0 %v7914
    %v7956 = vpop.f32.mrf.mxu0
    %v7957 = vadd.f32 0.0, %v7956
    %7958 = vmatmul.f32.gmra.mxu0 %v7917
    %v7959 = vpop.f32.mrf.mxu0
    %v7960 = vadd.f32 0.0, %v7959
    %7961 = vmatmul.f32.gmra.mxu0 %v7920
    %v7962 = vpop.f32.mrf.mxu0
    %v7963 = vadd.f32 0.0, %v7962
    %7964 = vdwg.mxu0
    %v7965 = vadd.f32 %v7880, %v7957
    %v7966 = vadd.f32 %v7881, %v7960
    %v7967 = vadd.f32 %v7882, %v7963
    %v7968 = vld [vmem:[%s10] sm:$0x1]
    %v7969 = vld [vmem:[%s11] sm:$0x1]
    %v7970 = vadd.f32 %v7965, %v7966
    %v7971 = vsel %vm349, %v7967, 0.0
    %v7972 = vadd.f32 %v7970, %v7971
    %v7973 = vrot.slane %v7972, 4
    %v7974 = vadd.f32 %v7972, %v7973
    %v7975 = vrot.slane %v7974, 2
    %v7976 = vadd.f32 %v7974, %v7975
    %v7977 = vrot.slane %v7976, 1
    %v7978 = vadd.f32 %v7976, %v7977
    %v7979 = vrcp.pop 18.0
    %v7980 = vmul.f32 18.0, %v7979
    %v7981 = vsub.f32 1.0, %v7980
    %v7982 = vmul.f32 %v7979, %v7981
    %v7983 = vadd.f32 %v7979, %v7982
    %vm7984 = vweird.f32 %v7979
    %v7985 = vsel %vm7984, %v7979, %v7983
    %v7986 = vmul.f32 %v7978, %v7985
    %v7987 = vsub.f32 %v7965, %v7986
    %v7988 = vsub.f32 %v7966, %v7986
    %v7989 = vsub.f32 %v7967, %v7986
    %v7990 = vmul.f32 %v7987, %v7987
    %v7991 = vmul.f32 %v7988, %v7988
    %v7992 = vmul.f32 %v7989, %v7989
    %v7993 = vadd.f32 %v7990, %v7991
    %v7994 = vsel %vm349, %v7992, 0.0
    %v7995 = vadd.f32 %v7993, %v7994
    %v7996 = vrot.slane %v7995, 4
    %v7997 = vadd.f32 %v7995, %v7996
    %v7998 = vrot.slane %v7997, 2
    %v7999 = vadd.f32 %v7997, %v7998
    %v8000 = vrot.slane %v7999, 1
    %v8001 = vadd.f32 %v7999, %v8000
    %v8002 = vmul.f32 %v8001, %v7985
    %v8004 = vperm.slane %v7968, 0
    %v8006 = vmul.f32 %v8004, %v7987
    %v8007 = vmul.f32 %v8004, %v7988
    %v8008 = vmul.f32 %v8004, %v7989
    %v8009 = vadd.f32 %v8002, 1e-05
    %v8010 = vrsqrt.pop %v8009
    %v8011 = vmul.f32 %v8010, %v8009
    %v8012 = vmul.f32 %v8011, %v8010
    %v8013 = vmul.f32 0.5, %v8012
    %v8014 = vsub.f32 1.5, %v8013
    %v8015 = vmul.f32 %v8010, %v8014
    %vm8016 = vweird.f32 %v8009
    %vm8017 = vweird.f32 %v8010
    %vm8018 = vmor %vm8016, %vm8017
    %v8019 = vsel %vm8018, %v8010, %v8015
    %v8020 = vmul.f32 %v8006, %v8019
    %v8021 = vmul.f32 %v8007, %v8019
    %v8022 = vmul.f32 %v8008, %v8019
    %v8024 = vperm.slane %v7969, 0
    %v8026 = vadd.f32 %v8020, %v8024
    %v8027 = vadd.f32 %v8021, %v8024
    %v8028 = vadd.f32 %v8022, %v8024
    %v8029 = vmax.f32 %v8026, 0.0
    %v8030 = vmax.f32 %v8027, 0.0
    %v8031 = vmax.f32 %v8028, 0.0
    %v8032 = vld [vmem:[%s12] sm:$0x3]
    %vm8033 = vcmask 146432
    %v8035 = vsel %vm8033, %v8032, 0
    %v8038 = vsel %vm349, %v8031, 0
    %8040 = vmatpush.msra.mxu0 0.0
    %8041 = vmatpush.msra.mxu0 0.0
    %8042 = vmatpush.msra.mxu0 0.0
    %8043 = vmatpush.msra.mxu0 0.0
    %8044 = vmatpush.msra.mxu0 0.0
    %8045 = vmatpush.msra.mxu0 0.0
    %8046 = vmatpush.msra.mxu0 0.0
    %8047 = vmatpush.msra.mxu0 0.0
    %8048 = vmatpush.msra.mxu0 0.0
    %8049 = vmatpush.msra.mxu0 0.0
    %8050 = vmatpush.msra.mxu0 0.0
    %8051 = vmatpush.msra.mxu0 0.0
    %8052 = vmatpush.msra.mxu0 0.0
    %8053 = vmatpush.msra.mxu0 %v8038
    %8054 = vmatpush.msra.mxu0 %v8030
    %8055 = vmatpush.msra.mxu0 %v8029
    %8056 = vmatmul.f32.gmra.mxu0 %v8035
    %v8057 = vpop.f32.mrf.mxu0
    %v8058 = vadd.f32 0.0, %v8057
    %8059 = vdwg.mxu0
    %v8060 = vld [vmem:[#allocation7] sm:$0xff]
    %v8061 = vld [vmem:[#allocation7 + $0x8] sm:$0xff]
    %v8062 = vld [vmem:[#allocation7 + $0x10] sm:$0xff]
    %v8063 = vld [vmem:[#allocation7 + $0x18] sm:$0xff]
    %v8064 = vld [vmem:[#allocation7 + $0x20] sm:$0xff]
    %v8065 = vld [vmem:[#allocation7 + $0x28] sm:$0xff]
    %v8066 = vld [vmem:[#allocation7 + $0x30] sm:$0xff]
    %v8067 = vld [vmem:[#allocation7 + $0x38] sm:$0xff]
    %v8068 = vld [vmem:[#allocation7 + $0x40] sm:$0xff]
    %v8069 = vld [vmem:[#allocation7 + $0x48] sm:$0xff]
    %v8070 = vld [vmem:[#allocation7 + $0x50] sm:$0xff]
    %v8071 = vld [vmem:[#allocation7 + $0x58] sm:$0xff]
    %v8072 = vld [vmem:[#allocation7 + $0x60] sm:$0xff]
    %v8073 = vld [vmem:[#allocation7 + $0x68] sm:$0xff]
    %v8074 = vld [vmem:[#allocation7 + $0x70] sm:$0xff]
    %v8075 = vld [vmem:[#allocation7 + $0x78] sm:$0xff]
    %s8076 = scalar_lea.vmem %s12, 2
    %v8077 = vld [vmem:[%s8076] sm:$0x3]
    %v8079 = vsel %vm8033, %v8077, 0
    %8081 = vmatpush.msra.mxu0 0.0
    %8082 = vmatpush.msra.mxu0 0.0
    %8083 = vmatpush.msra.mxu0 0.0
    %8084 = vmatpush.msra.mxu0 0.0
    %8085 = vmatpush.msra.mxu0 0.0
    %8086 = vmatpush.msra.mxu0 0.0
    %8087 = vmatpush.msra.mxu0 0.0
    %8088 = vmatpush.msra.mxu0 0.0
    %8089 = vmatpush.msra.mxu0 0.0
    %8090 = vmatpush.msra.mxu0 0.0
    %8091 = vmatpush.msra.mxu0 0.0
    %8092 = vmatpush.msra.mxu0 0.0
    %8093 = vmatpush.msra.mxu0 0.0
    %8094 = vmatpush.msra.mxu0 %v8038
    %8095 = vmatpush.msra.mxu0 %v8030
    %8096 = vmatpush.msra.mxu0 %v8029
    %8097 = vmatmul.f32.gmra.mxu0 %v8079
    %v8098 = vpop.f32.mrf.mxu0
    %v8099 = vadd.f32 0.0, %v8098
    %8100 = vdwg.mxu0
    %s8101 = scalar_lea.vmem [#allocation7], 128
    %v8102 = vld [vmem:[%s8101] sm:$0xff]
    %v8103 = vld [vmem:[%s8101 + $0x8] sm:$0xff]
    %v8104 = vld [vmem:[%s8101 + $0x10] sm:$0xff]
    %v8105 = vld [vmem:[%s8101 + $0x18] sm:$0xff]
    %v8106 = vld [vmem:[%s8101 + $0x20] sm:$0xff]
    %v8107 = vld [vmem:[%s8101 + $0x28] sm:$0xff]
    %v8108 = vld [vmem:[%s8101 + $0x30] sm:$0xff]
    %v8109 = vld [vmem:[%s8101 + $0x38] sm:$0xff]
    %v8110 = vld [vmem:[%s8101 + $0x40] sm:$0xff]
    %v8111 = vld [vmem:[%s8101 + $0x48] sm:$0xff]
    %v8112 = vld [vmem:[%s8101 + $0x50] sm:$0xff]
    %v8113 = vld [vmem:[%s8101 + $0x58] sm:$0xff]
    %v8114 = vld [vmem:[%s8101 + $0x60] sm:$0xff]
    %v8115 = vld [vmem:[%s8101 + $0x68] sm:$0xff]
    %v8116 = vld [vmem:[%s8101 + $0x70] sm:$0xff]
    %v8117 = vld [vmem:[%s8101 + $0x78] sm:$0xff]
    %8118 = vmatpush.msra.mxu0 %v8117
    %8119 = vmatpush.msra.mxu0 %v8116
    %8120 = vmatpush.msra.mxu0 %v8115
    %8121 = vmatpush.msra.mxu0 %v8114
    %8122 = vmatpush.msra.mxu0 %v8113
    %8123 = vmatpush.msra.mxu0 %v8112
    %8124 = vmatpush.msra.mxu0 %v8111
    %8125 = vmatpush.msra.mxu0 %v8110
    %8126 = vmatpush.msra.mxu0 %v8109
    %8127 = vmatpush.msra.mxu0 %v8108
    %8128 = vmatpush.msra.mxu0 %v8107
    %8129 = vmatpush.msra.mxu0 %v8106
    %8130 = vmatpush.msra.mxu0 %v8105
    %8131 = vmatpush.msra.mxu0 %v8104
    %8132 = vmatpush.msra.mxu0 %v8103
    %8133 = vmatpush.msra.mxu0 %v8102
    %8134 = vmatmul.f32.gmra.mxu0 %v8099
    %v8135 = vpop.f32.mrf.mxu0
    %v8136 = vadd.f32 0.0, %v8135
    %8137 = vdwg.mxu0
    %8138 = vmatpush.msra.mxu0 %v8075
    %8139 = vmatpush.msra.mxu0 %v8074
    %8140 = vmatpush.msra.mxu0 %v8073
    %8141 = vmatpush.msra.mxu0 %v8072
    %8142 = vmatpush.msra.mxu0 %v8071
    %8143 = vmatpush.msra.mxu0 %v8070
    %8144 = vmatpush.msra.mxu0 %v8069
    %8145 = vmatpush.msra.mxu0 %v8068
    %8146 = vmatpush.msra.mxu0 %v8067
    %8147 = vmatpush.msra.mxu0 %v8066
    %8148 = vmatpush.msra.mxu0 %v8065
    %8149 = vmatpush.msra.mxu0 %v8064
    %8150 = vmatpush.msra.mxu0 %v8063
    %8151 = vmatpush.msra.mxu0 %v8062
    %8152 = vmatpush.msra.mxu0 %v8061
    %8153 = vmatpush.msra.mxu0 %v8060
    %8154 = vmatmul.f32.gmra.mxu0 %v8058
    %v8155 = vpop.f32.mrf.mxu0
    %v8156 = vadd.f32 %v8136, %v8155
    %8157 = vdwg.mxu0
    %s8158 = scalar_lea.vmem %s12, 4
    %v8159 = vld [vmem:[%s8158] sm:$0x3]
    %v8161 = vsel %vm8033, %v8159, 0
    %8163 = vmatpush.msra.mxu0 0.0
    %8164 = vmatpush.msra.mxu0 0.0
    %8165 = vmatpush.msra.mxu0 0.0
    %8166 = vmatpush.msra.mxu0 0.0
    %8167 = vmatpush.msra.mxu0 0.0
    %8168 = vmatpush.msra.mxu0 0.0
    %8169 = vmatpush.msra.mxu0 0.0
    %8170 = vmatpush.msra.mxu0 0.0
    %8171 = vmatpush.msra.mxu0 0.0
    %8172 = vmatpush.msra.mxu0 0.0
    %8173 = vmatpush.msra.mxu0 0.0
    %8174 = vmatpush.msra.mxu0 0.0
    %8175 = vmatpush.msra.mxu0 0.0
    %8176 = vmatpush.msra.mxu0 %v8038
    %8177 = vmatpush.msra.mxu0 %v8030
    %8178 = vmatpush.msra.mxu0 %v8029
    %8179 = vmatmul.f32.gmra.mxu0 %v8161
    %v8180 = vpop.f32.mrf.mxu0
    %v8181 = vadd.f32 0.0, %v8180
    %8182 = vdwg.mxu0
    %s8183 = scalar_lea.vmem [#allocation7], 256
    %v8184 = vld [vmem:[%s8183] sm:$0xff]
    %v8185 = vld [vmem:[%s8183 + $0x8] sm:$0xff]
    %v8186 = vld [vmem:[%s8183 + $0x10] sm:$0xff]
    %v8187 = vld [vmem:[%s8183 + $0x18] sm:$0xff]
    %v8188 = vld [vmem:[%s8183 + $0x20] sm:$0xff]
    %v8189 = vld [vmem:[%s8183 + $0x28] sm:$0xff]
    %v8190 = vld [vmem:[%s8183 + $0x30] sm:$0xff]
    %v8191 = vld [vmem:[%s8183 + $0x38] sm:$0xff]
    %v8192 = vld [vmem:[%s8183 + $0x40] sm:$0xff]
    %v8193 = vld [vmem:[%s8183 + $0x48] sm:$0xff]
    %v8194 = vld [vmem:[%s8183 + $0x50] sm:$0xff]
    %v8195 = vld [vmem:[%s8183 + $0x58] sm:$0xff]
    %v8196 = vld [vmem:[%s8183 + $0x60] sm:$0xff]
    %v8197 = vld [vmem:[%s8183 + $0x68] sm:$0xff]
    %v8198 = vld [vmem:[%s8183 + $0x70] sm:$0xff]
    %v8199 = vld [vmem:[%s8183 + $0x78] sm:$0xff]
    %8200 = vmatpush.msra.mxu0 %v8199
    %8201 = vmatpush.msra.mxu0 %v8198
    %8202 = vmatpush.msra.mxu0 %v8197
    %8203 = vmatpush.msra.mxu0 %v8196
    %8204 = vmatpush.msra.mxu0 %v8195
    %8205 = vmatpush.msra.mxu0 %v8194
    %8206 = vmatpush.msra.mxu0 %v8193
    %8207 = vmatpush.msra.mxu0 %v8192
    %8208 = vmatpush.msra.mxu0 %v8191
    %8209 = vmatpush.msra.mxu0 %v8190
    %8210 = vmatpush.msra.mxu0 %v8189
    %8211 = vmatpush.msra.mxu0 %v8188
    %8212 = vmatpush.msra.mxu0 %v8187
    %8213 = vmatpush.msra.mxu0 %v8186
    %8214 = vmatpush.msra.mxu0 %v8185
    %8215 = vmatpush.msra.mxu0 %v8184
    %8216 = vmatmul.f32.gmra.mxu0 %v8181
    %v8217 = vpop.f32.mrf.mxu0
    %v8218 = vadd.f32 0.0, %v8217
    %8219 = vdwg.mxu0
    %v8220 = vadd.f32 %v8156, %v8218
    %s8221 = scalar_lea.vmem %s12, 6
    %v8222 = vld [vmem:[%s8221] sm:$0x3]
    %v8224 = vsel %vm8033, %v8222, 0
    %8226 = vmatpush.msra.mxu0 0.0
    %8227 = vmatpush.msra.mxu0 0.0
    %8228 = vmatpush.msra.mxu0 0.0
    %8229 = vmatpush.msra.mxu0 0.0
    %8230 = vmatpush.msra.mxu0 0.0
    %8231 = vmatpush.msra.mxu0 0.0
    %8232 = vmatpush.msra.mxu0 0.0
    %8233 = vmatpush.msra.mxu0 0.0
    %8234 = vmatpush.msra.mxu0 0.0
    %8235 = vmatpush.msra.mxu0 0.0
    %8236 = vmatpush.msra.mxu0 0.0
    %8237 = vmatpush.msra.mxu0 0.0
    %8238 = vmatpush.msra.mxu0 0.0
    %8239 = vmatpush.msra.mxu0 %v8038
    %8240 = vmatpush.msra.mxu0 %v8030
    %8241 = vmatpush.msra.mxu0 %v8029
    %8242 = vmatmul.f32.gmra.mxu0 %v8224
    %v8243 = vpop.f32.mrf.mxu0
    %v8244 = vadd.f32 0.0, %v8243
    %8245 = vdwg.mxu0
    %s8246 = scalar_lea.vmem [#allocation7], 384
    %v8247 = vld [vmem:[%s8246] sm:$0xff]
    %v8248 = vld [vmem:[%s8246 + $0x8] sm:$0xff]
    %v8249 = vld [vmem:[%s8246 + $0x10] sm:$0xff]
    %v8250 = vld [vmem:[%s8246 + $0x18] sm:$0xff]
    %v8251 = vld [vmem:[%s8246 + $0x20] sm:$0xff]
    %v8252 = vld [vmem:[%s8246 + $0x28] sm:$0xff]
    %v8253 = vld [vmem:[%s8246 + $0x30] sm:$0xff]
    %v8254 = vld [vmem:[%s8246 + $0x38] sm:$0xff]
    %v8255 = vld [vmem:[%s8246 + $0x40] sm:$0xff]
    %v8256 = vld [vmem:[%s8246 + $0x48] sm:$0xff]
    %v8257 = vld [vmem:[%s8246 + $0x50] sm:$0xff]
    %v8258 = vld [vmem:[%s8246 + $0x58] sm:$0xff]
    %v8259 = vld [vmem:[%s8246 + $0x60] sm:$0xff]
    %v8260 = vld [vmem:[%s8246 + $0x68] sm:$0xff]
    %v8261 = vld [vmem:[%s8246 + $0x70] sm:$0xff]
    %v8262 = vld [vmem:[%s8246 + $0x78] sm:$0xff]
    %8263 = vmatpush.msra.mxu0 %v8262
    %8264 = vmatpush.msra.mxu0 %v8261
    %8265 = vmatpush.msra.mxu0 %v8260
    %8266 = vmatpush.msra.mxu0 %v8259
    %8267 = vmatpush.msra.mxu0 %v8258
    %8268 = vmatpush.msra.mxu0 %v8257
    %8269 = vmatpush.msra.mxu0 %v8256
    %8270 = vmatpush.msra.mxu0 %v8255
    %8271 = vmatpush.msra.mxu0 %v8254
    %8272 = vmatpush.msra.mxu0 %v8253
    %8273 = vmatpush.msra.mxu0 %v8252
    %8274 = vmatpush.msra.mxu0 %v8251
    %8275 = vmatpush.msra.mxu0 %v8250
    %8276 = vmatpush.msra.mxu0 %v8249
    %8277 = vmatpush.msra.mxu0 %v8248
    %8278 = vmatpush.msra.mxu0 %v8247
    %8279 = vmatmul.f32.gmra.mxu0 %v8244
    %v8280 = vpop.f32.mrf.mxu0
    %v8281 = vadd.f32 0.0, %v8280
    %8282 = vdwg.mxu0
    %v8283 = vadd.f32 %v8220, %v8281
    %s8284 = scalar_lea.vmem %s12, 8
    %v8285 = vld [vmem:[%s8284] sm:$0x3]
    %v8287 = vsel %vm8033, %v8285, 0
    %8289 = vmatpush.msra.mxu0 0.0
    %8290 = vmatpush.msra.mxu0 0.0
    %8291 = vmatpush.msra.mxu0 0.0
    %8292 = vmatpush.msra.mxu0 0.0
    %8293 = vmatpush.msra.mxu0 0.0
    %8294 = vmatpush.msra.mxu0 0.0
    %8295 = vmatpush.msra.mxu0 0.0
    %8296 = vmatpush.msra.mxu0 0.0
    %8297 = vmatpush.msra.mxu0 0.0
    %8298 = vmatpush.msra.mxu0 0.0
    %8299 = vmatpush.msra.mxu0 0.0
    %8300 = vmatpush.msra.mxu0 0.0
    %8301 = vmatpush.msra.mxu0 0.0
    %8302 = vmatpush.msra.mxu0 %v8038
    %8303 = vmatpush.msra.mxu0 %v8030
    %8304 = vmatpush.msra.mxu0 %v8029
    %8305 = vmatmul.f32.gmra.mxu0 %v8287
    %v8306 = vpop.f32.mrf.mxu0
    %v8307 = vadd.f32 0.0, %v8306
    %8308 = vdwg.mxu0
    %s8309 = scalar_lea.vmem [#allocation7], 512
    %v8310 = vld [vmem:[%s8309] sm:$0xff]
    %v8311 = vld [vmem:[%s8309 + $0x8] sm:$0xff]
    %v8312 = vld [vmem:[%s8309 + $0x10] sm:$0xff]
    %v8313 = vld [vmem:[%s8309 + $0x18] sm:$0xff]
    %v8314 = vld [vmem:[%s8309 + $0x20] sm:$0xff]
    %v8315 = vld [vmem:[%s8309 + $0x28] sm:$0xff]
    %v8316 = vld [vmem:[%s8309 + $0x30] sm:$0xff]
    %v8317 = vld [vmem:[%s8309 + $0x38] sm:$0xff]
    %v8318 = vld [vmem:[%s8309 + $0x40] sm:$0xff]
    %v8319 = vld [vmem:[%s8309 + $0x48] sm:$0xff]
    %v8320 = vld [vmem:[%s8309 + $0x50] sm:$0xff]
    %v8321 = vld [vmem:[%s8309 + $0x58] sm:$0xff]
    %v8322 = vld [vmem:[%s8309 + $0x60] sm:$0xff]
    %v8323 = vld [vmem:[%s8309 + $0x68] sm:$0xff]
    %v8324 = vld [vmem:[%s8309 + $0x70] sm:$0xff]
    %v8325 = vld [vmem:[%s8309 + $0x78] sm:$0xff]
    %8326 = vmatpush.msra.mxu0 %v8325
    %8327 = vmatpush.msra.mxu0 %v8324
    %8328 = vmatpush.msra.mxu0 %v8323
    %8329 = vmatpush.msra.mxu0 %v8322
    %8330 = vmatpush.msra.mxu0 %v8321
    %8331 = vmatpush.msra.mxu0 %v8320
    %8332 = vmatpush.msra.mxu0 %v8319
    %8333 = vmatpush.msra.mxu0 %v8318
    %8334 = vmatpush.msra.mxu0 %v8317
    %8335 = vmatpush.msra.mxu0 %v8316
    %8336 = vmatpush.msra.mxu0 %v8315
    %8337 = vmatpush.msra.mxu0 %v8314
    %8338 = vmatpush.msra.mxu0 %v8313
    %8339 = vmatpush.msra.mxu0 %v8312
    %8340 = vmatpush.msra.mxu0 %v8311
    %8341 = vmatpush.msra.mxu0 %v8310
    %8342 = vmatmul.f32.gmra.mxu0 %v8307
    %v8343 = vpop.f32.mrf.mxu0
    %v8344 = vadd.f32 0.0, %v8343
    %8345 = vdwg.mxu0
    %v8346 = vadd.f32 %v8283, %v8344
    %s8347 = scalar_lea.vmem %s12, 10
    %v8348 = vld [vmem:[%s8347] sm:$0x3]
    %v8350 = vsel %vm8033, %v8348, 0
    %8352 = vmatpush.msra.mxu0 0.0
    %8353 = vmatpush.msra.mxu0 0.0
    %8354 = vmatpush.msra.mxu0 0.0
    %8355 = vmatpush.msra.mxu0 0.0
    %8356 = vmatpush.msra.mxu0 0.0
    %8357 = vmatpush.msra.mxu0 0.0
    %8358 = vmatpush.msra.mxu0 0.0
    %8359 = vmatpush.msra.mxu0 0.0
    %8360 = vmatpush.msra.mxu0 0.0
    %8361 = vmatpush.msra.mxu0 0.0
    %8362 = vmatpush.msra.mxu0 0.0
    %8363 = vmatpush.msra.mxu0 0.0
    %8364 = vmatpush.msra.mxu0 0.0
    %8365 = vmatpush.msra.mxu0 %v8038
    %8366 = vmatpush.msra.mxu0 %v8030
    %8367 = vmatpush.msra.mxu0 %v8029
    %8368 = vmatmul.f32.gmra.mxu0 %v8350
    %v8369 = vpop.f32.mrf.mxu0
    %v8370 = vadd.f32 0.0, %v8369
    %8371 = vdwg.mxu0
    %s8372 = scalar_lea.vmem [#allocation7], 640
    %v8373 = vld [vmem:[%s8372] sm:$0xff]
    %v8374 = vld [vmem:[%s8372 + $0x8] sm:$0xff]
    %v8375 = vld [vmem:[%s8372 + $0x10] sm:$0xff]
    %v8376 = vld [vmem:[%s8372 + $0x18] sm:$0xff]
    %v8377 = vld [vmem:[%s8372 + $0x20] sm:$0xff]
    %v8378 = vld [vmem:[%s8372 + $0x28] sm:$0xff]
    %v8379 = vld [vmem:[%s8372 + $0x30] sm:$0xff]
    %v8380 = vld [vmem:[%s8372 + $0x38] sm:$0xff]
    %v8381 = vld [vmem:[%s8372 + $0x40] sm:$0xff]
    %v8382 = vld [vmem:[%s8372 + $0x48] sm:$0xff]
    %v8383 = vld [vmem:[%s8372 + $0x50] sm:$0xff]
    %v8384 = vld [vmem:[%s8372 + $0x58] sm:$0xff]
    %v8385 = vld [vmem:[%s8372 + $0x60] sm:$0xff]
    %v8386 = vld [vmem:[%s8372 + $0x68] sm:$0xff]
    %v8387 = vld [vmem:[%s8372 + $0x70] sm:$0xff]
    %v8388 = vld [vmem:[%s8372 + $0x78] sm:$0xff]
    %8389 = vmatpush.msra.mxu0 %v8388
    %8390 = vmatpush.msra.mxu0 %v8387
    %8391 = vmatpush.msra.mxu0 %v8386
    %8392 = vmatpush.msra.mxu0 %v8385
    %8393 = vmatpush.msra.mxu0 %v8384
    %8394 = vmatpush.msra.mxu0 %v8383
    %8395 = vmatpush.msra.mxu0 %v8382
    %8396 = vmatpush.msra.mxu0 %v8381
    %8397 = vmatpush.msra.mxu0 %v8380
    %8398 = vmatpush.msra.mxu0 %v8379
    %8399 = vmatpush.msra.mxu0 %v8378
    %8400 = vmatpush.msra.mxu0 %v8377
    %8401 = vmatpush.msra.mxu0 %v8376
    %8402 = vmatpush.msra.mxu0 %v8375
    %8403 = vmatpush.msra.mxu0 %v8374
    %8404 = vmatpush.msra.mxu0 %v8373
    %8405 = vmatmul.f32.gmra.mxu0 %v8370
    %v8406 = vpop.f32.mrf.mxu0
    %v8407 = vadd.f32 0.0, %v8406
    %8408 = vdwg.mxu0
    %v8409 = vadd.f32 %v8346, %v8407
    %s8410 = scalar_lea.vmem %s12, 12
    %v8411 = vld [vmem:[%s8410] sm:$0x3]
    %v8413 = vsel %vm8033, %v8411, 0
    %8415 = vmatpush.msra.mxu0 0.0
    %8416 = vmatpush.msra.mxu0 0.0
    %8417 = vmatpush.msra.mxu0 0.0
    %8418 = vmatpush.msra.mxu0 0.0
    %8419 = vmatpush.msra.mxu0 0.0
    %8420 = vmatpush.msra.mxu0 0.0
    %8421 = vmatpush.msra.mxu0 0.0
    %8422 = vmatpush.msra.mxu0 0.0
    %8423 = vmatpush.msra.mxu0 0.0
    %8424 = vmatpush.msra.mxu0 0.0
    %8425 = vmatpush.msra.mxu0 0.0
    %8426 = vmatpush.msra.mxu0 0.0
    %8427 = vmatpush.msra.mxu0 0.0
    %8428 = vmatpush.msra.mxu0 %v8038
    %8429 = vmatpush.msra.mxu0 %v8030
    %8430 = vmatpush.msra.mxu0 %v8029
    %8431 = vmatmul.f32.gmra.mxu0 %v8413
    %v8432 = vpop.f32.mrf.mxu0
    %v8433 = vadd.f32 0.0, %v8432
    %8434 = vdwg.mxu0
    %s8435 = scalar_lea.vmem [#allocation7], 768
    %v8436 = vld [vmem:[%s8435] sm:$0xff]
    %v8437 = vld [vmem:[%s8435 + $0x8] sm:$0xff]
    %v8438 = vld [vmem:[%s8435 + $0x10] sm:$0xff]
    %v8439 = vld [vmem:[%s8435 + $0x18] sm:$0xff]
    %v8440 = vld [vmem:[%s8435 + $0x20] sm:$0xff]
    %v8441 = vld [vmem:[%s8435 + $0x28] sm:$0xff]
    %v8442 = vld [vmem:[%s8435 + $0x30] sm:$0xff]
    %v8443 = vld [vmem:[%s8435 + $0x38] sm:$0xff]
    %v8444 = vld [vmem:[%s8435 + $0x40] sm:$0xff]
    %v8445 = vld [vmem:[%s8435 + $0x48] sm:$0xff]
    %v8446 = vld [vmem:[%s8435 + $0x50] sm:$0xff]
    %v8447 = vld [vmem:[%s8435 + $0x58] sm:$0xff]
    %v8448 = vld [vmem:[%s8435 + $0x60] sm:$0xff]
    %v8449 = vld [vmem:[%s8435 + $0x68] sm:$0xff]
    %v8450 = vld [vmem:[%s8435 + $0x70] sm:$0xff]
    %v8451 = vld [vmem:[%s8435 + $0x78] sm:$0xff]
    %8452 = vmatpush.msra.mxu0 %v8451
    %8453 = vmatpush.msra.mxu0 %v8450
    %8454 = vmatpush.msra.mxu0 %v8449
    %8455 = vmatpush.msra.mxu0 %v8448
    %8456 = vmatpush.msra.mxu0 %v8447
    %8457 = vmatpush.msra.mxu0 %v8446
    %8458 = vmatpush.msra.mxu0 %v8445
    %8459 = vmatpush.msra.mxu0 %v8444
    %8460 = vmatpush.msra.mxu0 %v8443
    %8461 = vmatpush.msra.mxu0 %v8442
    %8462 = vmatpush.msra.mxu0 %v8441
    %8463 = vmatpush.msra.mxu0 %v8440
    %8464 = vmatpush.msra.mxu0 %v8439
    %8465 = vmatpush.msra.mxu0 %v8438
    %8466 = vmatpush.msra.mxu0 %v8437
    %8467 = vmatpush.msra.mxu0 %v8436
    %8468 = vmatmul.f32.gmra.mxu0 %v8433
    %v8469 = vpop.f32.mrf.mxu0
    %v8470 = vadd.f32 0.0, %v8469
    %8471 = vdwg.mxu0
    %v8472 = vadd.f32 %v8409, %v8470
    %s8473 = scalar_lea.vmem %s12, 14
    %v8474 = vld [vmem:[%s8473] sm:$0x3]
    %v8476 = vsel %vm8033, %v8474, 0
    %8478 = vmatpush.msra.mxu0 0.0
    %8479 = vmatpush.msra.mxu0 0.0
    %8480 = vmatpush.msra.mxu0 0.0
    %8481 = vmatpush.msra.mxu0 0.0
    %8482 = vmatpush.msra.mxu0 0.0
    %8483 = vmatpush.msra.mxu0 0.0
    %8484 = vmatpush.msra.mxu0 0.0
    %8485 = vmatpush.msra.mxu0 0.0
    %8486 = vmatpush.msra.mxu0 0.0
    %8487 = vmatpush.msra.mxu0 0.0
    %8488 = vmatpush.msra.mxu0 0.0
    %8489 = vmatpush.msra.mxu0 0.0
    %8490 = vmatpush.msra.mxu0 0.0
    %8491 = vmatpush.msra.mxu0 %v8038
    %8492 = vmatpush.msra.mxu0 %v8030
    %8493 = vmatpush.msra.mxu0 %v8029
    %8494 = vmatmul.f32.gmra.mxu0 %v8476
    %v8495 = vpop.f32.mrf.mxu0
    %v8496 = vadd.f32 0.0, %v8495
    %8497 = vdwg.mxu0
    %s8498 = scalar_lea.vmem [#allocation7], 896
    %v8499 = vld [vmem:[%s8498] sm:$0xff]
    %v8500 = vld [vmem:[%s8498 + $0x8] sm:$0xff]
    %v8501 = vld [vmem:[%s8498 + $0x10] sm:$0xff]
    %v8502 = vld [vmem:[%s8498 + $0x18] sm:$0xff]
    %v8503 = vld [vmem:[%s8498 + $0x20] sm:$0xff]
    %v8504 = vld [vmem:[%s8498 + $0x28] sm:$0xff]
    %v8505 = vld [vmem:[%s8498 + $0x30] sm:$0xff]
    %v8506 = vld [vmem:[%s8498 + $0x38] sm:$0xff]
    %v8507 = vld [vmem:[%s8498 + $0x40] sm:$0xff]
    %v8508 = vld [vmem:[%s8498 + $0x48] sm:$0xff]
    %v8509 = vld [vmem:[%s8498 + $0x50] sm:$0xff]
    %v8510 = vld [vmem:[%s8498 + $0x58] sm:$0xff]
    %v8511 = vld [vmem:[%s8498 + $0x60] sm:$0xff]
    %v8512 = vld [vmem:[%s8498 + $0x68] sm:$0xff]
    %v8513 = vld [vmem:[%s8498 + $0x70] sm:$0xff]
    %v8514 = vld [vmem:[%s8498 + $0x78] sm:$0xff]
    %8515 = vmatpush.msra.mxu0 %v8514
    %8516 = vmatpush.msra.mxu0 %v8513
    %8517 = vmatpush.msra.mxu0 %v8512
    %8518 = vmatpush.msra.mxu0 %v8511
    %8519 = vmatpush.msra.mxu0 %v8510
    %8520 = vmatpush.msra.mxu0 %v8509
    %8521 = vmatpush.msra.mxu0 %v8508
    %8522 = vmatpush.msra.mxu0 %v8507
    %8523 = vmatpush.msra.mxu0 %v8506
    %8524 = vmatpush.msra.mxu0 %v8505
    %8525 = vmatpush.msra.mxu0 %v8504
    %8526 = vmatpush.msra.mxu0 %v8503
    %8527 = vmatpush.msra.mxu0 %v8502
    %8528 = vmatpush.msra.mxu0 %v8501
    %8529 = vmatpush.msra.mxu0 %v8500
    %8530 = vmatpush.msra.mxu0 %v8499
    %8531 = vmatmul.f32.gmra.mxu0 %v8496
    %v8532 = vpop.f32.mrf.mxu0
    %v8533 = vadd.f32 0.0, %v8532
    %8534 = vdwg.mxu0
    %v8535 = vadd.f32 %v8472, %v8533
    %s8536 = scalar_lea.vmem %s12, 16
    %v8537 = vld [vmem:[%s8536] sm:$0x3]
    %v8539 = vsel %vm8033, %v8537, 0
    %8541 = vmatpush.msra.mxu0 0.0
    %8542 = vmatpush.msra.mxu0 0.0
    %8543 = vmatpush.msra.mxu0 0.0
    %8544 = vmatpush.msra.mxu0 0.0
    %8545 = vmatpush.msra.mxu0 0.0
    %8546 = vmatpush.msra.mxu0 0.0
    %8547 = vmatpush.msra.mxu0 0.0
    %8548 = vmatpush.msra.mxu0 0.0
    %8549 = vmatpush.msra.mxu0 0.0
    %8550 = vmatpush.msra.mxu0 0.0
    %8551 = vmatpush.msra.mxu0 0.0
    %8552 = vmatpush.msra.mxu0 0.0
    %8553 = vmatpush.msra.mxu0 0.0
    %8554 = vmatpush.msra.mxu0 %v8038
    %8555 = vmatpush.msra.mxu0 %v8030
    %8556 = vmatpush.msra.mxu0 %v8029
    %8557 = vmatmul.f32.gmra.mxu0 %v8539
    %v8558 = vpop.f32.mrf.mxu0
    %v8559 = vadd.f32 0.0, %v8558
    %8560 = vdwg.mxu0
    %s8561 = scalar_lea.vmem [#allocation7], 1024
    %v8562 = vld [vmem:[%s8561] sm:$0xff]
    %v8563 = vld [vmem:[%s8561 + $0x8] sm:$0xff]
    %v8564 = vld [vmem:[%s8561 + $0x10] sm:$0xff]
    %v8565 = vld [vmem:[%s8561 + $0x18] sm:$0xff]
    %v8566 = vld [vmem:[%s8561 + $0x20] sm:$0xff]
    %v8567 = vld [vmem:[%s8561 + $0x28] sm:$0xff]
    %v8568 = vld [vmem:[%s8561 + $0x30] sm:$0xff]
    %v8569 = vld [vmem:[%s8561 + $0x38] sm:$0xff]
    %v8570 = vld [vmem:[%s8561 + $0x40] sm:$0xff]
    %v8571 = vld [vmem:[%s8561 + $0x48] sm:$0xff]
    %v8572 = vld [vmem:[%s8561 + $0x50] sm:$0xff]
    %v8573 = vld [vmem:[%s8561 + $0x58] sm:$0xff]
    %v8574 = vld [vmem:[%s8561 + $0x60] sm:$0xff]
    %v8575 = vld [vmem:[%s8561 + $0x68] sm:$0xff]
    %v8576 = vld [vmem:[%s8561 + $0x70] sm:$0xff]
    %v8577 = vld [vmem:[%s8561 + $0x78] sm:$0xff]
    %8578 = vmatpush.msra.mxu0 %v8577
    %8579 = vmatpush.msra.mxu0 %v8576
    %8580 = vmatpush.msra.mxu0 %v8575
    %8581 = vmatpush.msra.mxu0 %v8574
    %8582 = vmatpush.msra.mxu0 %v8573
    %8583 = vmatpush.msra.mxu0 %v8572
    %8584 = vmatpush.msra.mxu0 %v8571
    %8585 = vmatpush.msra.mxu0 %v8570
    %8586 = vmatpush.msra.mxu0 %v8569
    %8587 = vmatpush.msra.mxu0 %v8568
    %8588 = vmatpush.msra.mxu0 %v8567
    %8589 = vmatpush.msra.mxu0 %v8566
    %8590 = vmatpush.msra.mxu0 %v8565
    %8591 = vmatpush.msra.mxu0 %v8564
    %8592 = vmatpush.msra.mxu0 %v8563
    %8593 = vmatpush.msra.mxu0 %v8562
    %8594 = vmatmul.f32.gmra.mxu0 %v8559
    %v8595 = vpop.f32.mrf.mxu0
    %v8596 = vadd.f32 0.0, %v8595
    %8597 = vdwg.mxu0
    %v8598 = vadd.f32 %v8535, %v8596
    %v8599 = vld [vmem:[%s14] sm:$0x1]
    %v8600 = vld [vmem:[%s15] sm:$0x1]
    %v8601 = vsel %vm349, %v8598, 0.0
    %v8602 = vrot.slane %v8601, 4
    %v8603 = vadd.f32 %v8601, %v8602
    %v8604 = vrot.slane %v8603, 2
    %v8605 = vadd.f32 %v8603, %v8604
    %v8606 = vrot.slane %v8605, 1
    %v8607 = vadd.f32 %v8605, %v8606
    %v8608 = vrcp.pop 2.0
    %v8609 = vmul.f32 2.0, %v8608
    %v8610 = vsub.f32 1.0, %v8609
    %v8611 = vmul.f32 %v8608, %v8610
    %v8612 = vadd.f32 %v8608, %v8611
    %vm8613 = vweird.f32 %v8608
    %v8614 = vsel %vm8613, %v8608, %v8612
    %v8615 = vmul.f32 %v8607, %v8614
    %v8616 = vsub.f32 %v8598, %v8615
    %v8617 = vmul.f32 %v8616, %v8616
    %v8618 = vsel %vm349, %v8617, 0.0
    %v8619 = vrot.slane %v8618, 4
    %v8620 = vadd.f32 %v8618, %v8619
    %v8621 = vrot.slane %v8620, 2
    %v8622 = vadd.f32 %v8620, %v8621
    %v8623 = vrot.slane %v8622, 1
    %v8624 = vadd.f32 %v8622, %v8623
    %v8625 = vmul.f32 %v8624, %v8614
    %v8627 = vperm.slane %v8599, 0
    %v8629 = vmul.f32 %v8627, %v8616
    %v8630 = vadd.f32 %v8625, 1e-05
    %v8631 = vrsqrt.pop %v8630
    %v8632 = vmul.f32 %v8631, %v8630
    %v8633 = vmul.f32 %v8632, %v8631
    %v8634 = vmul.f32 0.5, %v8633
    %v8635 = vsub.f32 1.5, %v8634
    %v8636 = vmul.f32 %v8631, %v8635
    %vm8637 = vweird.f32 %v8630
    %vm8638 = vweird.f32 %v8631
    %vm8639 = vmor %vm8637, %vm8638
    %v8640 = vsel %vm8639, %v8631, %v8636
    %v8641 = vmul.f32 %v8629, %v8640
    %v8643 = vperm.slane %v8600, 0
    %v8645 = vadd.f32 %v8641, %v8643
    %8646 = vst [vmem:[#allocation8] sm:$0x3] %v8645
    // Predicated region
    $region78: #{cnn_forward_pallas.1} parent=1 // pred_check
      _
    $region79: #{cnn_forward_pallas.1} parent=1 // pred_check_branch
      %8648 = sbr.rel (0) target = $region81
    $region80: #{cnn_forward_pallas.1} parent=1 // pred_region
      %8650 = vsyncadd [#allocation4], 0
      %s8652 = sshll.u32 [#allocation8], 4
      %s8653 = int_to_ptr.vmem [resolvable:$true] %s8652
      %s8654 = sshll.u32 %s16, 4
      %s8655 = int_to_ptr.hbm [resolvable:$true] %s8654
      %8657 = dma.vmem_to_hbm [thread:$0]  %s8653, 32, %s8655, [#allocation4]
    $region81: #{cnn_forward_pallas.1} parent=1 // pred_fallthru
      _
    // Predicated region
    $region82: #{cnn_forward_pallas.1} parent=1 // pred_check
      _
    $region83: #{cnn_forward_pallas.1} parent=1 // pred_check_branch
      %8659 = sbr.rel (0) target = $region85
    $region84: #{cnn_forward_pallas.1} parent=1 // pred_region
      %8661 = dma.done [#allocation4], 32
    $region85: #{cnn_forward_pallas.1} parent=1 // pred_fallthru
      _
    %8662 = vsyncpa [#allocation3], 1
    %8663 = vsyncpa [#allocation6], 1
    %8664 = vsyncpa [#allocation4], 1

</llo_original>
